<compile_context>
chip_gen: v7x
topology: tpu7x:2x2x1
jax: 0.10.0
libtpu: 0.0.40
codegen_flags: <defaults>
</compile_context>

<pallas_src>
import jax
import jax.numpy as jnp
from jax.experimental import pallas as pl
from jax.experimental.pallas import tpu as pltpu

C_OUT = 16
H = W = 64                      # input spatial (1 channel); fc1 expects 16*32*32 features
HP = WP = 32                    # spatial after 2x2 maxpool
FC_HIDDEN = 128
NUM_CLASSES = 4
K_FLAT = C_OUT * HP * WP        # 16384
CW = C_OUT * W                  # 1024   conv-slab lane width: col = par*512 + oc*32 + (j//2)
PW = C_OUT * WP                 # 512    pooled lane width:    col = oc*32 + iw
KC = 256                        # fused conv reduction depth (3*66 = 198, zero-padded to 256)


def _num_tensorcores():
    """2 on chips with two TensorCores per device (v7x / megacore v4/v5p), else 1."""
    try:
        kind = jax.devices()[0].device_kind.lower()
    except Exception:
        return 1
    return 2 if any(t in kind for t in ("v7", "7x", "v4", "v5p")) else 1


# --------------------------------------------------------------------------------------
# Kernel 1: conv(1->16, 3x3) + maxpool(2x2) + bias + ReLU, TB images per grid step.
# One fused-K MXU matmul per step:
#     y[(p, b, ih) row, (par, oc, jh) col] = conv value at (b, oc, 2*ih+p, 2*jh+par)
# so the 2x2 pool is max over the row-parity halves then over the lane-parity halves
# (aligned slices, pure VPU).  Bias + ReLU commute with max and run on the pooled tile.
# --------------------------------------------------------------------------------------
def conv_relu_pool_kernel(x_ref, c_ref, brow_ref, o_ref):
    # x_ref:    (2, TB, 32, 256) bf16  kh-fused input rows, leading axis = output-row parity
    # c_ref:    (256, 1024)      bf16  conv-as-matmul weights, col = par*512 + oc*32 + j//2
    # brow_ref: (1, 512)         f32   per-channel bias broadcast over iw
    # o_ref:    (TB, 32, 512)    bf16  pooled features, col = oc*32 + iw
    tb = x_ref.shape[1]
    half = tb * HP                                    # rows per output-row-parity group
    a = x_ref[...].reshape(2 * half, KC)
    # single fused-K conv matmul (MXU), f32 accumulation
    y = jnp.dot(a, c_ref[...], preferred_element_type=jnp.float32)   # (2*half, 1024)
    # 2x2 maxpool: both reductions are maxes of aligned contiguous slices
    yh = jnp.maximum(y[:half, :], y[half:, :])        # pool over rows (i parity)
    p = jnp.maximum(yh[:, :PW], yh[:, PW:])           # pool over cols (j parity)
    # bias + ReLU after pooling (exactly commute); lane-dense bf16 store
    p = jnp.maximum(p + brow_ref[...], 0.0)
    o_ref[...] = p.reshape(tb, HP, PW).astype(o_ref.dtype)


def conv_relu_pool(x_slab, cmat, brow, *, tb):
    B = x_slab.shape[1]
    assert B % tb == 0
    return pl.pallas_call(
        conv_relu_pool_kernel,
        out_shape=jax.ShapeDtypeStruct((B, HP, PW), jnp.bfloat16),
        grid_spec=pltpu.PrefetchScalarGridSpec(
            num_scalar_prefetch=0,
            grid=(B // tb,),
            in_specs=[
                pl.BlockSpec((2, tb, HP, KC), lambda i: (0, i, 0, 0)),
                pl.BlockSpec((KC, CW), lambda i: (0, 0)),
                pl.BlockSpec((1, PW), lambda i: (0, 0)),
            ],
            out_specs=pl.BlockSpec((tb, HP, PW), lambda i: (i, 0, 0)),
        ),
        compiler_params=pltpu.CompilerParams(dimension_semantics=("parallel",)),
    )(x_slab, cmat, brow)


# --------------------------------------------------------------------------------------
# Kernel 2: fc1 (16384 -> 128).  Grid = (NH hidden slices, batch tiles), both "parallel".
# Each step does the FULL 16384 reduction in one bf16 matmul with f32 accumulation and a
# lane-dense (BT, HH) f32 store.  fc2 (128 -> C) + b2 is a tiny f32 matmul in the wrapper.
# --------------------------------------------------------------------------------------
def fc1_kernel(x_ref, w1_ref, b1_ref, h_ref):
    # x_ref:  (BT, 16384)     bf16
    # w1_ref: (1, 16384, HH)  bf16  one hidden-unit slice of fc1's (feature-permuted) weight
    # b1_ref: (1, 1, HH)      f32
    # h_ref:  (1, BT, HH)     f32
    h_ref[0] = (jnp.dot(x_ref[...], w1_ref[0], preferred_element_type=jnp.float32)
                + b1_ref[0])


def fc1_parts(x_flat, w1s, b1s, *, bt):
    B, K = x_flat.shape
    nh, _, hh = w1s.shape
    assert B % bt == 0
    return pl.pallas_call(
        fc1_kernel,
        out_shape=jax.ShapeDtypeStruct((nh, B, hh), jnp.float32),
        grid_spec=pltpu.PrefetchScalarGridSpec(
            num_scalar_prefetch=0,
            grid=(nh, B // bt),
            in_specs=[
                pl.BlockSpec((bt, K), lambda n, j: (j, 0)),
                pl.BlockSpec((1, K, hh), lambda n, j: (n, 0, 0)),
                pl.BlockSpec((1, 1, hh), lambda n, j: (n, 0, 0)),
            ],
            out_specs=pl.BlockSpec((1, bt, hh), lambda n, j: (n, j, 0)),
        ),
        compiler_params=pltpu.CompilerParams(
            dimension_semantics=("parallel", "parallel")),
    )(x_flat, w1s, b1s)


# --------------------------------------------------------------------------------------
# Parameter preparation (plain JAX, done once).
# --------------------------------------------------------------------------------------
def prepare_params(params, nh=None):
    wc, bc, w1, b1, w2, b2 = params
    if nh is None:
        nh = _num_tensorcores()          # hidden split only pays off with >=2 TensorCores
    assert FC_HIDDEN % nh == 0
    hh = FC_HIDDEN // nh

    # conv-as-matmul weights: row = kh*66 + c (padded input column), padded to KC=256;
    # col = par*512 + oc*32 + jh with output column j = 2*jh + par.
    eyes = jnp.stack([jnp.eye(W + 2, W, k=-kw, dtype=jnp.float32) for kw in range(3)])
    cmat = jnp.einsum('okw,wmj->kmoj', wc[:, 0, :, :], eyes)              # (3, 66, 16, 64)
    cmat = cmat.reshape(3, W + 2, C_OUT, WP, 2).transpose(0, 1, 4, 2, 3)  # (3,66,2,16,32)
    cmat = cmat.reshape(3 * (W + 2), CW)
    cmat = jnp.pad(cmat, ((0, KC - 3 * (W + 2)), (0, 0))).astype(jnp.bfloat16)   # (256,1024)

    brow = jnp.repeat(bc, WP)[None, :].astype(jnp.float32)                # (1, 512)

    # fc1: permute input-feature columns from torch order (oc,ih,iw) to the kernel's
    # flattened order (ih,oc,iw); transpose, cast bf16, split hidden units into nh slices.
    ihg = jnp.arange(HP)[:, None, None]
    ocg = jnp.arange(C_OUT)[None, :, None]
    iwg = jnp.arange(WP)[None, None, :]
    perm = (ocg * (HP * WP) + ihg * WP + iwg).reshape(-1)                 # (16384,)
    w1t = w1[:, perm].T.astype(jnp.bfloat16)                              # (16384, 128)
    w1s = jnp.stack([w1t[:, i * hh:(i + 1) * hh] for i in range(nh)])            # (nh,16384,hh)
    b1s = jnp.stack([b1[i * hh:(i + 1) * hh] for i in range(nh)])[:, None, :]    # (nh,1,hh)

    return dict(cmat=cmat, brow=brow, w1s=w1s, b1s=b1s.astype(jnp.float32),
                w2=w2.astype(jnp.float32), b2=b2.astype(jnp.float32))


def _pick_tb(B, min_steps):
    # biggest batch tile that divides B while keeping >= min_steps grid steps (megacore)
    for tb in (16, 8, 4, 2, 1):
        if B % tb == 0 and B // tb >= min_steps:
            return tb
    return B


def _pick_bt(B):
    # fc1 activation tile: full batch up to 512 rows (32 KiB/row bf16), else tile it
    if B <= 512:
        return B
    for bt in (512, 256, 128, 64, 32, 16, 8, 4, 2, 1):
        if B % bt == 0:
            return bt
    return 1


def _make_conv_slab(x):
    """(B,1,64,64) -> (2, B, 32, 256) bf16: rows grouped by output-row parity, lanes hold
    the three kh-shifted padded input rows (fused conv K), zero-padded 198 -> 256."""
    B = x.shape[0]
    xp = jnp.pad(x[:, 0], ((0, 0), (1, 1), (1, 1)))                       # (B, 66, 66)
    slab = jnp.concatenate([xp[:, kh:kh + H, :] for kh in range(3)], axis=2)  # (B, 64, 198)
    slab = jnp.pad(slab, ((0, 0), (0, 0), (0, KC - 3 * (W + 2))))         # (B, 64, 256)
    slab = slab.reshape(B, HP, 2, KC).transpose(2, 0, 1, 3)               # (2, B, 32, 256)
    return slab.astype(jnp.bfloat16)


@jax.jit
def cnn_forward(x, prep):
    B = x.shape[0]
    ntc = _num_tensorcores()
    x_slab = _make_conv_slab(x)
    pooled = conv_relu_pool(x_slab, prep['cmat'], prep['brow'],
                            tb=_pick_tb(B, min_steps=ntc))                # (B, 32, 512) bf16
    flat = pooled.reshape(B, K_FLAT)                                      # (ih, oc, iw) order
    h = fc1_parts(flat, prep['w1s'], prep['b1s'], bt=_pick_bt(B))         # (nh, B, hh) f32
    h = jnp.transpose(h, (1, 0, 2)).reshape(B, FC_HIDDEN)                 # (B, 128) f32
    # fc2 is a tiny (128 -> num_classes) matmul; done in f32 in the wrapper to keep the
    # Pallas outputs lane-dense (avoids 4-lane masked stores).
    return h @ prep['w2'].T + prep['b2'][None, :]


# --------------------------------------------------------------------------------------
# References
# --------------------------------------------------------------------------------------
def reference_forward_f32(x, params):
    wc, bc, w1, b1, w2, b2 = params
    y = jax.lax.conv_general_dilated(x, wc, (1, 1), 'SAME',
                                     dimension_numbers=('NCHW', 'OIHW', 'NCHW'))
    y = jnp.maximum(y + bc[None, :, None, None], 0.0)
    y = jax.lax.reduce_window(y, -jnp.inf, jax.lax.max, (1, 1, 2, 2), (1, 1, 2, 2), 'VALID')
    y = y.reshape(y.shape[0], -1)
    return (y @ w1.T + b1) @ w2.T + b2


def reference_forward_matched(x, params):
    # Mirrors the Pallas precision: bf16 MXU operands with f32 accumulation for conv/fc1,
    # pooling/bias/ReLU in f32, fc2 in f32.
    wc, bc, w1, b1, w2, b2 = params
    y = jax.lax.conv_general_dilated(x.astype(jnp.bfloat16), wc.astype(jnp.bfloat16),
                                     (1, 1), 'SAME',
                                     dimension_numbers=('NCHW', 'OIHW', 'NCHW'),
                                     preferred_element_type=jnp.float32)
    y = jnp.maximum(y + bc[None, :, None, None], 0.0)
    y = jax.lax.reduce_window(y, -jnp.inf, jax.lax.max, (1, 1, 2, 2), (1, 1, 2, 2), 'VALID')
    flat = y.reshape(y.shape[0], -1).astype(jnp.bfloat16)
    h = jnp.dot(flat, w1.T.astype(jnp.bfloat16), preferred_element_type=jnp.float32) + b1
    return jnp.dot(h, w2.T, preferred_element_type=jnp.float32) + b2


def make_params(key):
    ks = jax.random.split(key, 6)
    wc = jax.random.normal(ks[0], (C_OUT, 1, 3, 3), jnp.float32) * 0.1
    bc = jax.random.normal(ks[1], (C_OUT,), jnp.float32) * 0.1
    w1 = jax.random.normal(ks[2], (FC_HIDDEN, K_FLAT), jnp.float32) * (1.0 / 128.0)
    b1 = jax.random.normal(ks[3], (FC_HIDDEN,), jnp.float32) * 0.01
    w2 = jax.random.normal(ks[4], (NUM_CLASSES, FC_HIDDEN), jnp.float32) * 0.1
    b2 = jax.random.normal(ks[5], (NUM_CLASSES,), jnp.float32) * 0.01
    return (wc, bc, w1, b1, w2, b2)


if __name__ == "__main__":
    key = jax.random.PRNGKey(0)
    pkey, xkey = jax.random.split(key)
    params = make_params(pkey)
    # fc1 expects 16*32*32 features => input spatial is 64x64 with 1 channel
    x = jax.random.normal(xkey, (2, 1, H, W), jnp.float32)

    prep = prepare_params(params)
    out = jax.block_until_ready(cnn_forward(x, prep))

    ref = jax.block_until_ready(reference_forward_matched(x, params))
    ref32 = jax.block_until_ready(reference_forward_f32(x, params))

    assert out.shape == (2, NUM_CLASSES)
    # tight check against a reference with identical bf16/f32 mixed precision
    assert jnp.allclose(out, ref, rtol=1e-2, atol=1e-2), (out, ref)
    # sanity check against the pure-f32 PyTorch-style forward (loose: bf16 MXU operands)
    assert jnp.allclose(out, ref32, rtol=1e-1, atol=1e-1), (out, ref32)
    print("KERNEL_OK")
</pallas_src>

<mosaic_0001>
module attributes {stable_mosaic.version = 11 : i64} {
  func.func @conv_relu_pool_kernel(%arg0: i32, %arg1: memref<2x2x32x256xbf16, #tpu.memory_space<vmem>>, %arg2: memref<256x1024xbf16, #tpu.memory_space<vmem>>, %arg3: memref<1x512xf32, #tpu.memory_space<vmem>>, %arg4: memref<2x32x512xbf16, #tpu.memory_space<vmem>>) attributes {dimension_semantics = [#tpu.dimension_semantics<parallel>], iteration_bounds = array<i64: 1>, scalar_prefetch = 0 : i64, scratch_operands = 0 : i64, tpu.core_type = #tpu.core_type<tc>, window_params = [{transform_indices = @transform_0, window_bounds = array<i64: 2, 2, 32, 256>}, {pipeline_mode = #tpu.pipeline_mode<synchronous>, transform_indices = @transform_1, window_bounds = array<i64: 256, 1024>}, {pipeline_mode = #tpu.pipeline_mode<synchronous>, transform_indices = @transform_2, window_bounds = array<i64: 1, 512>}, {transform_indices = @transform_3, window_bounds = array<i64: 2, 32, 512>}]} {
    %c0 = arith.constant 0 : index
    %c0_0 = arith.constant 0 : index
    %c0_1 = arith.constant 0 : index
    %c0_2 = arith.constant 0 : index
    %0 = vector.load %arg1[%c0, %c0_0, %c0_1, %c0_2] : memref<2x2x32x256xbf16, #tpu.memory_space<vmem>>, vector<2x2x32x256xbf16>
    %1 = vector.shape_cast %0 : vector<2x2x32x256xbf16> to vector<128x256xbf16>
    %c0_3 = arith.constant 0 : index
    %c0_4 = arith.constant 0 : index
    %2 = vector.load %arg2[%c0_3, %c0_4] : memref<256x1024xbf16, #tpu.memory_space<vmem>>, vector<256x1024xbf16>
    %cst = arith.constant dense<0.000000e+00> : vector<128x1024xf32>
    %3 = tpu.matmul %1, %2, %cst {dimension_numbers = #tpu.dot_dimension_numbers<[1], [0], [0], [1], [0, 0, 1, 1], [], []>} : vector<128x256xbf16>, vector<256x1024xbf16>, vector<128x1024xf32> -> vector<128x1024xf32>
    %4 = vector.extract_strided_slice %3 {offsets = [0, 0], sizes = [64, 1024], strides = [1, 1]} : vector<128x1024xf32> to vector<64x1024xf32>
    %5 = vector.extract_strided_slice %3 {offsets = [64, 0], sizes = [64, 1024], strides = [1, 1]} : vector<128x1024xf32> to vector<64x1024xf32>
    %6 = arith.maximumf %4, %5 : vector<64x1024xf32>
    %7 = vector.extract_strided_slice %6 {offsets = [0, 0], sizes = [64, 512], strides = [1, 1]} : vector<64x1024xf32> to vector<64x512xf32>
    %8 = vector.extract_strided_slice %6 {offsets = [0, 512], sizes = [64, 512], strides = [1, 1]} : vector<64x1024xf32> to vector<64x512xf32>
    %9 = arith.maximumf %7, %8 : vector<64x512xf32>
    %c0_5 = arith.constant 0 : index
    %c0_6 = arith.constant 0 : index
    %10 = vector.load %arg3[%c0_5, %c0_6] : memref<1x512xf32, #tpu.memory_space<vmem>>, vector<1x512xf32>
    %11 = vector.broadcast %10 : vector<1x512xf32> to vector<64x512xf32>
    %12 = arith.addf %9, %11 : vector<64x512xf32>
    %cst_7 = arith.constant 0.000000e+00 : f32
    %13 = vector.broadcast %cst_7 : f32 to vector<64x512xf32>
    %14 = arith.maximumf %12, %13 : vector<64x512xf32>
    %15 = vector.shape_cast %14 : vector<64x512xf32> to vector<2x32x512xf32>
    %16 = arith.truncf %15 : vector<2x32x512xf32> to vector<2x32x512xbf16>
    %c0_8 = arith.constant 0 : index
    %c0_9 = arith.constant 0 : index
    %c0_10 = arith.constant 0 : index
    %17 = vector.load %arg4[%c0_8, %c0_9, %c0_10] : memref<2x32x512xbf16, #tpu.memory_space<vmem>>, vector<2x32x512xbf16>
    tpu.vector_store %arg4[%c0_8, %c0_9, %c0_10], %16 {strides = array<i32>} : memref<2x32x512xbf16, #tpu.memory_space<vmem>>, vector<2x32x512xbf16>,
    return
  }
  func.func @transform_0(%arg0: i32) -> (i32, i32, i32, i32) {
    %c0_i32 = arith.constant 0 : i32
    %c0_i32_0 = arith.constant 0 : i32
    %c0_i32_1 = arith.constant 0 : i32
    %c0_i32_2 = arith.constant 0 : i32
    return %c0_i32, %arg0, %c0_i32_0, %c0_i32_1 : i32, i32, i32, i32
  }
  func.func @transform_1(%arg0: i32) -> (i32, i32) {
    %c0_i32 = arith.constant 0 : i32
    %c0_i32_0 = arith.constant 0 : i32
    %c0_i32_1 = arith.constant 0 : i32
    return %c0_i32, %c0_i32_0 : i32, i32
  }
  func.func @transform_2(%arg0: i32) -> (i32, i32) {
    %c0_i32 = arith.constant 0 : i32
    %c0_i32_0 = arith.constant 0 : i32
    %c0_i32_1 = arith.constant 0 : i32
    return %c0_i32, %c0_i32_0 : i32, i32
  }
  func.func @transform_3(%arg0: i32) -> (i32, i32, i32) {
    %c0_i32 = arith.constant 0 : i32
    %c0_i32_0 = arith.constant 0 : i32
    %c0_i32_1 = arith.constant 0 : i32
    return %arg0, %c0_i32, %c0_i32_0 : i32, i32, i32
  }
}

module attributes {stable_mosaic.version = 11 : i64} {
  func.func @fc1_kernel(%arg0: i32, %arg1: i32, %arg2: memref<2x16384xbf16, #tpu.memory_space<vmem>>, %arg3: memref<1x16384x128xbf16, #tpu.memory_space<vmem>>, %arg4: memref<1x1x128xf32, #tpu.memory_space<vmem>>, %arg5: memref<1x2x128xf32, #tpu.memory_space<vmem>>) attributes {dimension_semantics = [#tpu.dimension_semantics<parallel>, #tpu.dimension_semantics<parallel>], iteration_bounds = array<i64: 1, 1>, scalar_prefetch = 0 : i64, scratch_operands = 0 : i64, tpu.core_type = #tpu.core_type<tc>, window_params = [{transform_indices = @transform_0, window_bounds = array<i64: 2, 16384>}, {transform_indices = @transform_1, window_bounds = array<i64: 1, 16384, 128>}, {transform_indices = @transform_2, window_bounds = array<i64: 1, 1, 128>}, {transform_indices = @transform_3, window_bounds = array<i64: 1, 2, 128>}]} {
    %c0 = arith.constant 0 : index
    %c0_0 = arith.constant 0 : index
    %0 = vector.load %arg2[%c0, %c0_0] : memref<2x16384xbf16, #tpu.memory_space<vmem>>, vector<2x16384xbf16>
    %c0_1 = arith.constant 0 : index
    %c0_2 = arith.constant 0 : index
    %c0_3 = arith.constant 0 : index
    %1 = vector.load %arg3[%c0_1, %c0_2, %c0_3] : memref<1x16384x128xbf16, #tpu.memory_space<vmem>>, vector<1x16384x128xbf16>
    %2 = vector.shape_cast %1 : vector<1x16384x128xbf16> to vector<16384x128xbf16>
    %cst = arith.constant dense<0.000000e+00> : vector<2x128xf32>
    %3 = tpu.matmul %0, %2, %cst {dimension_numbers = #tpu.dot_dimension_numbers<[1], [0], [0], [1], [0, 0, 1, 1], [], []>} : vector<2x16384xbf16>, vector<16384x128xbf16>, vector<2x128xf32> -> vector<2x128xf32>
    %c0_4 = arith.constant 0 : index
    %c0_5 = arith.constant 0 : index
    %c0_6 = arith.constant 0 : index
    %4 = vector.load %arg4[%c0_4, %c0_5, %c0_6] : memref<1x1x128xf32, #tpu.memory_space<vmem>>, vector<1x1x128xf32>
    %5 = vector.shape_cast %4 : vector<1x1x128xf32> to vector<1x128xf32>
    %6 = vector.broadcast %5 : vector<1x128xf32> to vector<2x128xf32>
    %7 = arith.addf %3, %6 : vector<2x128xf32>
    %c0_7 = arith.constant 0 : index
    %c0_8 = arith.constant 0 : index
    %c0_9 = arith.constant 0 : index
    %8 = vector.load %arg5[%c0_7, %c0_8, %c0_9] : memref<1x2x128xf32, #tpu.memory_space<vmem>>, vector<1x2x128xf32>
    %9 = vector.shape_cast %8 : vector<1x2x128xf32> to vector<2x128xf32>
    %10 = vector.shape_cast %7 : vector<2x128xf32> to vector<1x2x128xf32>
    tpu.vector_store %arg5[%c0_7, %c0_8, %c0_9], %10 {strides = array<i32>} : memref<1x2x128xf32, #tpu.memory_space<vmem>>, vector<1x2x128xf32>,
    return
  }
  func.func @transform_0(%arg0: i32, %arg1: i32) -> (i32, i32) {
    %c0_i32 = arith.constant 0 : i32
    %c0_i32_0 = arith.constant 0 : i32
    return %arg1, %c0_i32 : i32, i32
  }
  func.func @transform_1(%arg0: i32, %arg1: i32) -> (i32, i32, i32) {
    %c0_i32 = arith.constant 0 : i32
    %c0_i32_0 = arith.constant 0 : i32
    %c0_i32_1 = arith.constant 0 : i32
    return %arg0, %c0_i32, %c0_i32_0 : i32, i32, i32
  }
  func.func @transform_2(%arg0: i32, %arg1: i32) -> (i32, i32, i32) {
    %c0_i32 = arith.constant 0 : i32
    %c0_i32_0 = arith.constant 0 : i32
    %c0_i32_1 = arith.constant 0 : i32
    return %arg0, %c0_i32, %c0_i32_0 : i32, i32, i32
  }
  func.func @transform_3(%arg0: i32, %arg1: i32) -> (i32, i32, i32) {
    %c0_i32 = arith.constant 0 : i32
    %c0_i32_0 = arith.constant 0 : i32
    return %arg0, %arg1, %c0_i32 : i32, i32, i32
  }
}

</mosaic_0001>

<llo_original>
// kernel: cnn_forward.2
$region0: #{cnn_forward.2}
  #allocation0 [shape = 'u32[]', space=smem, size = 0x4, offset = 0x4, fixed_abs, tag = 'smem constant byte address 0x4 - core index']
  #allocation1 [shape = 'u32[144,128]{1,0:T(1,128)}', space=vmem, size = 0x12000, scoped, tag = 'internal scratch']
  %s0 = inlined_call_operand.vmem [shape: bf16[2,2,32,256], index: 0, kind: input, shape index: {}]
  %s1 = inlined_call_operand.hbm [shape: bf16[256,1024], index: 1, kind: input, shape index: {}]
  %s2 = inlined_call_operand.hbm [shape: f32[1,512], index: 2, kind: input, shape index: {}]
  %s3 = inlined_call_operand.vmem [shape: bf16[2,32,512], index: 3, kind: output, shape index: {}]
  %s4 = sld [smem:[#allocation0]]
  $region30: #{cnn_forward.2} parent=0
    _
  %s6 = ssub.s32 1, %s4
  %s7 = scalar_select 0, %s6, %s4
  $region1: #{cnn_forward.2} parent=0
    #allocation2 [shape = 'u8[524288]{0}', space=vmem, size = 0x80000, scoped, tag = 'input window, operand 1, single buffered']
    #allocation3 [shape = 's32[1]{0}', space=sflag, size = 0x4, scoped, tag = 'scoped memory for cnn_forward.2']
    #allocation4 [shape = 'u8[2048]{0}', space=vmem, size = 0x800, scoped, tag = 'input window, operand 2, single buffered']
    #allocation5 [shape = 's32[1]{0}', space=sflag, size = 0x4, scoped, tag = 'scoped memory for cnn_forward.2']
    %8 = vsyncpa [#allocation3], 0
    %9 = vsyncpa [#allocation5], 0
    // Predicated region
    $region2: #{cnn_forward.2} parent=1 // pred_check
      _
    $region3: #{cnn_forward.2} parent=1 // pred_check_branch
      %11 = sbr.rel (0) target = $region5
    $region4: #{cnn_forward.2} parent=1 // pred_region
      _
    $region5: #{cnn_forward.2} parent=1 // pred_fallthru
      _
    // Predicated region
    $region6: #{cnn_forward.2} parent=1 // pred_check
      _
    $region7: #{cnn_forward.2} parent=1 // pred_check_branch
      %13 = sbr.rel (0) target = $region9
    $region8: #{cnn_forward.2} parent=1 // pred_region
      %s15 = ssub.s32 16384, 16384
      %16 = vsyncadd [#allocation3], %s15
      %s17 = sshll.u32 [#allocation2], 4
      %s18 = int_to_ptr.vmem [resolvable:$true] %s17
      %23 = dma.hbm_to_vmem [thread:$0]  %s1, 16384, %s18, [#allocation3], 512, 512, 32
    $region9: #{cnn_forward.2} parent=1 // pred_fallthru
      _
    // Predicated region
    $region10: #{cnn_forward.2} parent=1 // pred_check
      _
    $region11: #{cnn_forward.2} parent=1 // pred_check_branch
      %25 = sbr.rel (0) target = $region13
    $region12: #{cnn_forward.2} parent=1 // pred_region
      %s27 = ssub.s32 64, 64
      %28 = vsyncadd [#allocation5], %s27
      %s30 = sshll.u32 [#allocation4], 4
      %s31 = int_to_ptr.vmem [resolvable:$true] %s30
      %33 = dma.hbm_to_vmem [thread:$0]  %s2, 64, %s31, [#allocation5]
    $region13: #{cnn_forward.2} parent=1 // pred_fallthru
      _
    // Predicated region
    $region14: #{cnn_forward.2} parent=1 // pred_check
      _
    $region15: #{cnn_forward.2} parent=1 // pred_check_branch
      %35 = sbr.rel (0) target = $region17
    $region16: #{cnn_forward.2} parent=1 // pred_region
      %36 = dma.done [#allocation3], 16384
    $region17: #{cnn_forward.2} parent=1 // pred_fallthru
      _
    // Predicated region
    $region18: #{cnn_forward.2} parent=1 // pred_check
      _
    $region19: #{cnn_forward.2} parent=1 // pred_check_branch
      %38 = sbr.rel (0) target = $region21
    $region20: #{cnn_forward.2} parent=1 // pred_region
      %39 = dma.done [#allocation5], 64
    $region21: #{cnn_forward.2} parent=1 // pred_fallthru
      _
    %v40 = vld [vmem:[%s0] sm:$0xff]
    %v41 = vld [vmem:[%s0 + $0x8] sm:$0xff]
    %v42 = vld [vmem:[%s0 + $0x10] sm:$0xff]
    %v43 = vld [vmem:[%s0 + $0x18] sm:$0xff]
    %v44 = vld [vmem:[%s0 + $0x20] sm:$0xff]
    %v45 = vld [vmem:[%s0 + $0x28] sm:$0xff]
    %v46 = vld [vmem:[%s0 + $0x30] sm:$0xff]
    %v47 = vld [vmem:[%s0 + $0x38] sm:$0xff]
    %v48 = vld [vmem:[%s0 + $0x40] sm:$0xff]
    %v49 = vld [vmem:[%s0 + $0x48] sm:$0xff]
    %v50 = vld [vmem:[%s0 + $0x50] sm:$0xff]
    %v51 = vld [vmem:[%s0 + $0x58] sm:$0xff]
    %v52 = vld [vmem:[%s0 + $0x60] sm:$0xff]
    %v53 = vld [vmem:[%s0 + $0x68] sm:$0xff]
    %v54 = vld [vmem:[%s0 + $0x70] sm:$0xff]
    %v55 = vld [vmem:[%s0 + $0x78] sm:$0xff]
    %v56 = vld [vmem:[#allocation2] sm:$0xff]
    %v57 = vld [vmem:[#allocation2 + $0x8] sm:$0xff]
    %v58 = vld [vmem:[#allocation2 + $0x10] sm:$0xff]
    %v59 = vld [vmem:[#allocation2 + $0x18] sm:$0xff]
    %v60 = vld [vmem:[#allocation2 + $0x20] sm:$0xff]
    %v61 = vld [vmem:[#allocation2 + $0x28] sm:$0xff]
    %v62 = vld [vmem:[#allocation2 + $0x30] sm:$0xff]
    %v63 = vld [vmem:[#allocation2 + $0x38] sm:$0xff]
    %v64 = vld [vmem:[#allocation2 + $0x40] sm:$0xff]
    %v65 = vld [vmem:[#allocation2 + $0x48] sm:$0xff]
    %v66 = vld [vmem:[#allocation2 + $0x50] sm:$0xff]
    %v67 = vld [vmem:[#allocation2 + $0x58] sm:$0xff]
    %v68 = vld [vmem:[#allocation2 + $0x60] sm:$0xff]
    %v69 = vld [vmem:[#allocation2 + $0x68] sm:$0xff]
    %v70 = vld [vmem:[#allocation2 + $0x70] sm:$0xff]
    %v71 = vld [vmem:[#allocation2 + $0x78] sm:$0xff]
    %v72 = vld [vmem:[#allocation2 + $0x80] sm:$0xff]
    %v73 = vld [vmem:[#allocation2 + $0x88] sm:$0xff]
    %v74 = vld [vmem:[#allocation2 + $0x90] sm:$0xff]
    %v75 = vld [vmem:[#allocation2 + $0x98] sm:$0xff]
    %v76 = vld [vmem:[#allocation2 + $0xa0] sm:$0xff]
    %v77 = vld [vmem:[#allocation2 + $0xa8] sm:$0xff]
    %v78 = vld [vmem:[#allocation2 + $0xb0] sm:$0xff]
    %v79 = vld [vmem:[#allocation2 + $0xb8] sm:$0xff]
    %v80 = vld [vmem:[#allocation2 + $0xc0] sm:$0xff]
    %v81 = vld [vmem:[#allocation2 + $0xc8] sm:$0xff]
    %v82 = vld [vmem:[#allocation2 + $0xd0] sm:$0xff]
    %v83 = vld [vmem:[#allocation2 + $0xd8] sm:$0xff]
    %v84 = vld [vmem:[#allocation2 + $0xe0] sm:$0xff]
    %v85 = vld [vmem:[#allocation2 + $0xe8] sm:$0xff]
    %v86 = vld [vmem:[#allocation2 + $0xf0] sm:$0xff]
    %v87 = vld [vmem:[#allocation2 + $0xf8] sm:$0xff]
    %v88 = vld [vmem:[#allocation2 + $0x100] sm:$0xff]
    %v89 = vld [vmem:[#allocation2 + $0x108] sm:$0xff]
    %v90 = vld [vmem:[#allocation2 + $0x110] sm:$0xff]
    %v91 = vld [vmem:[#allocation2 + $0x118] sm:$0xff]
    %v92 = vld [vmem:[#allocation2 + $0x120] sm:$0xff]
    %v93 = vld [vmem:[#allocation2 + $0x128] sm:$0xff]
    %v94 = vld [vmem:[#allocation2 + $0x130] sm:$0xff]
    %v95 = vld [vmem:[#allocation2 + $0x138] sm:$0xff]
    %v96 = vld [vmem:[#allocation2 + $0x140] sm:$0xff]
    %v97 = vld [vmem:[#allocation2 + $0x148] sm:$0xff]
    %v98 = vld [vmem:[#allocation2 + $0x150] sm:$0xff]
    %v99 = vld [vmem:[#allocation2 + $0x158] sm:$0xff]
    %v100 = vld [vmem:[#allocation2 + $0x160] sm:$0xff]
    %v101 = vld [vmem:[#allocation2 + $0x168] sm:$0xff]
    %v102 = vld [vmem:[#allocation2 + $0x170] sm:$0xff]
    %v103 = vld [vmem:[#allocation2 + $0x178] sm:$0xff]
    %v104 = vld [vmem:[#allocation2 + $0x180] sm:$0xff]
    %v105 = vld [vmem:[#allocation2 + $0x188] sm:$0xff]
    %v106 = vld [vmem:[#allocation2 + $0x190] sm:$0xff]
    %v107 = vld [vmem:[#allocation2 + $0x198] sm:$0xff]
    %v108 = vld [vmem:[#allocation2 + $0x1a0] sm:$0xff]
    %v109 = vld [vmem:[#allocation2 + $0x1a8] sm:$0xff]
    %v110 = vld [vmem:[#allocation2 + $0x1b0] sm:$0xff]
    %v111 = vld [vmem:[#allocation2 + $0x1b8] sm:$0xff]
    %v112 = vld [vmem:[#allocation2 + $0x1c0] sm:$0xff]
    %v113 = vld [vmem:[#allocation2 + $0x1c8] sm:$0xff]
    %v114 = vld [vmem:[#allocation2 + $0x1d0] sm:$0xff]
    %v115 = vld [vmem:[#allocation2 + $0x1d8] sm:$0xff]
    %v116 = vld [vmem:[#allocation2 + $0x1e0] sm:$0xff]
    %v117 = vld [vmem:[#allocation2 + $0x1e8] sm:$0xff]
    %v118 = vld [vmem:[#allocation2 + $0x1f0] sm:$0xff]
    %v119 = vld [vmem:[#allocation2 + $0x1f8] sm:$0xff]
    %v120 = vld [vmem:[#allocation2 + $0x200] sm:$0xff]
    %v121 = vld [vmem:[#allocation2 + $0x208] sm:$0xff]
    %v122 = vld [vmem:[#allocation2 + $0x210] sm:$0xff]
    %v123 = vld [vmem:[#allocation2 + $0x218] sm:$0xff]
    %v124 = vld [vmem:[#allocation2 + $0x220] sm:$0xff]
    %v125 = vld [vmem:[#allocation2 + $0x228] sm:$0xff]
    %v126 = vld [vmem:[#allocation2 + $0x230] sm:$0xff]
    %v127 = vld [vmem:[#allocation2 + $0x238] sm:$0xff]
    %v128 = vld [vmem:[#allocation2 + $0x240] sm:$0xff]
    %v129 = vld [vmem:[#allocation2 + $0x248] sm:$0xff]
    %v130 = vld [vmem:[#allocation2 + $0x250] sm:$0xff]
    %v131 = vld [vmem:[#allocation2 + $0x258] sm:$0xff]
    %v132 = vld [vmem:[#allocation2 + $0x260] sm:$0xff]
    %v133 = vld [vmem:[#allocation2 + $0x268] sm:$0xff]
    %v134 = vld [vmem:[#allocation2 + $0x270] sm:$0xff]
    %v135 = vld [vmem:[#allocation2 + $0x278] sm:$0xff]
    %v136 = vld [vmem:[#allocation2 + $0x280] sm:$0xff]
    %v137 = vld [vmem:[#allocation2 + $0x288] sm:$0xff]
    %v138 = vld [vmem:[#allocation2 + $0x290] sm:$0xff]
    %v139 = vld [vmem:[#allocation2 + $0x298] sm:$0xff]
    %v140 = vld [vmem:[#allocation2 + $0x2a0] sm:$0xff]
    %v141 = vld [vmem:[#allocation2 + $0x2a8] sm:$0xff]
    %v142 = vld [vmem:[#allocation2 + $0x2b0] sm:$0xff]
    %v143 = vld [vmem:[#allocation2 + $0x2b8] sm:$0xff]
    %v144 = vld [vmem:[#allocation2 + $0x2c0] sm:$0xff]
    %v145 = vld [vmem:[#allocation2 + $0x2c8] sm:$0xff]
    %v146 = vld [vmem:[#allocation2 + $0x2d0] sm:$0xff]
    %v147 = vld [vmem:[#allocation2 + $0x2d8] sm:$0xff]
    %v148 = vld [vmem:[#allocation2 + $0x2e0] sm:$0xff]
    %v149 = vld [vmem:[#allocation2 + $0x2e8] sm:$0xff]
    %v150 = vld [vmem:[#allocation2 + $0x2f0] sm:$0xff]
    %v151 = vld [vmem:[#allocation2 + $0x2f8] sm:$0xff]
    %v152 = vld [vmem:[#allocation2 + $0x300] sm:$0xff]
    %v153 = vld [vmem:[#allocation2 + $0x308] sm:$0xff]
    %v154 = vld [vmem:[#allocation2 + $0x310] sm:$0xff]
    %v155 = vld [vmem:[#allocation2 + $0x318] sm:$0xff]
    %v156 = vld [vmem:[#allocation2 + $0x320] sm:$0xff]
    %v157 = vld [vmem:[#allocation2 + $0x328] sm:$0xff]
    %v158 = vld [vmem:[#allocation2 + $0x330] sm:$0xff]
    %v159 = vld [vmem:[#allocation2 + $0x338] sm:$0xff]
    %v160 = vld [vmem:[#allocation2 + $0x340] sm:$0xff]
    %v161 = vld [vmem:[#allocation2 + $0x348] sm:$0xff]
    %v162 = vld [vmem:[#allocation2 + $0x350] sm:$0xff]
    %v163 = vld [vmem:[#allocation2 + $0x358] sm:$0xff]
    %v164 = vld [vmem:[#allocation2 + $0x360] sm:$0xff]
    %v165 = vld [vmem:[#allocation2 + $0x368] sm:$0xff]
    %v166 = vld [vmem:[#allocation2 + $0x370] sm:$0xff]
    %v167 = vld [vmem:[#allocation2 + $0x378] sm:$0xff]
    %v168 = vld [vmem:[#allocation2 + $0x380] sm:$0xff]
    %v169 = vld [vmem:[#allocation2 + $0x388] sm:$0xff]
    %v170 = vld [vmem:[#allocation2 + $0x390] sm:$0xff]
    %v171 = vld [vmem:[#allocation2 + $0x398] sm:$0xff]
    %v172 = vld [vmem:[#allocation2 + $0x3a0] sm:$0xff]
    %v173 = vld [vmem:[#allocation2 + $0x3a8] sm:$0xff]
    %v174 = vld [vmem:[#allocation2 + $0x3b0] sm:$0xff]
    %v175 = vld [vmem:[#allocation2 + $0x3b8] sm:$0xff]
    %v176 = vld [vmem:[#allocation2 + $0x3c0] sm:$0xff]
    %v177 = vld [vmem:[#allocation2 + $0x3c8] sm:$0xff]
    %v178 = vld [vmem:[#allocation2 + $0x3d0] sm:$0xff]
    %v179 = vld [vmem:[#allocation2 + $0x3d8] sm:$0xff]
    %v180 = vld [vmem:[#allocation2 + $0x3e0] sm:$0xff]
    %v181 = vld [vmem:[#allocation2 + $0x3e8] sm:$0xff]
    %v182 = vld [vmem:[#allocation2 + $0x3f0] sm:$0xff]
    %v183 = vld [vmem:[#allocation2 + $0x3f8] sm:$0xff]
    %v200 = vunpack.c.l.b16 %v40
    %v201 = vunpack.c.h.b16 %v40
    %v202 = vunpack.c.l.b16 %v41
    %v203 = vunpack.c.h.b16 %v41
    %v204 = vunpack.c.l.b16 %v42
    %v205 = vunpack.c.h.b16 %v42
    %v206 = vunpack.c.l.b16 %v43
    %v207 = vunpack.c.h.b16 %v43
    %v208 = vunpack.c.l.b16 %v44
    %v209 = vunpack.c.h.b16 %v44
    %v210 = vunpack.c.l.b16 %v45
    %v211 = vunpack.c.h.b16 %v45
    %v212 = vunpack.c.l.b16 %v46
    %v213 = vunpack.c.h.b16 %v46
    %v214 = vunpack.c.l.b16 %v47
    %v215 = vunpack.c.h.b16 %v47
    %v216 = vunpack.c.l.b16 %v48
    %v217 = vunpack.c.h.b16 %v48
    %v218 = vunpack.c.l.b16 %v49
    %v219 = vunpack.c.h.b16 %v49
    %v220 = vunpack.c.l.b16 %v50
    %v221 = vunpack.c.h.b16 %v50
    %v222 = vunpack.c.l.b16 %v51
    %v223 = vunpack.c.h.b16 %v51
    %v224 = vunpack.c.l.b16 %v52
    %v225 = vunpack.c.h.b16 %v52
    %v226 = vunpack.c.l.b16 %v53
    %v227 = vunpack.c.h.b16 %v53
    %v228 = vunpack.c.l.b16 %v54
    %v229 = vunpack.c.h.b16 %v54
    %v230 = vunpack.c.l.b16 %v55
    %v231 = vunpack.c.h.b16 %v55
    %v232 = vpack.c.b16 %v202, %v200
    %v233 = vpack.c.b16 %v203, %v201
    %v234 = vpack.c.b16 %v206, %v204
    %v235 = vpack.c.b16 %v207, %v205
    %v236 = vpack.c.b16 %v210, %v208
    %v237 = vpack.c.b16 %v211, %v209
    %v238 = vpack.c.b16 %v214, %v212
    %v239 = vpack.c.b16 %v215, %v213
    %v240 = vpack.c.b16 %v218, %v216
    %v241 = vpack.c.b16 %v219, %v217
    %v242 = vpack.c.b16 %v222, %v220
    %v243 = vpack.c.b16 %v223, %v221
    %v244 = vpack.c.b16 %v226, %v224
    %v245 = vpack.c.b16 %v227, %v225
    %v246 = vpack.c.b16 %v230, %v228
    %v247 = vpack.c.b16 %v231, %v229
    %v392 = vunpack.c.l.b16 %v56
    %v393 = vunpack.c.h.b16 %v56
    %v394 = vunpack.c.l.b16 %v57
    %v395 = vunpack.c.h.b16 %v57
    %v396 = vunpack.c.l.b16 %v58
    %v397 = vunpack.c.h.b16 %v58
    %v398 = vunpack.c.l.b16 %v59
    %v399 = vunpack.c.h.b16 %v59
    %v400 = vunpack.c.l.b16 %v60
    %v401 = vunpack.c.h.b16 %v60
    %v402 = vunpack.c.l.b16 %v61
    %v403 = vunpack.c.h.b16 %v61
    %v404 = vunpack.c.l.b16 %v62
    %v405 = vunpack.c.h.b16 %v62
    %v406 = vunpack.c.l.b16 %v63
    %v407 = vunpack.c.h.b16 %v63
    %v408 = vunpack.c.l.b16 %v64
    %v409 = vunpack.c.h.b16 %v64
    %v410 = vunpack.c.l.b16 %v65
    %v411 = vunpack.c.h.b16 %v65
    %v412 = vunpack.c.l.b16 %v66
    %v413 = vunpack.c.h.b16 %v66
    %v414 = vunpack.c.l.b16 %v67
    %v415 = vunpack.c.h.b16 %v67
    %v416 = vunpack.c.l.b16 %v68
    %v417 = vunpack.c.h.b16 %v68
    %v418 = vunpack.c.l.b16 %v69
    %v419 = vunpack.c.h.b16 %v69
    %v420 = vunpack.c.l.b16 %v70
    %v421 = vunpack.c.h.b16 %v70
    %v422 = vunpack.c.l.b16 %v71
    %v423 = vunpack.c.h.b16 %v71
    %v424 = vunpack.c.l.b16 %v72
    %v425 = vunpack.c.h.b16 %v72
    %v426 = vunpack.c.l.b16 %v73
    %v427 = vunpack.c.h.b16 %v73
    %v428 = vunpack.c.l.b16 %v74
    %v429 = vunpack.c.h.b16 %v74
    %v430 = vunpack.c.l.b16 %v75
    %v431 = vunpack.c.h.b16 %v75
    %v432 = vunpack.c.l.b16 %v76
    %v433 = vunpack.c.h.b16 %v76
    %v434 = vunpack.c.l.b16 %v77
    %v435 = vunpack.c.h.b16 %v77
    %v436 = vunpack.c.l.b16 %v78
    %v437 = vunpack.c.h.b16 %v78
    %v438 = vunpack.c.l.b16 %v79
    %v439 = vunpack.c.h.b16 %v79
    %v440 = vunpack.c.l.b16 %v80
    %v441 = vunpack.c.h.b16 %v80
    %v442 = vunpack.c.l.b16 %v81
    %v443 = vunpack.c.h.b16 %v81
    %v444 = vunpack.c.l.b16 %v82
    %v445 = vunpack.c.h.b16 %v82
    %v446 = vunpack.c.l.b16 %v83
    %v447 = vunpack.c.h.b16 %v83
    %v448 = vunpack.c.l.b16 %v84
    %v449 = vunpack.c.h.b16 %v84
    %v450 = vunpack.c.l.b16 %v85
    %v451 = vunpack.c.h.b16 %v85
    %v452 = vunpack.c.l.b16 %v86
    %v453 = vunpack.c.h.b16 %v86
    %v454 = vunpack.c.l.b16 %v87
    %v455 = vunpack.c.h.b16 %v87
    %v456 = vunpack.c.l.b16 %v88
    %v457 = vunpack.c.h.b16 %v88
    %v458 = vunpack.c.l.b16 %v89
    %v459 = vunpack.c.h.b16 %v89
    %v460 = vunpack.c.l.b16 %v90
    %v461 = vunpack.c.h.b16 %v90
    %v462 = vunpack.c.l.b16 %v91
    %v463 = vunpack.c.h.b16 %v91
    %v464 = vunpack.c.l.b16 %v92
    %v465 = vunpack.c.h.b16 %v92
    %v466 = vunpack.c.l.b16 %v93
    %v467 = vunpack.c.h.b16 %v93
    %v468 = vunpack.c.l.b16 %v94
    %v469 = vunpack.c.h.b16 %v94
    %v470 = vunpack.c.l.b16 %v95
    %v471 = vunpack.c.h.b16 %v95
    %v472 = vunpack.c.l.b16 %v96
    %v473 = vunpack.c.h.b16 %v96
    %v474 = vunpack.c.l.b16 %v97
    %v475 = vunpack.c.h.b16 %v97
    %v476 = vunpack.c.l.b16 %v98
    %v477 = vunpack.c.h.b16 %v98
    %v478 = vunpack.c.l.b16 %v99
    %v479 = vunpack.c.h.b16 %v99
    %v480 = vunpack.c.l.b16 %v100
    %v481 = vunpack.c.h.b16 %v100
    %v482 = vunpack.c.l.b16 %v101
    %v483 = vunpack.c.h.b16 %v101
    %v484 = vunpack.c.l.b16 %v102
    %v485 = vunpack.c.h.b16 %v102
    %v486 = vunpack.c.l.b16 %v103
    %v487 = vunpack.c.h.b16 %v103
    %v488 = vunpack.c.l.b16 %v104
    %v489 = vunpack.c.h.b16 %v104
    %v490 = vunpack.c.l.b16 %v105
    %v491 = vunpack.c.h.b16 %v105
    %v492 = vunpack.c.l.b16 %v106
    %v493 = vunpack.c.h.b16 %v106
    %v494 = vunpack.c.l.b16 %v107
    %v495 = vunpack.c.h.b16 %v107
    %v496 = vunpack.c.l.b16 %v108
    %v497 = vunpack.c.h.b16 %v108
    %v498 = vunpack.c.l.b16 %v109
    %v499 = vunpack.c.h.b16 %v109
    %v500 = vunpack.c.l.b16 %v110
    %v501 = vunpack.c.h.b16 %v110
    %v502 = vunpack.c.l.b16 %v111
    %v503 = vunpack.c.h.b16 %v111
    %v504 = vunpack.c.l.b16 %v112
    %v505 = vunpack.c.h.b16 %v112
    %v506 = vunpack.c.l.b16 %v113
    %v507 = vunpack.c.h.b16 %v113
    %v508 = vunpack.c.l.b16 %v114
    %v509 = vunpack.c.h.b16 %v114
    %v510 = vunpack.c.l.b16 %v115
    %v511 = vunpack.c.h.b16 %v115
    %v512 = vunpack.c.l.b16 %v116
    %v513 = vunpack.c.h.b16 %v116
    %v514 = vunpack.c.l.b16 %v117
    %v515 = vunpack.c.h.b16 %v117
    %v516 = vunpack.c.l.b16 %v118
    %v517 = vunpack.c.h.b16 %v118
    %v518 = vunpack.c.l.b16 %v119
    %v519 = vunpack.c.h.b16 %v119
    %v520 = vunpack.c.l.b16 %v120
    %v521 = vunpack.c.h.b16 %v120
    %v522 = vunpack.c.l.b16 %v121
    %v523 = vunpack.c.h.b16 %v121
    %v524 = vunpack.c.l.b16 %v122
    %v525 = vunpack.c.h.b16 %v122
    %v526 = vunpack.c.l.b16 %v123
    %v527 = vunpack.c.h.b16 %v123
    %v528 = vunpack.c.l.b16 %v124
    %v529 = vunpack.c.h.b16 %v124
    %v530 = vunpack.c.l.b16 %v125
    %v531 = vunpack.c.h.b16 %v125
    %v532 = vunpack.c.l.b16 %v126
    %v533 = vunpack.c.h.b16 %v126
    %v534 = vunpack.c.l.b16 %v127
    %v535 = vunpack.c.h.b16 %v127
    %v536 = vunpack.c.l.b16 %v128
    %v537 = vunpack.c.h.b16 %v128
    %v538 = vunpack.c.l.b16 %v129
    %v539 = vunpack.c.h.b16 %v129
    %v540 = vunpack.c.l.b16 %v130
    %v541 = vunpack.c.h.b16 %v130
    %v542 = vunpack.c.l.b16 %v131
    %v543 = vunpack.c.h.b16 %v131
    %v544 = vunpack.c.l.b16 %v132
    %v545 = vunpack.c.h.b16 %v132
    %v546 = vunpack.c.l.b16 %v133
    %v547 = vunpack.c.h.b16 %v133
    %v548 = vunpack.c.l.b16 %v134
    %v549 = vunpack.c.h.b16 %v134
    %v550 = vunpack.c.l.b16 %v135
    %v551 = vunpack.c.h.b16 %v135
    %v552 = vunpack.c.l.b16 %v136
    %v553 = vunpack.c.h.b16 %v136
    %v554 = vunpack.c.l.b16 %v137
    %v555 = vunpack.c.h.b16 %v137
    %v556 = vunpack.c.l.b16 %v138
    %v557 = vunpack.c.h.b16 %v138
    %v558 = vunpack.c.l.b16 %v139
    %v559 = vunpack.c.h.b16 %v139
    %v560 = vunpack.c.l.b16 %v140
    %v561 = vunpack.c.h.b16 %v140
    %v562 = vunpack.c.l.b16 %v141
    %v563 = vunpack.c.h.b16 %v141
    %v564 = vunpack.c.l.b16 %v142
    %v565 = vunpack.c.h.b16 %v142
    %v566 = vunpack.c.l.b16 %v143
    %v567 = vunpack.c.h.b16 %v143
    %v568 = vunpack.c.l.b16 %v144
    %v569 = vunpack.c.h.b16 %v144
    %v570 = vunpack.c.l.b16 %v145
    %v571 = vunpack.c.h.b16 %v145
    %v572 = vunpack.c.l.b16 %v146
    %v573 = vunpack.c.h.b16 %v146
    %v574 = vunpack.c.l.b16 %v147
    %v575 = vunpack.c.h.b16 %v147
    %v576 = vunpack.c.l.b16 %v148
    %v577 = vunpack.c.h.b16 %v148
    %v578 = vunpack.c.l.b16 %v149
    %v579 = vunpack.c.h.b16 %v149
    %v580 = vunpack.c.l.b16 %v150
    %v581 = vunpack.c.h.b16 %v150
    %v582 = vunpack.c.l.b16 %v151
    %v583 = vunpack.c.h.b16 %v151
    %v584 = vunpack.c.l.b16 %v152
    %v585 = vunpack.c.h.b16 %v152
    %v586 = vunpack.c.l.b16 %v153
    %v587 = vunpack.c.h.b16 %v153
    %v588 = vunpack.c.l.b16 %v154
    %v589 = vunpack.c.h.b16 %v154
    %v590 = vunpack.c.l.b16 %v155
    %v591 = vunpack.c.h.b16 %v155
    %v592 = vunpack.c.l.b16 %v156
    %v593 = vunpack.c.h.b16 %v156
    %v594 = vunpack.c.l.b16 %v157
    %v595 = vunpack.c.h.b16 %v157
    %v596 = vunpack.c.l.b16 %v158
    %v597 = vunpack.c.h.b16 %v158
    %v598 = vunpack.c.l.b16 %v159
    %v599 = vunpack.c.h.b16 %v159
    %v600 = vunpack.c.l.b16 %v160
    %v601 = vunpack.c.h.b16 %v160
    %v602 = vunpack.c.l.b16 %v161
    %v603 = vunpack.c.h.b16 %v161
    %v604 = vunpack.c.l.b16 %v162
    %v605 = vunpack.c.h.b16 %v162
    %v606 = vunpack.c.l.b16 %v163
    %v607 = vunpack.c.h.b16 %v163
    %v608 = vunpack.c.l.b16 %v164
    %v609 = vunpack.c.h.b16 %v164
    %v610 = vunpack.c.l.b16 %v165
    %v611 = vunpack.c.h.b16 %v165
    %v612 = vunpack.c.l.b16 %v166
    %v613 = vunpack.c.h.b16 %v166
    %v614 = vunpack.c.l.b16 %v167
    %v615 = vunpack.c.h.b16 %v167
    %v616 = vunpack.c.l.b16 %v168
    %v617 = vunpack.c.h.b16 %v168
    %v618 = vunpack.c.l.b16 %v169
    %v619 = vunpack.c.h.b16 %v169
    %v620 = vunpack.c.l.b16 %v170
    %v621 = vunpack.c.h.b16 %v170
    %v622 = vunpack.c.l.b16 %v171
    %v623 = vunpack.c.h.b16 %v171
    %v624 = vunpack.c.l.b16 %v172
    %v625 = vunpack.c.h.b16 %v172
    %v626 = vunpack.c.l.b16 %v173
    %v627 = vunpack.c.h.b16 %v173
    %v628 = vunpack.c.l.b16 %v174
    %v629 = vunpack.c.h.b16 %v174
    %v630 = vunpack.c.l.b16 %v175
    %v631 = vunpack.c.h.b16 %v175
    %v632 = vunpack.c.l.b16 %v176
    %v633 = vunpack.c.h.b16 %v176
    %v634 = vunpack.c.l.b16 %v177
    %v635 = vunpack.c.h.b16 %v177
    %v636 = vunpack.c.l.b16 %v178
    %v637 = vunpack.c.h.b16 %v178
    %v638 = vunpack.c.l.b16 %v179
    %v639 = vunpack.c.h.b16 %v179
    %v640 = vunpack.c.l.b16 %v180
    %v641 = vunpack.c.h.b16 %v180
    %v642 = vunpack.c.l.b16 %v181
    %v643 = vunpack.c.h.b16 %v181
    %v644 = vunpack.c.l.b16 %v182
    %v645 = vunpack.c.h.b16 %v182
    %v646 = vunpack.c.l.b16 %v183
    %v647 = vunpack.c.h.b16 %v183
    %v648 = vpack.c.b16 %v400, %v392
    %v649 = vpack.c.b16 %v401, %v393
    %v650 = vpack.c.b16 %v402, %v394
    %v651 = vpack.c.b16 %v403, %v395
    %v652 = vpack.c.b16 %v404, %v396
    %v653 = vpack.c.b16 %v405, %v397
    %v654 = vpack.c.b16 %v406, %v398
    %v655 = vpack.c.b16 %v407, %v399
    %v656 = vpack.c.b16 %v416, %v408
    %v657 = vpack.c.b16 %v417, %v409
    %v658 = vpack.c.b16 %v418, %v410
    %v659 = vpack.c.b16 %v419, %v411
    %v660 = vpack.c.b16 %v420, %v412
    %v661 = vpack.c.b16 %v421, %v413
    %v662 = vpack.c.b16 %v422, %v414
    %v663 = vpack.c.b16 %v423, %v415
    %v664 = vpack.c.b16 %v432, %v424
    %v665 = vpack.c.b16 %v433, %v425
    %v666 = vpack.c.b16 %v434, %v426
    %v667 = vpack.c.b16 %v435, %v427
    %v668 = vpack.c.b16 %v436, %v428
    %v669 = vpack.c.b16 %v437, %v429
    %v670 = vpack.c.b16 %v438, %v430
    %v671 = vpack.c.b16 %v439, %v431
    %v672 = vpack.c.b16 %v448, %v440
    %v673 = vpack.c.b16 %v449, %v441
    %v674 = vpack.c.b16 %v450, %v442
    %v675 = vpack.c.b16 %v451, %v443
    %v676 = vpack.c.b16 %v452, %v444
    %v677 = vpack.c.b16 %v453, %v445
    %v678 = vpack.c.b16 %v454, %v446
    %v679 = vpack.c.b16 %v455, %v447
    %v680 = vpack.c.b16 %v464, %v456
    %v681 = vpack.c.b16 %v465, %v457
    %v682 = vpack.c.b16 %v466, %v458
    %v683 = vpack.c.b16 %v467, %v459
    %v684 = vpack.c.b16 %v468, %v460
    %v685 = vpack.c.b16 %v469, %v461
    %v686 = vpack.c.b16 %v470, %v462
    %v687 = vpack.c.b16 %v471, %v463
    %v688 = vpack.c.b16 %v480, %v472
    %v689 = vpack.c.b16 %v481, %v473
    %v690 = vpack.c.b16 %v482, %v474
    %v691 = vpack.c.b16 %v483, %v475
    %v692 = vpack.c.b16 %v484, %v476
    %v693 = vpack.c.b16 %v485, %v477
    %v694 = vpack.c.b16 %v486, %v478
    %v695 = vpack.c.b16 %v487, %v479
    %v696 = vpack.c.b16 %v496, %v488
    %v697 = vpack.c.b16 %v497, %v489
    %v698 = vpack.c.b16 %v498, %v490
    %v699 = vpack.c.b16 %v499, %v491
    %v700 = vpack.c.b16 %v500, %v492
    %v701 = vpack.c.b16 %v501, %v493
    %v702 = vpack.c.b16 %v502, %v494
    %v703 = vpack.c.b16 %v503, %v495
    %v704 = vpack.c.b16 %v512, %v504
    %v705 = vpack.c.b16 %v513, %v505
    %v706 = vpack.c.b16 %v514, %v506
    %v707 = vpack.c.b16 %v515, %v507
    %v708 = vpack.c.b16 %v516, %v508
    %v709 = vpack.c.b16 %v517, %v509
    %v710 = vpack.c.b16 %v518, %v510
    %v711 = vpack.c.b16 %v519, %v511
    %v712 = vpack.c.b16 %v528, %v520
    %v713 = vpack.c.b16 %v529, %v521
    %v714 = vpack.c.b16 %v530, %v522
    %v715 = vpack.c.b16 %v531, %v523
    %v716 = vpack.c.b16 %v532, %v524
    %v717 = vpack.c.b16 %v533, %v525
    %v718 = vpack.c.b16 %v534, %v526
    %v719 = vpack.c.b16 %v535, %v527
    %v720 = vpack.c.b16 %v544, %v536
    %v721 = vpack.c.b16 %v545, %v537
    %v722 = vpack.c.b16 %v546, %v538
    %v723 = vpack.c.b16 %v547, %v539
    %v724 = vpack.c.b16 %v548, %v540
    %v725 = vpack.c.b16 %v549, %v541
    %v726 = vpack.c.b16 %v550, %v542
    %v727 = vpack.c.b16 %v551, %v543
    %v728 = vpack.c.b16 %v560, %v552
    %v729 = vpack.c.b16 %v561, %v553
    %v730 = vpack.c.b16 %v562, %v554
    %v731 = vpack.c.b16 %v563, %v555
    %v732 = vpack.c.b16 %v564, %v556
    %v733 = vpack.c.b16 %v565, %v557
    %v734 = vpack.c.b16 %v566, %v558
    %v735 = vpack.c.b16 %v567, %v559
    %v736 = vpack.c.b16 %v576, %v568
    %v737 = vpack.c.b16 %v577, %v569
    %v738 = vpack.c.b16 %v578, %v570
    %v739 = vpack.c.b16 %v579, %v571
    %v740 = vpack.c.b16 %v580, %v572
    %v741 = vpack.c.b16 %v581, %v573
    %v742 = vpack.c.b16 %v582, %v574
    %v743 = vpack.c.b16 %v583, %v575
    %v744 = vpack.c.b16 %v592, %v584
    %v745 = vpack.c.b16 %v593, %v585
    %v746 = vpack.c.b16 %v594, %v586
    %v747 = vpack.c.b16 %v595, %v587
    %v748 = vpack.c.b16 %v596, %v588
    %v749 = vpack.c.b16 %v597, %v589
    %v750 = vpack.c.b16 %v598, %v590
    %v751 = vpack.c.b16 %v599, %v591
    %v752 = vpack.c.b16 %v608, %v600
    %v753 = vpack.c.b16 %v609, %v601
    %v754 = vpack.c.b16 %v610, %v602
    %v755 = vpack.c.b16 %v611, %v603
    %v756 = vpack.c.b16 %v612, %v604
    %v757 = vpack.c.b16 %v613, %v605
    %v758 = vpack.c.b16 %v614, %v606
    %v759 = vpack.c.b16 %v615, %v607
    %v760 = vpack.c.b16 %v624, %v616
    %v761 = vpack.c.b16 %v625, %v617
    %v762 = vpack.c.b16 %v626, %v618
    %v763 = vpack.c.b16 %v627, %v619
    %v764 = vpack.c.b16 %v628, %v620
    %v765 = vpack.c.b16 %v629, %v621
    %v766 = vpack.c.b16 %v630, %v622
    %v767 = vpack.c.b16 %v631, %v623
    %v768 = vpack.c.b16 %v640, %v632
    %v769 = vpack.c.b16 %v641, %v633
    %v770 = vpack.c.b16 %v642, %v634
    %v771 = vpack.c.b16 %v643, %v635
    %v772 = vpack.c.b16 %v644, %v636
    %v773 = vpack.c.b16 %v645, %v637
    %v774 = vpack.c.b16 %v646, %v638
    %v775 = vpack.c.b16 %v647, %v639
    %904 = vmatprep.subr.bf16.mxu0 %v649
    %905 = vmatpush1.bf16.msra.mxu0 %v648
    %906 = vmatprep.subr.bf16.mxu0 %v657
    %907 = vmatpush1.bf16.msra.mxu0 %v656
    %908 = vmatprep.subr.bf16.mxu0 %v665
    %909 = vmatpush1.bf16.msra.mxu0 %v664
    %910 = vmatprep.subr.bf16.mxu0 %v673
    %911 = vmatpush1.bf16.msra.mxu0 %v672
    %912 = vmatprep.subr.bf16.mxu0 %v681
    %913 = vmatpush1.bf16.msra.mxu0 %v680
    %914 = vmatprep.subr.bf16.mxu0 %v689
    %915 = vmatpush1.bf16.msra.mxu0 %v688
    %916 = vmatprep.subr.bf16.mxu0 %v697
    %917 = vmatpush1.bf16.msra.mxu0 %v696
    %918 = vmatprep.subr.bf16.mxu0 %v705
    %919 = vmatpush1.bf16.msra.mxu0 %v704
    %920 = vmatprep.subr.bf16.mxu0 %v713
    %921 = vmatpush1.bf16.msra.mxu0 %v712
    %922 = vmatprep.subr.bf16.mxu0 %v721
    %923 = vmatpush1.bf16.msra.mxu0 %v720
    %924 = vmatprep.subr.bf16.mxu0 %v729
    %925 = vmatpush1.bf16.msra.mxu0 %v728
    %926 = vmatprep.subr.bf16.mxu0 %v737
    %927 = vmatpush1.bf16.msra.mxu0 %v736
    %928 = vmatprep.subr.bf16.mxu0 %v745
    %929 = vmatpush1.bf16.msra.mxu0 %v744
    %930 = vmatprep.subr.bf16.mxu0 %v753
    %931 = vmatpush1.bf16.msra.mxu0 %v752
    %932 = vmatprep.subr.bf16.mxu0 %v761
    %933 = vmatpush1.bf16.msra.mxu0 %v760
    %934 = vmatprep.subr.bf16.mxu0 %v769
    %935 = vmatpush1.bf16.msra.mxu0 %v768
    %936 = vmatprep.mubr.bf16.mxu0 %v233
    %937 = vmatmul.mubr.bf16.gmra.mrb[0].mxu0 %v232
    %v938 = vpop.f32.mrb[0].mxu0
    %v939 = vadd.f32 0.0, %v938
    %v940 = vpop.f32.mrb[0].mxu0
    %v941 = vadd.f32 0.0, %v940
    %v942 = vpop.f32.mrb[0].mxu0
    %v943 = vadd.f32 0.0, %v942
    %v944 = vpop.f32.mrb[0].mxu0
    %v945 = vadd.f32 0.0, %v944
    %946 = vmatprep.mubr.bf16.mxu0 %v235
    %947 = vmatmul.mubr.bf16.gmra.mrb[0].mxu0 %v234
    %v948 = vpop.f32.mrb[0].mxu0
    %v949 = vadd.f32 0.0, %v948
    %v950 = vpop.f32.mrb[0].mxu0
    %v951 = vadd.f32 0.0, %v950
    %v952 = vpop.f32.mrb[0].mxu0
    %v953 = vadd.f32 0.0, %v952
    %v954 = vpop.f32.mrb[0].mxu0
    %v955 = vadd.f32 0.0, %v954
    %956 = vmatprep.mubr.bf16.mxu0 %v237
    %957 = vmatmul.mubr.bf16.gmra.mrb[0].mxu0 %v236
    %v958 = vpop.f32.mrb[0].mxu0
    %v959 = vadd.f32 0.0, %v958
    %v960 = vpop.f32.mrb[0].mxu0
    %v961 = vadd.f32 0.0, %v960
    %v962 = vpop.f32.mrb[0].mxu0
    %v963 = vadd.f32 0.0, %v962
    %v964 = vpop.f32.mrb[0].mxu0
    %v965 = vadd.f32 0.0, %v964
    %966 = vmatprep.mubr.bf16.mxu0 %v239
    %967 = vmatmul.mubr.bf16.gmra.mrb[0].mxu0 %v238
    %v968 = vpop.f32.mrb[0].mxu0
    %v969 = vadd.f32 0.0, %v968
    %v970 = vpop.f32.mrb[0].mxu0
    %v971 = vadd.f32 0.0, %v970
    %v972 = vpop.f32.mrb[0].mxu0
    %v973 = vadd.f32 0.0, %v972
    %v974 = vpop.f32.mrb[0].mxu0
    %v975 = vadd.f32 0.0, %v974
    %976 = vmatprep.mubr.bf16.mxu0 %v241
    %977 = vmatmul.mubr.bf16.gmra.mrb[0].mxu0 %v240
    %v978 = vpop.f32.mrb[0].mxu0
    %v979 = vadd.f32 0.0, %v978
    %v980 = vpop.f32.mrb[0].mxu0
    %v981 = vadd.f32 0.0, %v980
    %v982 = vpop.f32.mrb[0].mxu0
    %v983 = vadd.f32 0.0, %v982
    %v984 = vpop.f32.mrb[0].mxu0
    %v985 = vadd.f32 0.0, %v984
    %986 = vmatprep.mubr.bf16.mxu0 %v243
    %987 = vmatmul.mubr.bf16.gmra.mrb[0].mxu0 %v242
    %v988 = vpop.f32.mrb[0].mxu0
    %v989 = vadd.f32 0.0, %v988
    %v990 = vpop.f32.mrb[0].mxu0
    %v991 = vadd.f32 0.0, %v990
    %v992 = vpop.f32.mrb[0].mxu0
    %v993 = vadd.f32 0.0, %v992
    %v994 = vpop.f32.mrb[0].mxu0
    %v995 = vadd.f32 0.0, %v994
    %996 = vmatprep.mubr.bf16.mxu0 %v245
    %997 = vmatmul.mubr.bf16.gmra.mrb[0].mxu0 %v244
    %v998 = vpop.f32.mrb[0].mxu0
    %v999 = vadd.f32 0.0, %v998
    %v1000 = vpop.f32.mrb[0].mxu0
    %v1001 = vadd.f32 0.0, %v1000
    %v1002 = vpop.f32.mrb[0].mxu0
    %v1003 = vadd.f32 0.0, %v1002
    %v1004 = vpop.f32.mrb[0].mxu0
    %v1005 = vadd.f32 0.0, %v1004
    %1006 = vmatprep.mubr.bf16.mxu0 %v247
    %1007 = vmatmul.mubr.bf16.gmra.mrb[0].mxu0 %v246
    %v1008 = vpop.f32.mrb[0].mxu0
    %v1009 = vadd.f32 0.0, %v1008
    %v1010 = vpop.f32.mrb[0].mxu0
    %v1011 = vadd.f32 0.0, %v1010
    %v1012 = vpop.f32.mrb[0].mxu0
    %v1013 = vadd.f32 0.0, %v1012
    %v1014 = vpop.f32.mrb[0].mxu0
    %v1015 = vadd.f32 0.0, %v1014
    %1016 = vdwg.mxu0
    %1017 = vmatprep.subr.bf16.mxu0 %v651
    %1018 = vmatpush1.bf16.msra.mxu0 %v650
    %1019 = vmatprep.subr.bf16.mxu0 %v659
    %1020 = vmatpush1.bf16.msra.mxu0 %v658
    %1021 = vmatprep.subr.bf16.mxu0 %v667
    %1022 = vmatpush1.bf16.msra.mxu0 %v666
    %1023 = vmatprep.subr.bf16.mxu0 %v675
    %1024 = vmatpush1.bf16.msra.mxu0 %v674
    %1025 = vmatprep.subr.bf16.mxu0 %v683
    %1026 = vmatpush1.bf16.msra.mxu0 %v682
    %1027 = vmatprep.subr.bf16.mxu0 %v691
    %1028 = vmatpush1.bf16.msra.mxu0 %v690
    %1029 = vmatprep.subr.bf16.mxu0 %v699
    %1030 = vmatpush1.bf16.msra.mxu0 %v698
    %1031 = vmatprep.subr.bf16.mxu0 %v707
    %1032 = vmatpush1.bf16.msra.mxu0 %v706
    %1033 = vmatprep.subr.bf16.mxu0 %v715
    %1034 = vmatpush1.bf16.msra.mxu0 %v714
    %1035 = vmatprep.subr.bf16.mxu0 %v723
    %1036 = vmatpush1.bf16.msra.mxu0 %v722
    %1037 = vmatprep.subr.bf16.mxu0 %v731
    %1038 = vmatpush1.bf16.msra.mxu0 %v730
    %1039 = vmatprep.subr.bf16.mxu0 %v739
    %1040 = vmatpush1.bf16.msra.mxu0 %v738
    %1041 = vmatprep.subr.bf16.mxu0 %v747
    %1042 = vmatpush1.bf16.msra.mxu0 %v746
    %1043 = vmatprep.subr.bf16.mxu0 %v755
    %1044 = vmatpush1.bf16.msra.mxu0 %v754
    %1045 = vmatprep.subr.bf16.mxu0 %v763
    %1046 = vmatpush1.bf16.msra.mxu0 %v762
    %1047 = vmatprep.subr.bf16.mxu0 %v771
    %1048 = vmatpush1.bf16.msra.mxu0 %v770
    %1049 = vmatprep.mubr.bf16.mxu0 %v233
    %1050 = vmatmul.mubr.bf16.gmra.mrb[0].mxu0 %v232
    %v1051 = vpop.f32.mrb[0].mxu0
    %v1052 = vadd.f32 0.0, %v1051
    %v1053 = vpop.f32.mrb[0].mxu0
    %v1054 = vadd.f32 0.0, %v1053
    %v1055 = vpop.f32.mrb[0].mxu0
    %v1056 = vadd.f32 0.0, %v1055
    %v1057 = vpop.f32.mrb[0].mxu0
    %v1058 = vadd.f32 0.0, %v1057
    %1059 = vmatprep.mubr.bf16.mxu0 %v235
    %1060 = vmatmul.mubr.bf16.gmra.mrb[0].mxu0 %v234
    %v1061 = vpop.f32.mrb[0].mxu0
    %v1062 = vadd.f32 0.0, %v1061
    %v1063 = vpop.f32.mrb[0].mxu0
    %v1064 = vadd.f32 0.0, %v1063
    %v1065 = vpop.f32.mrb[0].mxu0
    %v1066 = vadd.f32 0.0, %v1065
    %v1067 = vpop.f32.mrb[0].mxu0
    %v1068 = vadd.f32 0.0, %v1067
    %1069 = vmatprep.mubr.bf16.mxu0 %v237
    %1070 = vmatmul.mubr.bf16.gmra.mrb[0].mxu0 %v236
    %v1071 = vpop.f32.mrb[0].mxu0
    %v1072 = vadd.f32 0.0, %v1071
    %v1073 = vpop.f32.mrb[0].mxu0
    %v1074 = vadd.f32 0.0, %v1073
    %v1075 = vpop.f32.mrb[0].mxu0
    %v1076 = vadd.f32 0.0, %v1075
    %v1077 = vpop.f32.mrb[0].mxu0
    %v1078 = vadd.f32 0.0, %v1077
    %1079 = vmatprep.mubr.bf16.mxu0 %v239
    %1080 = vmatmul.mubr.bf16.gmra.mrb[0].mxu0 %v238
    %v1081 = vpop.f32.mrb[0].mxu0
    %v1082 = vadd.f32 0.0, %v1081
    %v1083 = vpop.f32.mrb[0].mxu0
    %v1084 = vadd.f32 0.0, %v1083
    %v1085 = vpop.f32.mrb[0].mxu0
    %v1086 = vadd.f32 0.0, %v1085
    %v1087 = vpop.f32.mrb[0].mxu0
    %v1088 = vadd.f32 0.0, %v1087
    %1089 = vmatprep.mubr.bf16.mxu0 %v241
    %1090 = vmatmul.mubr.bf16.gmra.mrb[0].mxu0 %v240
    %v1091 = vpop.f32.mrb[0].mxu0
    %v1092 = vadd.f32 0.0, %v1091
    %v1093 = vpop.f32.mrb[0].mxu0
    %v1094 = vadd.f32 0.0, %v1093
    %v1095 = vpop.f32.mrb[0].mxu0
    %v1096 = vadd.f32 0.0, %v1095
    %v1097 = vpop.f32.mrb[0].mxu0
    %v1098 = vadd.f32 0.0, %v1097
    %1099 = vmatprep.mubr.bf16.mxu0 %v243
    %1100 = vmatmul.mubr.bf16.gmra.mrb[0].mxu0 %v242
    %v1101 = vpop.f32.mrb[0].mxu0
    %v1102 = vadd.f32 0.0, %v1101
    %v1103 = vpop.f32.mrb[0].mxu0
    %v1104 = vadd.f32 0.0, %v1103
    %v1105 = vpop.f32.mrb[0].mxu0
    %v1106 = vadd.f32 0.0, %v1105
    %v1107 = vpop.f32.mrb[0].mxu0
    %v1108 = vadd.f32 0.0, %v1107
    %1109 = vmatprep.mubr.bf16.mxu0 %v245
    %1110 = vmatmul.mubr.bf16.gmra.mrb[0].mxu0 %v244
    %v1111 = vpop.f32.mrb[0].mxu0
    %v1112 = vadd.f32 0.0, %v1111
    %v1113 = vpop.f32.mrb[0].mxu0
    %v1114 = vadd.f32 0.0, %v1113
    %v1115 = vpop.f32.mrb[0].mxu0
    %v1116 = vadd.f32 0.0, %v1115
    %v1117 = vpop.f32.mrb[0].mxu0
    %v1118 = vadd.f32 0.0, %v1117
    %1119 = vmatprep.mubr.bf16.mxu0 %v247
    %1120 = vmatmul.mubr.bf16.gmra.mrb[0].mxu0 %v246
    %v1121 = vpop.f32.mrb[0].mxu0
    %v1122 = vadd.f32 0.0, %v1121
    %v1123 = vpop.f32.mrb[0].mxu0
    %v1124 = vadd.f32 0.0, %v1123
    %v1125 = vpop.f32.mrb[0].mxu0
    %v1126 = vadd.f32 0.0, %v1125
    %v1127 = vpop.f32.mrb[0].mxu0
    %v1128 = vadd.f32 0.0, %v1127
    %1129 = vdwg.mxu0
    %1130 = vmatprep.subr.bf16.mxu0 %v653
    %1131 = vmatpush1.bf16.msra.mxu0 %v652
    %1132 = vmatprep.subr.bf16.mxu0 %v661
    %1133 = vmatpush1.bf16.msra.mxu0 %v660
    %1134 = vmatprep.subr.bf16.mxu0 %v669
    %1135 = vmatpush1.bf16.msra.mxu0 %v668
    %1136 = vmatprep.subr.bf16.mxu0 %v677
    %1137 = vmatpush1.bf16.msra.mxu0 %v676
    %1138 = vmatprep.subr.bf16.mxu0 %v685
    %1139 = vmatpush1.bf16.msra.mxu0 %v684
    %1140 = vmatprep.subr.bf16.mxu0 %v693
    %1141 = vmatpush1.bf16.msra.mxu0 %v692
    %1142 = vmatprep.subr.bf16.mxu0 %v701
    %1143 = vmatpush1.bf16.msra.mxu0 %v700
    %1144 = vmatprep.subr.bf16.mxu0 %v709
    %1145 = vmatpush1.bf16.msra.mxu0 %v708
    %1146 = vmatprep.subr.bf16.mxu0 %v717
    %1147 = vmatpush1.bf16.msra.mxu0 %v716
    %1148 = vmatprep.subr.bf16.mxu0 %v725
    %1149 = vmatpush1.bf16.msra.mxu0 %v724
    %1150 = vmatprep.subr.bf16.mxu0 %v733
    %1151 = vmatpush1.bf16.msra.mxu0 %v732
    %1152 = vmatprep.subr.bf16.mxu0 %v741
    %1153 = vmatpush1.bf16.msra.mxu0 %v740
    %1154 = vmatprep.subr.bf16.mxu0 %v749
    %1155 = vmatpush1.bf16.msra.mxu0 %v748
    %1156 = vmatprep.subr.bf16.mxu0 %v757
    %1157 = vmatpush1.bf16.msra.mxu0 %v756
    %1158 = vmatprep.subr.bf16.mxu0 %v765
    %1159 = vmatpush1.bf16.msra.mxu0 %v764
    %1160 = vmatprep.subr.bf16.mxu0 %v773
    %1161 = vmatpush1.bf16.msra.mxu0 %v772
    %1162 = vmatprep.mubr.bf16.mxu0 %v233
    %1163 = vmatmul.mubr.bf16.gmra.mrb[0].mxu0 %v232
    %v1164 = vpop.f32.mrb[0].mxu0
    %v1165 = vadd.f32 0.0, %v1164
    %v1166 = vpop.f32.mrb[0].mxu0
    %v1167 = vadd.f32 0.0, %v1166
    %v1168 = vpop.f32.mrb[0].mxu0
    %v1169 = vadd.f32 0.0, %v1168
    %v1170 = vpop.f32.mrb[0].mxu0
    %v1171 = vadd.f32 0.0, %v1170
    %1172 = vmatprep.mubr.bf16.mxu0 %v235
    %1173 = vmatmul.mubr.bf16.gmra.mrb[0].mxu0 %v234
    %v1174 = vpop.f32.mrb[0].mxu0
    %v1175 = vadd.f32 0.0, %v1174
    %v1176 = vpop.f32.mrb[0].mxu0
    %v1177 = vadd.f32 0.0, %v1176
    %v1178 = vpop.f32.mrb[0].mxu0
    %v1179 = vadd.f32 0.0, %v1178
    %v1180 = vpop.f32.mrb[0].mxu0
    %v1181 = vadd.f32 0.0, %v1180
    %1182 = vmatprep.mubr.bf16.mxu0 %v237
    %1183 = vmatmul.mubr.bf16.gmra.mrb[0].mxu0 %v236
    %v1184 = vpop.f32.mrb[0].mxu0
    %v1185 = vadd.f32 0.0, %v1184
    %v1186 = vpop.f32.mrb[0].mxu0
    %v1187 = vadd.f32 0.0, %v1186
    %v1188 = vpop.f32.mrb[0].mxu0
    %v1189 = vadd.f32 0.0, %v1188
    %v1190 = vpop.f32.mrb[0].mxu0
    %v1191 = vadd.f32 0.0, %v1190
    %1192 = vmatprep.mubr.bf16.mxu0 %v239
    %1193 = vmatmul.mubr.bf16.gmra.mrb[0].mxu0 %v238
    %v1194 = vpop.f32.mrb[0].mxu0
    %v1195 = vadd.f32 0.0, %v1194
    %v1196 = vpop.f32.mrb[0].mxu0
    %v1197 = vadd.f32 0.0, %v1196
    %v1198 = vpop.f32.mrb[0].mxu0
    %v1199 = vadd.f32 0.0, %v1198
    %v1200 = vpop.f32.mrb[0].mxu0
    %v1201 = vadd.f32 0.0, %v1200
    %1202 = vmatprep.mubr.bf16.mxu0 %v241
    %1203 = vmatmul.mubr.bf16.gmra.mrb[0].mxu0 %v240
    %v1204 = vpop.f32.mrb[0].mxu0
    %v1205 = vadd.f32 0.0, %v1204
    %v1206 = vpop.f32.mrb[0].mxu0
    %v1207 = vadd.f32 0.0, %v1206
    %v1208 = vpop.f32.mrb[0].mxu0
    %v1209 = vadd.f32 0.0, %v1208
    %v1210 = vpop.f32.mrb[0].mxu0
    %v1211 = vadd.f32 0.0, %v1210
    %1212 = vmatprep.mubr.bf16.mxu0 %v243
    %1213 = vmatmul.mubr.bf16.gmra.mrb[0].mxu0 %v242
    %v1214 = vpop.f32.mrb[0].mxu0
    %v1215 = vadd.f32 0.0, %v1214
    %v1216 = vpop.f32.mrb[0].mxu0
    %v1217 = vadd.f32 0.0, %v1216
    %v1218 = vpop.f32.mrb[0].mxu0
    %v1219 = vadd.f32 0.0, %v1218
    %v1220 = vpop.f32.mrb[0].mxu0
    %v1221 = vadd.f32 0.0, %v1220
    %1222 = vmatprep.mubr.bf16.mxu0 %v245
    %1223 = vmatmul.mubr.bf16.gmra.mrb[0].mxu0 %v244
    %v1224 = vpop.f32.mrb[0].mxu0
    %v1225 = vadd.f32 0.0, %v1224
    %v1226 = vpop.f32.mrb[0].mxu0
    %v1227 = vadd.f32 0.0, %v1226
    %v1228 = vpop.f32.mrb[0].mxu0
    %v1229 = vadd.f32 0.0, %v1228
    %v1230 = vpop.f32.mrb[0].mxu0
    %v1231 = vadd.f32 0.0, %v1230
    %1232 = vmatprep.mubr.bf16.mxu0 %v247
    %1233 = vmatmul.mubr.bf16.gmra.mrb[0].mxu0 %v246
    %v1234 = vpop.f32.mrb[0].mxu0
    %v1235 = vadd.f32 0.0, %v1234
    %v1236 = vpop.f32.mrb[0].mxu0
    %v1237 = vadd.f32 0.0, %v1236
    %v1238 = vpop.f32.mrb[0].mxu0
    %v1239 = vadd.f32 0.0, %v1238
    %v1240 = vpop.f32.mrb[0].mxu0
    %v1241 = vadd.f32 0.0, %v1240
    %1242 = vdwg.mxu0
    %1243 = vmatprep.subr.bf16.mxu0 %v655
    %1244 = vmatpush1.bf16.msra.mxu0 %v654
    %1245 = vmatprep.subr.bf16.mxu0 %v663
    %1246 = vmatpush1.bf16.msra.mxu0 %v662
    %1247 = vmatprep.subr.bf16.mxu0 %v671
    %1248 = vmatpush1.bf16.msra.mxu0 %v670
    %1249 = vmatprep.subr.bf16.mxu0 %v679
    %1250 = vmatpush1.bf16.msra.mxu0 %v678
    %1251 = vmatprep.subr.bf16.mxu0 %v687
    %1252 = vmatpush1.bf16.msra.mxu0 %v686
    %1253 = vmatprep.subr.bf16.mxu0 %v695
    %1254 = vmatpush1.bf16.msra.mxu0 %v694
    %1255 = vmatprep.subr.bf16.mxu0 %v703
    %1256 = vmatpush1.bf16.msra.mxu0 %v702
    %1257 = vmatprep.subr.bf16.mxu0 %v711
    %1258 = vmatpush1.bf16.msra.mxu0 %v710
    %1259 = vmatprep.subr.bf16.mxu0 %v719
    %1260 = vmatpush1.bf16.msra.mxu0 %v718
    %1261 = vmatprep.subr.bf16.mxu0 %v727
    %1262 = vmatpush1.bf16.msra.mxu0 %v726
    %1263 = vmatprep.subr.bf16.mxu0 %v735
    %1264 = vmatpush1.bf16.msra.mxu0 %v734
    %1265 = vmatprep.subr.bf16.mxu0 %v743
    %1266 = vmatpush1.bf16.msra.mxu0 %v742
    %1267 = vmatprep.subr.bf16.mxu0 %v751
    %1268 = vmatpush1.bf16.msra.mxu0 %v750
    %1269 = vmatprep.subr.bf16.mxu0 %v759
    %1270 = vmatpush1.bf16.msra.mxu0 %v758
    %1271 = vmatprep.subr.bf16.mxu0 %v767
    %1272 = vmatpush1.bf16.msra.mxu0 %v766
    %1273 = vmatprep.subr.bf16.mxu0 %v775
    %1274 = vmatpush1.bf16.msra.mxu0 %v774
    %1275 = vmatprep.mubr.bf16.mxu0 %v233
    %1276 = vmatmul.mubr.bf16.gmra.mrb[0].mxu0 %v232
    %v1277 = vpop.f32.mrb[0].mxu0
    %v1278 = vadd.f32 0.0, %v1277
    %v1279 = vpop.f32.mrb[0].mxu0
    %v1280 = vadd.f32 0.0, %v1279
    %v1281 = vpop.f32.mrb[0].mxu0
    %v1282 = vadd.f32 0.0, %v1281
    %v1283 = vpop.f32.mrb[0].mxu0
    %v1284 = vadd.f32 0.0, %v1283
    %1285 = vmatprep.mubr.bf16.mxu0 %v235
    %1286 = vmatmul.mubr.bf16.gmra.mrb[0].mxu0 %v234
    %v1287 = vpop.f32.mrb[0].mxu0
    %v1288 = vadd.f32 0.0, %v1287
    %v1289 = vpop.f32.mrb[0].mxu0
    %v1290 = vadd.f32 0.0, %v1289
    %v1291 = vpop.f32.mrb[0].mxu0
    %v1292 = vadd.f32 0.0, %v1291
    %v1293 = vpop.f32.mrb[0].mxu0
    %v1294 = vadd.f32 0.0, %v1293
    %1295 = vmatprep.mubr.bf16.mxu0 %v237
    %1296 = vmatmul.mubr.bf16.gmra.mrb[0].mxu0 %v236
    %v1297 = vpop.f32.mrb[0].mxu0
    %v1298 = vadd.f32 0.0, %v1297
    %v1299 = vpop.f32.mrb[0].mxu0
    %v1300 = vadd.f32 0.0, %v1299
    %v1301 = vpop.f32.mrb[0].mxu0
    %v1302 = vadd.f32 0.0, %v1301
    %v1303 = vpop.f32.mrb[0].mxu0
    %v1304 = vadd.f32 0.0, %v1303
    %1305 = vmatprep.mubr.bf16.mxu0 %v239
    %1306 = vmatmul.mubr.bf16.gmra.mrb[0].mxu0 %v238
    %v1307 = vpop.f32.mrb[0].mxu0
    %v1308 = vadd.f32 0.0, %v1307
    %v1309 = vpop.f32.mrb[0].mxu0
    %v1310 = vadd.f32 0.0, %v1309
    %v1311 = vpop.f32.mrb[0].mxu0
    %v1312 = vadd.f32 0.0, %v1311
    %v1313 = vpop.f32.mrb[0].mxu0
    %v1314 = vadd.f32 0.0, %v1313
    %1315 = vmatprep.mubr.bf16.mxu0 %v241
    %1316 = vmatmul.mubr.bf16.gmra.mrb[0].mxu0 %v240
    %v1317 = vpop.f32.mrb[0].mxu0
    %v1318 = vadd.f32 0.0, %v1317
    %v1319 = vpop.f32.mrb[0].mxu0
    %v1320 = vadd.f32 0.0, %v1319
    %v1321 = vpop.f32.mrb[0].mxu0
    %v1322 = vadd.f32 0.0, %v1321
    %v1323 = vpop.f32.mrb[0].mxu0
    %v1324 = vadd.f32 0.0, %v1323
    %1325 = vmatprep.mubr.bf16.mxu0 %v243
    %1326 = vmatmul.mubr.bf16.gmra.mrb[0].mxu0 %v242
    %v1327 = vpop.f32.mrb[0].mxu0
    %v1328 = vadd.f32 0.0, %v1327
    %v1329 = vpop.f32.mrb[0].mxu0
    %v1330 = vadd.f32 0.0, %v1329
    %v1331 = vpop.f32.mrb[0].mxu0
    %v1332 = vadd.f32 0.0, %v1331
    %v1333 = vpop.f32.mrb[0].mxu0
    %v1334 = vadd.f32 0.0, %v1333
    %1335 = vmatprep.mubr.bf16.mxu0 %v245
    %1336 = vmatmul.mubr.bf16.gmra.mrb[0].mxu0 %v244
    %v1337 = vpop.f32.mrb[0].mxu0
    %v1338 = vadd.f32 0.0, %v1337
    %v1339 = vpop.f32.mrb[0].mxu0
    %v1340 = vadd.f32 0.0, %v1339
    %v1341 = vpop.f32.mrb[0].mxu0
    %v1342 = vadd.f32 0.0, %v1341
    %v1343 = vpop.f32.mrb[0].mxu0
    %v1344 = vadd.f32 0.0, %v1343
    %1345 = vmatprep.mubr.bf16.mxu0 %v247
    %1346 = vmatmul.mubr.bf16.gmra.mrb[0].mxu0 %v246
    %v1347 = vpop.f32.mrb[0].mxu0
    %v1348 = vadd.f32 0.0, %v1347
    %v1349 = vpop.f32.mrb[0].mxu0
    %v1350 = vadd.f32 0.0, %v1349
    %v1351 = vpop.f32.mrb[0].mxu0
    %v1352 = vadd.f32 0.0, %v1351
    %v1353 = vpop.f32.mrb[0].mxu0
    %v1354 = vadd.f32 0.0, %v1353
    %1355 = vdwg.mxu0
    %v1356 = vmax.f32 %v939, %v979
    %v1357 = vmax.f32 %v941, %v981
    %v1358 = vmax.f32 %v1052, %v1092
    %v1359 = vmax.f32 %v1054, %v1094
    %v1360 = vmax.f32 %v1165, %v1205
    %v1361 = vmax.f32 %v1167, %v1207
    %v1362 = vmax.f32 %v1278, %v1318
    %v1363 = vmax.f32 %v1280, %v1320
    %v1364 = vmax.f32 %v943, %v983
    %v1365 = vmax.f32 %v945, %v985
    %v1366 = vmax.f32 %v1056, %v1096
    %v1367 = vmax.f32 %v1058, %v1098
    %v1368 = vmax.f32 %v1169, %v1209
    %v1369 = vmax.f32 %v1171, %v1211
    %v1370 = vmax.f32 %v1282, %v1322
    %v1371 = vmax.f32 %v1284, %v1324
    %v1372 = vmax.f32 %v949, %v989
    %v1373 = vmax.f32 %v951, %v991
    %v1374 = vmax.f32 %v1062, %v1102
    %v1375 = vmax.f32 %v1064, %v1104
    %v1376 = vmax.f32 %v1175, %v1215
    %v1377 = vmax.f32 %v1177, %v1217
    %v1378 = vmax.f32 %v1288, %v1328
    %v1379 = vmax.f32 %v1290, %v1330
    %v1380 = vmax.f32 %v953, %v993
    %v1381 = vmax.f32 %v955, %v995
    %v1382 = vmax.f32 %v1066, %v1106
    %v1383 = vmax.f32 %v1068, %v1108
    %v1384 = vmax.f32 %v1179, %v1219
    %v1385 = vmax.f32 %v1181, %v1221
    %v1386 = vmax.f32 %v1292, %v1332
    %v1387 = vmax.f32 %v1294, %v1334
    %v1388 = vmax.f32 %v959, %v999
    %v1389 = vmax.f32 %v961, %v1001
    %v1390 = vmax.f32 %v1072, %v1112
    %v1391 = vmax.f32 %v1074, %v1114
    %v1392 = vmax.f32 %v1185, %v1225
    %v1393 = vmax.f32 %v1187, %v1227
    %v1394 = vmax.f32 %v1298, %v1338
    %v1395 = vmax.f32 %v1300, %v1340
    %v1396 = vmax.f32 %v963, %v1003
    %v1397 = vmax.f32 %v965, %v1005
    %v1398 = vmax.f32 %v1076, %v1116
    %v1399 = vmax.f32 %v1078, %v1118
    %v1400 = vmax.f32 %v1189, %v1229
    %v1401 = vmax.f32 %v1191, %v1231
    %v1402 = vmax.f32 %v1302, %v1342
    %v1403 = vmax.f32 %v1304, %v1344
    %v1404 = vmax.f32 %v969, %v1009
    %v1405 = vmax.f32 %v971, %v1011
    %v1406 = vmax.f32 %v1082, %v1122
    %v1407 = vmax.f32 %v1084, %v1124
    %v1408 = vmax.f32 %v1195, %v1235
    %v1409 = vmax.f32 %v1197, %v1237
    %v1410 = vmax.f32 %v1308, %v1348
    %v1411 = vmax.f32 %v1310, %v1350
    %v1412 = vmax.f32 %v973, %v1013
    %v1413 = vmax.f32 %v975, %v1015
    %v1414 = vmax.f32 %v1086, %v1126
    %v1415 = vmax.f32 %v1088, %v1128
    %v1416 = vmax.f32 %v1199, %v1239
    %v1417 = vmax.f32 %v1201, %v1241
    %v1418 = vmax.f32 %v1312, %v1352
    %v1419 = vmax.f32 %v1314, %v1354
    %v1420 = vmax.f32 %v1356, %v1360
    %v1421 = vmax.f32 %v1357, %v1361
    %v1422 = vmax.f32 %v1358, %v1362
    %v1423 = vmax.f32 %v1359, %v1363
    %v1424 = vmax.f32 %v1364, %v1368
    %v1425 = vmax.f32 %v1365, %v1369
    %v1426 = vmax.f32 %v1366, %v1370
    %v1427 = vmax.f32 %v1367, %v1371
    %v1428 = vmax.f32 %v1372, %v1376
    %v1429 = vmax.f32 %v1373, %v1377
    %v1430 = vmax.f32 %v1374, %v1378
    %v1431 = vmax.f32 %v1375, %v1379
    %v1432 = vmax.f32 %v1380, %v1384
    %v1433 = vmax.f32 %v1381, %v1385
    %v1434 = vmax.f32 %v1382, %v1386
    %v1435 = vmax.f32 %v1383, %v1387
    %v1436 = vmax.f32 %v1388, %v1392
    %v1437 = vmax.f32 %v1389, %v1393
    %v1438 = vmax.f32 %v1390, %v1394
    %v1439 = vmax.f32 %v1391, %v1395
    %v1440 = vmax.f32 %v1396, %v1400
    %v1441 = vmax.f32 %v1397, %v1401
    %v1442 = vmax.f32 %v1398, %v1402
    %v1443 = vmax.f32 %v1399, %v1403
    %v1444 = vmax.f32 %v1404, %v1408
    %v1445 = vmax.f32 %v1405, %v1409
    %v1446 = vmax.f32 %v1406, %v1410
    %v1447 = vmax.f32 %v1407, %v1411
    %v1448 = vmax.f32 %v1412, %v1416
    %v1449 = vmax.f32 %v1413, %v1417
    %v1450 = vmax.f32 %v1414, %v1418
    %v1451 = vmax.f32 %v1415, %v1419
    %v1452 = vld [vmem:[#allocation4] sm:$0xf]
    %v1454 = vlaneseq
    %v1455 = vshrl.u32 %v1454, 7
    %v1456 = vsub.s32 0, %v1455
    %v1457 = vrot.slane %v1452, %v1456
    %v1458 = vlaneseq
    %v1459 = vshrl.u32 %v1458, 7
    %v1460 = vsub.s32 1, %v1459
    %v1461 = vrot.slane %v1452, %v1460
    %v1462 = vlaneseq
    %v1463 = vshrl.u32 %v1462, 7
    %v1464 = vsub.s32 2, %v1463
    %v1465 = vrot.slane %v1452, %v1464
    %v1466 = vlaneseq
    %v1467 = vshrl.u32 %v1466, 7
    %v1468 = vsub.s32 3, %v1467
    %v1469 = vrot.slane %v1452, %v1468
    %v1474 = vadd.f32 %v1420, %v1457
    %v1475 = vadd.f32 %v1421, %v1461
    %v1476 = vadd.f32 %v1422, %v1465
    %v1477 = vadd.f32 %v1423, %v1469
    %v1478 = vadd.f32 %v1424, %v1457
    %v1479 = vadd.f32 %v1425, %v1461
    %v1480 = vadd.f32 %v1426, %v1465
    %v1481 = vadd.f32 %v1427, %v1469
    %v1482 = vadd.f32 %v1428, %v1457
    %v1483 = vadd.f32 %v1429, %v1461
    %v1484 = vadd.f32 %v1430, %v1465
    %v1485 = vadd.f32 %v1431, %v1469
    %v1486 = vadd.f32 %v1432, %v1457
    %v1487 = vadd.f32 %v1433, %v1461
    %v1488 = vadd.f32 %v1434, %v1465
    %v1489 = vadd.f32 %v1435, %v1469
    %v1490 = vadd.f32 %v1436, %v1457
    %v1491 = vadd.f32 %v1437, %v1461
    %v1492 = vadd.f32 %v1438, %v1465
    %v1493 = vadd.f32 %v1439, %v1469
    %v1494 = vadd.f32 %v1440, %v1457
    %v1495 = vadd.f32 %v1441, %v1461
    %v1496 = vadd.f32 %v1442, %v1465
    %v1497 = vadd.f32 %v1443, %v1469
    %v1498 = vadd.f32 %v1444, %v1457
    %v1499 = vadd.f32 %v1445, %v1461
    %v1500 = vadd.f32 %v1446, %v1465
    %v1501 = vadd.f32 %v1447, %v1469
    %v1502 = vadd.f32 %v1448, %v1457
    %v1503 = vadd.f32 %v1449, %v1461
    %v1504 = vadd.f32 %v1450, %v1465
    %v1505 = vadd.f32 %v1451, %v1469
    %v1506 = vmax.f32 %v1474, 0.0
    %v1507 = vmax.f32 %v1475, 0.0
    %v1508 = vmax.f32 %v1476, 0.0
    %v1509 = vmax.f32 %v1477, 0.0
    %v1510 = vmax.f32 %v1478, 0.0
    %v1511 = vmax.f32 %v1479, 0.0
    %v1512 = vmax.f32 %v1480, 0.0
    %v1513 = vmax.f32 %v1481, 0.0
    %v1514 = vmax.f32 %v1482, 0.0
    %v1515 = vmax.f32 %v1483, 0.0
    %v1516 = vmax.f32 %v1484, 0.0
    %v1517 = vmax.f32 %v1485, 0.0
    %v1518 = vmax.f32 %v1486, 0.0
    %v1519 = vmax.f32 %v1487, 0.0
    %v1520 = vmax.f32 %v1488, 0.0
    %v1521 = vmax.f32 %v1489, 0.0
    %v1522 = vmax.f32 %v1490, 0.0
    %v1523 = vmax.f32 %v1491, 0.0
    %v1524 = vmax.f32 %v1492, 0.0
    %v1525 = vmax.f32 %v1493, 0.0
    %v1526 = vmax.f32 %v1494, 0.0
    %v1527 = vmax.f32 %v1495, 0.0
    %v1528 = vmax.f32 %v1496, 0.0
    %v1529 = vmax.f32 %v1497, 0.0
    %v1530 = vmax.f32 %v1498, 0.0
    %v1531 = vmax.f32 %v1499, 0.0
    %v1532 = vmax.f32 %v1500, 0.0
    %v1533 = vmax.f32 %v1501, 0.0
    %v1534 = vmax.f32 %v1502, 0.0
    %v1535 = vmax.f32 %v1503, 0.0
    %v1536 = vmax.f32 %v1504, 0.0
    %v1537 = vmax.f32 %v1505, 0.0
    %v1538 = vpack.c.bf16 %v1510, %v1506
    %v1539 = vpack.c.bf16 %v1511, %v1507
    %v1540 = vpack.c.bf16 %v1512, %v1508
    %v1541 = vpack.c.bf16 %v1513, %v1509
    %v1542 = vpack.c.bf16 %v1518, %v1514
    %v1543 = vpack.c.bf16 %v1519, %v1515
    %v1544 = vpack.c.bf16 %v1520, %v1516
    %v1545 = vpack.c.bf16 %v1521, %v1517
    %v1546 = vpack.c.bf16 %v1526, %v1522
    %v1547 = vpack.c.bf16 %v1527, %v1523
    %v1548 = vpack.c.bf16 %v1528, %v1524
    %v1549 = vpack.c.bf16 %v1529, %v1525
    %v1550 = vpack.c.bf16 %v1534, %v1530
    %v1551 = vpack.c.bf16 %v1535, %v1531
    %v1552 = vpack.c.bf16 %v1536, %v1532
    %v1553 = vpack.c.bf16 %v1537, %v1533
    %v1570 = vunpack.c.l.b16 %v1538
    %v1571 = vunpack.c.l.b16 %v1539
    %v1572 = vunpack.c.l.b16 %v1540
    %v1573 = vunpack.c.l.b16 %v1541
    %v1574 = vunpack.c.h.b16 %v1538
    %v1575 = vunpack.c.h.b16 %v1539
    %v1576 = vunpack.c.h.b16 %v1540
    %v1577 = vunpack.c.h.b16 %v1541
    %v1578 = vunpack.c.l.b16 %v1542
    %v1579 = vunpack.c.l.b16 %v1543
    %v1580 = vunpack.c.l.b16 %v1544
    %v1581 = vunpack.c.l.b16 %v1545
    %v1582 = vunpack.c.h.b16 %v1542
    %v1583 = vunpack.c.h.b16 %v1543
    %v1584 = vunpack.c.h.b16 %v1544
    %v1585 = vunpack.c.h.b16 %v1545
    %v1586 = vunpack.c.l.b16 %v1546
    %v1587 = vunpack.c.l.b16 %v1547
    %v1588 = vunpack.c.l.b16 %v1548
    %v1589 = vunpack.c.l.b16 %v1549
    %v1590 = vunpack.c.h.b16 %v1546
    %v1591 = vunpack.c.h.b16 %v1547
    %v1592 = vunpack.c.h.b16 %v1548
    %v1593 = vunpack.c.h.b16 %v1549
    %v1594 = vunpack.c.l.b16 %v1550
    %v1595 = vunpack.c.l.b16 %v1551
    %v1596 = vunpack.c.l.b16 %v1552
    %v1597 = vunpack.c.l.b16 %v1553
    %v1598 = vunpack.c.h.b16 %v1550
    %v1599 = vunpack.c.h.b16 %v1551
    %v1600 = vunpack.c.h.b16 %v1552
    %v1601 = vunpack.c.h.b16 %v1553
    %v1602 = vpack.c.b16 %v1571, %v1570
    %v1603 = vpack.c.b16 %v1573, %v1572
    %v1604 = vpack.c.b16 %v1575, %v1574
    %v1605 = vpack.c.b16 %v1577, %v1576
    %v1606 = vpack.c.b16 %v1579, %v1578
    %v1607 = vpack.c.b16 %v1581, %v1580
    %v1608 = vpack.c.b16 %v1583, %v1582
    %v1609 = vpack.c.b16 %v1585, %v1584
    %v1610 = vpack.c.b16 %v1587, %v1586
    %v1611 = vpack.c.b16 %v1589, %v1588
    %v1612 = vpack.c.b16 %v1591, %v1590
    %v1613 = vpack.c.b16 %v1593, %v1592
    %v1614 = vpack.c.b16 %v1595, %v1594
    %v1615 = vpack.c.b16 %v1597, %v1596
    %v1616 = vpack.c.b16 %v1599, %v1598
    %v1617 = vpack.c.b16 %v1601, %v1600
    %1634 = vst [vmem:[%s3] sm:$0xff] %v1602
    %1635 = vst [vmem:[%s3 + $0x8] sm:$0xff] %v1603
    %1636 = vst [vmem:[%s3 + $0x10] sm:$0xff] %v1604
    %1637 = vst [vmem:[%s3 + $0x18] sm:$0xff] %v1605
    %1638 = vst [vmem:[%s3 + $0x20] sm:$0xff] %v1606
    %1639 = vst [vmem:[%s3 + $0x28] sm:$0xff] %v1607
    %1640 = vst [vmem:[%s3 + $0x30] sm:$0xff] %v1608
    %1641 = vst [vmem:[%s3 + $0x38] sm:$0xff] %v1609
    %1642 = vst [vmem:[%s3 + $0x40] sm:$0xff] %v1610
    %1643 = vst [vmem:[%s3 + $0x48] sm:$0xff] %v1611
    %1644 = vst [vmem:[%s3 + $0x50] sm:$0xff] %v1612
    %1645 = vst [vmem:[%s3 + $0x58] sm:$0xff] %v1613
    %1646 = vst [vmem:[%s3 + $0x60] sm:$0xff] %v1614
    %1647 = vst [vmem:[%s3 + $0x68] sm:$0xff] %v1615
    %1648 = vst [vmem:[%s3 + $0x70] sm:$0xff] %v1616
    %1649 = vst [vmem:[%s3 + $0x78] sm:$0xff] %v1617
    // Predicated region
    $region22: #{cnn_forward.2} parent=1 // pred_check
      _
    $region23: #{cnn_forward.2} parent=1 // pred_check_branch
      %1651 = sbr.rel (0) target = $region25
    $region24: #{cnn_forward.2} parent=1 // pred_region
      _
    $region25: #{cnn_forward.2} parent=1 // pred_fallthru
      _
    // Predicated region
    $region26: #{cnn_forward.2} parent=1 // pred_check
      _
    $region27: #{cnn_forward.2} parent=1 // pred_check_branch
      %1653 = sbr.rel (0) target = $region29
    $region28: #{cnn_forward.2} parent=1 // pred_region
      _
    $region29: #{cnn_forward.2} parent=1 // pred_fallthru
      _
    %1654 = vsyncpa [#allocation3], 1
    %1655 = vsyncpa [#allocation5], 1

// kernel: cnn_forward.3
$region0: #{cnn_forward.3}
  #allocation0 [shape = 'u32[]', space=smem, size = 0x4, offset = 0x4, fixed_abs, tag = 'smem constant byte address 0x4 - core index']
  #allocation1 [shape = 'u32[144,128]{1,0:T(1,128)}', space=vmem, size = 0x12000, scoped, tag = 'internal scratch']
  %s0 = inlined_call_operand.vmem [shape: bf16[2,16384], index: 0, kind: input, shape index: {}]
  %s1 = inlined_call_operand.hbm [shape: bf16[1,16384,128], index: 1, kind: input, shape index: {}]
  %s2 = inlined_call_operand.hbm [shape: f32[1,1,128], index: 2, kind: input, shape index: {}]
  %s3 = inlined_call_operand.vmem [shape: f32[1,2,128], index: 3, kind: output, shape index: {}]
  %s4 = sld [smem:[#allocation0]]
  $region30: #{cnn_forward.3} parent=0
    _
  %s6 = ssub.s32 1, %s4
  %s7 = scalar_select 0, %s6, %s4
  $region1: #{cnn_forward.3} parent=0
    #allocation2 [shape = 'u8[4194304]{0}', space=vmem, size = 0x400000, scoped, tag = 'input window, operand 1, single buffered']
    #allocation3 [shape = 's32[1]{0}', space=sflag, size = 0x4, scoped, tag = 'scoped memory for cnn_forward.3']
    #allocation4 [shape = 'u8[512]{0}', space=vmem, size = 0x400, scoped, tag = 'input window, operand 2, single buffered']
    #allocation5 [shape = 's32[1]{0}', space=sflag, size = 0x4, scoped, tag = 'scoped memory for cnn_forward.3']
    %8 = vsyncpa [#allocation3], 0
    %9 = vsyncpa [#allocation5], 0
    // Predicated region
    $region2: #{cnn_forward.3} parent=1 // pred_check
      _
    $region3: #{cnn_forward.3} parent=1 // pred_check_branch
      %11 = sbr.rel (0) target = $region5
    $region4: #{cnn_forward.3} parent=1 // pred_region
      _
    $region5: #{cnn_forward.3} parent=1 // pred_fallthru
      _
    // Predicated region
    $region6: #{cnn_forward.3} parent=1 // pred_check
      _
    $region7: #{cnn_forward.3} parent=1 // pred_check_branch
      %13 = sbr.rel (0) target = $region9
    $region8: #{cnn_forward.3} parent=1 // pred_region
      %s15 = ssub.s32 131072, 131072
      %16 = vsyncadd [#allocation3], %s15
      %s17 = sshll.u32 [#allocation2], 4
      %s18 = int_to_ptr.vmem [resolvable:$true] %s17
      %23 = dma.hbm_to_vmem [thread:$0]  %s1, 131072, %s18, [#allocation3], 64, 64, 4
    $region9: #{cnn_forward.3} parent=1 // pred_fallthru
      _
    // Predicated region
    $region10: #{cnn_forward.3} parent=1 // pred_check
      _
    $region11: #{cnn_forward.3} parent=1 // pred_check_branch
      %25 = sbr.rel (0) target = $region13
    $region12: #{cnn_forward.3} parent=1 // pred_region
      %s27 = ssub.s32 16, 16
      %28 = vsyncadd [#allocation5], %s27
      %s30 = sshll.u32 [#allocation4], 4
      %s31 = int_to_ptr.vmem [resolvable:$true] %s30
      %33 = dma.hbm_to_vmem [thread:$0]  %s2, 16, %s31, [#allocation5]
    $region13: #{cnn_forward.3} parent=1 // pred_fallthru
      _
    // Predicated region
    $region14: #{cnn_forward.3} parent=1 // pred_check
      _
    $region15: #{cnn_forward.3} parent=1 // pred_check_branch
      %35 = sbr.rel (0) target = $region17
    $region16: #{cnn_forward.3} parent=1 // pred_region
      %36 = dma.done [#allocation3], 131072
    $region17: #{cnn_forward.3} parent=1 // pred_fallthru
      _
    // Predicated region
    $region18: #{cnn_forward.3} parent=1 // pred_check
      _
    $region19: #{cnn_forward.3} parent=1 // pred_check_branch
      %38 = sbr.rel (0) target = $region21
    $region20: #{cnn_forward.3} parent=1 // pred_region
      %39 = dma.done [#allocation5], 16
    $region21: #{cnn_forward.3} parent=1 // pred_fallthru
      _
    %v41 = vld [vmem:[%s0] sm:$0xff]
    %v42 = vld [vmem:[%s0 + $0x8] sm:$0xff]
    %v43 = vld [vmem:[%s0 + $0x10] sm:$0xff]
    %v44 = vld [vmem:[%s0 + $0x18] sm:$0xff]
    %v45 = vld [vmem:[%s0 + $0x20] sm:$0xff]
    %v46 = vld [vmem:[%s0 + $0x28] sm:$0xff]
    %v47 = vld [vmem:[%s0 + $0x30] sm:$0xff]
    %v48 = vld [vmem:[%s0 + $0x38] sm:$0xff]
    %v49 = vld [vmem:[%s0 + $0x40] sm:$0xff]
    %v50 = vld [vmem:[%s0 + $0x48] sm:$0xff]
    %v51 = vld [vmem:[%s0 + $0x50] sm:$0xff]
    %v52 = vld [vmem:[%s0 + $0x58] sm:$0xff]
    %v53 = vld [vmem:[%s0 + $0x60] sm:$0xff]
    %v54 = vld [vmem:[%s0 + $0x68] sm:$0xff]
    %v55 = vld [vmem:[%s0 + $0x70] sm:$0xff]
    %v56 = vld [vmem:[%s0 + $0x78] sm:$0xff]
    %v57 = vld [vmem:[#allocation2] sm:$0xf]
    %v58 = vld [vmem:[#allocation2 + $0x4] sm:$0xf]
    %v59 = vld [vmem:[#allocation2 + $0x8] sm:$0xf]
    %v60 = vld [vmem:[#allocation2 + $0xc] sm:$0xf]
    %v61 = vld [vmem:[#allocation2 + $0x10] sm:$0xf]
    %v62 = vld [vmem:[#allocation2 + $0x14] sm:$0xf]
    %v63 = vld [vmem:[#allocation2 + $0x18] sm:$0xf]
    %v64 = vld [vmem:[#allocation2 + $0x1c] sm:$0xf]
    %v65 = vld [vmem:[#allocation2 + $0x20] sm:$0xf]
    %v66 = vld [vmem:[#allocation2 + $0x24] sm:$0xf]
    %v67 = vld [vmem:[#allocation2 + $0x28] sm:$0xf]
    %v68 = vld [vmem:[#allocation2 + $0x2c] sm:$0xf]
    %v69 = vld [vmem:[#allocation2 + $0x30] sm:$0xf]
    %v70 = vld [vmem:[#allocation2 + $0x34] sm:$0xf]
    %v71 = vld [vmem:[#allocation2 + $0x38] sm:$0xf]
    %v72 = vld [vmem:[#allocation2 + $0x3c] sm:$0xf]
    %v73 = vld [vmem:[#allocation2 + $0x40] sm:$0xf]
    %v74 = vld [vmem:[#allocation2 + $0x44] sm:$0xf]
    %v75 = vld [vmem:[#allocation2 + $0x48] sm:$0xf]
    %v76 = vld [vmem:[#allocation2 + $0x4c] sm:$0xf]
    %v77 = vld [vmem:[#allocation2 + $0x50] sm:$0xf]
    %v78 = vld [vmem:[#allocation2 + $0x54] sm:$0xf]
    %v79 = vld [vmem:[#allocation2 + $0x58] sm:$0xf]
    %v80 = vld [vmem:[#allocation2 + $0x5c] sm:$0xf]
    %v81 = vld [vmem:[#allocation2 + $0x60] sm:$0xf]
    %v82 = vld [vmem:[#allocation2 + $0x64] sm:$0xf]
    %v83 = vld [vmem:[#allocation2 + $0x68] sm:$0xf]
    %v84 = vld [vmem:[#allocation2 + $0x6c] sm:$0xf]
    %v85 = vld [vmem:[#allocation2 + $0x70] sm:$0xf]
    %v86 = vld [vmem:[#allocation2 + $0x74] sm:$0xf]
    %v87 = vld [vmem:[#allocation2 + $0x78] sm:$0xf]
    %v88 = vld [vmem:[#allocation2 + $0x7c] sm:$0xf]
    %v89 = vld [vmem:[#allocation2 + $0x80] sm:$0xf]
    %v90 = vld [vmem:[#allocation2 + $0x84] sm:$0xf]
    %v91 = vld [vmem:[#allocation2 + $0x88] sm:$0xf]
    %v92 = vld [vmem:[#allocation2 + $0x8c] sm:$0xf]
    %v93 = vld [vmem:[#allocation2 + $0x90] sm:$0xf]
    %v94 = vld [vmem:[#allocation2 + $0x94] sm:$0xf]
    %v95 = vld [vmem:[#allocation2 + $0x98] sm:$0xf]
    %v96 = vld [vmem:[#allocation2 + $0x9c] sm:$0xf]
    %v97 = vld [vmem:[#allocation2 + $0xa0] sm:$0xf]
    %v98 = vld [vmem:[#allocation2 + $0xa4] sm:$0xf]
    %v99 = vld [vmem:[#allocation2 + $0xa8] sm:$0xf]
    %v100 = vld [vmem:[#allocation2 + $0xac] sm:$0xf]
    %v101 = vld [vmem:[#allocation2 + $0xb0] sm:$0xf]
    %v102 = vld [vmem:[#allocation2 + $0xb4] sm:$0xf]
    %v103 = vld [vmem:[#allocation2 + $0xb8] sm:$0xf]
    %v104 = vld [vmem:[#allocation2 + $0xbc] sm:$0xf]
    %v105 = vld [vmem:[#allocation2 + $0xc0] sm:$0xf]
    %v106 = vld [vmem:[#allocation2 + $0xc4] sm:$0xf]
    %v107 = vld [vmem:[#allocation2 + $0xc8] sm:$0xf]
    %v108 = vld [vmem:[#allocation2 + $0xcc] sm:$0xf]
    %v109 = vld [vmem:[#allocation2 + $0xd0] sm:$0xf]
    %v110 = vld [vmem:[#allocation2 + $0xd4] sm:$0xf]
    %v111 = vld [vmem:[#allocation2 + $0xd8] sm:$0xf]
    %v112 = vld [vmem:[#allocation2 + $0xdc] sm:$0xf]
    %v113 = vld [vmem:[#allocation2 + $0xe0] sm:$0xf]
    %v114 = vld [vmem:[#allocation2 + $0xe4] sm:$0xf]
    %v115 = vld [vmem:[#allocation2 + $0xe8] sm:$0xf]
    %v116 = vld [vmem:[#allocation2 + $0xec] sm:$0xf]
    %v117 = vld [vmem:[#allocation2 + $0xf0] sm:$0xf]
    %v118 = vld [vmem:[#allocation2 + $0xf4] sm:$0xf]
    %v119 = vld [vmem:[#allocation2 + $0xf8] sm:$0xf]
    %v120 = vld [vmem:[#allocation2 + $0xfc] sm:$0xf]
    %v121 = vld [vmem:[#allocation2 + $0x100] sm:$0xf]
    %v122 = vld [vmem:[#allocation2 + $0x104] sm:$0xf]
    %v123 = vld [vmem:[#allocation2 + $0x108] sm:$0xf]
    %v124 = vld [vmem:[#allocation2 + $0x10c] sm:$0xf]
    %v125 = vld [vmem:[#allocation2 + $0x110] sm:$0xf]
    %v126 = vld [vmem:[#allocation2 + $0x114] sm:$0xf]
    %v127 = vld [vmem:[#allocation2 + $0x118] sm:$0xf]
    %v128 = vld [vmem:[#allocation2 + $0x11c] sm:$0xf]
    %v129 = vld [vmem:[#allocation2 + $0x120] sm:$0xf]
    %v130 = vld [vmem:[#allocation2 + $0x124] sm:$0xf]
    %v131 = vld [vmem:[#allocation2 + $0x128] sm:$0xf]
    %v132 = vld [vmem:[#allocation2 + $0x12c] sm:$0xf]
    %v133 = vld [vmem:[#allocation2 + $0x130] sm:$0xf]
    %v134 = vld [vmem:[#allocation2 + $0x134] sm:$0xf]
    %v135 = vld [vmem:[#allocation2 + $0x138] sm:$0xf]
    %v136 = vld [vmem:[#allocation2 + $0x13c] sm:$0xf]
    %v137 = vld [vmem:[#allocation2 + $0x140] sm:$0xf]
    %v138 = vld [vmem:[#allocation2 + $0x144] sm:$0xf]
    %v139 = vld [vmem:[#allocation2 + $0x148] sm:$0xf]
    %v140 = vld [vmem:[#allocation2 + $0x14c] sm:$0xf]
    %v141 = vld [vmem:[#allocation2 + $0x150] sm:$0xf]
    %v142 = vld [vmem:[#allocation2 + $0x154] sm:$0xf]
    %v143 = vld [vmem:[#allocation2 + $0x158] sm:$0xf]
    %v144 = vld [vmem:[#allocation2 + $0x15c] sm:$0xf]
    %v145 = vld [vmem:[#allocation2 + $0x160] sm:$0xf]
    %v146 = vld [vmem:[#allocation2 + $0x164] sm:$0xf]
    %v147 = vld [vmem:[#allocation2 + $0x168] sm:$0xf]
    %v148 = vld [vmem:[#allocation2 + $0x16c] sm:$0xf]
    %v149 = vld [vmem:[#allocation2 + $0x170] sm:$0xf]
    %v150 = vld [vmem:[#allocation2 + $0x174] sm:$0xf]
    %v151 = vld [vmem:[#allocation2 + $0x178] sm:$0xf]
    %v152 = vld [vmem:[#allocation2 + $0x17c] sm:$0xf]
    %v153 = vld [vmem:[#allocation2 + $0x180] sm:$0xf]
    %v154 = vld [vmem:[#allocation2 + $0x184] sm:$0xf]
    %v155 = vld [vmem:[#allocation2 + $0x188] sm:$0xf]
    %v156 = vld [vmem:[#allocation2 + $0x18c] sm:$0xf]
    %v157 = vld [vmem:[#allocation2 + $0x190] sm:$0xf]
    %v158 = vld [vmem:[#allocation2 + $0x194] sm:$0xf]
    %v159 = vld [vmem:[#allocation2 + $0x198] sm:$0xf]
    %v160 = vld [vmem:[#allocation2 + $0x19c] sm:$0xf]
    %v161 = vld [vmem:[#allocation2 + $0x1a0] sm:$0xf]
    %v162 = vld [vmem:[#allocation2 + $0x1a4] sm:$0xf]
    %v163 = vld [vmem:[#allocation2 + $0x1a8] sm:$0xf]
    %v164 = vld [vmem:[#allocation2 + $0x1ac] sm:$0xf]
    %v165 = vld [vmem:[#allocation2 + $0x1b0] sm:$0xf]
    %v166 = vld [vmem:[#allocation2 + $0x1b4] sm:$0xf]
    %v167 = vld [vmem:[#allocation2 + $0x1b8] sm:$0xf]
    %v168 = vld [vmem:[#allocation2 + $0x1bc] sm:$0xf]
    %v169 = vld [vmem:[#allocation2 + $0x1c0] sm:$0xf]
    %v170 = vld [vmem:[#allocation2 + $0x1c4] sm:$0xf]
    %v171 = vld [vmem:[#allocation2 + $0x1c8] sm:$0xf]
    %v172 = vld [vmem:[#allocation2 + $0x1cc] sm:$0xf]
    %v173 = vld [vmem:[#allocation2 + $0x1d0] sm:$0xf]
    %v174 = vld [vmem:[#allocation2 + $0x1d4] sm:$0xf]
    %v175 = vld [vmem:[#allocation2 + $0x1d8] sm:$0xf]
    %v176 = vld [vmem:[#allocation2 + $0x1dc] sm:$0xf]
    %v177 = vld [vmem:[#allocation2 + $0x1e0] sm:$0xf]
    %v178 = vld [vmem:[#allocation2 + $0x1e4] sm:$0xf]
    %v179 = vld [vmem:[#allocation2 + $0x1e8] sm:$0xf]
    %v180 = vld [vmem:[#allocation2 + $0x1ec] sm:$0xf]
    %v181 = vld [vmem:[#allocation2 + $0x1f0] sm:$0xf]
    %v182 = vld [vmem:[#allocation2 + $0x1f4] sm:$0xf]
    %v183 = vld [vmem:[#allocation2 + $0x1f8] sm:$0xf]
    %v184 = vld [vmem:[#allocation2 + $0x1fc] sm:$0xf]
    %v185 = vld [vmem:[#allocation2 + $0x200] sm:$0xf]
    %v186 = vld [vmem:[#allocation2 + $0x204] sm:$0xf]
    %v187 = vld [vmem:[#allocation2 + $0x208] sm:$0xf]
    %v188 = vld [vmem:[#allocation2 + $0x20c] sm:$0xf]
    %v189 = vld [vmem:[#allocation2 + $0x210] sm:$0xf]
    %v190 = vld [vmem:[#allocation2 + $0x214] sm:$0xf]
    %v191 = vld [vmem:[#allocation2 + $0x218] sm:$0xf]
    %v192 = vld [vmem:[#allocation2 + $0x21c] sm:$0xf]
    %v193 = vld [vmem:[#allocation2 + $0x220] sm:$0xf]
    %v194 = vld [vmem:[#allocation2 + $0x224] sm:$0xf]
    %v195 = vld [vmem:[#allocation2 + $0x228] sm:$0xf]
    %v196 = vld [vmem:[#allocation2 + $0x22c] sm:$0xf]
    %v197 = vld [vmem:[#allocation2 + $0x230] sm:$0xf]
    %v198 = vld [vmem:[#allocation2 + $0x234] sm:$0xf]
    %v199 = vld [vmem:[#allocation2 + $0x238] sm:$0xf]
    %v200 = vld [vmem:[#allocation2 + $0x23c] sm:$0xf]
    %v201 = vld [vmem:[#allocation2 + $0x240] sm:$0xf]
    %v202 = vld [vmem:[#allocation2 + $0x244] sm:$0xf]
    %v203 = vld [vmem:[#allocation2 + $0x248] sm:$0xf]
    %v204 = vld [vmem:[#allocation2 + $0x24c] sm:$0xf]
    %v205 = vld [vmem:[#allocation2 + $0x250] sm:$0xf]
    %v206 = vld [vmem:[#allocation2 + $0x254] sm:$0xf]
    %v207 = vld [vmem:[#allocation2 + $0x258] sm:$0xf]
    %v208 = vld [vmem:[#allocation2 + $0x25c] sm:$0xf]
    %v209 = vld [vmem:[#allocation2 + $0x260] sm:$0xf]
    %v210 = vld [vmem:[#allocation2 + $0x264] sm:$0xf]
    %v211 = vld [vmem:[#allocation2 + $0x268] sm:$0xf]
    %v212 = vld [vmem:[#allocation2 + $0x26c] sm:$0xf]
    %v213 = vld [vmem:[#allocation2 + $0x270] sm:$0xf]
    %v214 = vld [vmem:[#allocation2 + $0x274] sm:$0xf]
    %v215 = vld [vmem:[#allocation2 + $0x278] sm:$0xf]
    %v216 = vld [vmem:[#allocation2 + $0x27c] sm:$0xf]
    %v217 = vld [vmem:[#allocation2 + $0x280] sm:$0xf]
    %v218 = vld [vmem:[#allocation2 + $0x284] sm:$0xf]
    %v219 = vld [vmem:[#allocation2 + $0x288] sm:$0xf]
    %v220 = vld [vmem:[#allocation2 + $0x28c] sm:$0xf]
    %v221 = vld [vmem:[#allocation2 + $0x290] sm:$0xf]
    %v222 = vld [vmem:[#allocation2 + $0x294] sm:$0xf]
    %v223 = vld [vmem:[#allocation2 + $0x298] sm:$0xf]
    %v224 = vld [vmem:[#allocation2 + $0x29c] sm:$0xf]
    %v225 = vld [vmem:[#allocation2 + $0x2a0] sm:$0xf]
    %v226 = vld [vmem:[#allocation2 + $0x2a4] sm:$0xf]
    %v227 = vld [vmem:[#allocation2 + $0x2a8] sm:$0xf]
    %v228 = vld [vmem:[#allocation2 + $0x2ac] sm:$0xf]
    %v229 = vld [vmem:[#allocation2 + $0x2b0] sm:$0xf]
    %v230 = vld [vmem:[#allocation2 + $0x2b4] sm:$0xf]
    %v231 = vld [vmem:[#allocation2 + $0x2b8] sm:$0xf]
    %v232 = vld [vmem:[#allocation2 + $0x2bc] sm:$0xf]
    %v233 = vld [vmem:[#allocation2 + $0x2c0] sm:$0xf]
    %v234 = vld [vmem:[#allocation2 + $0x2c4] sm:$0xf]
    %v235 = vld [vmem:[#allocation2 + $0x2c8] sm:$0xf]
    %v236 = vld [vmem:[#allocation2 + $0x2cc] sm:$0xf]
    %v237 = vld [vmem:[#allocation2 + $0x2d0] sm:$0xf]
    %v238 = vld [vmem:[#allocation2 + $0x2d4] sm:$0xf]
    %v239 = vld [vmem:[#allocation2 + $0x2d8] sm:$0xf]
    %v240 = vld [vmem:[#allocation2 + $0x2dc] sm:$0xf]
    %v241 = vld [vmem:[#allocation2 + $0x2e0] sm:$0xf]
    %v242 = vld [vmem:[#allocation2 + $0x2e4] sm:$0xf]
    %v243 = vld [vmem:[#allocation2 + $0x2e8] sm:$0xf]
    %v244 = vld [vmem:[#allocation2 + $0x2ec] sm:$0xf]
    %v245 = vld [vmem:[#allocation2 + $0x2f0] sm:$0xf]
    %v246 = vld [vmem:[#allocation2 + $0x2f4] sm:$0xf]
    %v247 = vld [vmem:[#allocation2 + $0x2f8] sm:$0xf]
    %v248 = vld [vmem:[#allocation2 + $0x2fc] sm:$0xf]
    %v249 = vld [vmem:[#allocation2 + $0x300] sm:$0xf]
    %v250 = vld [vmem:[#allocation2 + $0x304] sm:$0xf]
    %v251 = vld [vmem:[#allocation2 + $0x308] sm:$0xf]
    %v252 = vld [vmem:[#allocation2 + $0x30c] sm:$0xf]
    %v253 = vld [vmem:[#allocation2 + $0x310] sm:$0xf]
    %v254 = vld [vmem:[#allocation2 + $0x314] sm:$0xf]
    %v255 = vld [vmem:[#allocation2 + $0x318] sm:$0xf]
    %v256 = vld [vmem:[#allocation2 + $0x31c] sm:$0xf]
    %v257 = vld [vmem:[#allocation2 + $0x320] sm:$0xf]
    %v258 = vld [vmem:[#allocation2 + $0x324] sm:$0xf]
    %v259 = vld [vmem:[#allocation2 + $0x328] sm:$0xf]
    %v260 = vld [vmem:[#allocation2 + $0x32c] sm:$0xf]
    %v261 = vld [vmem:[#allocation2 + $0x330] sm:$0xf]
    %v262 = vld [vmem:[#allocation2 + $0x334] sm:$0xf]
    %v263 = vld [vmem:[#allocation2 + $0x338] sm:$0xf]
    %v264 = vld [vmem:[#allocation2 + $0x33c] sm:$0xf]
    %v265 = vld [vmem:[#allocation2 + $0x340] sm:$0xf]
    %v266 = vld [vmem:[#allocation2 + $0x344] sm:$0xf]
    %v267 = vld [vmem:[#allocation2 + $0x348] sm:$0xf]
    %v268 = vld [vmem:[#allocation2 + $0x34c] sm:$0xf]
    %v269 = vld [vmem:[#allocation2 + $0x350] sm:$0xf]
    %v270 = vld [vmem:[#allocation2 + $0x354] sm:$0xf]
    %v271 = vld [vmem:[#allocation2 + $0x358] sm:$0xf]
    %v272 = vld [vmem:[#allocation2 + $0x35c] sm:$0xf]
    %v273 = vld [vmem:[#allocation2 + $0x360] sm:$0xf]
    %v274 = vld [vmem:[#allocation2 + $0x364] sm:$0xf]
    %v275 = vld [vmem:[#allocation2 + $0x368] sm:$0xf]
    %v276 = vld [vmem:[#allocation2 + $0x36c] sm:$0xf]
    %v277 = vld [vmem:[#allocation2 + $0x370] sm:$0xf]
    %v278 = vld [vmem:[#allocation2 + $0x374] sm:$0xf]
    %v279 = vld [vmem:[#allocation2 + $0x378] sm:$0xf]
    %v280 = vld [vmem:[#allocation2 + $0x37c] sm:$0xf]
    %v281 = vld [vmem:[#allocation2 + $0x380] sm:$0xf]
    %v282 = vld [vmem:[#allocation2 + $0x384] sm:$0xf]
    %v283 = vld [vmem:[#allocation2 + $0x388] sm:$0xf]
    %v284 = vld [vmem:[#allocation2 + $0x38c] sm:$0xf]
    %v285 = vld [vmem:[#allocation2 + $0x390] sm:$0xf]
    %v286 = vld [vmem:[#allocation2 + $0x394] sm:$0xf]
    %v287 = vld [vmem:[#allocation2 + $0x398] sm:$0xf]
    %v288 = vld [vmem:[#allocation2 + $0x39c] sm:$0xf]
    %v289 = vld [vmem:[#allocation2 + $0x3a0] sm:$0xf]
    %v290 = vld [vmem:[#allocation2 + $0x3a4] sm:$0xf]
    %v291 = vld [vmem:[#allocation2 + $0x3a8] sm:$0xf]
    %v292 = vld [vmem:[#allocation2 + $0x3ac] sm:$0xf]
    %v293 = vld [vmem:[#allocation2 + $0x3b0] sm:$0xf]
    %v294 = vld [vmem:[#allocation2 + $0x3b4] sm:$0xf]
    %v295 = vld [vmem:[#allocation2 + $0x3b8] sm:$0xf]
    %v296 = vld [vmem:[#allocation2 + $0x3bc] sm:$0xf]
    %v297 = vld [vmem:[#allocation2 + $0x3c0] sm:$0xf]
    %v298 = vld [vmem:[#allocation2 + $0x3c4] sm:$0xf]
    %v299 = vld [vmem:[#allocation2 + $0x3c8] sm:$0xf]
    %v300 = vld [vmem:[#allocation2 + $0x3cc] sm:$0xf]
    %v301 = vld [vmem:[#allocation2 + $0x3d0] sm:$0xf]
    %v302 = vld [vmem:[#allocation2 + $0x3d4] sm:$0xf]
    %v303 = vld [vmem:[#allocation2 + $0x3d8] sm:$0xf]
    %v304 = vld [vmem:[#allocation2 + $0x3dc] sm:$0xf]
    %v305 = vld [vmem:[#allocation2 + $0x3e0] sm:$0xf]
    %v306 = vld [vmem:[#allocation2 + $0x3e4] sm:$0xf]
    %v307 = vld [vmem:[#allocation2 + $0x3e8] sm:$0xf]
    %v308 = vld [vmem:[#allocation2 + $0x3ec] sm:$0xf]
    %v309 = vld [vmem:[#allocation2 + $0x3f0] sm:$0xf]
    %v310 = vld [vmem:[#allocation2 + $0x3f4] sm:$0xf]
    %v311 = vld [vmem:[#allocation2 + $0x3f8] sm:$0xf]
    %v312 = vld [vmem:[#allocation2 + $0x3fc] sm:$0xf]
    %v313 = vld [vmem:[#allocation2 + $0x400] sm:$0xf]
    %v314 = vld [vmem:[#allocation2 + $0x404] sm:$0xf]
    %v315 = vld [vmem:[#allocation2 + $0x408] sm:$0xf]
    %v316 = vld [vmem:[#allocation2 + $0x40c] sm:$0xf]
    %v317 = vld [vmem:[#allocation2 + $0x410] sm:$0xf]
    %v318 = vld [vmem:[#allocation2 + $0x414] sm:$0xf]
    %v319 = vld [vmem:[#allocation2 + $0x418] sm:$0xf]
    %v320 = vld [vmem:[#allocation2 + $0x41c] sm:$0xf]
    %v321 = vld [vmem:[#allocation2 + $0x420] sm:$0xf]
    %v322 = vld [vmem:[#allocation2 + $0x424] sm:$0xf]
    %v323 = vld [vmem:[#allocation2 + $0x428] sm:$0xf]
    %v324 = vld [vmem:[#allocation2 + $0x42c] sm:$0xf]
    %v325 = vld [vmem:[#allocation2 + $0x430] sm:$0xf]
    %v326 = vld [vmem:[#allocation2 + $0x434] sm:$0xf]
    %v327 = vld [vmem:[#allocation2 + $0x438] sm:$0xf]
    %v328 = vld [vmem:[#allocation2 + $0x43c] sm:$0xf]
    %v329 = vld [vmem:[#allocation2 + $0x440] sm:$0xf]
    %v330 = vld [vmem:[#allocation2 + $0x444] sm:$0xf]
    %v331 = vld [vmem:[#allocation2 + $0x448] sm:$0xf]
    %v332 = vld [vmem:[#allocation2 + $0x44c] sm:$0xf]
    %v333 = vld [vmem:[#allocation2 + $0x450] sm:$0xf]
    %v334 = vld [vmem:[#allocation2 + $0x454] sm:$0xf]
    %v335 = vld [vmem:[#allocation2 + $0x458] sm:$0xf]
    %v336 = vld [vmem:[#allocation2 + $0x45c] sm:$0xf]
    %v337 = vld [vmem:[#allocation2 + $0x460] sm:$0xf]
    %v338 = vld [vmem:[#allocation2 + $0x464] sm:$0xf]
    %v339 = vld [vmem:[#allocation2 + $0x468] sm:$0xf]
    %v340 = vld [vmem:[#allocation2 + $0x46c] sm:$0xf]
    %v341 = vld [vmem:[#allocation2 + $0x470] sm:$0xf]
    %v342 = vld [vmem:[#allocation2 + $0x474] sm:$0xf]
    %v343 = vld [vmem:[#allocation2 + $0x478] sm:$0xf]
    %v344 = vld [vmem:[#allocation2 + $0x47c] sm:$0xf]
    %v345 = vld [vmem:[#allocation2 + $0x480] sm:$0xf]
    %v346 = vld [vmem:[#allocation2 + $0x484] sm:$0xf]
    %v347 = vld [vmem:[#allocation2 + $0x488] sm:$0xf]
    %v348 = vld [vmem:[#allocation2 + $0x48c] sm:$0xf]
    %v349 = vld [vmem:[#allocation2 + $0x490] sm:$0xf]
    %v350 = vld [vmem:[#allocation2 + $0x494] sm:$0xf]
    %v351 = vld [vmem:[#allocation2 + $0x498] sm:$0xf]
    %v352 = vld [vmem:[#allocation2 + $0x49c] sm:$0xf]
    %v353 = vld [vmem:[#allocation2 + $0x4a0] sm:$0xf]
    %v354 = vld [vmem:[#allocation2 + $0x4a4] sm:$0xf]
    %v355 = vld [vmem:[#allocation2 + $0x4a8] sm:$0xf]
    %v356 = vld [vmem:[#allocation2 + $0x4ac] sm:$0xf]
    %v357 = vld [vmem:[#allocation2 + $0x4b0] sm:$0xf]
    %v358 = vld [vmem:[#allocation2 + $0x4b4] sm:$0xf]
    %v359 = vld [vmem:[#allocation2 + $0x4b8] sm:$0xf]
    %v360 = vld [vmem:[#allocation2 + $0x4bc] sm:$0xf]
    %v361 = vld [vmem:[#allocation2 + $0x4c0] sm:$0xf]
    %v362 = vld [vmem:[#allocation2 + $0x4c4] sm:$0xf]
    %v363 = vld [vmem:[#allocation2 + $0x4c8] sm:$0xf]
    %v364 = vld [vmem:[#allocation2 + $0x4cc] sm:$0xf]
    %v365 = vld [vmem:[#allocation2 + $0x4d0] sm:$0xf]
    %v366 = vld [vmem:[#allocation2 + $0x4d4] sm:$0xf]
    %v367 = vld [vmem:[#allocation2 + $0x4d8] sm:$0xf]
    %v368 = vld [vmem:[#allocation2 + $0x4dc] sm:$0xf]
    %v369 = vld [vmem:[#allocation2 + $0x4e0] sm:$0xf]
    %v370 = vld [vmem:[#allocation2 + $0x4e4] sm:$0xf]
    %v371 = vld [vmem:[#allocation2 + $0x4e8] sm:$0xf]
    %v372 = vld [vmem:[#allocation2 + $0x4ec] sm:$0xf]
    %v373 = vld [vmem:[#allocation2 + $0x4f0] sm:$0xf]
    %v374 = vld [vmem:[#allocation2 + $0x4f4] sm:$0xf]
    %v375 = vld [vmem:[#allocation2 + $0x4f8] sm:$0xf]
    %v376 = vld [vmem:[#allocation2 + $0x4fc] sm:$0xf]
    %v377 = vld [vmem:[#allocation2 + $0x500] sm:$0xf]
    %v378 = vld [vmem:[#allocation2 + $0x504] sm:$0xf]
    %v379 = vld [vmem:[#allocation2 + $0x508] sm:$0xf]
    %v380 = vld [vmem:[#allocation2 + $0x50c] sm:$0xf]
    %v381 = vld [vmem:[#allocation2 + $0x510] sm:$0xf]
    %v382 = vld [vmem:[#allocation2 + $0x514] sm:$0xf]
    %v383 = vld [vmem:[#allocation2 + $0x518] sm:$0xf]
    %v384 = vld [vmem:[#allocation2 + $0x51c] sm:$0xf]
    %v385 = vld [vmem:[#allocation2 + $0x520] sm:$0xf]
    %v386 = vld [vmem:[#allocation2 + $0x524] sm:$0xf]
    %v387 = vld [vmem:[#allocation2 + $0x528] sm:$0xf]
    %v388 = vld [vmem:[#allocation2 + $0x52c] sm:$0xf]
    %v389 = vld [vmem:[#allocation2 + $0x530] sm:$0xf]
    %v390 = vld [vmem:[#allocation2 + $0x534] sm:$0xf]
    %v391 = vld [vmem:[#allocation2 + $0x538] sm:$0xf]
    %v392 = vld [vmem:[#allocation2 + $0x53c] sm:$0xf]
    %v393 = vld [vmem:[#allocation2 + $0x540] sm:$0xf]
    %v394 = vld [vmem:[#allocation2 + $0x544] sm:$0xf]
    %v395 = vld [vmem:[#allocation2 + $0x548] sm:$0xf]
    %v396 = vld [vmem:[#allocation2 + $0x54c] sm:$0xf]
    %v397 = vld [vmem:[#allocation2 + $0x550] sm:$0xf]
    %v398 = vld [vmem:[#allocation2 + $0x554] sm:$0xf]
    %v399 = vld [vmem:[#allocation2 + $0x558] sm:$0xf]
    %v400 = vld [vmem:[#allocation2 + $0x55c] sm:$0xf]
    %v401 = vld [vmem:[#allocation2 + $0x560] sm:$0xf]
    %v402 = vld [vmem:[#allocation2 + $0x564] sm:$0xf]
    %v403 = vld [vmem:[#allocation2 + $0x568] sm:$0xf]
    %v404 = vld [vmem:[#allocation2 + $0x56c] sm:$0xf]
    %v405 = vld [vmem:[#allocation2 + $0x570] sm:$0xf]
    %v406 = vld [vmem:[#allocation2 + $0x574] sm:$0xf]
    %v407 = vld [vmem:[#allocation2 + $0x578] sm:$0xf]
    %v408 = vld [vmem:[#allocation2 + $0x57c] sm:$0xf]
    %v409 = vld [vmem:[#allocation2 + $0x580] sm:$0xf]
    %v410 = vld [vmem:[#allocation2 + $0x584] sm:$0xf]
    %v411 = vld [vmem:[#allocation2 + $0x588] sm:$0xf]
    %v412 = vld [vmem:[#allocation2 + $0x58c] sm:$0xf]
    %v413 = vld [vmem:[#allocation2 + $0x590] sm:$0xf]
    %v414 = vld [vmem:[#allocation2 + $0x594] sm:$0xf]
    %v415 = vld [vmem:[#allocation2 + $0x598] sm:$0xf]
    %v416 = vld [vmem:[#allocation2 + $0x59c] sm:$0xf]
    %v417 = vld [vmem:[#allocation2 + $0x5a0] sm:$0xf]
    %v418 = vld [vmem:[#allocation2 + $0x5a4] sm:$0xf]
    %v419 = vld [vmem:[#allocation2 + $0x5a8] sm:$0xf]
    %v420 = vld [vmem:[#allocation2 + $0x5ac] sm:$0xf]
    %v421 = vld [vmem:[#allocation2 + $0x5b0] sm:$0xf]
    %v422 = vld [vmem:[#allocation2 + $0x5b4] sm:$0xf]
    %v423 = vld [vmem:[#allocation2 + $0x5b8] sm:$0xf]
    %v424 = vld [vmem:[#allocation2 + $0x5bc] sm:$0xf]
    %v425 = vld [vmem:[#allocation2 + $0x5c0] sm:$0xf]
    %v426 = vld [vmem:[#allocation2 + $0x5c4] sm:$0xf]
    %v427 = vld [vmem:[#allocation2 + $0x5c8] sm:$0xf]
    %v428 = vld [vmem:[#allocation2 + $0x5cc] sm:$0xf]
    %v429 = vld [vmem:[#allocation2 + $0x5d0] sm:$0xf]
    %v430 = vld [vmem:[#allocation2 + $0x5d4] sm:$0xf]
    %v431 = vld [vmem:[#allocation2 + $0x5d8] sm:$0xf]
    %v432 = vld [vmem:[#allocation2 + $0x5dc] sm:$0xf]
    %v433 = vld [vmem:[#allocation2 + $0x5e0] sm:$0xf]
    %v434 = vld [vmem:[#allocation2 + $0x5e4] sm:$0xf]
    %v435 = vld [vmem:[#allocation2 + $0x5e8] sm:$0xf]
    %v436 = vld [vmem:[#allocation2 + $0x5ec] sm:$0xf]
    %v437 = vld [vmem:[#allocation2 + $0x5f0] sm:$0xf]
    %v438 = vld [vmem:[#allocation2 + $0x5f4] sm:$0xf]
    %v439 = vld [vmem:[#allocation2 + $0x5f8] sm:$0xf]
    %v440 = vld [vmem:[#allocation2 + $0x5fc] sm:$0xf]
    %v441 = vld [vmem:[#allocation2 + $0x600] sm:$0xf]
    %v442 = vld [vmem:[#allocation2 + $0x604] sm:$0xf]
    %v443 = vld [vmem:[#allocation2 + $0x608] sm:$0xf]
    %v444 = vld [vmem:[#allocation2 + $0x60c] sm:$0xf]
    %v445 = vld [vmem:[#allocation2 + $0x610] sm:$0xf]
    %v446 = vld [vmem:[#allocation2 + $0x614] sm:$0xf]
    %v447 = vld [vmem:[#allocation2 + $0x618] sm:$0xf]
    %v448 = vld [vmem:[#allocation2 + $0x61c] sm:$0xf]
    %v449 = vld [vmem:[#allocation2 + $0x620] sm:$0xf]
    %v450 = vld [vmem:[#allocation2 + $0x624] sm:$0xf]
    %v451 = vld [vmem:[#allocation2 + $0x628] sm:$0xf]
    %v452 = vld [vmem:[#allocation2 + $0x62c] sm:$0xf]
    %v453 = vld [vmem:[#allocation2 + $0x630] sm:$0xf]
    %v454 = vld [vmem:[#allocation2 + $0x634] sm:$0xf]
    %v455 = vld [vmem:[#allocation2 + $0x638] sm:$0xf]
    %v456 = vld [vmem:[#allocation2 + $0x63c] sm:$0xf]
    %v457 = vld [vmem:[#allocation2 + $0x640] sm:$0xf]
    %v458 = vld [vmem:[#allocation2 + $0x644] sm:$0xf]
    %v459 = vld [vmem:[#allocation2 + $0x648] sm:$0xf]
    %v460 = vld [vmem:[#allocation2 + $0x64c] sm:$0xf]
    %v461 = vld [vmem:[#allocation2 + $0x650] sm:$0xf]
    %v462 = vld [vmem:[#allocation2 + $0x654] sm:$0xf]
    %v463 = vld [vmem:[#allocation2 + $0x658] sm:$0xf]
    %v464 = vld [vmem:[#allocation2 + $0x65c] sm:$0xf]
    %v465 = vld [vmem:[#allocation2 + $0x660] sm:$0xf]
    %v466 = vld [vmem:[#allocation2 + $0x664] sm:$0xf]
    %v467 = vld [vmem:[#allocation2 + $0x668] sm:$0xf]
    %v468 = vld [vmem:[#allocation2 + $0x66c] sm:$0xf]
    %v469 = vld [vmem:[#allocation2 + $0x670] sm:$0xf]
    %v470 = vld [vmem:[#allocation2 + $0x674] sm:$0xf]
    %v471 = vld [vmem:[#allocation2 + $0x678] sm:$0xf]
    %v472 = vld [vmem:[#allocation2 + $0x67c] sm:$0xf]
    %v473 = vld [vmem:[#allocation2 + $0x680] sm:$0xf]
    %v474 = vld [vmem:[#allocation2 + $0x684] sm:$0xf]
    %v475 = vld [vmem:[#allocation2 + $0x688] sm:$0xf]
    %v476 = vld [vmem:[#allocation2 + $0x68c] sm:$0xf]
    %v477 = vld [vmem:[#allocation2 + $0x690] sm:$0xf]
    %v478 = vld [vmem:[#allocation2 + $0x694] sm:$0xf]
    %v479 = vld [vmem:[#allocation2 + $0x698] sm:$0xf]
    %v480 = vld [vmem:[#allocation2 + $0x69c] sm:$0xf]
    %v481 = vld [vmem:[#allocation2 + $0x6a0] sm:$0xf]
    %v482 = vld [vmem:[#allocation2 + $0x6a4] sm:$0xf]
    %v483 = vld [vmem:[#allocation2 + $0x6a8] sm:$0xf]
    %v484 = vld [vmem:[#allocation2 + $0x6ac] sm:$0xf]
    %v485 = vld [vmem:[#allocation2 + $0x6b0] sm:$0xf]
    %v486 = vld [vmem:[#allocation2 + $0x6b4] sm:$0xf]
    %v487 = vld [vmem:[#allocation2 + $0x6b8] sm:$0xf]
    %v488 = vld [vmem:[#allocation2 + $0x6bc] sm:$0xf]
    %v489 = vld [vmem:[#allocation2 + $0x6c0] sm:$0xf]
    %v490 = vld [vmem:[#allocation2 + $0x6c4] sm:$0xf]
    %v491 = vld [vmem:[#allocation2 + $0x6c8] sm:$0xf]
    %v492 = vld [vmem:[#allocation2 + $0x6cc] sm:$0xf]
    %v493 = vld [vmem:[#allocation2 + $0x6d0] sm:$0xf]
    %v494 = vld [vmem:[#allocation2 + $0x6d4] sm:$0xf]
    %v495 = vld [vmem:[#allocation2 + $0x6d8] sm:$0xf]
    %v496 = vld [vmem:[#allocation2 + $0x6dc] sm:$0xf]
    %v497 = vld [vmem:[#allocation2 + $0x6e0] sm:$0xf]
    %v498 = vld [vmem:[#allocation2 + $0x6e4] sm:$0xf]
    %v499 = vld [vmem:[#allocation2 + $0x6e8] sm:$0xf]
    %v500 = vld [vmem:[#allocation2 + $0x6ec] sm:$0xf]
    %v501 = vld [vmem:[#allocation2 + $0x6f0] sm:$0xf]
    %v502 = vld [vmem:[#allocation2 + $0x6f4] sm:$0xf]
    %v503 = vld [vmem:[#allocation2 + $0x6f8] sm:$0xf]
    %v504 = vld [vmem:[#allocation2 + $0x6fc] sm:$0xf]
    %v505 = vld [vmem:[#allocation2 + $0x700] sm:$0xf]
    %v506 = vld [vmem:[#allocation2 + $0x704] sm:$0xf]
    %v507 = vld [vmem:[#allocation2 + $0x708] sm:$0xf]
    %v508 = vld [vmem:[#allocation2 + $0x70c] sm:$0xf]
    %v509 = vld [vmem:[#allocation2 + $0x710] sm:$0xf]
    %v510 = vld [vmem:[#allocation2 + $0x714] sm:$0xf]
    %v511 = vld [vmem:[#allocation2 + $0x718] sm:$0xf]
    %v512 = vld [vmem:[#allocation2 + $0x71c] sm:$0xf]
    %v513 = vld [vmem:[#allocation2 + $0x720] sm:$0xf]
    %v514 = vld [vmem:[#allocation2 + $0x724] sm:$0xf]
    %v515 = vld [vmem:[#allocation2 + $0x728] sm:$0xf]
    %v516 = vld [vmem:[#allocation2 + $0x72c] sm:$0xf]
    %v517 = vld [vmem:[#allocation2 + $0x730] sm:$0xf]
    %v518 = vld [vmem:[#allocation2 + $0x734] sm:$0xf]
    %v519 = vld [vmem:[#allocation2 + $0x738] sm:$0xf]
    %v520 = vld [vmem:[#allocation2 + $0x73c] sm:$0xf]
    %v521 = vld [vmem:[#allocation2 + $0x740] sm:$0xf]
    %v522 = vld [vmem:[#allocation2 + $0x744] sm:$0xf]
    %v523 = vld [vmem:[#allocation2 + $0x748] sm:$0xf]
    %v524 = vld [vmem:[#allocation2 + $0x74c] sm:$0xf]
    %v525 = vld [vmem:[#allocation2 + $0x750] sm:$0xf]
    %v526 = vld [vmem:[#allocation2 + $0x754] sm:$0xf]
    %v527 = vld [vmem:[#allocation2 + $0x758] sm:$0xf]
    %v528 = vld [vmem:[#allocation2 + $0x75c] sm:$0xf]
    %v529 = vld [vmem:[#allocation2 + $0x760] sm:$0xf]
    %v530 = vld [vmem:[#allocation2 + $0x764] sm:$0xf]
    %v531 = vld [vmem:[#allocation2 + $0x768] sm:$0xf]
    %v532 = vld [vmem:[#allocation2 + $0x76c] sm:$0xf]
    %v533 = vld [vmem:[#allocation2 + $0x770] sm:$0xf]
    %v534 = vld [vmem:[#allocation2 + $0x774] sm:$0xf]
    %v535 = vld [vmem:[#allocation2 + $0x778] sm:$0xf]
    %v536 = vld [vmem:[#allocation2 + $0x77c] sm:$0xf]
    %v537 = vld [vmem:[#allocation2 + $0x780] sm:$0xf]
    %v538 = vld [vmem:[#allocation2 + $0x784] sm:$0xf]
    %v539 = vld [vmem:[#allocation2 + $0x788] sm:$0xf]
    %v540 = vld [vmem:[#allocation2 + $0x78c] sm:$0xf]
    %v541 = vld [vmem:[#allocation2 + $0x790] sm:$0xf]
    %v542 = vld [vmem:[#allocation2 + $0x794] sm:$0xf]
    %v543 = vld [vmem:[#allocation2 + $0x798] sm:$0xf]
    %v544 = vld [vmem:[#allocation2 + $0x79c] sm:$0xf]
    %v545 = vld [vmem:[#allocation2 + $0x7a0] sm:$0xf]
    %v546 = vld [vmem:[#allocation2 + $0x7a4] sm:$0xf]
    %v547 = vld [vmem:[#allocation2 + $0x7a8] sm:$0xf]
    %v548 = vld [vmem:[#allocation2 + $0x7ac] sm:$0xf]
    %v549 = vld [vmem:[#allocation2 + $0x7b0] sm:$0xf]
    %v550 = vld [vmem:[#allocation2 + $0x7b4] sm:$0xf]
    %v551 = vld [vmem:[#allocation2 + $0x7b8] sm:$0xf]
    %v552 = vld [vmem:[#allocation2 + $0x7bc] sm:$0xf]
    %v553 = vld [vmem:[#allocation2 + $0x7c0] sm:$0xf]
    %v554 = vld [vmem:[#allocation2 + $0x7c4] sm:$0xf]
    %v555 = vld [vmem:[#allocation2 + $0x7c8] sm:$0xf]
    %v556 = vld [vmem:[#allocation2 + $0x7cc] sm:$0xf]
    %v557 = vld [vmem:[#allocation2 + $0x7d0] sm:$0xf]
    %v558 = vld [vmem:[#allocation2 + $0x7d4] sm:$0xf]
    %v559 = vld [vmem:[#allocation2 + $0x7d8] sm:$0xf]
    %v560 = vld [vmem:[#allocation2 + $0x7dc] sm:$0xf]
    %v561 = vld [vmem:[#allocation2 + $0x7e0] sm:$0xf]
    %v562 = vld [vmem:[#allocation2 + $0x7e4] sm:$0xf]
    %v563 = vld [vmem:[#allocation2 + $0x7e8] sm:$0xf]
    %v564 = vld [vmem:[#allocation2 + $0x7ec] sm:$0xf]
    %v565 = vld [vmem:[#allocation2 + $0x7f0] sm:$0xf]
    %v566 = vld [vmem:[#allocation2 + $0x7f4] sm:$0xf]
    %v567 = vld [vmem:[#allocation2 + $0x7f8] sm:$0xf]
    %v568 = vld [vmem:[#allocation2 + $0x7fc] sm:$0xf]
    %v569 = vld [vmem:[#allocation2 + $0x800] sm:$0xf]
    %v570 = vld [vmem:[#allocation2 + $0x804] sm:$0xf]
    %v571 = vld [vmem:[#allocation2 + $0x808] sm:$0xf]
    %v572 = vld [vmem:[#allocation2 + $0x80c] sm:$0xf]
    %v573 = vld [vmem:[#allocation2 + $0x810] sm:$0xf]
    %v574 = vld [vmem:[#allocation2 + $0x814] sm:$0xf]
    %v575 = vld [vmem:[#allocation2 + $0x818] sm:$0xf]
    %v576 = vld [vmem:[#allocation2 + $0x81c] sm:$0xf]
    %v577 = vld [vmem:[#allocation2 + $0x820] sm:$0xf]
    %v578 = vld [vmem:[#allocation2 + $0x824] sm:$0xf]
    %v579 = vld [vmem:[#allocation2 + $0x828] sm:$0xf]
    %v580 = vld [vmem:[#allocation2 + $0x82c] sm:$0xf]
    %v581 = vld [vmem:[#allocation2 + $0x830] sm:$0xf]
    %v582 = vld [vmem:[#allocation2 + $0x834] sm:$0xf]
    %v583 = vld [vmem:[#allocation2 + $0x838] sm:$0xf]
    %v584 = vld [vmem:[#allocation2 + $0x83c] sm:$0xf]
    %v585 = vld [vmem:[#allocation2 + $0x840] sm:$0xf]
    %v586 = vld [vmem:[#allocation2 + $0x844] sm:$0xf]
    %v587 = vld [vmem:[#allocation2 + $0x848] sm:$0xf]
    %v588 = vld [vmem:[#allocation2 + $0x84c] sm:$0xf]
    %v589 = vld [vmem:[#allocation2 + $0x850] sm:$0xf]
    %v590 = vld [vmem:[#allocation2 + $0x854] sm:$0xf]
    %v591 = vld [vmem:[#allocation2 + $0x858] sm:$0xf]
    %v592 = vld [vmem:[#allocation2 + $0x85c] sm:$0xf]
    %v593 = vld [vmem:[#allocation2 + $0x860] sm:$0xf]
    %v594 = vld [vmem:[#allocation2 + $0x864] sm:$0xf]
    %v595 = vld [vmem:[#allocation2 + $0x868] sm:$0xf]
    %v596 = vld [vmem:[#allocation2 + $0x86c] sm:$0xf]
    %v597 = vld [vmem:[#allocation2 + $0x870] sm:$0xf]
    %v598 = vld [vmem:[#allocation2 + $0x874] sm:$0xf]
    %v599 = vld [vmem:[#allocation2 + $0x878] sm:$0xf]
    %v600 = vld [vmem:[#allocation2 + $0x87c] sm:$0xf]
    %v601 = vld [vmem:[#allocation2 + $0x880] sm:$0xf]
    %v602 = vld [vmem:[#allocation2 + $0x884] sm:$0xf]
    %v603 = vld [vmem:[#allocation2 + $0x888] sm:$0xf]
    %v604 = vld [vmem:[#allocation2 + $0x88c] sm:$0xf]
    %v605 = vld [vmem:[#allocation2 + $0x890] sm:$0xf]
    %v606 = vld [vmem:[#allocation2 + $0x894] sm:$0xf]
    %v607 = vld [vmem:[#allocation2 + $0x898] sm:$0xf]
    %v608 = vld [vmem:[#allocation2 + $0x89c] sm:$0xf]
    %v609 = vld [vmem:[#allocation2 + $0x8a0] sm:$0xf]
    %v610 = vld [vmem:[#allocation2 + $0x8a4] sm:$0xf]
    %v611 = vld [vmem:[#allocation2 + $0x8a8] sm:$0xf]
    %v612 = vld [vmem:[#allocation2 + $0x8ac] sm:$0xf]
    %v613 = vld [vmem:[#allocation2 + $0x8b0] sm:$0xf]
    %v614 = vld [vmem:[#allocation2 + $0x8b4] sm:$0xf]
    %v615 = vld [vmem:[#allocation2 + $0x8b8] sm:$0xf]
    %v616 = vld [vmem:[#allocation2 + $0x8bc] sm:$0xf]
    %v617 = vld [vmem:[#allocation2 + $0x8c0] sm:$0xf]
    %v618 = vld [vmem:[#allocation2 + $0x8c4] sm:$0xf]
    %v619 = vld [vmem:[#allocation2 + $0x8c8] sm:$0xf]
    %v620 = vld [vmem:[#allocation2 + $0x8cc] sm:$0xf]
    %v621 = vld [vmem:[#allocation2 + $0x8d0] sm:$0xf]
    %v622 = vld [vmem:[#allocation2 + $0x8d4] sm:$0xf]
    %v623 = vld [vmem:[#allocation2 + $0x8d8] sm:$0xf]
    %v624 = vld [vmem:[#allocation2 + $0x8dc] sm:$0xf]
    %v625 = vld [vmem:[#allocation2 + $0x8e0] sm:$0xf]
    %v626 = vld [vmem:[#allocation2 + $0x8e4] sm:$0xf]
    %v627 = vld [vmem:[#allocation2 + $0x8e8] sm:$0xf]
    %v628 = vld [vmem:[#allocation2 + $0x8ec] sm:$0xf]
    %v629 = vld [vmem:[#allocation2 + $0x8f0] sm:$0xf]
    %v630 = vld [vmem:[#allocation2 + $0x8f4] sm:$0xf]
    %v631 = vld [vmem:[#allocation2 + $0x8f8] sm:$0xf]
    %v632 = vld [vmem:[#allocation2 + $0x8fc] sm:$0xf]
    %v633 = vld [vmem:[#allocation2 + $0x900] sm:$0xf]
    %v634 = vld [vmem:[#allocation2 + $0x904] sm:$0xf]
    %v635 = vld [vmem:[#allocation2 + $0x908] sm:$0xf]
    %v636 = vld [vmem:[#allocation2 + $0x90c] sm:$0xf]
    %v637 = vld [vmem:[#allocation2 + $0x910] sm:$0xf]
    %v638 = vld [vmem:[#allocation2 + $0x914] sm:$0xf]
    %v639 = vld [vmem:[#allocation2 + $0x918] sm:$0xf]
    %v640 = vld [vmem:[#allocation2 + $0x91c] sm:$0xf]
    %v641 = vld [vmem:[#allocation2 + $0x920] sm:$0xf]
    %v642 = vld [vmem:[#allocation2 + $0x924] sm:$0xf]
    %v643 = vld [vmem:[#allocation2 + $0x928] sm:$0xf]
    %v644 = vld [vmem:[#allocation2 + $0x92c] sm:$0xf]
    %v645 = vld [vmem:[#allocation2 + $0x930] sm:$0xf]
    %v646 = vld [vmem:[#allocation2 + $0x934] sm:$0xf]
    %v647 = vld [vmem:[#allocation2 + $0x938] sm:$0xf]
    %v648 = vld [vmem:[#allocation2 + $0x93c] sm:$0xf]
    %v649 = vld [vmem:[#allocation2 + $0x940] sm:$0xf]
    %v650 = vld [vmem:[#allocation2 + $0x944] sm:$0xf]
    %v651 = vld [vmem:[#allocation2 + $0x948] sm:$0xf]
    %v652 = vld [vmem:[#allocation2 + $0x94c] sm:$0xf]
    %v653 = vld [vmem:[#allocation2 + $0x950] sm:$0xf]
    %v654 = vld [vmem:[#allocation2 + $0x954] sm:$0xf]
    %v655 = vld [vmem:[#allocation2 + $0x958] sm:$0xf]
    %v656 = vld [vmem:[#allocation2 + $0x95c] sm:$0xf]
    %v657 = vld [vmem:[#allocation2 + $0x960] sm:$0xf]
    %v658 = vld [vmem:[#allocation2 + $0x964] sm:$0xf]
    %v659 = vld [vmem:[#allocation2 + $0x968] sm:$0xf]
    %v660 = vld [vmem:[#allocation2 + $0x96c] sm:$0xf]
    %v661 = vld [vmem:[#allocation2 + $0x970] sm:$0xf]
    %v662 = vld [vmem:[#allocation2 + $0x974] sm:$0xf]
    %v663 = vld [vmem:[#allocation2 + $0x978] sm:$0xf]
    %v664 = vld [vmem:[#allocation2 + $0x97c] sm:$0xf]
    %v665 = vld [vmem:[#allocation2 + $0x980] sm:$0xf]
    %v666 = vld [vmem:[#allocation2 + $0x984] sm:$0xf]
    %v667 = vld [vmem:[#allocation2 + $0x988] sm:$0xf]
    %v668 = vld [vmem:[#allocation2 + $0x98c] sm:$0xf]
    %v669 = vld [vmem:[#allocation2 + $0x990] sm:$0xf]
    %v670 = vld [vmem:[#allocation2 + $0x994] sm:$0xf]
    %v671 = vld [vmem:[#allocation2 + $0x998] sm:$0xf]
    %v672 = vld [vmem:[#allocation2 + $0x99c] sm:$0xf]
    %v673 = vld [vmem:[#allocation2 + $0x9a0] sm:$0xf]
    %v674 = vld [vmem:[#allocation2 + $0x9a4] sm:$0xf]
    %v675 = vld [vmem:[#allocation2 + $0x9a8] sm:$0xf]
    %v676 = vld [vmem:[#allocation2 + $0x9ac] sm:$0xf]
    %v677 = vld [vmem:[#allocation2 + $0x9b0] sm:$0xf]
    %v678 = vld [vmem:[#allocation2 + $0x9b4] sm:$0xf]
    %v679 = vld [vmem:[#allocation2 + $0x9b8] sm:$0xf]
    %v680 = vld [vmem:[#allocation2 + $0x9bc] sm:$0xf]
    %v681 = vld [vmem:[#allocation2 + $0x9c0] sm:$0xf]
    %v682 = vld [vmem:[#allocation2 + $0x9c4] sm:$0xf]
    %v683 = vld [vmem:[#allocation2 + $0x9c8] sm:$0xf]
    %v684 = vld [vmem:[#allocation2 + $0x9cc] sm:$0xf]
    %v685 = vld [vmem:[#allocation2 + $0x9d0] sm:$0xf]
    %v686 = vld [vmem:[#allocation2 + $0x9d4] sm:$0xf]
    %v687 = vld [vmem:[#allocation2 + $0x9d8] sm:$0xf]
    %v688 = vld [vmem:[#allocation2 + $0x9dc] sm:$0xf]
    %v689 = vld [vmem:[#allocation2 + $0x9e0] sm:$0xf]
    %v690 = vld [vmem:[#allocation2 + $0x9e4] sm:$0xf]
    %v691 = vld [vmem:[#allocation2 + $0x9e8] sm:$0xf]
    %v692 = vld [vmem:[#allocation2 + $0x9ec] sm:$0xf]
    %v693 = vld [vmem:[#allocation2 + $0x9f0] sm:$0xf]
    %v694 = vld [vmem:[#allocation2 + $0x9f4] sm:$0xf]
    %v695 = vld [vmem:[#allocation2 + $0x9f8] sm:$0xf]
    %v696 = vld [vmem:[#allocation2 + $0x9fc] sm:$0xf]
    %v697 = vld [vmem:[#allocation2 + $0xa00] sm:$0xf]
    %v698 = vld [vmem:[#allocation2 + $0xa04] sm:$0xf]
    %v699 = vld [vmem:[#allocation2 + $0xa08] sm:$0xf]
    %v700 = vld [vmem:[#allocation2 + $0xa0c] sm:$0xf]
    %v701 = vld [vmem:[#allocation2 + $0xa10] sm:$0xf]
    %v702 = vld [vmem:[#allocation2 + $0xa14] sm:$0xf]
    %v703 = vld [vmem:[#allocation2 + $0xa18] sm:$0xf]
    %v704 = vld [vmem:[#allocation2 + $0xa1c] sm:$0xf]
    %v705 = vld [vmem:[#allocation2 + $0xa20] sm:$0xf]
    %v706 = vld [vmem:[#allocation2 + $0xa24] sm:$0xf]
    %v707 = vld [vmem:[#allocation2 + $0xa28] sm:$0xf]
    %v708 = vld [vmem:[#allocation2 + $0xa2c] sm:$0xf]
    %v709 = vld [vmem:[#allocation2 + $0xa30] sm:$0xf]
    %v710 = vld [vmem:[#allocation2 + $0xa34] sm:$0xf]
    %v711 = vld [vmem:[#allocation2 + $0xa38] sm:$0xf]
    %v712 = vld [vmem:[#allocation2 + $0xa3c] sm:$0xf]
    %v713 = vld [vmem:[#allocation2 + $0xa40] sm:$0xf]
    %v714 = vld [vmem:[#allocation2 + $0xa44] sm:$0xf]
    %v715 = vld [vmem:[#allocation2 + $0xa48] sm:$0xf]
    %v716 = vld [vmem:[#allocation2 + $0xa4c] sm:$0xf]
    %v717 = vld [vmem:[#allocation2 + $0xa50] sm:$0xf]
    %v718 = vld [vmem:[#allocation2 + $0xa54] sm:$0xf]
    %v719 = vld [vmem:[#allocation2 + $0xa58] sm:$0xf]
    %v720 = vld [vmem:[#allocation2 + $0xa5c] sm:$0xf]
    %v721 = vld [vmem:[#allocation2 + $0xa60] sm:$0xf]
    %v722 = vld [vmem:[#allocation2 + $0xa64] sm:$0xf]
    %v723 = vld [vmem:[#allocation2 + $0xa68] sm:$0xf]
    %v724 = vld [vmem:[#allocation2 + $0xa6c] sm:$0xf]
    %v725 = vld [vmem:[#allocation2 + $0xa70] sm:$0xf]
    %v726 = vld [vmem:[#allocation2 + $0xa74] sm:$0xf]
    %v727 = vld [vmem:[#allocation2 + $0xa78] sm:$0xf]
    %v728 = vld [vmem:[#allocation2 + $0xa7c] sm:$0xf]
    %v729 = vld [vmem:[#allocation2 + $0xa80] sm:$0xf]
    %v730 = vld [vmem:[#allocation2 + $0xa84] sm:$0xf]
    %v731 = vld [vmem:[#allocation2 + $0xa88] sm:$0xf]
    %v732 = vld [vmem:[#allocation2 + $0xa8c] sm:$0xf]
    %v733 = vld [vmem:[#allocation2 + $0xa90] sm:$0xf]
    %v734 = vld [vmem:[#allocation2 + $0xa94] sm:$0xf]
    %v735 = vld [vmem:[#allocation2 + $0xa98] sm:$0xf]
    %v736 = vld [vmem:[#allocation2 + $0xa9c] sm:$0xf]
    %v737 = vld [vmem:[#allocation2 + $0xaa0] sm:$0xf]
    %v738 = vld [vmem:[#allocation2 + $0xaa4] sm:$0xf]
    %v739 = vld [vmem:[#allocation2 + $0xaa8] sm:$0xf]
    %v740 = vld [vmem:[#allocation2 + $0xaac] sm:$0xf]
    %v741 = vld [vmem:[#allocation2 + $0xab0] sm:$0xf]
    %v742 = vld [vmem:[#allocation2 + $0xab4] sm:$0xf]
    %v743 = vld [vmem:[#allocation2 + $0xab8] sm:$0xf]
    %v744 = vld [vmem:[#allocation2 + $0xabc] sm:$0xf]
    %v745 = vld [vmem:[#allocation2 + $0xac0] sm:$0xf]
    %v746 = vld [vmem:[#allocation2 + $0xac4] sm:$0xf]
    %v747 = vld [vmem:[#allocation2 + $0xac8] sm:$0xf]
    %v748 = vld [vmem:[#allocation2 + $0xacc] sm:$0xf]
    %v749 = vld [vmem:[#allocation2 + $0xad0] sm:$0xf]
    %v750 = vld [vmem:[#allocation2 + $0xad4] sm:$0xf]
    %v751 = vld [vmem:[#allocation2 + $0xad8] sm:$0xf]
    %v752 = vld [vmem:[#allocation2 + $0xadc] sm:$0xf]
    %v753 = vld [vmem:[#allocation2 + $0xae0] sm:$0xf]
    %v754 = vld [vmem:[#allocation2 + $0xae4] sm:$0xf]
    %v755 = vld [vmem:[#allocation2 + $0xae8] sm:$0xf]
    %v756 = vld [vmem:[#allocation2 + $0xaec] sm:$0xf]
    %v757 = vld [vmem:[#allocation2 + $0xaf0] sm:$0xf]
    %v758 = vld [vmem:[#allocation2 + $0xaf4] sm:$0xf]
    %v759 = vld [vmem:[#allocation2 + $0xaf8] sm:$0xf]
    %v760 = vld [vmem:[#allocation2 + $0xafc] sm:$0xf]
    %v761 = vld [vmem:[#allocation2 + $0xb00] sm:$0xf]
    %v762 = vld [vmem:[#allocation2 + $0xb04] sm:$0xf]
    %v763 = vld [vmem:[#allocation2 + $0xb08] sm:$0xf]
    %v764 = vld [vmem:[#allocation2 + $0xb0c] sm:$0xf]
    %v765 = vld [vmem:[#allocation2 + $0xb10] sm:$0xf]
    %v766 = vld [vmem:[#allocation2 + $0xb14] sm:$0xf]
    %v767 = vld [vmem:[#allocation2 + $0xb18] sm:$0xf]
    %v768 = vld [vmem:[#allocation2 + $0xb1c] sm:$0xf]
    %v769 = vld [vmem:[#allocation2 + $0xb20] sm:$0xf]
    %v770 = vld [vmem:[#allocation2 + $0xb24] sm:$0xf]
    %v771 = vld [vmem:[#allocation2 + $0xb28] sm:$0xf]
    %v772 = vld [vmem:[#allocation2 + $0xb2c] sm:$0xf]
    %v773 = vld [vmem:[#allocation2 + $0xb30] sm:$0xf]
    %v774 = vld [vmem:[#allocation2 + $0xb34] sm:$0xf]
    %v775 = vld [vmem:[#allocation2 + $0xb38] sm:$0xf]
    %v776 = vld [vmem:[#allocation2 + $0xb3c] sm:$0xf]
    %v777 = vld [vmem:[#allocation2 + $0xb40] sm:$0xf]
    %v778 = vld [vmem:[#allocation2 + $0xb44] sm:$0xf]
    %v779 = vld [vmem:[#allocation2 + $0xb48] sm:$0xf]
    %v780 = vld [vmem:[#allocation2 + $0xb4c] sm:$0xf]
    %v781 = vld [vmem:[#allocation2 + $0xb50] sm:$0xf]
    %v782 = vld [vmem:[#allocation2 + $0xb54] sm:$0xf]
    %v783 = vld [vmem:[#allocation2 + $0xb58] sm:$0xf]
    %v784 = vld [vmem:[#allocation2 + $0xb5c] sm:$0xf]
    %v785 = vld [vmem:[#allocation2 + $0xb60] sm:$0xf]
    %v786 = vld [vmem:[#allocation2 + $0xb64] sm:$0xf]
    %v787 = vld [vmem:[#allocation2 + $0xb68] sm:$0xf]
    %v788 = vld [vmem:[#allocation2 + $0xb6c] sm:$0xf]
    %v789 = vld [vmem:[#allocation2 + $0xb70] sm:$0xf]
    %v790 = vld [vmem:[#allocation2 + $0xb74] sm:$0xf]
    %v791 = vld [vmem:[#allocation2 + $0xb78] sm:$0xf]
    %v792 = vld [vmem:[#allocation2 + $0xb7c] sm:$0xf]
    %v793 = vld [vmem:[#allocation2 + $0xb80] sm:$0xf]
    %v794 = vld [vmem:[#allocation2 + $0xb84] sm:$0xf]
    %v795 = vld [vmem:[#allocation2 + $0xb88] sm:$0xf]
    %v796 = vld [vmem:[#allocation2 + $0xb8c] sm:$0xf]
    %v797 = vld [vmem:[#allocation2 + $0xb90] sm:$0xf]
    %v798 = vld [vmem:[#allocation2 + $0xb94] sm:$0xf]
    %v799 = vld [vmem:[#allocation2 + $0xb98] sm:$0xf]
    %v800 = vld [vmem:[#allocation2 + $0xb9c] sm:$0xf]
    %v801 = vld [vmem:[#allocation2 + $0xba0] sm:$0xf]
    %v802 = vld [vmem:[#allocation2 + $0xba4] sm:$0xf]
    %v803 = vld [vmem:[#allocation2 + $0xba8] sm:$0xf]
    %v804 = vld [vmem:[#allocation2 + $0xbac] sm:$0xf]
    %v805 = vld [vmem:[#allocation2 + $0xbb0] sm:$0xf]
    %v806 = vld [vmem:[#allocation2 + $0xbb4] sm:$0xf]
    %v807 = vld [vmem:[#allocation2 + $0xbb8] sm:$0xf]
    %v808 = vld [vmem:[#allocation2 + $0xbbc] sm:$0xf]
    %v809 = vld [vmem:[#allocation2 + $0xbc0] sm:$0xf]
    %v810 = vld [vmem:[#allocation2 + $0xbc4] sm:$0xf]
    %v811 = vld [vmem:[#allocation2 + $0xbc8] sm:$0xf]
    %v812 = vld [vmem:[#allocation2 + $0xbcc] sm:$0xf]
    %v813 = vld [vmem:[#allocation2 + $0xbd0] sm:$0xf]
    %v814 = vld [vmem:[#allocation2 + $0xbd4] sm:$0xf]
    %v815 = vld [vmem:[#allocation2 + $0xbd8] sm:$0xf]
    %v816 = vld [vmem:[#allocation2 + $0xbdc] sm:$0xf]
    %v817 = vld [vmem:[#allocation2 + $0xbe0] sm:$0xf]
    %v818 = vld [vmem:[#allocation2 + $0xbe4] sm:$0xf]
    %v819 = vld [vmem:[#allocation2 + $0xbe8] sm:$0xf]
    %v820 = vld [vmem:[#allocation2 + $0xbec] sm:$0xf]
    %v821 = vld [vmem:[#allocation2 + $0xbf0] sm:$0xf]
    %v822 = vld [vmem:[#allocation2 + $0xbf4] sm:$0xf]
    %v823 = vld [vmem:[#allocation2 + $0xbf8] sm:$0xf]
    %v824 = vld [vmem:[#allocation2 + $0xbfc] sm:$0xf]
    %v825 = vld [vmem:[#allocation2 + $0xc00] sm:$0xf]
    %v826 = vld [vmem:[#allocation2 + $0xc04] sm:$0xf]
    %v827 = vld [vmem:[#allocation2 + $0xc08] sm:$0xf]
    %v828 = vld [vmem:[#allocation2 + $0xc0c] sm:$0xf]
    %v829 = vld [vmem:[#allocation2 + $0xc10] sm:$0xf]
    %v830 = vld [vmem:[#allocation2 + $0xc14] sm:$0xf]
    %v831 = vld [vmem:[#allocation2 + $0xc18] sm:$0xf]
    %v832 = vld [vmem:[#allocation2 + $0xc1c] sm:$0xf]
    %v833 = vld [vmem:[#allocation2 + $0xc20] sm:$0xf]
    %v834 = vld [vmem:[#allocation2 + $0xc24] sm:$0xf]
    %v835 = vld [vmem:[#allocation2 + $0xc28] sm:$0xf]
    %v836 = vld [vmem:[#allocation2 + $0xc2c] sm:$0xf]
    %v837 = vld [vmem:[#allocation2 + $0xc30] sm:$0xf]
    %v838 = vld [vmem:[#allocation2 + $0xc34] sm:$0xf]
    %v839 = vld [vmem:[#allocation2 + $0xc38] sm:$0xf]
    %v840 = vld [vmem:[#allocation2 + $0xc3c] sm:$0xf]
    %v841 = vld [vmem:[#allocation2 + $0xc40] sm:$0xf]
    %v842 = vld [vmem:[#allocation2 + $0xc44] sm:$0xf]
    %v843 = vld [vmem:[#allocation2 + $0xc48] sm:$0xf]
    %v844 = vld [vmem:[#allocation2 + $0xc4c] sm:$0xf]
    %v845 = vld [vmem:[#allocation2 + $0xc50] sm:$0xf]
    %v846 = vld [vmem:[#allocation2 + $0xc54] sm:$0xf]
    %v847 = vld [vmem:[#allocation2 + $0xc58] sm:$0xf]
    %v848 = vld [vmem:[#allocation2 + $0xc5c] sm:$0xf]
    %v849 = vld [vmem:[#allocation2 + $0xc60] sm:$0xf]
    %v850 = vld [vmem:[#allocation2 + $0xc64] sm:$0xf]
    %v851 = vld [vmem:[#allocation2 + $0xc68] sm:$0xf]
    %v852 = vld [vmem:[#allocation2 + $0xc6c] sm:$0xf]
    %v853 = vld [vmem:[#allocation2 + $0xc70] sm:$0xf]
    %v854 = vld [vmem:[#allocation2 + $0xc74] sm:$0xf]
    %v855 = vld [vmem:[#allocation2 + $0xc78] sm:$0xf]
    %v856 = vld [vmem:[#allocation2 + $0xc7c] sm:$0xf]
    %v857 = vld [vmem:[#allocation2 + $0xc80] sm:$0xf]
    %v858 = vld [vmem:[#allocation2 + $0xc84] sm:$0xf]
    %v859 = vld [vmem:[#allocation2 + $0xc88] sm:$0xf]
    %v860 = vld [vmem:[#allocation2 + $0xc8c] sm:$0xf]
    %v861 = vld [vmem:[#allocation2 + $0xc90] sm:$0xf]
    %v862 = vld [vmem:[#allocation2 + $0xc94] sm:$0xf]
    %v863 = vld [vmem:[#allocation2 + $0xc98] sm:$0xf]
    %v864 = vld [vmem:[#allocation2 + $0xc9c] sm:$0xf]
    %v865 = vld [vmem:[#allocation2 + $0xca0] sm:$0xf]
    %v866 = vld [vmem:[#allocation2 + $0xca4] sm:$0xf]
    %v867 = vld [vmem:[#allocation2 + $0xca8] sm:$0xf]
    %v868 = vld [vmem:[#allocation2 + $0xcac] sm:$0xf]
    %v869 = vld [vmem:[#allocation2 + $0xcb0] sm:$0xf]
    %v870 = vld [vmem:[#allocation2 + $0xcb4] sm:$0xf]
    %v871 = vld [vmem:[#allocation2 + $0xcb8] sm:$0xf]
    %v872 = vld [vmem:[#allocation2 + $0xcbc] sm:$0xf]
    %v873 = vld [vmem:[#allocation2 + $0xcc0] sm:$0xf]
    %v874 = vld [vmem:[#allocation2 + $0xcc4] sm:$0xf]
    %v875 = vld [vmem:[#allocation2 + $0xcc8] sm:$0xf]
    %v876 = vld [vmem:[#allocation2 + $0xccc] sm:$0xf]
    %v877 = vld [vmem:[#allocation2 + $0xcd0] sm:$0xf]
    %v878 = vld [vmem:[#allocation2 + $0xcd4] sm:$0xf]
    %v879 = vld [vmem:[#allocation2 + $0xcd8] sm:$0xf]
    %v880 = vld [vmem:[#allocation2 + $0xcdc] sm:$0xf]
    %v881 = vld [vmem:[#allocation2 + $0xce0] sm:$0xf]
    %v882 = vld [vmem:[#allocation2 + $0xce4] sm:$0xf]
    %v883 = vld [vmem:[#allocation2 + $0xce8] sm:$0xf]
    %v884 = vld [vmem:[#allocation2 + $0xcec] sm:$0xf]
    %v885 = vld [vmem:[#allocation2 + $0xcf0] sm:$0xf]
    %v886 = vld [vmem:[#allocation2 + $0xcf4] sm:$0xf]
    %v887 = vld [vmem:[#allocation2 + $0xcf8] sm:$0xf]
    %v888 = vld [vmem:[#allocation2 + $0xcfc] sm:$0xf]
    %v889 = vld [vmem:[#allocation2 + $0xd00] sm:$0xf]
    %v890 = vld [vmem:[#allocation2 + $0xd04] sm:$0xf]
    %v891 = vld [vmem:[#allocation2 + $0xd08] sm:$0xf]
    %v892 = vld [vmem:[#allocation2 + $0xd0c] sm:$0xf]
    %v893 = vld [vmem:[#allocation2 + $0xd10] sm:$0xf]
    %v894 = vld [vmem:[#allocation2 + $0xd14] sm:$0xf]
    %v895 = vld [vmem:[#allocation2 + $0xd18] sm:$0xf]
    %v896 = vld [vmem:[#allocation2 + $0xd1c] sm:$0xf]
    %v897 = vld [vmem:[#allocation2 + $0xd20] sm:$0xf]
    %v898 = vld [vmem:[#allocation2 + $0xd24] sm:$0xf]
    %v899 = vld [vmem:[#allocation2 + $0xd28] sm:$0xf]
    %v900 = vld [vmem:[#allocation2 + $0xd2c] sm:$0xf]
    %v901 = vld [vmem:[#allocation2 + $0xd30] sm:$0xf]
    %v902 = vld [vmem:[#allocation2 + $0xd34] sm:$0xf]
    %v903 = vld [vmem:[#allocation2 + $0xd38] sm:$0xf]
    %v904 = vld [vmem:[#allocation2 + $0xd3c] sm:$0xf]
    %v905 = vld [vmem:[#allocation2 + $0xd40] sm:$0xf]
    %v906 = vld [vmem:[#allocation2 + $0xd44] sm:$0xf]
    %v907 = vld [vmem:[#allocation2 + $0xd48] sm:$0xf]
    %v908 = vld [vmem:[#allocation2 + $0xd4c] sm:$0xf]
    %v909 = vld [vmem:[#allocation2 + $0xd50] sm:$0xf]
    %v910 = vld [vmem:[#allocation2 + $0xd54] sm:$0xf]
    %v911 = vld [vmem:[#allocation2 + $0xd58] sm:$0xf]
    %v912 = vld [vmem:[#allocation2 + $0xd5c] sm:$0xf]
    %v913 = vld [vmem:[#allocation2 + $0xd60] sm:$0xf]
    %v914 = vld [vmem:[#allocation2 + $0xd64] sm:$0xf]
    %v915 = vld [vmem:[#allocation2 + $0xd68] sm:$0xf]
    %v916 = vld [vmem:[#allocation2 + $0xd6c] sm:$0xf]
    %v917 = vld [vmem:[#allocation2 + $0xd70] sm:$0xf]
    %v918 = vld [vmem:[#allocation2 + $0xd74] sm:$0xf]
    %v919 = vld [vmem:[#allocation2 + $0xd78] sm:$0xf]
    %v920 = vld [vmem:[#allocation2 + $0xd7c] sm:$0xf]
    %v921 = vld [vmem:[#allocation2 + $0xd80] sm:$0xf]
    %v922 = vld [vmem:[#allocation2 + $0xd84] sm:$0xf]
    %v923 = vld [vmem:[#allocation2 + $0xd88] sm:$0xf]
    %v924 = vld [vmem:[#allocation2 + $0xd8c] sm:$0xf]
    %v925 = vld [vmem:[#allocation2 + $0xd90] sm:$0xf]
    %v926 = vld [vmem:[#allocation2 + $0xd94] sm:$0xf]
    %v927 = vld [vmem:[#allocation2 + $0xd98] sm:$0xf]
    %v928 = vld [vmem:[#allocation2 + $0xd9c] sm:$0xf]
    %v929 = vld [vmem:[#allocation2 + $0xda0] sm:$0xf]
    %v930 = vld [vmem:[#allocation2 + $0xda4] sm:$0xf]
    %v931 = vld [vmem:[#allocation2 + $0xda8] sm:$0xf]
    %v932 = vld [vmem:[#allocation2 + $0xdac] sm:$0xf]
    %v933 = vld [vmem:[#allocation2 + $0xdb0] sm:$0xf]
    %v934 = vld [vmem:[#allocation2 + $0xdb4] sm:$0xf]
    %v935 = vld [vmem:[#allocation2 + $0xdb8] sm:$0xf]
    %v936 = vld [vmem:[#allocation2 + $0xdbc] sm:$0xf]
    %v937 = vld [vmem:[#allocation2 + $0xdc0] sm:$0xf]
    %v938 = vld [vmem:[#allocation2 + $0xdc4] sm:$0xf]
    %v939 = vld [vmem:[#allocation2 + $0xdc8] sm:$0xf]
    %v940 = vld [vmem:[#allocation2 + $0xdcc] sm:$0xf]
    %v941 = vld [vmem:[#allocation2 + $0xdd0] sm:$0xf]
    %v942 = vld [vmem:[#allocation2 + $0xdd4] sm:$0xf]
    %v943 = vld [vmem:[#allocation2 + $0xdd8] sm:$0xf]
    %v944 = vld [vmem:[#allocation2 + $0xddc] sm:$0xf]
    %v945 = vld [vmem:[#allocation2 + $0xde0] sm:$0xf]
    %v946 = vld [vmem:[#allocation2 + $0xde4] sm:$0xf]
    %v947 = vld [vmem:[#allocation2 + $0xde8] sm:$0xf]
    %v948 = vld [vmem:[#allocation2 + $0xdec] sm:$0xf]
    %v949 = vld [vmem:[#allocation2 + $0xdf0] sm:$0xf]
    %v950 = vld [vmem:[#allocation2 + $0xdf4] sm:$0xf]
    %v951 = vld [vmem:[#allocation2 + $0xdf8] sm:$0xf]
    %v952 = vld [vmem:[#allocation2 + $0xdfc] sm:$0xf]
    %v953 = vld [vmem:[#allocation2 + $0xe00] sm:$0xf]
    %v954 = vld [vmem:[#allocation2 + $0xe04] sm:$0xf]
    %v955 = vld [vmem:[#allocation2 + $0xe08] sm:$0xf]
    %v956 = vld [vmem:[#allocation2 + $0xe0c] sm:$0xf]
    %v957 = vld [vmem:[#allocation2 + $0xe10] sm:$0xf]
    %v958 = vld [vmem:[#allocation2 + $0xe14] sm:$0xf]
    %v959 = vld [vmem:[#allocation2 + $0xe18] sm:$0xf]
    %v960 = vld [vmem:[#allocation2 + $0xe1c] sm:$0xf]
    %v961 = vld [vmem:[#allocation2 + $0xe20] sm:$0xf]
    %v962 = vld [vmem:[#allocation2 + $0xe24] sm:$0xf]
    %v963 = vld [vmem:[#allocation2 + $0xe28] sm:$0xf]
    %v964 = vld [vmem:[#allocation2 + $0xe2c] sm:$0xf]
    %v965 = vld [vmem:[#allocation2 + $0xe30] sm:$0xf]
    %v966 = vld [vmem:[#allocation2 + $0xe34] sm:$0xf]
    %v967 = vld [vmem:[#allocation2 + $0xe38] sm:$0xf]
    %v968 = vld [vmem:[#allocation2 + $0xe3c] sm:$0xf]
    %v969 = vld [vmem:[#allocation2 + $0xe40] sm:$0xf]
    %v970 = vld [vmem:[#allocation2 + $0xe44] sm:$0xf]
    %v971 = vld [vmem:[#allocation2 + $0xe48] sm:$0xf]
    %v972 = vld [vmem:[#allocation2 + $0xe4c] sm:$0xf]
    %v973 = vld [vmem:[#allocation2 + $0xe50] sm:$0xf]
    %v974 = vld [vmem:[#allocation2 + $0xe54] sm:$0xf]
    %v975 = vld [vmem:[#allocation2 + $0xe58] sm:$0xf]
    %v976 = vld [vmem:[#allocation2 + $0xe5c] sm:$0xf]
    %v977 = vld [vmem:[#allocation2 + $0xe60] sm:$0xf]
    %v978 = vld [vmem:[#allocation2 + $0xe64] sm:$0xf]
    %v979 = vld [vmem:[#allocation2 + $0xe68] sm:$0xf]
    %v980 = vld [vmem:[#allocation2 + $0xe6c] sm:$0xf]
    %v981 = vld [vmem:[#allocation2 + $0xe70] sm:$0xf]
    %v982 = vld [vmem:[#allocation2 + $0xe74] sm:$0xf]
    %v983 = vld [vmem:[#allocation2 + $0xe78] sm:$0xf]
    %v984 = vld [vmem:[#allocation2 + $0xe7c] sm:$0xf]
    %v985 = vld [vmem:[#allocation2 + $0xe80] sm:$0xf]
    %v986 = vld [vmem:[#allocation2 + $0xe84] sm:$0xf]
    %v987 = vld [vmem:[#allocation2 + $0xe88] sm:$0xf]
    %v988 = vld [vmem:[#allocation2 + $0xe8c] sm:$0xf]
    %v989 = vld [vmem:[#allocation2 + $0xe90] sm:$0xf]
    %v990 = vld [vmem:[#allocation2 + $0xe94] sm:$0xf]
    %v991 = vld [vmem:[#allocation2 + $0xe98] sm:$0xf]
    %v992 = vld [vmem:[#allocation2 + $0xe9c] sm:$0xf]
    %v993 = vld [vmem:[#allocation2 + $0xea0] sm:$0xf]
    %v994 = vld [vmem:[#allocation2 + $0xea4] sm:$0xf]
    %v995 = vld [vmem:[#allocation2 + $0xea8] sm:$0xf]
    %v996 = vld [vmem:[#allocation2 + $0xeac] sm:$0xf]
    %v997 = vld [vmem:[#allocation2 + $0xeb0] sm:$0xf]
    %v998 = vld [vmem:[#allocation2 + $0xeb4] sm:$0xf]
    %v999 = vld [vmem:[#allocation2 + $0xeb8] sm:$0xf]
    %v1000 = vld [vmem:[#allocation2 + $0xebc] sm:$0xf]
    %v1001 = vld [vmem:[#allocation2 + $0xec0] sm:$0xf]
    %v1002 = vld [vmem:[#allocation2 + $0xec4] sm:$0xf]
    %v1003 = vld [vmem:[#allocation2 + $0xec8] sm:$0xf]
    %v1004 = vld [vmem:[#allocation2 + $0xecc] sm:$0xf]
    %v1005 = vld [vmem:[#allocation2 + $0xed0] sm:$0xf]
    %v1006 = vld [vmem:[#allocation2 + $0xed4] sm:$0xf]
    %v1007 = vld [vmem:[#allocation2 + $0xed8] sm:$0xf]
    %v1008 = vld [vmem:[#allocation2 + $0xedc] sm:$0xf]
    %v1009 = vld [vmem:[#allocation2 + $0xee0] sm:$0xf]
    %v1010 = vld [vmem:[#allocation2 + $0xee4] sm:$0xf]
    %v1011 = vld [vmem:[#allocation2 + $0xee8] sm:$0xf]
    %v1012 = vld [vmem:[#allocation2 + $0xeec] sm:$0xf]
    %v1013 = vld [vmem:[#allocation2 + $0xef0] sm:$0xf]
    %v1014 = vld [vmem:[#allocation2 + $0xef4] sm:$0xf]
    %v1015 = vld [vmem:[#allocation2 + $0xef8] sm:$0xf]
    %v1016 = vld [vmem:[#allocation2 + $0xefc] sm:$0xf]
    %v1017 = vld [vmem:[#allocation2 + $0xf00] sm:$0xf]
    %v1018 = vld [vmem:[#allocation2 + $0xf04] sm:$0xf]
    %v1019 = vld [vmem:[#allocation2 + $0xf08] sm:$0xf]
    %v1020 = vld [vmem:[#allocation2 + $0xf0c] sm:$0xf]
    %v1021 = vld [vmem:[#allocation2 + $0xf10] sm:$0xf]
    %v1022 = vld [vmem:[#allocation2 + $0xf14] sm:$0xf]
    %v1023 = vld [vmem:[#allocation2 + $0xf18] sm:$0xf]
    %v1024 = vld [vmem:[#allocation2 + $0xf1c] sm:$0xf]
    %v1025 = vld [vmem:[#allocation2 + $0xf20] sm:$0xf]
    %v1026 = vld [vmem:[#allocation2 + $0xf24] sm:$0xf]
    %v1027 = vld [vmem:[#allocation2 + $0xf28] sm:$0xf]
    %v1028 = vld [vmem:[#allocation2 + $0xf2c] sm:$0xf]
    %v1029 = vld [vmem:[#allocation2 + $0xf30] sm:$0xf]
    %v1030 = vld [vmem:[#allocation2 + $0xf34] sm:$0xf]
    %v1031 = vld [vmem:[#allocation2 + $0xf38] sm:$0xf]
    %v1032 = vld [vmem:[#allocation2 + $0xf3c] sm:$0xf]
    %v1033 = vld [vmem:[#allocation2 + $0xf40] sm:$0xf]
    %v1034 = vld [vmem:[#allocation2 + $0xf44] sm:$0xf]
    %v1035 = vld [vmem:[#allocation2 + $0xf48] sm:$0xf]
    %v1036 = vld [vmem:[#allocation2 + $0xf4c] sm:$0xf]
    %v1037 = vld [vmem:[#allocation2 + $0xf50] sm:$0xf]
    %v1038 = vld [vmem:[#allocation2 + $0xf54] sm:$0xf]
    %v1039 = vld [vmem:[#allocation2 + $0xf58] sm:$0xf]
    %v1040 = vld [vmem:[#allocation2 + $0xf5c] sm:$0xf]
    %v1041 = vld [vmem:[#allocation2 + $0xf60] sm:$0xf]
    %v1042 = vld [vmem:[#allocation2 + $0xf64] sm:$0xf]
    %v1043 = vld [vmem:[#allocation2 + $0xf68] sm:$0xf]
    %v1044 = vld [vmem:[#allocation2 + $0xf6c] sm:$0xf]
    %v1045 = vld [vmem:[#allocation2 + $0xf70] sm:$0xf]
    %v1046 = vld [vmem:[#allocation2 + $0xf74] sm:$0xf]
    %v1047 = vld [vmem:[#allocation2 + $0xf78] sm:$0xf]
    %v1048 = vld [vmem:[#allocation2 + $0xf7c] sm:$0xf]
    %v1049 = vld [vmem:[#allocation2 + $0xf80] sm:$0xf]
    %v1050 = vld [vmem:[#allocation2 + $0xf84] sm:$0xf]
    %v1051 = vld [vmem:[#allocation2 + $0xf88] sm:$0xf]
    %v1052 = vld [vmem:[#allocation2 + $0xf8c] sm:$0xf]
    %v1053 = vld [vmem:[#allocation2 + $0xf90] sm:$0xf]
    %v1054 = vld [vmem:[#allocation2 + $0xf94] sm:$0xf]
    %v1055 = vld [vmem:[#allocation2 + $0xf98] sm:$0xf]
    %v1056 = vld [vmem:[#allocation2 + $0xf9c] sm:$0xf]
    %v1057 = vld [vmem:[#allocation2 + $0xfa0] sm:$0xf]
    %v1058 = vld [vmem:[#allocation2 + $0xfa4] sm:$0xf]
    %v1059 = vld [vmem:[#allocation2 + $0xfa8] sm:$0xf]
    %v1060 = vld [vmem:[#allocation2 + $0xfac] sm:$0xf]
    %v1061 = vld [vmem:[#allocation2 + $0xfb0] sm:$0xf]
    %v1062 = vld [vmem:[#allocation2 + $0xfb4] sm:$0xf]
    %v1063 = vld [vmem:[#allocation2 + $0xfb8] sm:$0xf]
    %v1064 = vld [vmem:[#allocation2 + $0xfbc] sm:$0xf]
    %v1065 = vld [vmem:[#allocation2 + $0xfc0] sm:$0xf]
    %v1066 = vld [vmem:[#allocation2 + $0xfc4] sm:$0xf]
    %v1067 = vld [vmem:[#allocation2 + $0xfc8] sm:$0xf]
    %v1068 = vld [vmem:[#allocation2 + $0xfcc] sm:$0xf]
    %v1069 = vld [vmem:[#allocation2 + $0xfd0] sm:$0xf]
    %v1070 = vld [vmem:[#allocation2 + $0xfd4] sm:$0xf]
    %v1071 = vld [vmem:[#allocation2 + $0xfd8] sm:$0xf]
    %v1072 = vld [vmem:[#allocation2 + $0xfdc] sm:$0xf]
    %v1073 = vld [vmem:[#allocation2 + $0xfe0] sm:$0xf]
    %v1074 = vld [vmem:[#allocation2 + $0xfe4] sm:$0xf]
    %v1075 = vld [vmem:[#allocation2 + $0xfe8] sm:$0xf]
    %v1076 = vld [vmem:[#allocation2 + $0xfec] sm:$0xf]
    %v1077 = vld [vmem:[#allocation2 + $0xff0] sm:$0xf]
    %v1078 = vld [vmem:[#allocation2 + $0xff4] sm:$0xf]
    %v1079 = vld [vmem:[#allocation2 + $0xff8] sm:$0xf]
    %v1080 = vld [vmem:[#allocation2 + $0xffc] sm:$0xf]
    %v1081 = vld [vmem:[#allocation2 + $0x1000] sm:$0xf]
    %v1082 = vld [vmem:[#allocation2 + $0x1004] sm:$0xf]
    %v1083 = vld [vmem:[#allocation2 + $0x1008] sm:$0xf]
    %v1084 = vld [vmem:[#allocation2 + $0x100c] sm:$0xf]
    %v1085 = vld [vmem:[#allocation2 + $0x1010] sm:$0xf]
    %v1086 = vld [vmem:[#allocation2 + $0x1014] sm:$0xf]
    %v1087 = vld [vmem:[#allocation2 + $0x1018] sm:$0xf]
    %v1088 = vld [vmem:[#allocation2 + $0x101c] sm:$0xf]
    %v1089 = vld [vmem:[#allocation2 + $0x1020] sm:$0xf]
    %v1090 = vld [vmem:[#allocation2 + $0x1024] sm:$0xf]
    %v1091 = vld [vmem:[#allocation2 + $0x1028] sm:$0xf]
    %v1092 = vld [vmem:[#allocation2 + $0x102c] sm:$0xf]
    %v1093 = vld [vmem:[#allocation2 + $0x1030] sm:$0xf]
    %v1094 = vld [vmem:[#allocation2 + $0x1034] sm:$0xf]
    %v1095 = vld [vmem:[#allocation2 + $0x1038] sm:$0xf]
    %v1096 = vld [vmem:[#allocation2 + $0x103c] sm:$0xf]
    %v1097 = vld [vmem:[#allocation2 + $0x1040] sm:$0xf]
    %v1098 = vld [vmem:[#allocation2 + $0x1044] sm:$0xf]
    %v1099 = vld [vmem:[#allocation2 + $0x1048] sm:$0xf]
    %v1100 = vld [vmem:[#allocation2 + $0x104c] sm:$0xf]
    %v1101 = vld [vmem:[#allocation2 + $0x1050] sm:$0xf]
    %v1102 = vld [vmem:[#allocation2 + $0x1054] sm:$0xf]
    %v1103 = vld [vmem:[#allocation2 + $0x1058] sm:$0xf]
    %v1104 = vld [vmem:[#allocation2 + $0x105c] sm:$0xf]
    %v1105 = vld [vmem:[#allocation2 + $0x1060] sm:$0xf]
    %v1106 = vld [vmem:[#allocation2 + $0x1064] sm:$0xf]
    %v1107 = vld [vmem:[#allocation2 + $0x1068] sm:$0xf]
    %v1108 = vld [vmem:[#allocation2 + $0x106c] sm:$0xf]
    %v1109 = vld [vmem:[#allocation2 + $0x1070] sm:$0xf]
    %v1110 = vld [vmem:[#allocation2 + $0x1074] sm:$0xf]
    %v1111 = vld [vmem:[#allocation2 + $0x1078] sm:$0xf]
    %v1112 = vld [vmem:[#allocation2 + $0x107c] sm:$0xf]
    %v1113 = vld [vmem:[#allocation2 + $0x1080] sm:$0xf]
    %v1114 = vld [vmem:[#allocation2 + $0x1084] sm:$0xf]
    %v1115 = vld [vmem:[#allocation2 + $0x1088] sm:$0xf]
    %v1116 = vld [vmem:[#allocation2 + $0x108c] sm:$0xf]
    %v1117 = vld [vmem:[#allocation2 + $0x1090] sm:$0xf]
    %v1118 = vld [vmem:[#allocation2 + $0x1094] sm:$0xf]
    %v1119 = vld [vmem:[#allocation2 + $0x1098] sm:$0xf]
    %v1120 = vld [vmem:[#allocation2 + $0x109c] sm:$0xf]
    %v1121 = vld [vmem:[#allocation2 + $0x10a0] sm:$0xf]
    %v1122 = vld [vmem:[#allocation2 + $0x10a4] sm:$0xf]
    %v1123 = vld [vmem:[#allocation2 + $0x10a8] sm:$0xf]
    %v1124 = vld [vmem:[#allocation2 + $0x10ac] sm:$0xf]
    %v1125 = vld [vmem:[#allocation2 + $0x10b0] sm:$0xf]
    %v1126 = vld [vmem:[#allocation2 + $0x10b4] sm:$0xf]
    %v1127 = vld [vmem:[#allocation2 + $0x10b8] sm:$0xf]
    %v1128 = vld [vmem:[#allocation2 + $0x10bc] sm:$0xf]
    %v1129 = vld [vmem:[#allocation2 + $0x10c0] sm:$0xf]
    %v1130 = vld [vmem:[#allocation2 + $0x10c4] sm:$0xf]
    %v1131 = vld [vmem:[#allocation2 + $0x10c8] sm:$0xf]
    %v1132 = vld [vmem:[#allocation2 + $0x10cc] sm:$0xf]
    %v1133 = vld [vmem:[#allocation2 + $0x10d0] sm:$0xf]
    %v1134 = vld [vmem:[#allocation2 + $0x10d4] sm:$0xf]
    %v1135 = vld [vmem:[#allocation2 + $0x10d8] sm:$0xf]
    %v1136 = vld [vmem:[#allocation2 + $0x10dc] sm:$0xf]
    %v1137 = vld [vmem:[#allocation2 + $0x10e0] sm:$0xf]
    %v1138 = vld [vmem:[#allocation2 + $0x10e4] sm:$0xf]
    %v1139 = vld [vmem:[#allocation2 + $0x10e8] sm:$0xf]
    %v1140 = vld [vmem:[#allocation2 + $0x10ec] sm:$0xf]
    %v1141 = vld [vmem:[#allocation2 + $0x10f0] sm:$0xf]
    %v1142 = vld [vmem:[#allocation2 + $0x10f4] sm:$0xf]
    %v1143 = vld [vmem:[#allocation2 + $0x10f8] sm:$0xf]
    %v1144 = vld [vmem:[#allocation2 + $0x10fc] sm:$0xf]
    %v1145 = vld [vmem:[#allocation2 + $0x1100] sm:$0xf]
    %v1146 = vld [vmem:[#allocation2 + $0x1104] sm:$0xf]
    %v1147 = vld [vmem:[#allocation2 + $0x1108] sm:$0xf]
    %v1148 = vld [vmem:[#allocation2 + $0x110c] sm:$0xf]
    %v1149 = vld [vmem:[#allocation2 + $0x1110] sm:$0xf]
    %v1150 = vld [vmem:[#allocation2 + $0x1114] sm:$0xf]
    %v1151 = vld [vmem:[#allocation2 + $0x1118] sm:$0xf]
    %v1152 = vld [vmem:[#allocation2 + $0x111c] sm:$0xf]
    %v1153 = vld [vmem:[#allocation2 + $0x1120] sm:$0xf]
    %v1154 = vld [vmem:[#allocation2 + $0x1124] sm:$0xf]
    %v1155 = vld [vmem:[#allocation2 + $0x1128] sm:$0xf]
    %v1156 = vld [vmem:[#allocation2 + $0x112c] sm:$0xf]
    %v1157 = vld [vmem:[#allocation2 + $0x1130] sm:$0xf]
    %v1158 = vld [vmem:[#allocation2 + $0x1134] sm:$0xf]
    %v1159 = vld [vmem:[#allocation2 + $0x1138] sm:$0xf]
    %v1160 = vld [vmem:[#allocation2 + $0x113c] sm:$0xf]
    %v1161 = vld [vmem:[#allocation2 + $0x1140] sm:$0xf]
    %v1162 = vld [vmem:[#allocation2 + $0x1144] sm:$0xf]
    %v1163 = vld [vmem:[#allocation2 + $0x1148] sm:$0xf]
    %v1164 = vld [vmem:[#allocation2 + $0x114c] sm:$0xf]
    %v1165 = vld [vmem:[#allocation2 + $0x1150] sm:$0xf]
    %v1166 = vld [vmem:[#allocation2 + $0x1154] sm:$0xf]
    %v1167 = vld [vmem:[#allocation2 + $0x1158] sm:$0xf]
    %v1168 = vld [vmem:[#allocation2 + $0x115c] sm:$0xf]
    %v1169 = vld [vmem:[#allocation2 + $0x1160] sm:$0xf]
    %v1170 = vld [vmem:[#allocation2 + $0x1164] sm:$0xf]
    %v1171 = vld [vmem:[#allocation2 + $0x1168] sm:$0xf]
    %v1172 = vld [vmem:[#allocation2 + $0x116c] sm:$0xf]
    %v1173 = vld [vmem:[#allocation2 + $0x1170] sm:$0xf]
    %v1174 = vld [vmem:[#allocation2 + $0x1174] sm:$0xf]
    %v1175 = vld [vmem:[#allocation2 + $0x1178] sm:$0xf]
    %v1176 = vld [vmem:[#allocation2 + $0x117c] sm:$0xf]
    %v1177 = vld [vmem:[#allocation2 + $0x1180] sm:$0xf]
    %v1178 = vld [vmem:[#allocation2 + $0x1184] sm:$0xf]
    %v1179 = vld [vmem:[#allocation2 + $0x1188] sm:$0xf]
    %v1180 = vld [vmem:[#allocation2 + $0x118c] sm:$0xf]
    %v1181 = vld [vmem:[#allocation2 + $0x1190] sm:$0xf]
    %v1182 = vld [vmem:[#allocation2 + $0x1194] sm:$0xf]
    %v1183 = vld [vmem:[#allocation2 + $0x1198] sm:$0xf]
    %v1184 = vld [vmem:[#allocation2 + $0x119c] sm:$0xf]
    %v1185 = vld [vmem:[#allocation2 + $0x11a0] sm:$0xf]
    %v1186 = vld [vmem:[#allocation2 + $0x11a4] sm:$0xf]
    %v1187 = vld [vmem:[#allocation2 + $0x11a8] sm:$0xf]
    %v1188 = vld [vmem:[#allocation2 + $0x11ac] sm:$0xf]
    %v1189 = vld [vmem:[#allocation2 + $0x11b0] sm:$0xf]
    %v1190 = vld [vmem:[#allocation2 + $0x11b4] sm:$0xf]
    %v1191 = vld [vmem:[#allocation2 + $0x11b8] sm:$0xf]
    %v1192 = vld [vmem:[#allocation2 + $0x11bc] sm:$0xf]
    %v1193 = vld [vmem:[#allocation2 + $0x11c0] sm:$0xf]
    %v1194 = vld [vmem:[#allocation2 + $0x11c4] sm:$0xf]
    %v1195 = vld [vmem:[#allocation2 + $0x11c8] sm:$0xf]
    %v1196 = vld [vmem:[#allocation2 + $0x11cc] sm:$0xf]
    %v1197 = vld [vmem:[#allocation2 + $0x11d0] sm:$0xf]
    %v1198 = vld [vmem:[#allocation2 + $0x11d4] sm:$0xf]
    %v1199 = vld [vmem:[#allocation2 + $0x11d8] sm:$0xf]
    %v1200 = vld [vmem:[#allocation2 + $0x11dc] sm:$0xf]
    %v1201 = vld [vmem:[#allocation2 + $0x11e0] sm:$0xf]
    %v1202 = vld [vmem:[#allocation2 + $0x11e4] sm:$0xf]
    %v1203 = vld [vmem:[#allocation2 + $0x11e8] sm:$0xf]
    %v1204 = vld [vmem:[#allocation2 + $0x11ec] sm:$0xf]
    %v1205 = vld [vmem:[#allocation2 + $0x11f0] sm:$0xf]
    %v1206 = vld [vmem:[#allocation2 + $0x11f4] sm:$0xf]
    %v1207 = vld [vmem:[#allocation2 + $0x11f8] sm:$0xf]
    %v1208 = vld [vmem:[#allocation2 + $0x11fc] sm:$0xf]
    %v1209 = vld [vmem:[#allocation2 + $0x1200] sm:$0xf]
    %v1210 = vld [vmem:[#allocation2 + $0x1204] sm:$0xf]
    %v1211 = vld [vmem:[#allocation2 + $0x1208] sm:$0xf]
    %v1212 = vld [vmem:[#allocation2 + $0x120c] sm:$0xf]
    %v1213 = vld [vmem:[#allocation2 + $0x1210] sm:$0xf]
    %v1214 = vld [vmem:[#allocation2 + $0x1214] sm:$0xf]
    %v1215 = vld [vmem:[#allocation2 + $0x1218] sm:$0xf]
    %v1216 = vld [vmem:[#allocation2 + $0x121c] sm:$0xf]
    %v1217 = vld [vmem:[#allocation2 + $0x1220] sm:$0xf]
    %v1218 = vld [vmem:[#allocation2 + $0x1224] sm:$0xf]
    %v1219 = vld [vmem:[#allocation2 + $0x1228] sm:$0xf]
    %v1220 = vld [vmem:[#allocation2 + $0x122c] sm:$0xf]
    %v1221 = vld [vmem:[#allocation2 + $0x1230] sm:$0xf]
    %v1222 = vld [vmem:[#allocation2 + $0x1234] sm:$0xf]
    %v1223 = vld [vmem:[#allocation2 + $0x1238] sm:$0xf]
    %v1224 = vld [vmem:[#allocation2 + $0x123c] sm:$0xf]
    %v1225 = vld [vmem:[#allocation2 + $0x1240] sm:$0xf]
    %v1226 = vld [vmem:[#allocation2 + $0x1244] sm:$0xf]
    %v1227 = vld [vmem:[#allocation2 + $0x1248] sm:$0xf]
    %v1228 = vld [vmem:[#allocation2 + $0x124c] sm:$0xf]
    %v1229 = vld [vmem:[#allocation2 + $0x1250] sm:$0xf]
    %v1230 = vld [vmem:[#allocation2 + $0x1254] sm:$0xf]
    %v1231 = vld [vmem:[#allocation2 + $0x1258] sm:$0xf]
    %v1232 = vld [vmem:[#allocation2 + $0x125c] sm:$0xf]
    %v1233 = vld [vmem:[#allocation2 + $0x1260] sm:$0xf]
    %v1234 = vld [vmem:[#allocation2 + $0x1264] sm:$0xf]
    %v1235 = vld [vmem:[#allocation2 + $0x1268] sm:$0xf]
    %v1236 = vld [vmem:[#allocation2 + $0x126c] sm:$0xf]
    %v1237 = vld [vmem:[#allocation2 + $0x1270] sm:$0xf]
    %v1238 = vld [vmem:[#allocation2 + $0x1274] sm:$0xf]
    %v1239 = vld [vmem:[#allocation2 + $0x1278] sm:$0xf]
    %v1240 = vld [vmem:[#allocation2 + $0x127c] sm:$0xf]
    %v1241 = vld [vmem:[#allocation2 + $0x1280] sm:$0xf]
    %v1242 = vld [vmem:[#allocation2 + $0x1284] sm:$0xf]
    %v1243 = vld [vmem:[#allocation2 + $0x1288] sm:$0xf]
    %v1244 = vld [vmem:[#allocation2 + $0x128c] sm:$0xf]
    %v1245 = vld [vmem:[#allocation2 + $0x1290] sm:$0xf]
    %v1246 = vld [vmem:[#allocation2 + $0x1294] sm:$0xf]
    %v1247 = vld [vmem:[#allocation2 + $0x1298] sm:$0xf]
    %v1248 = vld [vmem:[#allocation2 + $0x129c] sm:$0xf]
    %v1249 = vld [vmem:[#allocation2 + $0x12a0] sm:$0xf]
    %v1250 = vld [vmem:[#allocation2 + $0x12a4] sm:$0xf]
    %v1251 = vld [vmem:[#allocation2 + $0x12a8] sm:$0xf]
    %v1252 = vld [vmem:[#allocation2 + $0x12ac] sm:$0xf]
    %v1253 = vld [vmem:[#allocation2 + $0x12b0] sm:$0xf]
    %v1254 = vld [vmem:[#allocation2 + $0x12b4] sm:$0xf]
    %v1255 = vld [vmem:[#allocation2 + $0x12b8] sm:$0xf]
    %v1256 = vld [vmem:[#allocation2 + $0x12bc] sm:$0xf]
    %v1257 = vld [vmem:[#allocation2 + $0x12c0] sm:$0xf]
    %v1258 = vld [vmem:[#allocation2 + $0x12c4] sm:$0xf]
    %v1259 = vld [vmem:[#allocation2 + $0x12c8] sm:$0xf]
    %v1260 = vld [vmem:[#allocation2 + $0x12cc] sm:$0xf]
    %v1261 = vld [vmem:[#allocation2 + $0x12d0] sm:$0xf]
    %v1262 = vld [vmem:[#allocation2 + $0x12d4] sm:$0xf]
    %v1263 = vld [vmem:[#allocation2 + $0x12d8] sm:$0xf]
    %v1264 = vld [vmem:[#allocation2 + $0x12dc] sm:$0xf]
    %v1265 = vld [vmem:[#allocation2 + $0x12e0] sm:$0xf]
    %v1266 = vld [vmem:[#allocation2 + $0x12e4] sm:$0xf]
    %v1267 = vld [vmem:[#allocation2 + $0x12e8] sm:$0xf]
    %v1268 = vld [vmem:[#allocation2 + $0x12ec] sm:$0xf]
    %v1269 = vld [vmem:[#allocation2 + $0x12f0] sm:$0xf]
    %v1270 = vld [vmem:[#allocation2 + $0x12f4] sm:$0xf]
    %v1271 = vld [vmem:[#allocation2 + $0x12f8] sm:$0xf]
    %v1272 = vld [vmem:[#allocation2 + $0x12fc] sm:$0xf]
    %v1273 = vld [vmem:[#allocation2 + $0x1300] sm:$0xf]
    %v1274 = vld [vmem:[#allocation2 + $0x1304] sm:$0xf]
    %v1275 = vld [vmem:[#allocation2 + $0x1308] sm:$0xf]
    %v1276 = vld [vmem:[#allocation2 + $0x130c] sm:$0xf]
    %v1277 = vld [vmem:[#allocation2 + $0x1310] sm:$0xf]
    %v1278 = vld [vmem:[#allocation2 + $0x1314] sm:$0xf]
    %v1279 = vld [vmem:[#allocation2 + $0x1318] sm:$0xf]
    %v1280 = vld [vmem:[#allocation2 + $0x131c] sm:$0xf]
    %v1281 = vld [vmem:[#allocation2 + $0x1320] sm:$0xf]
    %v1282 = vld [vmem:[#allocation2 + $0x1324] sm:$0xf]
    %v1283 = vld [vmem:[#allocation2 + $0x1328] sm:$0xf]
    %v1284 = vld [vmem:[#allocation2 + $0x132c] sm:$0xf]
    %v1285 = vld [vmem:[#allocation2 + $0x1330] sm:$0xf]
    %v1286 = vld [vmem:[#allocation2 + $0x1334] sm:$0xf]
    %v1287 = vld [vmem:[#allocation2 + $0x1338] sm:$0xf]
    %v1288 = vld [vmem:[#allocation2 + $0x133c] sm:$0xf]
    %v1289 = vld [vmem:[#allocation2 + $0x1340] sm:$0xf]
    %v1290 = vld [vmem:[#allocation2 + $0x1344] sm:$0xf]
    %v1291 = vld [vmem:[#allocation2 + $0x1348] sm:$0xf]
    %v1292 = vld [vmem:[#allocation2 + $0x134c] sm:$0xf]
    %v1293 = vld [vmem:[#allocation2 + $0x1350] sm:$0xf]
    %v1294 = vld [vmem:[#allocation2 + $0x1354] sm:$0xf]
    %v1295 = vld [vmem:[#allocation2 + $0x1358] sm:$0xf]
    %v1296 = vld [vmem:[#allocation2 + $0x135c] sm:$0xf]
    %v1297 = vld [vmem:[#allocation2 + $0x1360] sm:$0xf]
    %v1298 = vld [vmem:[#allocation2 + $0x1364] sm:$0xf]
    %v1299 = vld [vmem:[#allocation2 + $0x1368] sm:$0xf]
    %v1300 = vld [vmem:[#allocation2 + $0x136c] sm:$0xf]
    %v1301 = vld [vmem:[#allocation2 + $0x1370] sm:$0xf]
    %v1302 = vld [vmem:[#allocation2 + $0x1374] sm:$0xf]
    %v1303 = vld [vmem:[#allocation2 + $0x1378] sm:$0xf]
    %v1304 = vld [vmem:[#allocation2 + $0x137c] sm:$0xf]
    %v1305 = vld [vmem:[#allocation2 + $0x1380] sm:$0xf]
    %v1306 = vld [vmem:[#allocation2 + $0x1384] sm:$0xf]
    %v1307 = vld [vmem:[#allocation2 + $0x1388] sm:$0xf]
    %v1308 = vld [vmem:[#allocation2 + $0x138c] sm:$0xf]
    %v1309 = vld [vmem:[#allocation2 + $0x1390] sm:$0xf]
    %v1310 = vld [vmem:[#allocation2 + $0x1394] sm:$0xf]
    %v1311 = vld [vmem:[#allocation2 + $0x1398] sm:$0xf]
    %v1312 = vld [vmem:[#allocation2 + $0x139c] sm:$0xf]
    %v1313 = vld [vmem:[#allocation2 + $0x13a0] sm:$0xf]
    %v1314 = vld [vmem:[#allocation2 + $0x13a4] sm:$0xf]
    %v1315 = vld [vmem:[#allocation2 + $0x13a8] sm:$0xf]
    %v1316 = vld [vmem:[#allocation2 + $0x13ac] sm:$0xf]
    %v1317 = vld [vmem:[#allocation2 + $0x13b0] sm:$0xf]
    %v1318 = vld [vmem:[#allocation2 + $0x13b4] sm:$0xf]
    %v1319 = vld [vmem:[#allocation2 + $0x13b8] sm:$0xf]
    %v1320 = vld [vmem:[#allocation2 + $0x13bc] sm:$0xf]
    %v1321 = vld [vmem:[#allocation2 + $0x13c0] sm:$0xf]
    %v1322 = vld [vmem:[#allocation2 + $0x13c4] sm:$0xf]
    %v1323 = vld [vmem:[#allocation2 + $0x13c8] sm:$0xf]
    %v1324 = vld [vmem:[#allocation2 + $0x13cc] sm:$0xf]
    %v1325 = vld [vmem:[#allocation2 + $0x13d0] sm:$0xf]
    %v1326 = vld [vmem:[#allocation2 + $0x13d4] sm:$0xf]
    %v1327 = vld [vmem:[#allocation2 + $0x13d8] sm:$0xf]
    %v1328 = vld [vmem:[#allocation2 + $0x13dc] sm:$0xf]
    %v1329 = vld [vmem:[#allocation2 + $0x13e0] sm:$0xf]
    %v1330 = vld [vmem:[#allocation2 + $0x13e4] sm:$0xf]
    %v1331 = vld [vmem:[#allocation2 + $0x13e8] sm:$0xf]
    %v1332 = vld [vmem:[#allocation2 + $0x13ec] sm:$0xf]
    %v1333 = vld [vmem:[#allocation2 + $0x13f0] sm:$0xf]
    %v1334 = vld [vmem:[#allocation2 + $0x13f4] sm:$0xf]
    %v1335 = vld [vmem:[#allocation2 + $0x13f8] sm:$0xf]
    %v1336 = vld [vmem:[#allocation2 + $0x13fc] sm:$0xf]
    %v1337 = vld [vmem:[#allocation2 + $0x1400] sm:$0xf]
    %v1338 = vld [vmem:[#allocation2 + $0x1404] sm:$0xf]
    %v1339 = vld [vmem:[#allocation2 + $0x1408] sm:$0xf]
    %v1340 = vld [vmem:[#allocation2 + $0x140c] sm:$0xf]
    %v1341 = vld [vmem:[#allocation2 + $0x1410] sm:$0xf]
    %v1342 = vld [vmem:[#allocation2 + $0x1414] sm:$0xf]
    %v1343 = vld [vmem:[#allocation2 + $0x1418] sm:$0xf]
    %v1344 = vld [vmem:[#allocation2 + $0x141c] sm:$0xf]
    %v1345 = vld [vmem:[#allocation2 + $0x1420] sm:$0xf]
    %v1346 = vld [vmem:[#allocation2 + $0x1424] sm:$0xf]
    %v1347 = vld [vmem:[#allocation2 + $0x1428] sm:$0xf]
    %v1348 = vld [vmem:[#allocation2 + $0x142c] sm:$0xf]
    %v1349 = vld [vmem:[#allocation2 + $0x1430] sm:$0xf]
    %v1350 = vld [vmem:[#allocation2 + $0x1434] sm:$0xf]
    %v1351 = vld [vmem:[#allocation2 + $0x1438] sm:$0xf]
    %v1352 = vld [vmem:[#allocation2 + $0x143c] sm:$0xf]
    %v1353 = vld [vmem:[#allocation2 + $0x1440] sm:$0xf]
    %v1354 = vld [vmem:[#allocation2 + $0x1444] sm:$0xf]
    %v1355 = vld [vmem:[#allocation2 + $0x1448] sm:$0xf]
    %v1356 = vld [vmem:[#allocation2 + $0x144c] sm:$0xf]
    %v1357 = vld [vmem:[#allocation2 + $0x1450] sm:$0xf]
    %v1358 = vld [vmem:[#allocation2 + $0x1454] sm:$0xf]
    %v1359 = vld [vmem:[#allocation2 + $0x1458] sm:$0xf]
    %v1360 = vld [vmem:[#allocation2 + $0x145c] sm:$0xf]
    %v1361 = vld [vmem:[#allocation2 + $0x1460] sm:$0xf]
    %v1362 = vld [vmem:[#allocation2 + $0x1464] sm:$0xf]
    %v1363 = vld [vmem:[#allocation2 + $0x1468] sm:$0xf]
    %v1364 = vld [vmem:[#allocation2 + $0x146c] sm:$0xf]
    %v1365 = vld [vmem:[#allocation2 + $0x1470] sm:$0xf]
    %v1366 = vld [vmem:[#allocation2 + $0x1474] sm:$0xf]
    %v1367 = vld [vmem:[#allocation2 + $0x1478] sm:$0xf]
    %v1368 = vld [vmem:[#allocation2 + $0x147c] sm:$0xf]
    %v1369 = vld [vmem:[#allocation2 + $0x1480] sm:$0xf]
    %v1370 = vld [vmem:[#allocation2 + $0x1484] sm:$0xf]
    %v1371 = vld [vmem:[#allocation2 + $0x1488] sm:$0xf]
    %v1372 = vld [vmem:[#allocation2 + $0x148c] sm:$0xf]
    %v1373 = vld [vmem:[#allocation2 + $0x1490] sm:$0xf]
    %v1374 = vld [vmem:[#allocation2 + $0x1494] sm:$0xf]
    %v1375 = vld [vmem:[#allocation2 + $0x1498] sm:$0xf]
    %v1376 = vld [vmem:[#allocation2 + $0x149c] sm:$0xf]
    %v1377 = vld [vmem:[#allocation2 + $0x14a0] sm:$0xf]
    %v1378 = vld [vmem:[#allocation2 + $0x14a4] sm:$0xf]
    %v1379 = vld [vmem:[#allocation2 + $0x14a8] sm:$0xf]
    %v1380 = vld [vmem:[#allocation2 + $0x14ac] sm:$0xf]
    %v1381 = vld [vmem:[#allocation2 + $0x14b0] sm:$0xf]
    %v1382 = vld [vmem:[#allocation2 + $0x14b4] sm:$0xf]
    %v1383 = vld [vmem:[#allocation2 + $0x14b8] sm:$0xf]
    %v1384 = vld [vmem:[#allocation2 + $0x14bc] sm:$0xf]
    %v1385 = vld [vmem:[#allocation2 + $0x14c0] sm:$0xf]
    %v1386 = vld [vmem:[#allocation2 + $0x14c4] sm:$0xf]
    %v1387 = vld [vmem:[#allocation2 + $0x14c8] sm:$0xf]
    %v1388 = vld [vmem:[#allocation2 + $0x14cc] sm:$0xf]
    %v1389 = vld [vmem:[#allocation2 + $0x14d0] sm:$0xf]
    %v1390 = vld [vmem:[#allocation2 + $0x14d4] sm:$0xf]
    %v1391 = vld [vmem:[#allocation2 + $0x14d8] sm:$0xf]
    %v1392 = vld [vmem:[#allocation2 + $0x14dc] sm:$0xf]
    %v1393 = vld [vmem:[#allocation2 + $0x14e0] sm:$0xf]
    %v1394 = vld [vmem:[#allocation2 + $0x14e4] sm:$0xf]
    %v1395 = vld [vmem:[#allocation2 + $0x14e8] sm:$0xf]
    %v1396 = vld [vmem:[#allocation2 + $0x14ec] sm:$0xf]
    %v1397 = vld [vmem:[#allocation2 + $0x14f0] sm:$0xf]
    %v1398 = vld [vmem:[#allocation2 + $0x14f4] sm:$0xf]
    %v1399 = vld [vmem:[#allocation2 + $0x14f8] sm:$0xf]
    %v1400 = vld [vmem:[#allocation2 + $0x14fc] sm:$0xf]
    %v1401 = vld [vmem:[#allocation2 + $0x1500] sm:$0xf]
    %v1402 = vld [vmem:[#allocation2 + $0x1504] sm:$0xf]
    %v1403 = vld [vmem:[#allocation2 + $0x1508] sm:$0xf]
    %v1404 = vld [vmem:[#allocation2 + $0x150c] sm:$0xf]
    %v1405 = vld [vmem:[#allocation2 + $0x1510] sm:$0xf]
    %v1406 = vld [vmem:[#allocation2 + $0x1514] sm:$0xf]
    %v1407 = vld [vmem:[#allocation2 + $0x1518] sm:$0xf]
    %v1408 = vld [vmem:[#allocation2 + $0x151c] sm:$0xf]
    %v1409 = vld [vmem:[#allocation2 + $0x1520] sm:$0xf]
    %v1410 = vld [vmem:[#allocation2 + $0x1524] sm:$0xf]
    %v1411 = vld [vmem:[#allocation2 + $0x1528] sm:$0xf]
    %v1412 = vld [vmem:[#allocation2 + $0x152c] sm:$0xf]
    %v1413 = vld [vmem:[#allocation2 + $0x1530] sm:$0xf]
    %v1414 = vld [vmem:[#allocation2 + $0x1534] sm:$0xf]
    %v1415 = vld [vmem:[#allocation2 + $0x1538] sm:$0xf]
    %v1416 = vld [vmem:[#allocation2 + $0x153c] sm:$0xf]
    %v1417 = vld [vmem:[#allocation2 + $0x1540] sm:$0xf]
    %v1418 = vld [vmem:[#allocation2 + $0x1544] sm:$0xf]
    %v1419 = vld [vmem:[#allocation2 + $0x1548] sm:$0xf]
    %v1420 = vld [vmem:[#allocation2 + $0x154c] sm:$0xf]
    %v1421 = vld [vmem:[#allocation2 + $0x1550] sm:$0xf]
    %v1422 = vld [vmem:[#allocation2 + $0x1554] sm:$0xf]
    %v1423 = vld [vmem:[#allocation2 + $0x1558] sm:$0xf]
    %v1424 = vld [vmem:[#allocation2 + $0x155c] sm:$0xf]
    %v1425 = vld [vmem:[#allocation2 + $0x1560] sm:$0xf]
    %v1426 = vld [vmem:[#allocation2 + $0x1564] sm:$0xf]
    %v1427 = vld [vmem:[#allocation2 + $0x1568] sm:$0xf]
    %v1428 = vld [vmem:[#allocation2 + $0x156c] sm:$0xf]
    %v1429 = vld [vmem:[#allocation2 + $0x1570] sm:$0xf]
    %v1430 = vld [vmem:[#allocation2 + $0x1574] sm:$0xf]
    %v1431 = vld [vmem:[#allocation2 + $0x1578] sm:$0xf]
    %v1432 = vld [vmem:[#allocation2 + $0x157c] sm:$0xf]
    %v1433 = vld [vmem:[#allocation2 + $0x1580] sm:$0xf]
    %v1434 = vld [vmem:[#allocation2 + $0x1584] sm:$0xf]
    %v1435 = vld [vmem:[#allocation2 + $0x1588] sm:$0xf]
    %v1436 = vld [vmem:[#allocation2 + $0x158c] sm:$0xf]
    %v1437 = vld [vmem:[#allocation2 + $0x1590] sm:$0xf]
    %v1438 = vld [vmem:[#allocation2 + $0x1594] sm:$0xf]
    %v1439 = vld [vmem:[#allocation2 + $0x1598] sm:$0xf]
    %v1440 = vld [vmem:[#allocation2 + $0x159c] sm:$0xf]
    %v1441 = vld [vmem:[#allocation2 + $0x15a0] sm:$0xf]
    %v1442 = vld [vmem:[#allocation2 + $0x15a4] sm:$0xf]
    %v1443 = vld [vmem:[#allocation2 + $0x15a8] sm:$0xf]
    %v1444 = vld [vmem:[#allocation2 + $0x15ac] sm:$0xf]
    %v1445 = vld [vmem:[#allocation2 + $0x15b0] sm:$0xf]
    %v1446 = vld [vmem:[#allocation2 + $0x15b4] sm:$0xf]
    %v1447 = vld [vmem:[#allocation2 + $0x15b8] sm:$0xf]
    %v1448 = vld [vmem:[#allocation2 + $0x15bc] sm:$0xf]
    %v1449 = vld [vmem:[#allocation2 + $0x15c0] sm:$0xf]
    %v1450 = vld [vmem:[#allocation2 + $0x15c4] sm:$0xf]
    %v1451 = vld [vmem:[#allocation2 + $0x15c8] sm:$0xf]
    %v1452 = vld [vmem:[#allocation2 + $0x15cc] sm:$0xf]
    %v1453 = vld [vmem:[#allocation2 + $0x15d0] sm:$0xf]
    %v1454 = vld [vmem:[#allocation2 + $0x15d4] sm:$0xf]
    %v1455 = vld [vmem:[#allocation2 + $0x15d8] sm:$0xf]
    %v1456 = vld [vmem:[#allocation2 + $0x15dc] sm:$0xf]
    %v1457 = vld [vmem:[#allocation2 + $0x15e0] sm:$0xf]
    %v1458 = vld [vmem:[#allocation2 + $0x15e4] sm:$0xf]
    %v1459 = vld [vmem:[#allocation2 + $0x15e8] sm:$0xf]
    %v1460 = vld [vmem:[#allocation2 + $0x15ec] sm:$0xf]
    %v1461 = vld [vmem:[#allocation2 + $0x15f0] sm:$0xf]
    %v1462 = vld [vmem:[#allocation2 + $0x15f4] sm:$0xf]
    %v1463 = vld [vmem:[#allocation2 + $0x15f8] sm:$0xf]
    %v1464 = vld [vmem:[#allocation2 + $0x15fc] sm:$0xf]
    %v1465 = vld [vmem:[#allocation2 + $0x1600] sm:$0xf]
    %v1466 = vld [vmem:[#allocation2 + $0x1604] sm:$0xf]
    %v1467 = vld [vmem:[#allocation2 + $0x1608] sm:$0xf]
    %v1468 = vld [vmem:[#allocation2 + $0x160c] sm:$0xf]
    %v1469 = vld [vmem:[#allocation2 + $0x1610] sm:$0xf]
    %v1470 = vld [vmem:[#allocation2 + $0x1614] sm:$0xf]
    %v1471 = vld [vmem:[#allocation2 + $0x1618] sm:$0xf]
    %v1472 = vld [vmem:[#allocation2 + $0x161c] sm:$0xf]
    %v1473 = vld [vmem:[#allocation2 + $0x1620] sm:$0xf]
    %v1474 = vld [vmem:[#allocation2 + $0x1624] sm:$0xf]
    %v1475 = vld [vmem:[#allocation2 + $0x1628] sm:$0xf]
    %v1476 = vld [vmem:[#allocation2 + $0x162c] sm:$0xf]
    %v1477 = vld [vmem:[#allocation2 + $0x1630] sm:$0xf]
    %v1478 = vld [vmem:[#allocation2 + $0x1634] sm:$0xf]
    %v1479 = vld [vmem:[#allocation2 + $0x1638] sm:$0xf]
    %v1480 = vld [vmem:[#allocation2 + $0x163c] sm:$0xf]
    %v1481 = vld [vmem:[#allocation2 + $0x1640] sm:$0xf]
    %v1482 = vld [vmem:[#allocation2 + $0x1644] sm:$0xf]
    %v1483 = vld [vmem:[#allocation2 + $0x1648] sm:$0xf]
    %v1484 = vld [vmem:[#allocation2 + $0x164c] sm:$0xf]
    %v1485 = vld [vmem:[#allocation2 + $0x1650] sm:$0xf]
    %v1486 = vld [vmem:[#allocation2 + $0x1654] sm:$0xf]
    %v1487 = vld [vmem:[#allocation2 + $0x1658] sm:$0xf]
    %v1488 = vld [vmem:[#allocation2 + $0x165c] sm:$0xf]
    %v1489 = vld [vmem:[#allocation2 + $0x1660] sm:$0xf]
    %v1490 = vld [vmem:[#allocation2 + $0x1664] sm:$0xf]
    %v1491 = vld [vmem:[#allocation2 + $0x1668] sm:$0xf]
    %v1492 = vld [vmem:[#allocation2 + $0x166c] sm:$0xf]
    %v1493 = vld [vmem:[#allocation2 + $0x1670] sm:$0xf]
    %v1494 = vld [vmem:[#allocation2 + $0x1674] sm:$0xf]
    %v1495 = vld [vmem:[#allocation2 + $0x1678] sm:$0xf]
    %v1496 = vld [vmem:[#allocation2 + $0x167c] sm:$0xf]
    %v1497 = vld [vmem:[#allocation2 + $0x1680] sm:$0xf]
    %v1498 = vld [vmem:[#allocation2 + $0x1684] sm:$0xf]
    %v1499 = vld [vmem:[#allocation2 + $0x1688] sm:$0xf]
    %v1500 = vld [vmem:[#allocation2 + $0x168c] sm:$0xf]
    %v1501 = vld [vmem:[#allocation2 + $0x1690] sm:$0xf]
    %v1502 = vld [vmem:[#allocation2 + $0x1694] sm:$0xf]
    %v1503 = vld [vmem:[#allocation2 + $0x1698] sm:$0xf]
    %v1504 = vld [vmem:[#allocation2 + $0x169c] sm:$0xf]
    %v1505 = vld [vmem:[#allocation2 + $0x16a0] sm:$0xf]
    %v1506 = vld [vmem:[#allocation2 + $0x16a4] sm:$0xf]
    %v1507 = vld [vmem:[#allocation2 + $0x16a8] sm:$0xf]
    %v1508 = vld [vmem:[#allocation2 + $0x16ac] sm:$0xf]
    %v1509 = vld [vmem:[#allocation2 + $0x16b0] sm:$0xf]
    %v1510 = vld [vmem:[#allocation2 + $0x16b4] sm:$0xf]
    %v1511 = vld [vmem:[#allocation2 + $0x16b8] sm:$0xf]
    %v1512 = vld [vmem:[#allocation2 + $0x16bc] sm:$0xf]
    %v1513 = vld [vmem:[#allocation2 + $0x16c0] sm:$0xf]
    %v1514 = vld [vmem:[#allocation2 + $0x16c4] sm:$0xf]
    %v1515 = vld [vmem:[#allocation2 + $0x16c8] sm:$0xf]
    %v1516 = vld [vmem:[#allocation2 + $0x16cc] sm:$0xf]
    %v1517 = vld [vmem:[#allocation2 + $0x16d0] sm:$0xf]
    %v1518 = vld [vmem:[#allocation2 + $0x16d4] sm:$0xf]
    %v1519 = vld [vmem:[#allocation2 + $0x16d8] sm:$0xf]
    %v1520 = vld [vmem:[#allocation2 + $0x16dc] sm:$0xf]
    %v1521 = vld [vmem:[#allocation2 + $0x16e0] sm:$0xf]
    %v1522 = vld [vmem:[#allocation2 + $0x16e4] sm:$0xf]
    %v1523 = vld [vmem:[#allocation2 + $0x16e8] sm:$0xf]
    %v1524 = vld [vmem:[#allocation2 + $0x16ec] sm:$0xf]
    %v1525 = vld [vmem:[#allocation2 + $0x16f0] sm:$0xf]
    %v1526 = vld [vmem:[#allocation2 + $0x16f4] sm:$0xf]
    %v1527 = vld [vmem:[#allocation2 + $0x16f8] sm:$0xf]
    %v1528 = vld [vmem:[#allocation2 + $0x16fc] sm:$0xf]
    %v1529 = vld [vmem:[#allocation2 + $0x1700] sm:$0xf]
    %v1530 = vld [vmem:[#allocation2 + $0x1704] sm:$0xf]
    %v1531 = vld [vmem:[#allocation2 + $0x1708] sm:$0xf]
    %v1532 = vld [vmem:[#allocation2 + $0x170c] sm:$0xf]
    %v1533 = vld [vmem:[#allocation2 + $0x1710] sm:$0xf]
    %v1534 = vld [vmem:[#allocation2 + $0x1714] sm:$0xf]
    %v1535 = vld [vmem:[#allocation2 + $0x1718] sm:$0xf]
    %v1536 = vld [vmem:[#allocation2 + $0x171c] sm:$0xf]
    %v1537 = vld [vmem:[#allocation2 + $0x1720] sm:$0xf]
    %v1538 = vld [vmem:[#allocation2 + $0x1724] sm:$0xf]
    %v1539 = vld [vmem:[#allocation2 + $0x1728] sm:$0xf]
    %v1540 = vld [vmem:[#allocation2 + $0x172c] sm:$0xf]
    %v1541 = vld [vmem:[#allocation2 + $0x1730] sm:$0xf]
    %v1542 = vld [vmem:[#allocation2 + $0x1734] sm:$0xf]
    %v1543 = vld [vmem:[#allocation2 + $0x1738] sm:$0xf]
    %v1544 = vld [vmem:[#allocation2 + $0x173c] sm:$0xf]
    %v1545 = vld [vmem:[#allocation2 + $0x1740] sm:$0xf]
    %v1546 = vld [vmem:[#allocation2 + $0x1744] sm:$0xf]
    %v1547 = vld [vmem:[#allocation2 + $0x1748] sm:$0xf]
    %v1548 = vld [vmem:[#allocation2 + $0x174c] sm:$0xf]
    %v1549 = vld [vmem:[#allocation2 + $0x1750] sm:$0xf]
    %v1550 = vld [vmem:[#allocation2 + $0x1754] sm:$0xf]
    %v1551 = vld [vmem:[#allocation2 + $0x1758] sm:$0xf]
    %v1552 = vld [vmem:[#allocation2 + $0x175c] sm:$0xf]
    %v1553 = vld [vmem:[#allocation2 + $0x1760] sm:$0xf]
    %v1554 = vld [vmem:[#allocation2 + $0x1764] sm:$0xf]
    %v1555 = vld [vmem:[#allocation2 + $0x1768] sm:$0xf]
    %v1556 = vld [vmem:[#allocation2 + $0x176c] sm:$0xf]
    %v1557 = vld [vmem:[#allocation2 + $0x1770] sm:$0xf]
    %v1558 = vld [vmem:[#allocation2 + $0x1774] sm:$0xf]
    %v1559 = vld [vmem:[#allocation2 + $0x1778] sm:$0xf]
    %v1560 = vld [vmem:[#allocation2 + $0x177c] sm:$0xf]
    %v1561 = vld [vmem:[#allocation2 + $0x1780] sm:$0xf]
    %v1562 = vld [vmem:[#allocation2 + $0x1784] sm:$0xf]
    %v1563 = vld [vmem:[#allocation2 + $0x1788] sm:$0xf]
    %v1564 = vld [vmem:[#allocation2 + $0x178c] sm:$0xf]
    %v1565 = vld [vmem:[#allocation2 + $0x1790] sm:$0xf]
    %v1566 = vld [vmem:[#allocation2 + $0x1794] sm:$0xf]
    %v1567 = vld [vmem:[#allocation2 + $0x1798] sm:$0xf]
    %v1568 = vld [vmem:[#allocation2 + $0x179c] sm:$0xf]
    %v1569 = vld [vmem:[#allocation2 + $0x17a0] sm:$0xf]
    %v1570 = vld [vmem:[#allocation2 + $0x17a4] sm:$0xf]
    %v1571 = vld [vmem:[#allocation2 + $0x17a8] sm:$0xf]
    %v1572 = vld [vmem:[#allocation2 + $0x17ac] sm:$0xf]
    %v1573 = vld [vmem:[#allocation2 + $0x17b0] sm:$0xf]
    %v1574 = vld [vmem:[#allocation2 + $0x17b4] sm:$0xf]
    %v1575 = vld [vmem:[#allocation2 + $0x17b8] sm:$0xf]
    %v1576 = vld [vmem:[#allocation2 + $0x17bc] sm:$0xf]
    %v1577 = vld [vmem:[#allocation2 + $0x17c0] sm:$0xf]
    %v1578 = vld [vmem:[#allocation2 + $0x17c4] sm:$0xf]
    %v1579 = vld [vmem:[#allocation2 + $0x17c8] sm:$0xf]
    %v1580 = vld [vmem:[#allocation2 + $0x17cc] sm:$0xf]
    %v1581 = vld [vmem:[#allocation2 + $0x17d0] sm:$0xf]
    %v1582 = vld [vmem:[#allocation2 + $0x17d4] sm:$0xf]
    %v1583 = vld [vmem:[#allocation2 + $0x17d8] sm:$0xf]
    %v1584 = vld [vmem:[#allocation2 + $0x17dc] sm:$0xf]
    %v1585 = vld [vmem:[#allocation2 + $0x17e0] sm:$0xf]
    %v1586 = vld [vmem:[#allocation2 + $0x17e4] sm:$0xf]
    %v1587 = vld [vmem:[#allocation2 + $0x17e8] sm:$0xf]
    %v1588 = vld [vmem:[#allocation2 + $0x17ec] sm:$0xf]
    %v1589 = vld [vmem:[#allocation2 + $0x17f0] sm:$0xf]
    %v1590 = vld [vmem:[#allocation2 + $0x17f4] sm:$0xf]
    %v1591 = vld [vmem:[#allocation2 + $0x17f8] sm:$0xf]
    %v1592 = vld [vmem:[#allocation2 + $0x17fc] sm:$0xf]
    %v1593 = vld [vmem:[#allocation2 + $0x1800] sm:$0xf]
    %v1594 = vld [vmem:[#allocation2 + $0x1804] sm:$0xf]
    %v1595 = vld [vmem:[#allocation2 + $0x1808] sm:$0xf]
    %v1596 = vld [vmem:[#allocation2 + $0x180c] sm:$0xf]
    %v1597 = vld [vmem:[#allocation2 + $0x1810] sm:$0xf]
    %v1598 = vld [vmem:[#allocation2 + $0x1814] sm:$0xf]
    %v1599 = vld [vmem:[#allocation2 + $0x1818] sm:$0xf]
    %v1600 = vld [vmem:[#allocation2 + $0x181c] sm:$0xf]
    %v1601 = vld [vmem:[#allocation2 + $0x1820] sm:$0xf]
    %v1602 = vld [vmem:[#allocation2 + $0x1824] sm:$0xf]
    %v1603 = vld [vmem:[#allocation2 + $0x1828] sm:$0xf]
    %v1604 = vld [vmem:[#allocation2 + $0x182c] sm:$0xf]
    %v1605 = vld [vmem:[#allocation2 + $0x1830] sm:$0xf]
    %v1606 = vld [vmem:[#allocation2 + $0x1834] sm:$0xf]
    %v1607 = vld [vmem:[#allocation2 + $0x1838] sm:$0xf]
    %v1608 = vld [vmem:[#allocation2 + $0x183c] sm:$0xf]
    %v1609 = vld [vmem:[#allocation2 + $0x1840] sm:$0xf]
    %v1610 = vld [vmem:[#allocation2 + $0x1844] sm:$0xf]
    %v1611 = vld [vmem:[#allocation2 + $0x1848] sm:$0xf]
    %v1612 = vld [vmem:[#allocation2 + $0x184c] sm:$0xf]
    %v1613 = vld [vmem:[#allocation2 + $0x1850] sm:$0xf]
    %v1614 = vld [vmem:[#allocation2 + $0x1854] sm:$0xf]
    %v1615 = vld [vmem:[#allocation2 + $0x1858] sm:$0xf]
    %v1616 = vld [vmem:[#allocation2 + $0x185c] sm:$0xf]
    %v1617 = vld [vmem:[#allocation2 + $0x1860] sm:$0xf]
    %v1618 = vld [vmem:[#allocation2 + $0x1864] sm:$0xf]
    %v1619 = vld [vmem:[#allocation2 + $0x1868] sm:$0xf]
    %v1620 = vld [vmem:[#allocation2 + $0x186c] sm:$0xf]
    %v1621 = vld [vmem:[#allocation2 + $0x1870] sm:$0xf]
    %v1622 = vld [vmem:[#allocation2 + $0x1874] sm:$0xf]
    %v1623 = vld [vmem:[#allocation2 + $0x1878] sm:$0xf]
    %v1624 = vld [vmem:[#allocation2 + $0x187c] sm:$0xf]
    %v1625 = vld [vmem:[#allocation2 + $0x1880] sm:$0xf]
    %v1626 = vld [vmem:[#allocation2 + $0x1884] sm:$0xf]
    %v1627 = vld [vmem:[#allocation2 + $0x1888] sm:$0xf]
    %v1628 = vld [vmem:[#allocation2 + $0x188c] sm:$0xf]
    %v1629 = vld [vmem:[#allocation2 + $0x1890] sm:$0xf]
    %v1630 = vld [vmem:[#allocation2 + $0x1894] sm:$0xf]
    %v1631 = vld [vmem:[#allocation2 + $0x1898] sm:$0xf]
    %v1632 = vld [vmem:[#allocation2 + $0x189c] sm:$0xf]
    %v1633 = vld [vmem:[#allocation2 + $0x18a0] sm:$0xf]
    %v1634 = vld [vmem:[#allocation2 + $0x18a4] sm:$0xf]
    %v1635 = vld [vmem:[#allocation2 + $0x18a8] sm:$0xf]
    %v1636 = vld [vmem:[#allocation2 + $0x18ac] sm:$0xf]
    %v1637 = vld [vmem:[#allocation2 + $0x18b0] sm:$0xf]
    %v1638 = vld [vmem:[#allocation2 + $0x18b4] sm:$0xf]
    %v1639 = vld [vmem:[#allocation2 + $0x18b8] sm:$0xf]
    %v1640 = vld [vmem:[#allocation2 + $0x18bc] sm:$0xf]
    %v1641 = vld [vmem:[#allocation2 + $0x18c0] sm:$0xf]
    %v1642 = vld [vmem:[#allocation2 + $0x18c4] sm:$0xf]
    %v1643 = vld [vmem:[#allocation2 + $0x18c8] sm:$0xf]
    %v1644 = vld [vmem:[#allocation2 + $0x18cc] sm:$0xf]
    %v1645 = vld [vmem:[#allocation2 + $0x18d0] sm:$0xf]
    %v1646 = vld [vmem:[#allocation2 + $0x18d4] sm:$0xf]
    %v1647 = vld [vmem:[#allocation2 + $0x18d8] sm:$0xf]
    %v1648 = vld [vmem:[#allocation2 + $0x18dc] sm:$0xf]
    %v1649 = vld [vmem:[#allocation2 + $0x18e0] sm:$0xf]
    %v1650 = vld [vmem:[#allocation2 + $0x18e4] sm:$0xf]
    %v1651 = vld [vmem:[#allocation2 + $0x18e8] sm:$0xf]
    %v1652 = vld [vmem:[#allocation2 + $0x18ec] sm:$0xf]
    %v1653 = vld [vmem:[#allocation2 + $0x18f0] sm:$0xf]
    %v1654 = vld [vmem:[#allocation2 + $0x18f4] sm:$0xf]
    %v1655 = vld [vmem:[#allocation2 + $0x18f8] sm:$0xf]
    %v1656 = vld [vmem:[#allocation2 + $0x18fc] sm:$0xf]
    %v1657 = vld [vmem:[#allocation2 + $0x1900] sm:$0xf]
    %v1658 = vld [vmem:[#allocation2 + $0x1904] sm:$0xf]
    %v1659 = vld [vmem:[#allocation2 + $0x1908] sm:$0xf]
    %v1660 = vld [vmem:[#allocation2 + $0x190c] sm:$0xf]
    %v1661 = vld [vmem:[#allocation2 + $0x1910] sm:$0xf]
    %v1662 = vld [vmem:[#allocation2 + $0x1914] sm:$0xf]
    %v1663 = vld [vmem:[#allocation2 + $0x1918] sm:$0xf]
    %v1664 = vld [vmem:[#allocation2 + $0x191c] sm:$0xf]
    %v1665 = vld [vmem:[#allocation2 + $0x1920] sm:$0xf]
    %v1666 = vld [vmem:[#allocation2 + $0x1924] sm:$0xf]
    %v1667 = vld [vmem:[#allocation2 + $0x1928] sm:$0xf]
    %v1668 = vld [vmem:[#allocation2 + $0x192c] sm:$0xf]
    %v1669 = vld [vmem:[#allocation2 + $0x1930] sm:$0xf]
    %v1670 = vld [vmem:[#allocation2 + $0x1934] sm:$0xf]
    %v1671 = vld [vmem:[#allocation2 + $0x1938] sm:$0xf]
    %v1672 = vld [vmem:[#allocation2 + $0x193c] sm:$0xf]
    %v1673 = vld [vmem:[#allocation2 + $0x1940] sm:$0xf]
    %v1674 = vld [vmem:[#allocation2 + $0x1944] sm:$0xf]
    %v1675 = vld [vmem:[#allocation2 + $0x1948] sm:$0xf]
    %v1676 = vld [vmem:[#allocation2 + $0x194c] sm:$0xf]
    %v1677 = vld [vmem:[#allocation2 + $0x1950] sm:$0xf]
    %v1678 = vld [vmem:[#allocation2 + $0x1954] sm:$0xf]
    %v1679 = vld [vmem:[#allocation2 + $0x1958] sm:$0xf]
    %v1680 = vld [vmem:[#allocation2 + $0x195c] sm:$0xf]
    %v1681 = vld [vmem:[#allocation2 + $0x1960] sm:$0xf]
    %v1682 = vld [vmem:[#allocation2 + $0x1964] sm:$0xf]
    %v1683 = vld [vmem:[#allocation2 + $0x1968] sm:$0xf]
    %v1684 = vld [vmem:[#allocation2 + $0x196c] sm:$0xf]
    %v1685 = vld [vmem:[#allocation2 + $0x1970] sm:$0xf]
    %v1686 = vld [vmem:[#allocation2 + $0x1974] sm:$0xf]
    %v1687 = vld [vmem:[#allocation2 + $0x1978] sm:$0xf]
    %v1688 = vld [vmem:[#allocation2 + $0x197c] sm:$0xf]
    %v1689 = vld [vmem:[#allocation2 + $0x1980] sm:$0xf]
    %v1690 = vld [vmem:[#allocation2 + $0x1984] sm:$0xf]
    %v1691 = vld [vmem:[#allocation2 + $0x1988] sm:$0xf]
    %v1692 = vld [vmem:[#allocation2 + $0x198c] sm:$0xf]
    %v1693 = vld [vmem:[#allocation2 + $0x1990] sm:$0xf]
    %v1694 = vld [vmem:[#allocation2 + $0x1994] sm:$0xf]
    %v1695 = vld [vmem:[#allocation2 + $0x1998] sm:$0xf]
    %v1696 = vld [vmem:[#allocation2 + $0x199c] sm:$0xf]
    %v1697 = vld [vmem:[#allocation2 + $0x19a0] sm:$0xf]
    %v1698 = vld [vmem:[#allocation2 + $0x19a4] sm:$0xf]
    %v1699 = vld [vmem:[#allocation2 + $0x19a8] sm:$0xf]
    %v1700 = vld [vmem:[#allocation2 + $0x19ac] sm:$0xf]
    %v1701 = vld [vmem:[#allocation2 + $0x19b0] sm:$0xf]
    %v1702 = vld [vmem:[#allocation2 + $0x19b4] sm:$0xf]
    %v1703 = vld [vmem:[#allocation2 + $0x19b8] sm:$0xf]
    %v1704 = vld [vmem:[#allocation2 + $0x19bc] sm:$0xf]
    %v1705 = vld [vmem:[#allocation2 + $0x19c0] sm:$0xf]
    %v1706 = vld [vmem:[#allocation2 + $0x19c4] sm:$0xf]
    %v1707 = vld [vmem:[#allocation2 + $0x19c8] sm:$0xf]
    %v1708 = vld [vmem:[#allocation2 + $0x19cc] sm:$0xf]
    %v1709 = vld [vmem:[#allocation2 + $0x19d0] sm:$0xf]
    %v1710 = vld [vmem:[#allocation2 + $0x19d4] sm:$0xf]
    %v1711 = vld [vmem:[#allocation2 + $0x19d8] sm:$0xf]
    %v1712 = vld [vmem:[#allocation2 + $0x19dc] sm:$0xf]
    %v1713 = vld [vmem:[#allocation2 + $0x19e0] sm:$0xf]
    %v1714 = vld [vmem:[#allocation2 + $0x19e4] sm:$0xf]
    %v1715 = vld [vmem:[#allocation2 + $0x19e8] sm:$0xf]
    %v1716 = vld [vmem:[#allocation2 + $0x19ec] sm:$0xf]
    %v1717 = vld [vmem:[#allocation2 + $0x19f0] sm:$0xf]
    %v1718 = vld [vmem:[#allocation2 + $0x19f4] sm:$0xf]
    %v1719 = vld [vmem:[#allocation2 + $0x19f8] sm:$0xf]
    %v1720 = vld [vmem:[#allocation2 + $0x19fc] sm:$0xf]
    %v1721 = vld [vmem:[#allocation2 + $0x1a00] sm:$0xf]
    %v1722 = vld [vmem:[#allocation2 + $0x1a04] sm:$0xf]
    %v1723 = vld [vmem:[#allocation2 + $0x1a08] sm:$0xf]
    %v1724 = vld [vmem:[#allocation2 + $0x1a0c] sm:$0xf]
    %v1725 = vld [vmem:[#allocation2 + $0x1a10] sm:$0xf]
    %v1726 = vld [vmem:[#allocation2 + $0x1a14] sm:$0xf]
    %v1727 = vld [vmem:[#allocation2 + $0x1a18] sm:$0xf]
    %v1728 = vld [vmem:[#allocation2 + $0x1a1c] sm:$0xf]
    %v1729 = vld [vmem:[#allocation2 + $0x1a20] sm:$0xf]
    %v1730 = vld [vmem:[#allocation2 + $0x1a24] sm:$0xf]
    %v1731 = vld [vmem:[#allocation2 + $0x1a28] sm:$0xf]
    %v1732 = vld [vmem:[#allocation2 + $0x1a2c] sm:$0xf]
    %v1733 = vld [vmem:[#allocation2 + $0x1a30] sm:$0xf]
    %v1734 = vld [vmem:[#allocation2 + $0x1a34] sm:$0xf]
    %v1735 = vld [vmem:[#allocation2 + $0x1a38] sm:$0xf]
    %v1736 = vld [vmem:[#allocation2 + $0x1a3c] sm:$0xf]
    %v1737 = vld [vmem:[#allocation2 + $0x1a40] sm:$0xf]
    %v1738 = vld [vmem:[#allocation2 + $0x1a44] sm:$0xf]
    %v1739 = vld [vmem:[#allocation2 + $0x1a48] sm:$0xf]
    %v1740 = vld [vmem:[#allocation2 + $0x1a4c] sm:$0xf]
    %v1741 = vld [vmem:[#allocation2 + $0x1a50] sm:$0xf]
    %v1742 = vld [vmem:[#allocation2 + $0x1a54] sm:$0xf]
    %v1743 = vld [vmem:[#allocation2 + $0x1a58] sm:$0xf]
    %v1744 = vld [vmem:[#allocation2 + $0x1a5c] sm:$0xf]
    %v1745 = vld [vmem:[#allocation2 + $0x1a60] sm:$0xf]
    %v1746 = vld [vmem:[#allocation2 + $0x1a64] sm:$0xf]
    %v1747 = vld [vmem:[#allocation2 + $0x1a68] sm:$0xf]
    %v1748 = vld [vmem:[#allocation2 + $0x1a6c] sm:$0xf]
    %v1749 = vld [vmem:[#allocation2 + $0x1a70] sm:$0xf]
    %v1750 = vld [vmem:[#allocation2 + $0x1a74] sm:$0xf]
    %v1751 = vld [vmem:[#allocation2 + $0x1a78] sm:$0xf]
    %v1752 = vld [vmem:[#allocation2 + $0x1a7c] sm:$0xf]
    %v1753 = vld [vmem:[#allocation2 + $0x1a80] sm:$0xf]
    %v1754 = vld [vmem:[#allocation2 + $0x1a84] sm:$0xf]
    %v1755 = vld [vmem:[#allocation2 + $0x1a88] sm:$0xf]
    %v1756 = vld [vmem:[#allocation2 + $0x1a8c] sm:$0xf]
    %v1757 = vld [vmem:[#allocation2 + $0x1a90] sm:$0xf]
    %v1758 = vld [vmem:[#allocation2 + $0x1a94] sm:$0xf]
    %v1759 = vld [vmem:[#allocation2 + $0x1a98] sm:$0xf]
    %v1760 = vld [vmem:[#allocation2 + $0x1a9c] sm:$0xf]
    %v1761 = vld [vmem:[#allocation2 + $0x1aa0] sm:$0xf]
    %v1762 = vld [vmem:[#allocation2 + $0x1aa4] sm:$0xf]
    %v1763 = vld [vmem:[#allocation2 + $0x1aa8] sm:$0xf]
    %v1764 = vld [vmem:[#allocation2 + $0x1aac] sm:$0xf]
    %v1765 = vld [vmem:[#allocation2 + $0x1ab0] sm:$0xf]
    %v1766 = vld [vmem:[#allocation2 + $0x1ab4] sm:$0xf]
    %v1767 = vld [vmem:[#allocation2 + $0x1ab8] sm:$0xf]
    %v1768 = vld [vmem:[#allocation2 + $0x1abc] sm:$0xf]
    %v1769 = vld [vmem:[#allocation2 + $0x1ac0] sm:$0xf]
    %v1770 = vld [vmem:[#allocation2 + $0x1ac4] sm:$0xf]
    %v1771 = vld [vmem:[#allocation2 + $0x1ac8] sm:$0xf]
    %v1772 = vld [vmem:[#allocation2 + $0x1acc] sm:$0xf]
    %v1773 = vld [vmem:[#allocation2 + $0x1ad0] sm:$0xf]
    %v1774 = vld [vmem:[#allocation2 + $0x1ad4] sm:$0xf]
    %v1775 = vld [vmem:[#allocation2 + $0x1ad8] sm:$0xf]
    %v1776 = vld [vmem:[#allocation2 + $0x1adc] sm:$0xf]
    %v1777 = vld [vmem:[#allocation2 + $0x1ae0] sm:$0xf]
    %v1778 = vld [vmem:[#allocation2 + $0x1ae4] sm:$0xf]
    %v1779 = vld [vmem:[#allocation2 + $0x1ae8] sm:$0xf]
    %v1780 = vld [vmem:[#allocation2 + $0x1aec] sm:$0xf]
    %v1781 = vld [vmem:[#allocation2 + $0x1af0] sm:$0xf]
    %v1782 = vld [vmem:[#allocation2 + $0x1af4] sm:$0xf]
    %v1783 = vld [vmem:[#allocation2 + $0x1af8] sm:$0xf]
    %v1784 = vld [vmem:[#allocation2 + $0x1afc] sm:$0xf]
    %v1785 = vld [vmem:[#allocation2 + $0x1b00] sm:$0xf]
    %v1786 = vld [vmem:[#allocation2 + $0x1b04] sm:$0xf]
    %v1787 = vld [vmem:[#allocation2 + $0x1b08] sm:$0xf]
    %v1788 = vld [vmem:[#allocation2 + $0x1b0c] sm:$0xf]
    %v1789 = vld [vmem:[#allocation2 + $0x1b10] sm:$0xf]
    %v1790 = vld [vmem:[#allocation2 + $0x1b14] sm:$0xf]
    %v1791 = vld [vmem:[#allocation2 + $0x1b18] sm:$0xf]
    %v1792 = vld [vmem:[#allocation2 + $0x1b1c] sm:$0xf]
    %v1793 = vld [vmem:[#allocation2 + $0x1b20] sm:$0xf]
    %v1794 = vld [vmem:[#allocation2 + $0x1b24] sm:$0xf]
    %v1795 = vld [vmem:[#allocation2 + $0x1b28] sm:$0xf]
    %v1796 = vld [vmem:[#allocation2 + $0x1b2c] sm:$0xf]
    %v1797 = vld [vmem:[#allocation2 + $0x1b30] sm:$0xf]
    %v1798 = vld [vmem:[#allocation2 + $0x1b34] sm:$0xf]
    %v1799 = vld [vmem:[#allocation2 + $0x1b38] sm:$0xf]
    %v1800 = vld [vmem:[#allocation2 + $0x1b3c] sm:$0xf]
    %v1801 = vld [vmem:[#allocation2 + $0x1b40] sm:$0xf]
    %v1802 = vld [vmem:[#allocation2 + $0x1b44] sm:$0xf]
    %v1803 = vld [vmem:[#allocation2 + $0x1b48] sm:$0xf]
    %v1804 = vld [vmem:[#allocation2 + $0x1b4c] sm:$0xf]
    %v1805 = vld [vmem:[#allocation2 + $0x1b50] sm:$0xf]
    %v1806 = vld [vmem:[#allocation2 + $0x1b54] sm:$0xf]
    %v1807 = vld [vmem:[#allocation2 + $0x1b58] sm:$0xf]
    %v1808 = vld [vmem:[#allocation2 + $0x1b5c] sm:$0xf]
    %v1809 = vld [vmem:[#allocation2 + $0x1b60] sm:$0xf]
    %v1810 = vld [vmem:[#allocation2 + $0x1b64] sm:$0xf]
    %v1811 = vld [vmem:[#allocation2 + $0x1b68] sm:$0xf]
    %v1812 = vld [vmem:[#allocation2 + $0x1b6c] sm:$0xf]
    %v1813 = vld [vmem:[#allocation2 + $0x1b70] sm:$0xf]
    %v1814 = vld [vmem:[#allocation2 + $0x1b74] sm:$0xf]
    %v1815 = vld [vmem:[#allocation2 + $0x1b78] sm:$0xf]
    %v1816 = vld [vmem:[#allocation2 + $0x1b7c] sm:$0xf]
    %v1817 = vld [vmem:[#allocation2 + $0x1b80] sm:$0xf]
    %v1818 = vld [vmem:[#allocation2 + $0x1b84] sm:$0xf]
    %v1819 = vld [vmem:[#allocation2 + $0x1b88] sm:$0xf]
    %v1820 = vld [vmem:[#allocation2 + $0x1b8c] sm:$0xf]
    %v1821 = vld [vmem:[#allocation2 + $0x1b90] sm:$0xf]
    %v1822 = vld [vmem:[#allocation2 + $0x1b94] sm:$0xf]
    %v1823 = vld [vmem:[#allocation2 + $0x1b98] sm:$0xf]
    %v1824 = vld [vmem:[#allocation2 + $0x1b9c] sm:$0xf]
    %v1825 = vld [vmem:[#allocation2 + $0x1ba0] sm:$0xf]
    %v1826 = vld [vmem:[#allocation2 + $0x1ba4] sm:$0xf]
    %v1827 = vld [vmem:[#allocation2 + $0x1ba8] sm:$0xf]
    %v1828 = vld [vmem:[#allocation2 + $0x1bac] sm:$0xf]
    %v1829 = vld [vmem:[#allocation2 + $0x1bb0] sm:$0xf]
    %v1830 = vld [vmem:[#allocation2 + $0x1bb4] sm:$0xf]
    %v1831 = vld [vmem:[#allocation2 + $0x1bb8] sm:$0xf]
    %v1832 = vld [vmem:[#allocation2 + $0x1bbc] sm:$0xf]
    %v1833 = vld [vmem:[#allocation2 + $0x1bc0] sm:$0xf]
    %v1834 = vld [vmem:[#allocation2 + $0x1bc4] sm:$0xf]
    %v1835 = vld [vmem:[#allocation2 + $0x1bc8] sm:$0xf]
    %v1836 = vld [vmem:[#allocation2 + $0x1bcc] sm:$0xf]
    %v1837 = vld [vmem:[#allocation2 + $0x1bd0] sm:$0xf]
    %v1838 = vld [vmem:[#allocation2 + $0x1bd4] sm:$0xf]
    %v1839 = vld [vmem:[#allocation2 + $0x1bd8] sm:$0xf]
    %v1840 = vld [vmem:[#allocation2 + $0x1bdc] sm:$0xf]
    %v1841 = vld [vmem:[#allocation2 + $0x1be0] sm:$0xf]
    %v1842 = vld [vmem:[#allocation2 + $0x1be4] sm:$0xf]
    %v1843 = vld [vmem:[#allocation2 + $0x1be8] sm:$0xf]
    %v1844 = vld [vmem:[#allocation2 + $0x1bec] sm:$0xf]
    %v1845 = vld [vmem:[#allocation2 + $0x1bf0] sm:$0xf]
    %v1846 = vld [vmem:[#allocation2 + $0x1bf4] sm:$0xf]
    %v1847 = vld [vmem:[#allocation2 + $0x1bf8] sm:$0xf]
    %v1848 = vld [vmem:[#allocation2 + $0x1bfc] sm:$0xf]
    %v1849 = vld [vmem:[#allocation2 + $0x1c00] sm:$0xf]
    %v1850 = vld [vmem:[#allocation2 + $0x1c04] sm:$0xf]
    %v1851 = vld [vmem:[#allocation2 + $0x1c08] sm:$0xf]
    %v1852 = vld [vmem:[#allocation2 + $0x1c0c] sm:$0xf]
    %v1853 = vld [vmem:[#allocation2 + $0x1c10] sm:$0xf]
    %v1854 = vld [vmem:[#allocation2 + $0x1c14] sm:$0xf]
    %v1855 = vld [vmem:[#allocation2 + $0x1c18] sm:$0xf]
    %v1856 = vld [vmem:[#allocation2 + $0x1c1c] sm:$0xf]
    %v1857 = vld [vmem:[#allocation2 + $0x1c20] sm:$0xf]
    %v1858 = vld [vmem:[#allocation2 + $0x1c24] sm:$0xf]
    %v1859 = vld [vmem:[#allocation2 + $0x1c28] sm:$0xf]
    %v1860 = vld [vmem:[#allocation2 + $0x1c2c] sm:$0xf]
    %v1861 = vld [vmem:[#allocation2 + $0x1c30] sm:$0xf]
    %v1862 = vld [vmem:[#allocation2 + $0x1c34] sm:$0xf]
    %v1863 = vld [vmem:[#allocation2 + $0x1c38] sm:$0xf]
    %v1864 = vld [vmem:[#allocation2 + $0x1c3c] sm:$0xf]
    %v1865 = vld [vmem:[#allocation2 + $0x1c40] sm:$0xf]
    %v1866 = vld [vmem:[#allocation2 + $0x1c44] sm:$0xf]
    %v1867 = vld [vmem:[#allocation2 + $0x1c48] sm:$0xf]
    %v1868 = vld [vmem:[#allocation2 + $0x1c4c] sm:$0xf]
    %v1869 = vld [vmem:[#allocation2 + $0x1c50] sm:$0xf]
    %v1870 = vld [vmem:[#allocation2 + $0x1c54] sm:$0xf]
    %v1871 = vld [vmem:[#allocation2 + $0x1c58] sm:$0xf]
    %v1872 = vld [vmem:[#allocation2 + $0x1c5c] sm:$0xf]
    %v1873 = vld [vmem:[#allocation2 + $0x1c60] sm:$0xf]
    %v1874 = vld [vmem:[#allocation2 + $0x1c64] sm:$0xf]
    %v1875 = vld [vmem:[#allocation2 + $0x1c68] sm:$0xf]
    %v1876 = vld [vmem:[#allocation2 + $0x1c6c] sm:$0xf]
    %v1877 = vld [vmem:[#allocation2 + $0x1c70] sm:$0xf]
    %v1878 = vld [vmem:[#allocation2 + $0x1c74] sm:$0xf]
    %v1879 = vld [vmem:[#allocation2 + $0x1c78] sm:$0xf]
    %v1880 = vld [vmem:[#allocation2 + $0x1c7c] sm:$0xf]
    %v1881 = vld [vmem:[#allocation2 + $0x1c80] sm:$0xf]
    %v1882 = vld [vmem:[#allocation2 + $0x1c84] sm:$0xf]
    %v1883 = vld [vmem:[#allocation2 + $0x1c88] sm:$0xf]
    %v1884 = vld [vmem:[#allocation2 + $0x1c8c] sm:$0xf]
    %v1885 = vld [vmem:[#allocation2 + $0x1c90] sm:$0xf]
    %v1886 = vld [vmem:[#allocation2 + $0x1c94] sm:$0xf]
    %v1887 = vld [vmem:[#allocation2 + $0x1c98] sm:$0xf]
    %v1888 = vld [vmem:[#allocation2 + $0x1c9c] sm:$0xf]
    %v1889 = vld [vmem:[#allocation2 + $0x1ca0] sm:$0xf]
    %v1890 = vld [vmem:[#allocation2 + $0x1ca4] sm:$0xf]
    %v1891 = vld [vmem:[#allocation2 + $0x1ca8] sm:$0xf]
    %v1892 = vld [vmem:[#allocation2 + $0x1cac] sm:$0xf]
    %v1893 = vld [vmem:[#allocation2 + $0x1cb0] sm:$0xf]
    %v1894 = vld [vmem:[#allocation2 + $0x1cb4] sm:$0xf]
    %v1895 = vld [vmem:[#allocation2 + $0x1cb8] sm:$0xf]
    %v1896 = vld [vmem:[#allocation2 + $0x1cbc] sm:$0xf]
    %v1897 = vld [vmem:[#allocation2 + $0x1cc0] sm:$0xf]
    %v1898 = vld [vmem:[#allocation2 + $0x1cc4] sm:$0xf]
    %v1899 = vld [vmem:[#allocation2 + $0x1cc8] sm:$0xf]
    %v1900 = vld [vmem:[#allocation2 + $0x1ccc] sm:$0xf]
    %v1901 = vld [vmem:[#allocation2 + $0x1cd0] sm:$0xf]
    %v1902 = vld [vmem:[#allocation2 + $0x1cd4] sm:$0xf]
    %v1903 = vld [vmem:[#allocation2 + $0x1cd8] sm:$0xf]
    %v1904 = vld [vmem:[#allocation2 + $0x1cdc] sm:$0xf]
    %v1905 = vld [vmem:[#allocation2 + $0x1ce0] sm:$0xf]
    %v1906 = vld [vmem:[#allocation2 + $0x1ce4] sm:$0xf]
    %v1907 = vld [vmem:[#allocation2 + $0x1ce8] sm:$0xf]
    %v1908 = vld [vmem:[#allocation2 + $0x1cec] sm:$0xf]
    %v1909 = vld [vmem:[#allocation2 + $0x1cf0] sm:$0xf]
    %v1910 = vld [vmem:[#allocation2 + $0x1cf4] sm:$0xf]
    %v1911 = vld [vmem:[#allocation2 + $0x1cf8] sm:$0xf]
    %v1912 = vld [vmem:[#allocation2 + $0x1cfc] sm:$0xf]
    %v1913 = vld [vmem:[#allocation2 + $0x1d00] sm:$0xf]
    %v1914 = vld [vmem:[#allocation2 + $0x1d04] sm:$0xf]
    %v1915 = vld [vmem:[#allocation2 + $0x1d08] sm:$0xf]
    %v1916 = vld [vmem:[#allocation2 + $0x1d0c] sm:$0xf]
    %v1917 = vld [vmem:[#allocation2 + $0x1d10] sm:$0xf]
    %v1918 = vld [vmem:[#allocation2 + $0x1d14] sm:$0xf]
    %v1919 = vld [vmem:[#allocation2 + $0x1d18] sm:$0xf]
    %v1920 = vld [vmem:[#allocation2 + $0x1d1c] sm:$0xf]
    %v1921 = vld [vmem:[#allocation2 + $0x1d20] sm:$0xf]
    %v1922 = vld [vmem:[#allocation2 + $0x1d24] sm:$0xf]
    %v1923 = vld [vmem:[#allocation2 + $0x1d28] sm:$0xf]
    %v1924 = vld [vmem:[#allocation2 + $0x1d2c] sm:$0xf]
    %v1925 = vld [vmem:[#allocation2 + $0x1d30] sm:$0xf]
    %v1926 = vld [vmem:[#allocation2 + $0x1d34] sm:$0xf]
    %v1927 = vld [vmem:[#allocation2 + $0x1d38] sm:$0xf]
    %v1928 = vld [vmem:[#allocation2 + $0x1d3c] sm:$0xf]
    %v1929 = vld [vmem:[#allocation2 + $0x1d40] sm:$0xf]
    %v1930 = vld [vmem:[#allocation2 + $0x1d44] sm:$0xf]
    %v1931 = vld [vmem:[#allocation2 + $0x1d48] sm:$0xf]
    %v1932 = vld [vmem:[#allocation2 + $0x1d4c] sm:$0xf]
    %v1933 = vld [vmem:[#allocation2 + $0x1d50] sm:$0xf]
    %v1934 = vld [vmem:[#allocation2 + $0x1d54] sm:$0xf]
    %v1935 = vld [vmem:[#allocation2 + $0x1d58] sm:$0xf]
    %v1936 = vld [vmem:[#allocation2 + $0x1d5c] sm:$0xf]
    %v1937 = vld [vmem:[#allocation2 + $0x1d60] sm:$0xf]
    %v1938 = vld [vmem:[#allocation2 + $0x1d64] sm:$0xf]
    %v1939 = vld [vmem:[#allocation2 + $0x1d68] sm:$0xf]
    %v1940 = vld [vmem:[#allocation2 + $0x1d6c] sm:$0xf]
    %v1941 = vld [vmem:[#allocation2 + $0x1d70] sm:$0xf]
    %v1942 = vld [vmem:[#allocation2 + $0x1d74] sm:$0xf]
    %v1943 = vld [vmem:[#allocation2 + $0x1d78] sm:$0xf]
    %v1944 = vld [vmem:[#allocation2 + $0x1d7c] sm:$0xf]
    %v1945 = vld [vmem:[#allocation2 + $0x1d80] sm:$0xf]
    %v1946 = vld [vmem:[#allocation2 + $0x1d84] sm:$0xf]
    %v1947 = vld [vmem:[#allocation2 + $0x1d88] sm:$0xf]
    %v1948 = vld [vmem:[#allocation2 + $0x1d8c] sm:$0xf]
    %v1949 = vld [vmem:[#allocation2 + $0x1d90] sm:$0xf]
    %v1950 = vld [vmem:[#allocation2 + $0x1d94] sm:$0xf]
    %v1951 = vld [vmem:[#allocation2 + $0x1d98] sm:$0xf]
    %v1952 = vld [vmem:[#allocation2 + $0x1d9c] sm:$0xf]
    %v1953 = vld [vmem:[#allocation2 + $0x1da0] sm:$0xf]
    %v1954 = vld [vmem:[#allocation2 + $0x1da4] sm:$0xf]
    %v1955 = vld [vmem:[#allocation2 + $0x1da8] sm:$0xf]
    %v1956 = vld [vmem:[#allocation2 + $0x1dac] sm:$0xf]
    %v1957 = vld [vmem:[#allocation2 + $0x1db0] sm:$0xf]
    %v1958 = vld [vmem:[#allocation2 + $0x1db4] sm:$0xf]
    %v1959 = vld [vmem:[#allocation2 + $0x1db8] sm:$0xf]
    %v1960 = vld [vmem:[#allocation2 + $0x1dbc] sm:$0xf]
    %v1961 = vld [vmem:[#allocation2 + $0x1dc0] sm:$0xf]
    %v1962 = vld [vmem:[#allocation2 + $0x1dc4] sm:$0xf]
    %v1963 = vld [vmem:[#allocation2 + $0x1dc8] sm:$0xf]
    %v1964 = vld [vmem:[#allocation2 + $0x1dcc] sm:$0xf]
    %v1965 = vld [vmem:[#allocation2 + $0x1dd0] sm:$0xf]
    %v1966 = vld [vmem:[#allocation2 + $0x1dd4] sm:$0xf]
    %v1967 = vld [vmem:[#allocation2 + $0x1dd8] sm:$0xf]
    %v1968 = vld [vmem:[#allocation2 + $0x1ddc] sm:$0xf]
    %v1969 = vld [vmem:[#allocation2 + $0x1de0] sm:$0xf]
    %v1970 = vld [vmem:[#allocation2 + $0x1de4] sm:$0xf]
    %v1971 = vld [vmem:[#allocation2 + $0x1de8] sm:$0xf]
    %v1972 = vld [vmem:[#allocation2 + $0x1dec] sm:$0xf]
    %v1973 = vld [vmem:[#allocation2 + $0x1df0] sm:$0xf]
    %v1974 = vld [vmem:[#allocation2 + $0x1df4] sm:$0xf]
    %v1975 = vld [vmem:[#allocation2 + $0x1df8] sm:$0xf]
    %v1976 = vld [vmem:[#allocation2 + $0x1dfc] sm:$0xf]
    %v1977 = vld [vmem:[#allocation2 + $0x1e00] sm:$0xf]
    %v1978 = vld [vmem:[#allocation2 + $0x1e04] sm:$0xf]
    %v1979 = vld [vmem:[#allocation2 + $0x1e08] sm:$0xf]
    %v1980 = vld [vmem:[#allocation2 + $0x1e0c] sm:$0xf]
    %v1981 = vld [vmem:[#allocation2 + $0x1e10] sm:$0xf]
    %v1982 = vld [vmem:[#allocation2 + $0x1e14] sm:$0xf]
    %v1983 = vld [vmem:[#allocation2 + $0x1e18] sm:$0xf]
    %v1984 = vld [vmem:[#allocation2 + $0x1e1c] sm:$0xf]
    %v1985 = vld [vmem:[#allocation2 + $0x1e20] sm:$0xf]
    %v1986 = vld [vmem:[#allocation2 + $0x1e24] sm:$0xf]
    %v1987 = vld [vmem:[#allocation2 + $0x1e28] sm:$0xf]
    %v1988 = vld [vmem:[#allocation2 + $0x1e2c] sm:$0xf]
    %v1989 = vld [vmem:[#allocation2 + $0x1e30] sm:$0xf]
    %v1990 = vld [vmem:[#allocation2 + $0x1e34] sm:$0xf]
    %v1991 = vld [vmem:[#allocation2 + $0x1e38] sm:$0xf]
    %v1992 = vld [vmem:[#allocation2 + $0x1e3c] sm:$0xf]
    %v1993 = vld [vmem:[#allocation2 + $0x1e40] sm:$0xf]
    %v1994 = vld [vmem:[#allocation2 + $0x1e44] sm:$0xf]
    %v1995 = vld [vmem:[#allocation2 + $0x1e48] sm:$0xf]
    %v1996 = vld [vmem:[#allocation2 + $0x1e4c] sm:$0xf]
    %v1997 = vld [vmem:[#allocation2 + $0x1e50] sm:$0xf]
    %v1998 = vld [vmem:[#allocation2 + $0x1e54] sm:$0xf]
    %v1999 = vld [vmem:[#allocation2 + $0x1e58] sm:$0xf]
    %v2000 = vld [vmem:[#allocation2 + $0x1e5c] sm:$0xf]
    %v2001 = vld [vmem:[#allocation2 + $0x1e60] sm:$0xf]
    %v2002 = vld [vmem:[#allocation2 + $0x1e64] sm:$0xf]
    %v2003 = vld [vmem:[#allocation2 + $0x1e68] sm:$0xf]
    %v2004 = vld [vmem:[#allocation2 + $0x1e6c] sm:$0xf]
    %v2005 = vld [vmem:[#allocation2 + $0x1e70] sm:$0xf]
    %v2006 = vld [vmem:[#allocation2 + $0x1e74] sm:$0xf]
    %v2007 = vld [vmem:[#allocation2 + $0x1e78] sm:$0xf]
    %v2008 = vld [vmem:[#allocation2 + $0x1e7c] sm:$0xf]
    %v2009 = vld [vmem:[#allocation2 + $0x1e80] sm:$0xf]
    %v2010 = vld [vmem:[#allocation2 + $0x1e84] sm:$0xf]
    %v2011 = vld [vmem:[#allocation2 + $0x1e88] sm:$0xf]
    %v2012 = vld [vmem:[#allocation2 + $0x1e8c] sm:$0xf]
    %v2013 = vld [vmem:[#allocation2 + $0x1e90] sm:$0xf]
    %v2014 = vld [vmem:[#allocation2 + $0x1e94] sm:$0xf]
    %v2015 = vld [vmem:[#allocation2 + $0x1e98] sm:$0xf]
    %v2016 = vld [vmem:[#allocation2 + $0x1e9c] sm:$0xf]
    %v2017 = vld [vmem:[#allocation2 + $0x1ea0] sm:$0xf]
    %v2018 = vld [vmem:[#allocation2 + $0x1ea4] sm:$0xf]
    %v2019 = vld [vmem:[#allocation2 + $0x1ea8] sm:$0xf]
    %v2020 = vld [vmem:[#allocation2 + $0x1eac] sm:$0xf]
    %v2021 = vld [vmem:[#allocation2 + $0x1eb0] sm:$0xf]
    %v2022 = vld [vmem:[#allocation2 + $0x1eb4] sm:$0xf]
    %v2023 = vld [vmem:[#allocation2 + $0x1eb8] sm:$0xf]
    %v2024 = vld [vmem:[#allocation2 + $0x1ebc] sm:$0xf]
    %v2025 = vld [vmem:[#allocation2 + $0x1ec0] sm:$0xf]
    %v2026 = vld [vmem:[#allocation2 + $0x1ec4] sm:$0xf]
    %v2027 = vld [vmem:[#allocation2 + $0x1ec8] sm:$0xf]
    %v2028 = vld [vmem:[#allocation2 + $0x1ecc] sm:$0xf]
    %v2029 = vld [vmem:[#allocation2 + $0x1ed0] sm:$0xf]
    %v2030 = vld [vmem:[#allocation2 + $0x1ed4] sm:$0xf]
    %v2031 = vld [vmem:[#allocation2 + $0x1ed8] sm:$0xf]
    %v2032 = vld [vmem:[#allocation2 + $0x1edc] sm:$0xf]
    %v2033 = vld [vmem:[#allocation2 + $0x1ee0] sm:$0xf]
    %v2034 = vld [vmem:[#allocation2 + $0x1ee4] sm:$0xf]
    %v2035 = vld [vmem:[#allocation2 + $0x1ee8] sm:$0xf]
    %v2036 = vld [vmem:[#allocation2 + $0x1eec] sm:$0xf]
    %v2037 = vld [vmem:[#allocation2 + $0x1ef0] sm:$0xf]
    %v2038 = vld [vmem:[#allocation2 + $0x1ef4] sm:$0xf]
    %v2039 = vld [vmem:[#allocation2 + $0x1ef8] sm:$0xf]
    %v2040 = vld [vmem:[#allocation2 + $0x1efc] sm:$0xf]
    %v2041 = vld [vmem:[#allocation2 + $0x1f00] sm:$0xf]
    %v2042 = vld [vmem:[#allocation2 + $0x1f04] sm:$0xf]
    %v2043 = vld [vmem:[#allocation2 + $0x1f08] sm:$0xf]
    %v2044 = vld [vmem:[#allocation2 + $0x1f0c] sm:$0xf]
    %v2045 = vld [vmem:[#allocation2 + $0x1f10] sm:$0xf]
    %v2046 = vld [vmem:[#allocation2 + $0x1f14] sm:$0xf]
    %v2047 = vld [vmem:[#allocation2 + $0x1f18] sm:$0xf]
    %v2048 = vld [vmem:[#allocation2 + $0x1f1c] sm:$0xf]
    %v2049 = vld [vmem:[#allocation2 + $0x1f20] sm:$0xf]
    %v2050 = vld [vmem:[#allocation2 + $0x1f24] sm:$0xf]
    %v2051 = vld [vmem:[#allocation2 + $0x1f28] sm:$0xf]
    %v2052 = vld [vmem:[#allocation2 + $0x1f2c] sm:$0xf]
    %v2053 = vld [vmem:[#allocation2 + $0x1f30] sm:$0xf]
    %v2054 = vld [vmem:[#allocation2 + $0x1f34] sm:$0xf]
    %v2055 = vld [vmem:[#allocation2 + $0x1f38] sm:$0xf]
    %v2056 = vld [vmem:[#allocation2 + $0x1f3c] sm:$0xf]
    %v2057 = vld [vmem:[#allocation2 + $0x1f40] sm:$0xf]
    %v2058 = vld [vmem:[#allocation2 + $0x1f44] sm:$0xf]
    %v2059 = vld [vmem:[#allocation2 + $0x1f48] sm:$0xf]
    %v2060 = vld [vmem:[#allocation2 + $0x1f4c] sm:$0xf]
    %v2061 = vld [vmem:[#allocation2 + $0x1f50] sm:$0xf]
    %v2062 = vld [vmem:[#allocation2 + $0x1f54] sm:$0xf]
    %v2063 = vld [vmem:[#allocation2 + $0x1f58] sm:$0xf]
    %v2064 = vld [vmem:[#allocation2 + $0x1f5c] sm:$0xf]
    %v2065 = vld [vmem:[#allocation2 + $0x1f60] sm:$0xf]
    %v2066 = vld [vmem:[#allocation2 + $0x1f64] sm:$0xf]
    %v2067 = vld [vmem:[#allocation2 + $0x1f68] sm:$0xf]
    %v2068 = vld [vmem:[#allocation2 + $0x1f6c] sm:$0xf]
    %v2069 = vld [vmem:[#allocation2 + $0x1f70] sm:$0xf]
    %v2070 = vld [vmem:[#allocation2 + $0x1f74] sm:$0xf]
    %v2071 = vld [vmem:[#allocation2 + $0x1f78] sm:$0xf]
    %v2072 = vld [vmem:[#allocation2 + $0x1f7c] sm:$0xf]
    %v2073 = vld [vmem:[#allocation2 + $0x1f80] sm:$0xf]
    %v2074 = vld [vmem:[#allocation2 + $0x1f84] sm:$0xf]
    %v2075 = vld [vmem:[#allocation2 + $0x1f88] sm:$0xf]
    %v2076 = vld [vmem:[#allocation2 + $0x1f8c] sm:$0xf]
    %v2077 = vld [vmem:[#allocation2 + $0x1f90] sm:$0xf]
    %v2078 = vld [vmem:[#allocation2 + $0x1f94] sm:$0xf]
    %v2079 = vld [vmem:[#allocation2 + $0x1f98] sm:$0xf]
    %v2080 = vld [vmem:[#allocation2 + $0x1f9c] sm:$0xf]
    %v2081 = vld [vmem:[#allocation2 + $0x1fa0] sm:$0xf]
    %v2082 = vld [vmem:[#allocation2 + $0x1fa4] sm:$0xf]
    %v2083 = vld [vmem:[#allocation2 + $0x1fa8] sm:$0xf]
    %v2084 = vld [vmem:[#allocation2 + $0x1fac] sm:$0xf]
    %v2085 = vld [vmem:[#allocation2 + $0x1fb0] sm:$0xf]
    %v2086 = vld [vmem:[#allocation2 + $0x1fb4] sm:$0xf]
    %v2087 = vld [vmem:[#allocation2 + $0x1fb8] sm:$0xf]
    %v2088 = vld [vmem:[#allocation2 + $0x1fbc] sm:$0xf]
    %v2089 = vld [vmem:[#allocation2 + $0x1fc0] sm:$0xf]
    %v2090 = vld [vmem:[#allocation2 + $0x1fc4] sm:$0xf]
    %v2091 = vld [vmem:[#allocation2 + $0x1fc8] sm:$0xf]
    %v2092 = vld [vmem:[#allocation2 + $0x1fcc] sm:$0xf]
    %v2093 = vld [vmem:[#allocation2 + $0x1fd0] sm:$0xf]
    %v2094 = vld [vmem:[#allocation2 + $0x1fd4] sm:$0xf]
    %v2095 = vld [vmem:[#allocation2 + $0x1fd8] sm:$0xf]
    %v2096 = vld [vmem:[#allocation2 + $0x1fdc] sm:$0xf]
    %v2097 = vld [vmem:[#allocation2 + $0x1fe0] sm:$0xf]
    %v2098 = vld [vmem:[#allocation2 + $0x1fe4] sm:$0xf]
    %v2099 = vld [vmem:[#allocation2 + $0x1fe8] sm:$0xf]
    %v2100 = vld [vmem:[#allocation2 + $0x1fec] sm:$0xf]
    %v2101 = vld [vmem:[#allocation2 + $0x1ff0] sm:$0xf]
    %v2102 = vld [vmem:[#allocation2 + $0x1ff4] sm:$0xf]
    %v2103 = vld [vmem:[#allocation2 + $0x1ff8] sm:$0xf]
    %v2104 = vld [vmem:[#allocation2 + $0x1ffc] sm:$0xf]
    %v2105 = vld [vmem:[#allocation4] sm:$0x1]
    %v2107 = vlaneseq
    %v2108 = vshrl.u32 %v2107, 7
    %v2109 = vsub.s32 0, %v2108
    %v2110 = vrot.slane %v2105, %v2109
    %v2128 = vcombine.high %v41, %v41
    %v2130 = vunpack.c.l.s4 1966171168
    %v2131 = vunpack.c.0.s8 %v2130
    %v2132 = vlaneseq
    %v2133 = vshrl.u32 %v2132, 7
    %v2134 = vsub.s32 %v2131, %v2133
    %v2135 = vrot.slane %v41, %v2134
    %v2137 = vunpack.c.l.s4 1966171168
    %v2138 = vunpack.c.0.s8 %v2137
    %v2139 = vlaneseq
    %v2140 = vshrl.u32 %v2139, 7
    %v2141 = vsub.s32 %v2138, %v2140
    %v2142 = vrot.slane %v2128, %v2141
    %v2143 = vcombine.high %v2135, %v2135
    %v2144 = vcombine.high %v2142, %v2142
    %v2146 = vunpack.c.l.s4 1966171168
    %v2147 = vunpack.c.0.s8 %v2146
    %v2148 = vlaneseq
    %v2149 = vshrl.u32 %v2148, 7
    %v2150 = vsub.s32 %v2147, %v2149
    %v2151 = vrot.slane %v2135, %v2150
    %v2153 = vunpack.c.l.s4 1966171168
    %v2154 = vunpack.c.0.s8 %v2153
    %v2155 = vlaneseq
    %v2156 = vshrl.u32 %v2155, 7
    %v2157 = vsub.s32 %v2154, %v2156
    %v2158 = vrot.slane %v2142, %v2157
    %v2160 = vunpack.c.l.s4 1966171168
    %v2161 = vunpack.c.0.s8 %v2160
    %v2162 = vlaneseq
    %v2163 = vshrl.u32 %v2162, 7
    %v2164 = vsub.s32 %v2161, %v2163
    %v2165 = vrot.slane %v2143, %v2164
    %v2167 = vunpack.c.l.s4 1966171168
    %v2168 = vunpack.c.0.s8 %v2167
    %v2169 = vlaneseq
    %v2170 = vshrl.u32 %v2169, 7
    %v2171 = vsub.s32 %v2168, %v2170
    %v2172 = vrot.slane %v2144, %v2171
    %v2173 = vcombine.high %v2151, %v2151
    %v2174 = vcombine.high %v2158, %v2158
    %v2175 = vcombine.high %v2165, %v2165
    %v2176 = vcombine.high %v2172, %v2172
    %v2177 = vcombine.high %v42, %v42
    %v2179 = vunpack.c.l.s4 1966171168
    %v2180 = vunpack.c.0.s8 %v2179
    %v2181 = vlaneseq
    %v2182 = vshrl.u32 %v2181, 7
    %v2183 = vsub.s32 %v2180, %v2182
    %v2184 = vrot.slane %v42, %v2183
    %v2186 = vunpack.c.l.s4 1966171168
    %v2187 = vunpack.c.0.s8 %v2186
    %v2188 = vlaneseq
    %v2189 = vshrl.u32 %v2188, 7
    %v2190 = vsub.s32 %v2187, %v2189
    %v2191 = vrot.slane %v2177, %v2190
    %v2192 = vcombine.high %v2184, %v2184
    %v2193 = vcombine.high %v2191, %v2191
    %v2195 = vunpack.c.l.s4 1966171168
    %v2196 = vunpack.c.0.s8 %v2195
    %v2197 = vlaneseq
    %v2198 = vshrl.u32 %v2197, 7
    %v2199 = vsub.s32 %v2196, %v2198
    %v2200 = vrot.slane %v2184, %v2199
    %v2202 = vunpack.c.l.s4 1966171168
    %v2203 = vunpack.c.0.s8 %v2202
    %v2204 = vlaneseq
    %v2205 = vshrl.u32 %v2204, 7
    %v2206 = vsub.s32 %v2203, %v2205
    %v2207 = vrot.slane %v2191, %v2206
    %v2209 = vunpack.c.l.s4 1966171168
    %v2210 = vunpack.c.0.s8 %v2209
    %v2211 = vlaneseq
    %v2212 = vshrl.u32 %v2211, 7
    %v2213 = vsub.s32 %v2210, %v2212
    %v2214 = vrot.slane %v2192, %v2213
    %v2216 = vunpack.c.l.s4 1966171168
    %v2217 = vunpack.c.0.s8 %v2216
    %v2218 = vlaneseq
    %v2219 = vshrl.u32 %v2218, 7
    %v2220 = vsub.s32 %v2217, %v2219
    %v2221 = vrot.slane %v2193, %v2220
    %v2222 = vcombine.high %v2200, %v2200
    %v2223 = vcombine.high %v2207, %v2207
    %v2224 = vcombine.high %v2214, %v2214
    %v2225 = vcombine.high %v2221, %v2221
    %v2226 = vcombine.high %v43, %v43
    %v2228 = vunpack.c.l.s4 1966171168
    %v2229 = vunpack.c.0.s8 %v2228
    %v2230 = vlaneseq
    %v2231 = vshrl.u32 %v2230, 7
    %v2232 = vsub.s32 %v2229, %v2231
    %v2233 = vrot.slane %v43, %v2232
    %v2235 = vunpack.c.l.s4 1966171168
    %v2236 = vunpack.c.0.s8 %v2235
    %v2237 = vlaneseq
    %v2238 = vshrl.u32 %v2237, 7
    %v2239 = vsub.s32 %v2236, %v2238
    %v2240 = vrot.slane %v2226, %v2239
    %v2241 = vcombine.high %v2233, %v2233
    %v2242 = vcombine.high %v2240, %v2240
    %v2244 = vunpack.c.l.s4 1966171168
    %v2245 = vunpack.c.0.s8 %v2244
    %v2246 = vlaneseq
    %v2247 = vshrl.u32 %v2246, 7
    %v2248 = vsub.s32 %v2245, %v2247
    %v2249 = vrot.slane %v2233, %v2248
    %v2251 = vunpack.c.l.s4 1966171168
    %v2252 = vunpack.c.0.s8 %v2251
    %v2253 = vlaneseq
    %v2254 = vshrl.u32 %v2253, 7
    %v2255 = vsub.s32 %v2252, %v2254
    %v2256 = vrot.slane %v2240, %v2255
    %v2258 = vunpack.c.l.s4 1966171168
    %v2259 = vunpack.c.0.s8 %v2258
    %v2260 = vlaneseq
    %v2261 = vshrl.u32 %v2260, 7
    %v2262 = vsub.s32 %v2259, %v2261
    %v2263 = vrot.slane %v2241, %v2262
    %v2265 = vunpack.c.l.s4 1966171168
    %v2266 = vunpack.c.0.s8 %v2265
    %v2267 = vlaneseq
    %v2268 = vshrl.u32 %v2267, 7
    %v2269 = vsub.s32 %v2266, %v2268
    %v2270 = vrot.slane %v2242, %v2269
    %v2271 = vcombine.high %v2249, %v2249
    %v2272 = vcombine.high %v2256, %v2256
    %v2273 = vcombine.high %v2263, %v2263
    %v2274 = vcombine.high %v2270, %v2270
    %v2275 = vcombine.high %v44, %v44
    %v2277 = vunpack.c.l.s4 1966171168
    %v2278 = vunpack.c.0.s8 %v2277
    %v2279 = vlaneseq
    %v2280 = vshrl.u32 %v2279, 7
    %v2281 = vsub.s32 %v2278, %v2280
    %v2282 = vrot.slane %v44, %v2281
    %v2284 = vunpack.c.l.s4 1966171168
    %v2285 = vunpack.c.0.s8 %v2284
    %v2286 = vlaneseq
    %v2287 = vshrl.u32 %v2286, 7
    %v2288 = vsub.s32 %v2285, %v2287
    %v2289 = vrot.slane %v2275, %v2288
    %v2290 = vcombine.high %v2282, %v2282
    %v2291 = vcombine.high %v2289, %v2289
    %v2293 = vunpack.c.l.s4 1966171168
    %v2294 = vunpack.c.0.s8 %v2293
    %v2295 = vlaneseq
    %v2296 = vshrl.u32 %v2295, 7
    %v2297 = vsub.s32 %v2294, %v2296
    %v2298 = vrot.slane %v2282, %v2297
    %v2300 = vunpack.c.l.s4 1966171168
    %v2301 = vunpack.c.0.s8 %v2300
    %v2302 = vlaneseq
    %v2303 = vshrl.u32 %v2302, 7
    %v2304 = vsub.s32 %v2301, %v2303
    %v2305 = vrot.slane %v2289, %v2304
    %v2307 = vunpack.c.l.s4 1966171168
    %v2308 = vunpack.c.0.s8 %v2307
    %v2309 = vlaneseq
    %v2310 = vshrl.u32 %v2309, 7
    %v2311 = vsub.s32 %v2308, %v2310
    %v2312 = vrot.slane %v2290, %v2311
    %v2314 = vunpack.c.l.s4 1966171168
    %v2315 = vunpack.c.0.s8 %v2314
    %v2316 = vlaneseq
    %v2317 = vshrl.u32 %v2316, 7
    %v2318 = vsub.s32 %v2315, %v2317
    %v2319 = vrot.slane %v2291, %v2318
    %v2320 = vcombine.high %v2298, %v2298
    %v2321 = vcombine.high %v2305, %v2305
    %v2322 = vcombine.high %v2312, %v2312
    %v2323 = vcombine.high %v2319, %v2319
    %v2324 = vcombine.high %v45, %v45
    %v2326 = vunpack.c.l.s4 1966171168
    %v2327 = vunpack.c.0.s8 %v2326
    %v2328 = vlaneseq
    %v2329 = vshrl.u32 %v2328, 7
    %v2330 = vsub.s32 %v2327, %v2329
    %v2331 = vrot.slane %v45, %v2330
    %v2333 = vunpack.c.l.s4 1966171168
    %v2334 = vunpack.c.0.s8 %v2333
    %v2335 = vlaneseq
    %v2336 = vshrl.u32 %v2335, 7
    %v2337 = vsub.s32 %v2334, %v2336
    %v2338 = vrot.slane %v2324, %v2337
    %v2339 = vcombine.high %v2331, %v2331
    %v2340 = vcombine.high %v2338, %v2338
    %v2342 = vunpack.c.l.s4 1966171168
    %v2343 = vunpack.c.0.s8 %v2342
    %v2344 = vlaneseq
    %v2345 = vshrl.u32 %v2344, 7
    %v2346 = vsub.s32 %v2343, %v2345
    %v2347 = vrot.slane %v2331, %v2346
    %v2349 = vunpack.c.l.s4 1966171168
    %v2350 = vunpack.c.0.s8 %v2349
    %v2351 = vlaneseq
    %v2352 = vshrl.u32 %v2351, 7
    %v2353 = vsub.s32 %v2350, %v2352
    %v2354 = vrot.slane %v2338, %v2353
    %v2356 = vunpack.c.l.s4 1966171168
    %v2357 = vunpack.c.0.s8 %v2356
    %v2358 = vlaneseq
    %v2359 = vshrl.u32 %v2358, 7
    %v2360 = vsub.s32 %v2357, %v2359
    %v2361 = vrot.slane %v2339, %v2360
    %v2363 = vunpack.c.l.s4 1966171168
    %v2364 = vunpack.c.0.s8 %v2363
    %v2365 = vlaneseq
    %v2366 = vshrl.u32 %v2365, 7
    %v2367 = vsub.s32 %v2364, %v2366
    %v2368 = vrot.slane %v2340, %v2367
    %v2369 = vcombine.high %v2347, %v2347
    %v2370 = vcombine.high %v2354, %v2354
    %v2371 = vcombine.high %v2361, %v2361
    %v2372 = vcombine.high %v2368, %v2368
    %v2373 = vcombine.high %v46, %v46
    %v2375 = vunpack.c.l.s4 1966171168
    %v2376 = vunpack.c.0.s8 %v2375
    %v2377 = vlaneseq
    %v2378 = vshrl.u32 %v2377, 7
    %v2379 = vsub.s32 %v2376, %v2378
    %v2380 = vrot.slane %v46, %v2379
    %v2382 = vunpack.c.l.s4 1966171168
    %v2383 = vunpack.c.0.s8 %v2382
    %v2384 = vlaneseq
    %v2385 = vshrl.u32 %v2384, 7
    %v2386 = vsub.s32 %v2383, %v2385
    %v2387 = vrot.slane %v2373, %v2386
    %v2388 = vcombine.high %v2380, %v2380
    %v2389 = vcombine.high %v2387, %v2387
    %v2391 = vunpack.c.l.s4 1966171168
    %v2392 = vunpack.c.0.s8 %v2391
    %v2393 = vlaneseq
    %v2394 = vshrl.u32 %v2393, 7
    %v2395 = vsub.s32 %v2392, %v2394
    %v2396 = vrot.slane %v2380, %v2395
    %v2398 = vunpack.c.l.s4 1966171168
    %v2399 = vunpack.c.0.s8 %v2398
    %v2400 = vlaneseq
    %v2401 = vshrl.u32 %v2400, 7
    %v2402 = vsub.s32 %v2399, %v2401
    %v2403 = vrot.slane %v2387, %v2402
    %v2405 = vunpack.c.l.s4 1966171168
    %v2406 = vunpack.c.0.s8 %v2405
    %v2407 = vlaneseq
    %v2408 = vshrl.u32 %v2407, 7
    %v2409 = vsub.s32 %v2406, %v2408
    %v2410 = vrot.slane %v2388, %v2409
    %v2412 = vunpack.c.l.s4 1966171168
    %v2413 = vunpack.c.0.s8 %v2412
    %v2414 = vlaneseq
    %v2415 = vshrl.u32 %v2414, 7
    %v2416 = vsub.s32 %v2413, %v2415
    %v2417 = vrot.slane %v2389, %v2416
    %v2418 = vcombine.high %v2396, %v2396
    %v2419 = vcombine.high %v2403, %v2403
    %v2420 = vcombine.high %v2410, %v2410
    %v2421 = vcombine.high %v2417, %v2417
    %v2422 = vcombine.high %v47, %v47
    %v2424 = vunpack.c.l.s4 1966171168
    %v2425 = vunpack.c.0.s8 %v2424
    %v2426 = vlaneseq
    %v2427 = vshrl.u32 %v2426, 7
    %v2428 = vsub.s32 %v2425, %v2427
    %v2429 = vrot.slane %v47, %v2428
    %v2431 = vunpack.c.l.s4 1966171168
    %v2432 = vunpack.c.0.s8 %v2431
    %v2433 = vlaneseq
    %v2434 = vshrl.u32 %v2433, 7
    %v2435 = vsub.s32 %v2432, %v2434
    %v2436 = vrot.slane %v2422, %v2435
    %v2437 = vcombine.high %v2429, %v2429
    %v2438 = vcombine.high %v2436, %v2436
    %v2440 = vunpack.c.l.s4 1966171168
    %v2441 = vunpack.c.0.s8 %v2440
    %v2442 = vlaneseq
    %v2443 = vshrl.u32 %v2442, 7
    %v2444 = vsub.s32 %v2441, %v2443
    %v2445 = vrot.slane %v2429, %v2444
    %v2447 = vunpack.c.l.s4 1966171168
    %v2448 = vunpack.c.0.s8 %v2447
    %v2449 = vlaneseq
    %v2450 = vshrl.u32 %v2449, 7
    %v2451 = vsub.s32 %v2448, %v2450
    %v2452 = vrot.slane %v2436, %v2451
    %v2454 = vunpack.c.l.s4 1966171168
    %v2455 = vunpack.c.0.s8 %v2454
    %v2456 = vlaneseq
    %v2457 = vshrl.u32 %v2456, 7
    %v2458 = vsub.s32 %v2455, %v2457
    %v2459 = vrot.slane %v2437, %v2458
    %v2461 = vunpack.c.l.s4 1966171168
    %v2462 = vunpack.c.0.s8 %v2461
    %v2463 = vlaneseq
    %v2464 = vshrl.u32 %v2463, 7
    %v2465 = vsub.s32 %v2462, %v2464
    %v2466 = vrot.slane %v2438, %v2465
    %v2467 = vcombine.high %v2445, %v2445
    %v2468 = vcombine.high %v2452, %v2452
    %v2469 = vcombine.high %v2459, %v2459
    %v2470 = vcombine.high %v2466, %v2466
    %v2471 = vcombine.high %v48, %v48
    %v2473 = vunpack.c.l.s4 1966171168
    %v2474 = vunpack.c.0.s8 %v2473
    %v2475 = vlaneseq
    %v2476 = vshrl.u32 %v2475, 7
    %v2477 = vsub.s32 %v2474, %v2476
    %v2478 = vrot.slane %v48, %v2477
    %v2480 = vunpack.c.l.s4 1966171168
    %v2481 = vunpack.c.0.s8 %v2480
    %v2482 = vlaneseq
    %v2483 = vshrl.u32 %v2482, 7
    %v2484 = vsub.s32 %v2481, %v2483
    %v2485 = vrot.slane %v2471, %v2484
    %v2486 = vcombine.high %v2478, %v2478
    %v2487 = vcombine.high %v2485, %v2485
    %v2489 = vunpack.c.l.s4 1966171168
    %v2490 = vunpack.c.0.s8 %v2489
    %v2491 = vlaneseq
    %v2492 = vshrl.u32 %v2491, 7
    %v2493 = vsub.s32 %v2490, %v2492
    %v2494 = vrot.slane %v2478, %v2493
    %v2496 = vunpack.c.l.s4 1966171168
    %v2497 = vunpack.c.0.s8 %v2496
    %v2498 = vlaneseq
    %v2499 = vshrl.u32 %v2498, 7
    %v2500 = vsub.s32 %v2497, %v2499
    %v2501 = vrot.slane %v2485, %v2500
    %v2503 = vunpack.c.l.s4 1966171168
    %v2504 = vunpack.c.0.s8 %v2503
    %v2505 = vlaneseq
    %v2506 = vshrl.u32 %v2505, 7
    %v2507 = vsub.s32 %v2504, %v2506
    %v2508 = vrot.slane %v2486, %v2507
    %v2510 = vunpack.c.l.s4 1966171168
    %v2511 = vunpack.c.0.s8 %v2510
    %v2512 = vlaneseq
    %v2513 = vshrl.u32 %v2512, 7
    %v2514 = vsub.s32 %v2511, %v2513
    %v2515 = vrot.slane %v2487, %v2514
    %v2516 = vcombine.high %v2494, %v2494
    %v2517 = vcombine.high %v2501, %v2501
    %v2518 = vcombine.high %v2508, %v2508
    %v2519 = vcombine.high %v2515, %v2515
    %v2520 = vcombine.high %v49, %v49
    %v2522 = vunpack.c.l.s4 1966171168
    %v2523 = vunpack.c.0.s8 %v2522
    %v2524 = vlaneseq
    %v2525 = vshrl.u32 %v2524, 7
    %v2526 = vsub.s32 %v2523, %v2525
    %v2527 = vrot.slane %v49, %v2526
    %v2529 = vunpack.c.l.s4 1966171168
    %v2530 = vunpack.c.0.s8 %v2529
    %v2531 = vlaneseq
    %v2532 = vshrl.u32 %v2531, 7
    %v2533 = vsub.s32 %v2530, %v2532
    %v2534 = vrot.slane %v2520, %v2533
    %v2535 = vcombine.high %v2527, %v2527
    %v2536 = vcombine.high %v2534, %v2534
    %v2538 = vunpack.c.l.s4 1966171168
    %v2539 = vunpack.c.0.s8 %v2538
    %v2540 = vlaneseq
    %v2541 = vshrl.u32 %v2540, 7
    %v2542 = vsub.s32 %v2539, %v2541
    %v2543 = vrot.slane %v2527, %v2542
    %v2545 = vunpack.c.l.s4 1966171168
    %v2546 = vunpack.c.0.s8 %v2545
    %v2547 = vlaneseq
    %v2548 = vshrl.u32 %v2547, 7
    %v2549 = vsub.s32 %v2546, %v2548
    %v2550 = vrot.slane %v2534, %v2549
    %v2552 = vunpack.c.l.s4 1966171168
    %v2553 = vunpack.c.0.s8 %v2552
    %v2554 = vlaneseq
    %v2555 = vshrl.u32 %v2554, 7
    %v2556 = vsub.s32 %v2553, %v2555
    %v2557 = vrot.slane %v2535, %v2556
    %v2559 = vunpack.c.l.s4 1966171168
    %v2560 = vunpack.c.0.s8 %v2559
    %v2561 = vlaneseq
    %v2562 = vshrl.u32 %v2561, 7
    %v2563 = vsub.s32 %v2560, %v2562
    %v2564 = vrot.slane %v2536, %v2563
    %v2565 = vcombine.high %v2543, %v2543
    %v2566 = vcombine.high %v2550, %v2550
    %v2567 = vcombine.high %v2557, %v2557
    %v2568 = vcombine.high %v2564, %v2564
    %v2569 = vcombine.high %v50, %v50
    %v2571 = vunpack.c.l.s4 1966171168
    %v2572 = vunpack.c.0.s8 %v2571
    %v2573 = vlaneseq
    %v2574 = vshrl.u32 %v2573, 7
    %v2575 = vsub.s32 %v2572, %v2574
    %v2576 = vrot.slane %v50, %v2575
    %v2578 = vunpack.c.l.s4 1966171168
    %v2579 = vunpack.c.0.s8 %v2578
    %v2580 = vlaneseq
    %v2581 = vshrl.u32 %v2580, 7
    %v2582 = vsub.s32 %v2579, %v2581
    %v2583 = vrot.slane %v2569, %v2582
    %v2584 = vcombine.high %v2576, %v2576
    %v2585 = vcombine.high %v2583, %v2583
    %v2587 = vunpack.c.l.s4 1966171168
    %v2588 = vunpack.c.0.s8 %v2587
    %v2589 = vlaneseq
    %v2590 = vshrl.u32 %v2589, 7
    %v2591 = vsub.s32 %v2588, %v2590
    %v2592 = vrot.slane %v2576, %v2591
    %v2594 = vunpack.c.l.s4 1966171168
    %v2595 = vunpack.c.0.s8 %v2594
    %v2596 = vlaneseq
    %v2597 = vshrl.u32 %v2596, 7
    %v2598 = vsub.s32 %v2595, %v2597
    %v2599 = vrot.slane %v2583, %v2598
    %v2601 = vunpack.c.l.s4 1966171168
    %v2602 = vunpack.c.0.s8 %v2601
    %v2603 = vlaneseq
    %v2604 = vshrl.u32 %v2603, 7
    %v2605 = vsub.s32 %v2602, %v2604
    %v2606 = vrot.slane %v2584, %v2605
    %v2608 = vunpack.c.l.s4 1966171168
    %v2609 = vunpack.c.0.s8 %v2608
    %v2610 = vlaneseq
    %v2611 = vshrl.u32 %v2610, 7
    %v2612 = vsub.s32 %v2609, %v2611
    %v2613 = vrot.slane %v2585, %v2612
    %v2614 = vcombine.high %v2592, %v2592
    %v2615 = vcombine.high %v2599, %v2599
    %v2616 = vcombine.high %v2606, %v2606
    %v2617 = vcombine.high %v2613, %v2613
    %v2618 = vcombine.high %v51, %v51
    %v2620 = vunpack.c.l.s4 1966171168
    %v2621 = vunpack.c.0.s8 %v2620
    %v2622 = vlaneseq
    %v2623 = vshrl.u32 %v2622, 7
    %v2624 = vsub.s32 %v2621, %v2623
    %v2625 = vrot.slane %v51, %v2624
    %v2627 = vunpack.c.l.s4 1966171168
    %v2628 = vunpack.c.0.s8 %v2627
    %v2629 = vlaneseq
    %v2630 = vshrl.u32 %v2629, 7
    %v2631 = vsub.s32 %v2628, %v2630
    %v2632 = vrot.slane %v2618, %v2631
    %v2633 = vcombine.high %v2625, %v2625
    %v2634 = vcombine.high %v2632, %v2632
    %v2636 = vunpack.c.l.s4 1966171168
    %v2637 = vunpack.c.0.s8 %v2636
    %v2638 = vlaneseq
    %v2639 = vshrl.u32 %v2638, 7
    %v2640 = vsub.s32 %v2637, %v2639
    %v2641 = vrot.slane %v2625, %v2640
    %v2643 = vunpack.c.l.s4 1966171168
    %v2644 = vunpack.c.0.s8 %v2643
    %v2645 = vlaneseq
    %v2646 = vshrl.u32 %v2645, 7
    %v2647 = vsub.s32 %v2644, %v2646
    %v2648 = vrot.slane %v2632, %v2647
    %v2650 = vunpack.c.l.s4 1966171168
    %v2651 = vunpack.c.0.s8 %v2650
    %v2652 = vlaneseq
    %v2653 = vshrl.u32 %v2652, 7
    %v2654 = vsub.s32 %v2651, %v2653
    %v2655 = vrot.slane %v2633, %v2654
    %v2657 = vunpack.c.l.s4 1966171168
    %v2658 = vunpack.c.0.s8 %v2657
    %v2659 = vlaneseq
    %v2660 = vshrl.u32 %v2659, 7
    %v2661 = vsub.s32 %v2658, %v2660
    %v2662 = vrot.slane %v2634, %v2661
    %v2663 = vcombine.high %v2641, %v2641
    %v2664 = vcombine.high %v2648, %v2648
    %v2665 = vcombine.high %v2655, %v2655
    %v2666 = vcombine.high %v2662, %v2662
    %v2667 = vcombine.high %v52, %v52
    %v2669 = vunpack.c.l.s4 1966171168
    %v2670 = vunpack.c.0.s8 %v2669
    %v2671 = vlaneseq
    %v2672 = vshrl.u32 %v2671, 7
    %v2673 = vsub.s32 %v2670, %v2672
    %v2674 = vrot.slane %v52, %v2673
    %v2676 = vunpack.c.l.s4 1966171168
    %v2677 = vunpack.c.0.s8 %v2676
    %v2678 = vlaneseq
    %v2679 = vshrl.u32 %v2678, 7
    %v2680 = vsub.s32 %v2677, %v2679
    %v2681 = vrot.slane %v2667, %v2680
    %v2682 = vcombine.high %v2674, %v2674
    %v2683 = vcombine.high %v2681, %v2681
    %v2685 = vunpack.c.l.s4 1966171168
    %v2686 = vunpack.c.0.s8 %v2685
    %v2687 = vlaneseq
    %v2688 = vshrl.u32 %v2687, 7
    %v2689 = vsub.s32 %v2686, %v2688
    %v2690 = vrot.slane %v2674, %v2689
    %v2692 = vunpack.c.l.s4 1966171168
    %v2693 = vunpack.c.0.s8 %v2692
    %v2694 = vlaneseq
    %v2695 = vshrl.u32 %v2694, 7
    %v2696 = vsub.s32 %v2693, %v2695
    %v2697 = vrot.slane %v2681, %v2696
    %v2699 = vunpack.c.l.s4 1966171168
    %v2700 = vunpack.c.0.s8 %v2699
    %v2701 = vlaneseq
    %v2702 = vshrl.u32 %v2701, 7
    %v2703 = vsub.s32 %v2700, %v2702
    %v2704 = vrot.slane %v2682, %v2703
    %v2706 = vunpack.c.l.s4 1966171168
    %v2707 = vunpack.c.0.s8 %v2706
    %v2708 = vlaneseq
    %v2709 = vshrl.u32 %v2708, 7
    %v2710 = vsub.s32 %v2707, %v2709
    %v2711 = vrot.slane %v2683, %v2710
    %v2712 = vcombine.high %v2690, %v2690
    %v2713 = vcombine.high %v2697, %v2697
    %v2714 = vcombine.high %v2704, %v2704
    %v2715 = vcombine.high %v2711, %v2711
    %v2716 = vcombine.high %v53, %v53
    %v2718 = vunpack.c.l.s4 1966171168
    %v2719 = vunpack.c.0.s8 %v2718
    %v2720 = vlaneseq
    %v2721 = vshrl.u32 %v2720, 7
    %v2722 = vsub.s32 %v2719, %v2721
    %v2723 = vrot.slane %v53, %v2722
    %v2725 = vunpack.c.l.s4 1966171168
    %v2726 = vunpack.c.0.s8 %v2725
    %v2727 = vlaneseq
    %v2728 = vshrl.u32 %v2727, 7
    %v2729 = vsub.s32 %v2726, %v2728
    %v2730 = vrot.slane %v2716, %v2729
    %v2731 = vcombine.high %v2723, %v2723
    %v2732 = vcombine.high %v2730, %v2730
    %v2734 = vunpack.c.l.s4 1966171168
    %v2735 = vunpack.c.0.s8 %v2734
    %v2736 = vlaneseq
    %v2737 = vshrl.u32 %v2736, 7
    %v2738 = vsub.s32 %v2735, %v2737
    %v2739 = vrot.slane %v2723, %v2738
    %v2741 = vunpack.c.l.s4 1966171168
    %v2742 = vunpack.c.0.s8 %v2741
    %v2743 = vlaneseq
    %v2744 = vshrl.u32 %v2743, 7
    %v2745 = vsub.s32 %v2742, %v2744
    %v2746 = vrot.slane %v2730, %v2745
    %v2748 = vunpack.c.l.s4 1966171168
    %v2749 = vunpack.c.0.s8 %v2748
    %v2750 = vlaneseq
    %v2751 = vshrl.u32 %v2750, 7
    %v2752 = vsub.s32 %v2749, %v2751
    %v2753 = vrot.slane %v2731, %v2752
    %v2755 = vunpack.c.l.s4 1966171168
    %v2756 = vunpack.c.0.s8 %v2755
    %v2757 = vlaneseq
    %v2758 = vshrl.u32 %v2757, 7
    %v2759 = vsub.s32 %v2756, %v2758
    %v2760 = vrot.slane %v2732, %v2759
    %v2761 = vcombine.high %v2739, %v2739
    %v2762 = vcombine.high %v2746, %v2746
    %v2763 = vcombine.high %v2753, %v2753
    %v2764 = vcombine.high %v2760, %v2760
    %v2765 = vcombine.high %v54, %v54
    %v2767 = vunpack.c.l.s4 1966171168
    %v2768 = vunpack.c.0.s8 %v2767
    %v2769 = vlaneseq
    %v2770 = vshrl.u32 %v2769, 7
    %v2771 = vsub.s32 %v2768, %v2770
    %v2772 = vrot.slane %v54, %v2771
    %v2774 = vunpack.c.l.s4 1966171168
    %v2775 = vunpack.c.0.s8 %v2774
    %v2776 = vlaneseq
    %v2777 = vshrl.u32 %v2776, 7
    %v2778 = vsub.s32 %v2775, %v2777
    %v2779 = vrot.slane %v2765, %v2778
    %v2780 = vcombine.high %v2772, %v2772
    %v2781 = vcombine.high %v2779, %v2779
    %v2783 = vunpack.c.l.s4 1966171168
    %v2784 = vunpack.c.0.s8 %v2783
    %v2785 = vlaneseq
    %v2786 = vshrl.u32 %v2785, 7
    %v2787 = vsub.s32 %v2784, %v2786
    %v2788 = vrot.slane %v2772, %v2787
    %v2790 = vunpack.c.l.s4 1966171168
    %v2791 = vunpack.c.0.s8 %v2790
    %v2792 = vlaneseq
    %v2793 = vshrl.u32 %v2792, 7
    %v2794 = vsub.s32 %v2791, %v2793
    %v2795 = vrot.slane %v2779, %v2794
    %v2797 = vunpack.c.l.s4 1966171168
    %v2798 = vunpack.c.0.s8 %v2797
    %v2799 = vlaneseq
    %v2800 = vshrl.u32 %v2799, 7
    %v2801 = vsub.s32 %v2798, %v2800
    %v2802 = vrot.slane %v2780, %v2801
    %v2804 = vunpack.c.l.s4 1966171168
    %v2805 = vunpack.c.0.s8 %v2804
    %v2806 = vlaneseq
    %v2807 = vshrl.u32 %v2806, 7
    %v2808 = vsub.s32 %v2805, %v2807
    %v2809 = vrot.slane %v2781, %v2808
    %v2810 = vcombine.high %v2788, %v2788
    %v2811 = vcombine.high %v2795, %v2795
    %v2812 = vcombine.high %v2802, %v2802
    %v2813 = vcombine.high %v2809, %v2809
    %v2814 = vcombine.high %v55, %v55
    %v2816 = vunpack.c.l.s4 1966171168
    %v2817 = vunpack.c.0.s8 %v2816
    %v2818 = vlaneseq
    %v2819 = vshrl.u32 %v2818, 7
    %v2820 = vsub.s32 %v2817, %v2819
    %v2821 = vrot.slane %v55, %v2820
    %v2823 = vunpack.c.l.s4 1966171168
    %v2824 = vunpack.c.0.s8 %v2823
    %v2825 = vlaneseq
    %v2826 = vshrl.u32 %v2825, 7
    %v2827 = vsub.s32 %v2824, %v2826
    %v2828 = vrot.slane %v2814, %v2827
    %v2829 = vcombine.high %v2821, %v2821
    %v2830 = vcombine.high %v2828, %v2828
    %v2832 = vunpack.c.l.s4 1966171168
    %v2833 = vunpack.c.0.s8 %v2832
    %v2834 = vlaneseq
    %v2835 = vshrl.u32 %v2834, 7
    %v2836 = vsub.s32 %v2833, %v2835
    %v2837 = vrot.slane %v2821, %v2836
    %v2839 = vunpack.c.l.s4 1966171168
    %v2840 = vunpack.c.0.s8 %v2839
    %v2841 = vlaneseq
    %v2842 = vshrl.u32 %v2841, 7
    %v2843 = vsub.s32 %v2840, %v2842
    %v2844 = vrot.slane %v2828, %v2843
    %v2846 = vunpack.c.l.s4 1966171168
    %v2847 = vunpack.c.0.s8 %v2846
    %v2848 = vlaneseq
    %v2849 = vshrl.u32 %v2848, 7
    %v2850 = vsub.s32 %v2847, %v2849
    %v2851 = vrot.slane %v2829, %v2850
    %v2853 = vunpack.c.l.s4 1966171168
    %v2854 = vunpack.c.0.s8 %v2853
    %v2855 = vlaneseq
    %v2856 = vshrl.u32 %v2855, 7
    %v2857 = vsub.s32 %v2854, %v2856
    %v2858 = vrot.slane %v2830, %v2857
    %v2859 = vcombine.high %v2837, %v2837
    %v2860 = vcombine.high %v2844, %v2844
    %v2861 = vcombine.high %v2851, %v2851
    %v2862 = vcombine.high %v2858, %v2858
    %v2863 = vcombine.high %v56, %v56
    %v2865 = vunpack.c.l.s4 1966171168
    %v2866 = vunpack.c.0.s8 %v2865
    %v2867 = vlaneseq
    %v2868 = vshrl.u32 %v2867, 7
    %v2869 = vsub.s32 %v2866, %v2868
    %v2870 = vrot.slane %v56, %v2869
    %v2872 = vunpack.c.l.s4 1966171168
    %v2873 = vunpack.c.0.s8 %v2872
    %v2874 = vlaneseq
    %v2875 = vshrl.u32 %v2874, 7
    %v2876 = vsub.s32 %v2873, %v2875
    %v2877 = vrot.slane %v2863, %v2876
    %v2878 = vcombine.high %v2870, %v2870
    %v2879 = vcombine.high %v2877, %v2877
    %v2881 = vunpack.c.l.s4 1966171168
    %v2882 = vunpack.c.0.s8 %v2881
    %v2883 = vlaneseq
    %v2884 = vshrl.u32 %v2883, 7
    %v2885 = vsub.s32 %v2882, %v2884
    %v2886 = vrot.slane %v2870, %v2885
    %v2888 = vunpack.c.l.s4 1966171168
    %v2889 = vunpack.c.0.s8 %v2888
    %v2890 = vlaneseq
    %v2891 = vshrl.u32 %v2890, 7
    %v2892 = vsub.s32 %v2889, %v2891
    %v2893 = vrot.slane %v2877, %v2892
    %v2895 = vunpack.c.l.s4 1966171168
    %v2896 = vunpack.c.0.s8 %v2895
    %v2897 = vlaneseq
    %v2898 = vshrl.u32 %v2897, 7
    %v2899 = vsub.s32 %v2896, %v2898
    %v2900 = vrot.slane %v2878, %v2899
    %v2902 = vunpack.c.l.s4 1966171168
    %v2903 = vunpack.c.0.s8 %v2902
    %v2904 = vlaneseq
    %v2905 = vshrl.u32 %v2904, 7
    %v2906 = vsub.s32 %v2903, %v2905
    %v2907 = vrot.slane %v2879, %v2906
    %v2908 = vcombine.high %v2886, %v2886
    %v2909 = vcombine.high %v2893, %v2893
    %v2910 = vcombine.high %v2900, %v2900
    %v2911 = vcombine.high %v2907, %v2907
    %v5088 = vunpack.c.l.b16 %v57
    %v5089 = vunpack.c.l.b16 %v58
    %v5090 = vunpack.c.l.b16 %v59
    %v5091 = vunpack.c.l.b16 %v60
    %v5092 = vunpack.c.l.b16 %v61
    %v5093 = vunpack.c.l.b16 %v62
    %v5094 = vunpack.c.l.b16 %v63
    %v5095 = vunpack.c.l.b16 %v64
    %v5096 = vunpack.c.l.b16 %v65
    %v5097 = vunpack.c.l.b16 %v66
    %v5098 = vunpack.c.l.b16 %v67
    %v5099 = vunpack.c.l.b16 %v68
    %v5100 = vunpack.c.l.b16 %v69
    %v5101 = vunpack.c.l.b16 %v70
    %v5102 = vunpack.c.l.b16 %v71
    %v5103 = vunpack.c.l.b16 %v72
    %v5104 = vunpack.c.l.b16 %v73
    %v5105 = vunpack.c.l.b16 %v74
    %v5106 = vunpack.c.l.b16 %v75
    %v5107 = vunpack.c.l.b16 %v76
    %v5108 = vunpack.c.l.b16 %v77
    %v5109 = vunpack.c.l.b16 %v78
    %v5110 = vunpack.c.l.b16 %v79
    %v5111 = vunpack.c.l.b16 %v80
    %v5112 = vunpack.c.l.b16 %v81
    %v5113 = vunpack.c.l.b16 %v82
    %v5114 = vunpack.c.l.b16 %v83
    %v5115 = vunpack.c.l.b16 %v84
    %v5116 = vunpack.c.l.b16 %v85
    %v5117 = vunpack.c.l.b16 %v86
    %v5118 = vunpack.c.l.b16 %v87
    %v5119 = vunpack.c.l.b16 %v88
    %v5120 = vunpack.c.l.b16 %v89
    %v5121 = vunpack.c.l.b16 %v90
    %v5122 = vunpack.c.l.b16 %v91
    %v5123 = vunpack.c.l.b16 %v92
    %v5124 = vunpack.c.l.b16 %v93
    %v5125 = vunpack.c.l.b16 %v94
    %v5126 = vunpack.c.l.b16 %v95
    %v5127 = vunpack.c.l.b16 %v96
    %v5128 = vunpack.c.l.b16 %v97
    %v5129 = vunpack.c.l.b16 %v98
    %v5130 = vunpack.c.l.b16 %v99
    %v5131 = vunpack.c.l.b16 %v100
    %v5132 = vunpack.c.l.b16 %v101
    %v5133 = vunpack.c.l.b16 %v102
    %v5134 = vunpack.c.l.b16 %v103
    %v5135 = vunpack.c.l.b16 %v104
    %v5136 = vunpack.c.l.b16 %v105
    %v5137 = vunpack.c.l.b16 %v106
    %v5138 = vunpack.c.l.b16 %v107
    %v5139 = vunpack.c.l.b16 %v108
    %v5140 = vunpack.c.l.b16 %v109
    %v5141 = vunpack.c.l.b16 %v110
    %v5142 = vunpack.c.l.b16 %v111
    %v5143 = vunpack.c.l.b16 %v112
    %v5144 = vunpack.c.l.b16 %v113
    %v5145 = vunpack.c.l.b16 %v114
    %v5146 = vunpack.c.l.b16 %v115
    %v5147 = vunpack.c.l.b16 %v116
    %v5148 = vunpack.c.l.b16 %v117
    %v5149 = vunpack.c.l.b16 %v118
    %v5150 = vunpack.c.l.b16 %v119
    %v5151 = vunpack.c.l.b16 %v120
    %v5152 = vunpack.c.l.b16 %v121
    %v5153 = vunpack.c.l.b16 %v122
    %v5154 = vunpack.c.l.b16 %v123
    %v5155 = vunpack.c.l.b16 %v124
    %v5156 = vunpack.c.l.b16 %v125
    %v5157 = vunpack.c.l.b16 %v126
    %v5158 = vunpack.c.l.b16 %v127
    %v5159 = vunpack.c.l.b16 %v128
    %v5160 = vunpack.c.l.b16 %v129
    %v5161 = vunpack.c.l.b16 %v130
    %v5162 = vunpack.c.l.b16 %v131
    %v5163 = vunpack.c.l.b16 %v132
    %v5164 = vunpack.c.l.b16 %v133
    %v5165 = vunpack.c.l.b16 %v134
    %v5166 = vunpack.c.l.b16 %v135
    %v5167 = vunpack.c.l.b16 %v136
    %v5168 = vunpack.c.l.b16 %v137
    %v5169 = vunpack.c.l.b16 %v138
    %v5170 = vunpack.c.l.b16 %v139
    %v5171 = vunpack.c.l.b16 %v140
    %v5172 = vunpack.c.l.b16 %v141
    %v5173 = vunpack.c.l.b16 %v142
    %v5174 = vunpack.c.l.b16 %v143
    %v5175 = vunpack.c.l.b16 %v144
    %v5176 = vunpack.c.l.b16 %v145
    %v5177 = vunpack.c.l.b16 %v146
    %v5178 = vunpack.c.l.b16 %v147
    %v5179 = vunpack.c.l.b16 %v148
    %v5180 = vunpack.c.l.b16 %v149
    %v5181 = vunpack.c.l.b16 %v150
    %v5182 = vunpack.c.l.b16 %v151
    %v5183 = vunpack.c.l.b16 %v152
    %v5184 = vunpack.c.l.b16 %v153
    %v5185 = vunpack.c.l.b16 %v154
    %v5186 = vunpack.c.l.b16 %v155
    %v5187 = vunpack.c.l.b16 %v156
    %v5188 = vunpack.c.l.b16 %v157
    %v5189 = vunpack.c.l.b16 %v158
    %v5190 = vunpack.c.l.b16 %v159
    %v5191 = vunpack.c.l.b16 %v160
    %v5192 = vunpack.c.l.b16 %v161
    %v5193 = vunpack.c.l.b16 %v162
    %v5194 = vunpack.c.l.b16 %v163
    %v5195 = vunpack.c.l.b16 %v164
    %v5196 = vunpack.c.l.b16 %v165
    %v5197 = vunpack.c.l.b16 %v166
    %v5198 = vunpack.c.l.b16 %v167
    %v5199 = vunpack.c.l.b16 %v168
    %v5200 = vunpack.c.l.b16 %v169
    %v5201 = vunpack.c.l.b16 %v170
    %v5202 = vunpack.c.l.b16 %v171
    %v5203 = vunpack.c.l.b16 %v172
    %v5204 = vunpack.c.l.b16 %v173
    %v5205 = vunpack.c.l.b16 %v174
    %v5206 = vunpack.c.l.b16 %v175
    %v5207 = vunpack.c.l.b16 %v176
    %v5208 = vunpack.c.l.b16 %v177
    %v5209 = vunpack.c.l.b16 %v178
    %v5210 = vunpack.c.l.b16 %v179
    %v5211 = vunpack.c.l.b16 %v180
    %v5212 = vunpack.c.l.b16 %v181
    %v5213 = vunpack.c.l.b16 %v182
    %v5214 = vunpack.c.l.b16 %v183
    %v5215 = vunpack.c.l.b16 %v184
    %v5216 = vunpack.c.l.b16 %v185
    %v5217 = vunpack.c.l.b16 %v186
    %v5218 = vunpack.c.l.b16 %v187
    %v5219 = vunpack.c.l.b16 %v188
    %v5220 = vunpack.c.l.b16 %v189
    %v5221 = vunpack.c.l.b16 %v190
    %v5222 = vunpack.c.l.b16 %v191
    %v5223 = vunpack.c.l.b16 %v192
    %v5224 = vunpack.c.l.b16 %v193
    %v5225 = vunpack.c.l.b16 %v194
    %v5226 = vunpack.c.l.b16 %v195
    %v5227 = vunpack.c.l.b16 %v196
    %v5228 = vunpack.c.l.b16 %v197
    %v5229 = vunpack.c.l.b16 %v198
    %v5230 = vunpack.c.l.b16 %v199
    %v5231 = vunpack.c.l.b16 %v200
    %v5232 = vunpack.c.l.b16 %v201
    %v5233 = vunpack.c.l.b16 %v202
    %v5234 = vunpack.c.l.b16 %v203
    %v5235 = vunpack.c.l.b16 %v204
    %v5236 = vunpack.c.l.b16 %v205
    %v5237 = vunpack.c.l.b16 %v206
    %v5238 = vunpack.c.l.b16 %v207
    %v5239 = vunpack.c.l.b16 %v208
    %v5240 = vunpack.c.l.b16 %v209
    %v5241 = vunpack.c.l.b16 %v210
    %v5242 = vunpack.c.l.b16 %v211
    %v5243 = vunpack.c.l.b16 %v212
    %v5244 = vunpack.c.l.b16 %v213
    %v5245 = vunpack.c.l.b16 %v214
    %v5246 = vunpack.c.l.b16 %v215
    %v5247 = vunpack.c.l.b16 %v216
    %v5248 = vunpack.c.l.b16 %v217
    %v5249 = vunpack.c.l.b16 %v218
    %v5250 = vunpack.c.l.b16 %v219
    %v5251 = vunpack.c.l.b16 %v220
    %v5252 = vunpack.c.l.b16 %v221
    %v5253 = vunpack.c.l.b16 %v222
    %v5254 = vunpack.c.l.b16 %v223
    %v5255 = vunpack.c.l.b16 %v224
    %v5256 = vunpack.c.l.b16 %v225
    %v5257 = vunpack.c.l.b16 %v226
    %v5258 = vunpack.c.l.b16 %v227
    %v5259 = vunpack.c.l.b16 %v228
    %v5260 = vunpack.c.l.b16 %v229
    %v5261 = vunpack.c.l.b16 %v230
    %v5262 = vunpack.c.l.b16 %v231
    %v5263 = vunpack.c.l.b16 %v232
    %v5264 = vunpack.c.l.b16 %v233
    %v5265 = vunpack.c.l.b16 %v234
    %v5266 = vunpack.c.l.b16 %v235
    %v5267 = vunpack.c.l.b16 %v236
    %v5268 = vunpack.c.l.b16 %v237
    %v5269 = vunpack.c.l.b16 %v238
    %v5270 = vunpack.c.l.b16 %v239
    %v5271 = vunpack.c.l.b16 %v240
    %v5272 = vunpack.c.l.b16 %v241
    %v5273 = vunpack.c.l.b16 %v242
    %v5274 = vunpack.c.l.b16 %v243
    %v5275 = vunpack.c.l.b16 %v244
    %v5276 = vunpack.c.l.b16 %v245
    %v5277 = vunpack.c.l.b16 %v246
    %v5278 = vunpack.c.l.b16 %v247
    %v5279 = vunpack.c.l.b16 %v248
    %v5280 = vunpack.c.l.b16 %v249
    %v5281 = vunpack.c.l.b16 %v250
    %v5282 = vunpack.c.l.b16 %v251
    %v5283 = vunpack.c.l.b16 %v252
    %v5284 = vunpack.c.l.b16 %v253
    %v5285 = vunpack.c.l.b16 %v254
    %v5286 = vunpack.c.l.b16 %v255
    %v5287 = vunpack.c.l.b16 %v256
    %v5288 = vunpack.c.l.b16 %v257
    %v5289 = vunpack.c.l.b16 %v258
    %v5290 = vunpack.c.l.b16 %v259
    %v5291 = vunpack.c.l.b16 %v260
    %v5292 = vunpack.c.l.b16 %v261
    %v5293 = vunpack.c.l.b16 %v262
    %v5294 = vunpack.c.l.b16 %v263
    %v5295 = vunpack.c.l.b16 %v264
    %v5296 = vunpack.c.l.b16 %v265
    %v5297 = vunpack.c.l.b16 %v266
    %v5298 = vunpack.c.l.b16 %v267
    %v5299 = vunpack.c.l.b16 %v268
    %v5300 = vunpack.c.l.b16 %v269
    %v5301 = vunpack.c.l.b16 %v270
    %v5302 = vunpack.c.l.b16 %v271
    %v5303 = vunpack.c.l.b16 %v272
    %v5304 = vunpack.c.l.b16 %v273
    %v5305 = vunpack.c.l.b16 %v274
    %v5306 = vunpack.c.l.b16 %v275
    %v5307 = vunpack.c.l.b16 %v276
    %v5308 = vunpack.c.l.b16 %v277
    %v5309 = vunpack.c.l.b16 %v278
    %v5310 = vunpack.c.l.b16 %v279
    %v5311 = vunpack.c.l.b16 %v280
    %v5312 = vunpack.c.l.b16 %v281
    %v5313 = vunpack.c.l.b16 %v282
    %v5314 = vunpack.c.l.b16 %v283
    %v5315 = vunpack.c.l.b16 %v284
    %v5316 = vunpack.c.l.b16 %v285
    %v5317 = vunpack.c.l.b16 %v286
    %v5318 = vunpack.c.l.b16 %v287
    %v5319 = vunpack.c.l.b16 %v288
    %v5320 = vunpack.c.l.b16 %v289
    %v5321 = vunpack.c.l.b16 %v290
    %v5322 = vunpack.c.l.b16 %v291
    %v5323 = vunpack.c.l.b16 %v292
    %v5324 = vunpack.c.l.b16 %v293
    %v5325 = vunpack.c.l.b16 %v294
    %v5326 = vunpack.c.l.b16 %v295
    %v5327 = vunpack.c.l.b16 %v296
    %v5328 = vunpack.c.l.b16 %v297
    %v5329 = vunpack.c.l.b16 %v298
    %v5330 = vunpack.c.l.b16 %v299
    %v5331 = vunpack.c.l.b16 %v300
    %v5332 = vunpack.c.l.b16 %v301
    %v5333 = vunpack.c.l.b16 %v302
    %v5334 = vunpack.c.l.b16 %v303
    %v5335 = vunpack.c.l.b16 %v304
    %v5336 = vunpack.c.l.b16 %v305
    %v5337 = vunpack.c.l.b16 %v306
    %v5338 = vunpack.c.l.b16 %v307
    %v5339 = vunpack.c.l.b16 %v308
    %v5340 = vunpack.c.l.b16 %v309
    %v5341 = vunpack.c.l.b16 %v310
    %v5342 = vunpack.c.l.b16 %v311
    %v5343 = vunpack.c.l.b16 %v312
    %v5344 = vunpack.c.l.b16 %v313
    %v5345 = vunpack.c.l.b16 %v314
    %v5346 = vunpack.c.l.b16 %v315
    %v5347 = vunpack.c.l.b16 %v316
    %v5348 = vunpack.c.l.b16 %v317
    %v5349 = vunpack.c.l.b16 %v318
    %v5350 = vunpack.c.l.b16 %v319
    %v5351 = vunpack.c.l.b16 %v320
    %v5352 = vunpack.c.l.b16 %v321
    %v5353 = vunpack.c.l.b16 %v322
    %v5354 = vunpack.c.l.b16 %v323
    %v5355 = vunpack.c.l.b16 %v324
    %v5356 = vunpack.c.l.b16 %v325
    %v5357 = vunpack.c.l.b16 %v326
    %v5358 = vunpack.c.l.b16 %v327
    %v5359 = vunpack.c.l.b16 %v328
    %v5360 = vunpack.c.l.b16 %v329
    %v5361 = vunpack.c.l.b16 %v330
    %v5362 = vunpack.c.l.b16 %v331
    %v5363 = vunpack.c.l.b16 %v332
    %v5364 = vunpack.c.l.b16 %v333
    %v5365 = vunpack.c.l.b16 %v334
    %v5366 = vunpack.c.l.b16 %v335
    %v5367 = vunpack.c.l.b16 %v336
    %v5368 = vunpack.c.l.b16 %v337
    %v5369 = vunpack.c.l.b16 %v338
    %v5370 = vunpack.c.l.b16 %v339
    %v5371 = vunpack.c.l.b16 %v340
    %v5372 = vunpack.c.l.b16 %v341
    %v5373 = vunpack.c.l.b16 %v342
    %v5374 = vunpack.c.l.b16 %v343
    %v5375 = vunpack.c.l.b16 %v344
    %v5376 = vunpack.c.l.b16 %v345
    %v5377 = vunpack.c.l.b16 %v346
    %v5378 = vunpack.c.l.b16 %v347
    %v5379 = vunpack.c.l.b16 %v348
    %v5380 = vunpack.c.l.b16 %v349
    %v5381 = vunpack.c.l.b16 %v350
    %v5382 = vunpack.c.l.b16 %v351
    %v5383 = vunpack.c.l.b16 %v352
    %v5384 = vunpack.c.l.b16 %v353
    %v5385 = vunpack.c.l.b16 %v354
    %v5386 = vunpack.c.l.b16 %v355
    %v5387 = vunpack.c.l.b16 %v356
    %v5388 = vunpack.c.l.b16 %v357
    %v5389 = vunpack.c.l.b16 %v358
    %v5390 = vunpack.c.l.b16 %v359
    %v5391 = vunpack.c.l.b16 %v360
    %v5392 = vunpack.c.l.b16 %v361
    %v5393 = vunpack.c.l.b16 %v362
    %v5394 = vunpack.c.l.b16 %v363
    %v5395 = vunpack.c.l.b16 %v364
    %v5396 = vunpack.c.l.b16 %v365
    %v5397 = vunpack.c.l.b16 %v366
    %v5398 = vunpack.c.l.b16 %v367
    %v5399 = vunpack.c.l.b16 %v368
    %v5400 = vunpack.c.l.b16 %v369
    %v5401 = vunpack.c.l.b16 %v370
    %v5402 = vunpack.c.l.b16 %v371
    %v5403 = vunpack.c.l.b16 %v372
    %v5404 = vunpack.c.l.b16 %v373
    %v5405 = vunpack.c.l.b16 %v374
    %v5406 = vunpack.c.l.b16 %v375
    %v5407 = vunpack.c.l.b16 %v376
    %v5408 = vunpack.c.l.b16 %v377
    %v5409 = vunpack.c.l.b16 %v378
    %v5410 = vunpack.c.l.b16 %v379
    %v5411 = vunpack.c.l.b16 %v380
    %v5412 = vunpack.c.l.b16 %v381
    %v5413 = vunpack.c.l.b16 %v382
    %v5414 = vunpack.c.l.b16 %v383
    %v5415 = vunpack.c.l.b16 %v384
    %v5416 = vunpack.c.l.b16 %v385
    %v5417 = vunpack.c.l.b16 %v386
    %v5418 = vunpack.c.l.b16 %v387
    %v5419 = vunpack.c.l.b16 %v388
    %v5420 = vunpack.c.l.b16 %v389
    %v5421 = vunpack.c.l.b16 %v390
    %v5422 = vunpack.c.l.b16 %v391
    %v5423 = vunpack.c.l.b16 %v392
    %v5424 = vunpack.c.l.b16 %v393
    %v5425 = vunpack.c.l.b16 %v394
    %v5426 = vunpack.c.l.b16 %v395
    %v5427 = vunpack.c.l.b16 %v396
    %v5428 = vunpack.c.l.b16 %v397
    %v5429 = vunpack.c.l.b16 %v398
    %v5430 = vunpack.c.l.b16 %v399
    %v5431 = vunpack.c.l.b16 %v400
    %v5432 = vunpack.c.l.b16 %v401
    %v5433 = vunpack.c.l.b16 %v402
    %v5434 = vunpack.c.l.b16 %v403
    %v5435 = vunpack.c.l.b16 %v404
    %v5436 = vunpack.c.l.b16 %v405
    %v5437 = vunpack.c.l.b16 %v406
    %v5438 = vunpack.c.l.b16 %v407
    %v5439 = vunpack.c.l.b16 %v408
    %v5440 = vunpack.c.l.b16 %v409
    %v5441 = vunpack.c.l.b16 %v410
    %v5442 = vunpack.c.l.b16 %v411
    %v5443 = vunpack.c.l.b16 %v412
    %v5444 = vunpack.c.l.b16 %v413
    %v5445 = vunpack.c.l.b16 %v414
    %v5446 = vunpack.c.l.b16 %v415
    %v5447 = vunpack.c.l.b16 %v416
    %v5448 = vunpack.c.l.b16 %v417
    %v5449 = vunpack.c.l.b16 %v418
    %v5450 = vunpack.c.l.b16 %v419
    %v5451 = vunpack.c.l.b16 %v420
    %v5452 = vunpack.c.l.b16 %v421
    %v5453 = vunpack.c.l.b16 %v422
    %v5454 = vunpack.c.l.b16 %v423
    %v5455 = vunpack.c.l.b16 %v424
    %v5456 = vunpack.c.l.b16 %v425
    %v5457 = vunpack.c.l.b16 %v426
    %v5458 = vunpack.c.l.b16 %v427
    %v5459 = vunpack.c.l.b16 %v428
    %v5460 = vunpack.c.l.b16 %v429
    %v5461 = vunpack.c.l.b16 %v430
    %v5462 = vunpack.c.l.b16 %v431
    %v5463 = vunpack.c.l.b16 %v432
    %v5464 = vunpack.c.l.b16 %v433
    %v5465 = vunpack.c.l.b16 %v434
    %v5466 = vunpack.c.l.b16 %v435
    %v5467 = vunpack.c.l.b16 %v436
    %v5468 = vunpack.c.l.b16 %v437
    %v5469 = vunpack.c.l.b16 %v438
    %v5470 = vunpack.c.l.b16 %v439
    %v5471 = vunpack.c.l.b16 %v440
    %v5472 = vunpack.c.l.b16 %v441
    %v5473 = vunpack.c.l.b16 %v442
    %v5474 = vunpack.c.l.b16 %v443
    %v5475 = vunpack.c.l.b16 %v444
    %v5476 = vunpack.c.l.b16 %v445
    %v5477 = vunpack.c.l.b16 %v446
    %v5478 = vunpack.c.l.b16 %v447
    %v5479 = vunpack.c.l.b16 %v448
    %v5480 = vunpack.c.l.b16 %v449
    %v5481 = vunpack.c.l.b16 %v450
    %v5482 = vunpack.c.l.b16 %v451
    %v5483 = vunpack.c.l.b16 %v452
    %v5484 = vunpack.c.l.b16 %v453
    %v5485 = vunpack.c.l.b16 %v454
    %v5486 = vunpack.c.l.b16 %v455
    %v5487 = vunpack.c.l.b16 %v456
    %v5488 = vunpack.c.l.b16 %v457
    %v5489 = vunpack.c.l.b16 %v458
    %v5490 = vunpack.c.l.b16 %v459
    %v5491 = vunpack.c.l.b16 %v460
    %v5492 = vunpack.c.l.b16 %v461
    %v5493 = vunpack.c.l.b16 %v462
    %v5494 = vunpack.c.l.b16 %v463
    %v5495 = vunpack.c.l.b16 %v464
    %v5496 = vunpack.c.l.b16 %v465
    %v5497 = vunpack.c.l.b16 %v466
    %v5498 = vunpack.c.l.b16 %v467
    %v5499 = vunpack.c.l.b16 %v468
    %v5500 = vunpack.c.l.b16 %v469
    %v5501 = vunpack.c.l.b16 %v470
    %v5502 = vunpack.c.l.b16 %v471
    %v5503 = vunpack.c.l.b16 %v472
    %v5504 = vunpack.c.l.b16 %v473
    %v5505 = vunpack.c.l.b16 %v474
    %v5506 = vunpack.c.l.b16 %v475
    %v5507 = vunpack.c.l.b16 %v476
    %v5508 = vunpack.c.l.b16 %v477
    %v5509 = vunpack.c.l.b16 %v478
    %v5510 = vunpack.c.l.b16 %v479
    %v5511 = vunpack.c.l.b16 %v480
    %v5512 = vunpack.c.l.b16 %v481
    %v5513 = vunpack.c.l.b16 %v482
    %v5514 = vunpack.c.l.b16 %v483
    %v5515 = vunpack.c.l.b16 %v484
    %v5516 = vunpack.c.l.b16 %v485
    %v5517 = vunpack.c.l.b16 %v486
    %v5518 = vunpack.c.l.b16 %v487
    %v5519 = vunpack.c.l.b16 %v488
    %v5520 = vunpack.c.l.b16 %v489
    %v5521 = vunpack.c.l.b16 %v490
    %v5522 = vunpack.c.l.b16 %v491
    %v5523 = vunpack.c.l.b16 %v492
    %v5524 = vunpack.c.l.b16 %v493
    %v5525 = vunpack.c.l.b16 %v494
    %v5526 = vunpack.c.l.b16 %v495
    %v5527 = vunpack.c.l.b16 %v496
    %v5528 = vunpack.c.l.b16 %v497
    %v5529 = vunpack.c.l.b16 %v498
    %v5530 = vunpack.c.l.b16 %v499
    %v5531 = vunpack.c.l.b16 %v500
    %v5532 = vunpack.c.l.b16 %v501
    %v5533 = vunpack.c.l.b16 %v502
    %v5534 = vunpack.c.l.b16 %v503
    %v5535 = vunpack.c.l.b16 %v504
    %v5536 = vunpack.c.l.b16 %v505
    %v5537 = vunpack.c.l.b16 %v506
    %v5538 = vunpack.c.l.b16 %v507
    %v5539 = vunpack.c.l.b16 %v508
    %v5540 = vunpack.c.l.b16 %v509
    %v5541 = vunpack.c.l.b16 %v510
    %v5542 = vunpack.c.l.b16 %v511
    %v5543 = vunpack.c.l.b16 %v512
    %v5544 = vunpack.c.l.b16 %v513
    %v5545 = vunpack.c.l.b16 %v514
    %v5546 = vunpack.c.l.b16 %v515
    %v5547 = vunpack.c.l.b16 %v516
    %v5548 = vunpack.c.l.b16 %v517
    %v5549 = vunpack.c.l.b16 %v518
    %v5550 = vunpack.c.l.b16 %v519
    %v5551 = vunpack.c.l.b16 %v520
    %v5552 = vunpack.c.l.b16 %v521
    %v5553 = vunpack.c.l.b16 %v522
    %v5554 = vunpack.c.l.b16 %v523
    %v5555 = vunpack.c.l.b16 %v524
    %v5556 = vunpack.c.l.b16 %v525
    %v5557 = vunpack.c.l.b16 %v526
    %v5558 = vunpack.c.l.b16 %v527
    %v5559 = vunpack.c.l.b16 %v528
    %v5560 = vunpack.c.l.b16 %v529
    %v5561 = vunpack.c.l.b16 %v530
    %v5562 = vunpack.c.l.b16 %v531
    %v5563 = vunpack.c.l.b16 %v532
    %v5564 = vunpack.c.l.b16 %v533
    %v5565 = vunpack.c.l.b16 %v534
    %v5566 = vunpack.c.l.b16 %v535
    %v5567 = vunpack.c.l.b16 %v536
    %v5568 = vunpack.c.l.b16 %v537
    %v5569 = vunpack.c.l.b16 %v538
    %v5570 = vunpack.c.l.b16 %v539
    %v5571 = vunpack.c.l.b16 %v540
    %v5572 = vunpack.c.l.b16 %v541
    %v5573 = vunpack.c.l.b16 %v542
    %v5574 = vunpack.c.l.b16 %v543
    %v5575 = vunpack.c.l.b16 %v544
    %v5576 = vunpack.c.l.b16 %v545
    %v5577 = vunpack.c.l.b16 %v546
    %v5578 = vunpack.c.l.b16 %v547
    %v5579 = vunpack.c.l.b16 %v548
    %v5580 = vunpack.c.l.b16 %v549
    %v5581 = vunpack.c.l.b16 %v550
    %v5582 = vunpack.c.l.b16 %v551
    %v5583 = vunpack.c.l.b16 %v552
    %v5584 = vunpack.c.l.b16 %v553
    %v5585 = vunpack.c.l.b16 %v554
    %v5586 = vunpack.c.l.b16 %v555
    %v5587 = vunpack.c.l.b16 %v556
    %v5588 = vunpack.c.l.b16 %v557
    %v5589 = vunpack.c.l.b16 %v558
    %v5590 = vunpack.c.l.b16 %v559
    %v5591 = vunpack.c.l.b16 %v560
    %v5592 = vunpack.c.l.b16 %v561
    %v5593 = vunpack.c.l.b16 %v562
    %v5594 = vunpack.c.l.b16 %v563
    %v5595 = vunpack.c.l.b16 %v564
    %v5596 = vunpack.c.l.b16 %v565
    %v5597 = vunpack.c.l.b16 %v566
    %v5598 = vunpack.c.l.b16 %v567
    %v5599 = vunpack.c.l.b16 %v568
    %v5600 = vunpack.c.l.b16 %v569
    %v5601 = vunpack.c.l.b16 %v570
    %v5602 = vunpack.c.l.b16 %v571
    %v5603 = vunpack.c.l.b16 %v572
    %v5604 = vunpack.c.l.b16 %v573
    %v5605 = vunpack.c.l.b16 %v574
    %v5606 = vunpack.c.l.b16 %v575
    %v5607 = vunpack.c.l.b16 %v576
    %v5608 = vunpack.c.l.b16 %v577
    %v5609 = vunpack.c.l.b16 %v578
    %v5610 = vunpack.c.l.b16 %v579
    %v5611 = vunpack.c.l.b16 %v580
    %v5612 = vunpack.c.l.b16 %v581
    %v5613 = vunpack.c.l.b16 %v582
    %v5614 = vunpack.c.l.b16 %v583
    %v5615 = vunpack.c.l.b16 %v584
    %v5616 = vunpack.c.l.b16 %v585
    %v5617 = vunpack.c.l.b16 %v586
    %v5618 = vunpack.c.l.b16 %v587
    %v5619 = vunpack.c.l.b16 %v588
    %v5620 = vunpack.c.l.b16 %v589
    %v5621 = vunpack.c.l.b16 %v590
    %v5622 = vunpack.c.l.b16 %v591
    %v5623 = vunpack.c.l.b16 %v592
    %v5624 = vunpack.c.l.b16 %v593
    %v5625 = vunpack.c.l.b16 %v594
    %v5626 = vunpack.c.l.b16 %v595
    %v5627 = vunpack.c.l.b16 %v596
    %v5628 = vunpack.c.l.b16 %v597
    %v5629 = vunpack.c.l.b16 %v598
    %v5630 = vunpack.c.l.b16 %v599
    %v5631 = vunpack.c.l.b16 %v600
    %v5632 = vunpack.c.l.b16 %v601
    %v5633 = vunpack.c.l.b16 %v602
    %v5634 = vunpack.c.l.b16 %v603
    %v5635 = vunpack.c.l.b16 %v604
    %v5636 = vunpack.c.l.b16 %v605
    %v5637 = vunpack.c.l.b16 %v606
    %v5638 = vunpack.c.l.b16 %v607
    %v5639 = vunpack.c.l.b16 %v608
    %v5640 = vunpack.c.l.b16 %v609
    %v5641 = vunpack.c.l.b16 %v610
    %v5642 = vunpack.c.l.b16 %v611
    %v5643 = vunpack.c.l.b16 %v612
    %v5644 = vunpack.c.l.b16 %v613
    %v5645 = vunpack.c.l.b16 %v614
    %v5646 = vunpack.c.l.b16 %v615
    %v5647 = vunpack.c.l.b16 %v616
    %v5648 = vunpack.c.l.b16 %v617
    %v5649 = vunpack.c.l.b16 %v618
    %v5650 = vunpack.c.l.b16 %v619
    %v5651 = vunpack.c.l.b16 %v620
    %v5652 = vunpack.c.l.b16 %v621
    %v5653 = vunpack.c.l.b16 %v622
    %v5654 = vunpack.c.l.b16 %v623
    %v5655 = vunpack.c.l.b16 %v624
    %v5656 = vunpack.c.l.b16 %v625
    %v5657 = vunpack.c.l.b16 %v626
    %v5658 = vunpack.c.l.b16 %v627
    %v5659 = vunpack.c.l.b16 %v628
    %v5660 = vunpack.c.l.b16 %v629
    %v5661 = vunpack.c.l.b16 %v630
    %v5662 = vunpack.c.l.b16 %v631
    %v5663 = vunpack.c.l.b16 %v632
    %v5664 = vunpack.c.l.b16 %v633
    %v5665 = vunpack.c.l.b16 %v634
    %v5666 = vunpack.c.l.b16 %v635
    %v5667 = vunpack.c.l.b16 %v636
    %v5668 = vunpack.c.l.b16 %v637
    %v5669 = vunpack.c.l.b16 %v638
    %v5670 = vunpack.c.l.b16 %v639
    %v5671 = vunpack.c.l.b16 %v640
    %v5672 = vunpack.c.l.b16 %v641
    %v5673 = vunpack.c.l.b16 %v642
    %v5674 = vunpack.c.l.b16 %v643
    %v5675 = vunpack.c.l.b16 %v644
    %v5676 = vunpack.c.l.b16 %v645
    %v5677 = vunpack.c.l.b16 %v646
    %v5678 = vunpack.c.l.b16 %v647
    %v5679 = vunpack.c.l.b16 %v648
    %v5680 = vunpack.c.l.b16 %v649
    %v5681 = vunpack.c.l.b16 %v650
    %v5682 = vunpack.c.l.b16 %v651
    %v5683 = vunpack.c.l.b16 %v652
    %v5684 = vunpack.c.l.b16 %v653
    %v5685 = vunpack.c.l.b16 %v654
    %v5686 = vunpack.c.l.b16 %v655
    %v5687 = vunpack.c.l.b16 %v656
    %v5688 = vunpack.c.l.b16 %v657
    %v5689 = vunpack.c.l.b16 %v658
    %v5690 = vunpack.c.l.b16 %v659
    %v5691 = vunpack.c.l.b16 %v660
    %v5692 = vunpack.c.l.b16 %v661
    %v5693 = vunpack.c.l.b16 %v662
    %v5694 = vunpack.c.l.b16 %v663
    %v5695 = vunpack.c.l.b16 %v664
    %v5696 = vunpack.c.l.b16 %v665
    %v5697 = vunpack.c.l.b16 %v666
    %v5698 = vunpack.c.l.b16 %v667
    %v5699 = vunpack.c.l.b16 %v668
    %v5700 = vunpack.c.l.b16 %v669
    %v5701 = vunpack.c.l.b16 %v670
    %v5702 = vunpack.c.l.b16 %v671
    %v5703 = vunpack.c.l.b16 %v672
    %v5704 = vunpack.c.l.b16 %v673
    %v5705 = vunpack.c.l.b16 %v674
    %v5706 = vunpack.c.l.b16 %v675
    %v5707 = vunpack.c.l.b16 %v676
    %v5708 = vunpack.c.l.b16 %v677
    %v5709 = vunpack.c.l.b16 %v678
    %v5710 = vunpack.c.l.b16 %v679
    %v5711 = vunpack.c.l.b16 %v680
    %v5712 = vunpack.c.l.b16 %v681
    %v5713 = vunpack.c.l.b16 %v682
    %v5714 = vunpack.c.l.b16 %v683
    %v5715 = vunpack.c.l.b16 %v684
    %v5716 = vunpack.c.l.b16 %v685
    %v5717 = vunpack.c.l.b16 %v686
    %v5718 = vunpack.c.l.b16 %v687
    %v5719 = vunpack.c.l.b16 %v688
    %v5720 = vunpack.c.l.b16 %v689
    %v5721 = vunpack.c.l.b16 %v690
    %v5722 = vunpack.c.l.b16 %v691
    %v5723 = vunpack.c.l.b16 %v692
    %v5724 = vunpack.c.l.b16 %v693
    %v5725 = vunpack.c.l.b16 %v694
    %v5726 = vunpack.c.l.b16 %v695
    %v5727 = vunpack.c.l.b16 %v696
    %v5728 = vunpack.c.l.b16 %v697
    %v5729 = vunpack.c.l.b16 %v698
    %v5730 = vunpack.c.l.b16 %v699
    %v5731 = vunpack.c.l.b16 %v700
    %v5732 = vunpack.c.l.b16 %v701
    %v5733 = vunpack.c.l.b16 %v702
    %v5734 = vunpack.c.l.b16 %v703
    %v5735 = vunpack.c.l.b16 %v704
    %v5736 = vunpack.c.l.b16 %v705
    %v5737 = vunpack.c.l.b16 %v706
    %v5738 = vunpack.c.l.b16 %v707
    %v5739 = vunpack.c.l.b16 %v708
    %v5740 = vunpack.c.l.b16 %v709
    %v5741 = vunpack.c.l.b16 %v710
    %v5742 = vunpack.c.l.b16 %v711
    %v5743 = vunpack.c.l.b16 %v712
    %v5744 = vunpack.c.l.b16 %v713
    %v5745 = vunpack.c.l.b16 %v714
    %v5746 = vunpack.c.l.b16 %v715
    %v5747 = vunpack.c.l.b16 %v716
    %v5748 = vunpack.c.l.b16 %v717
    %v5749 = vunpack.c.l.b16 %v718
    %v5750 = vunpack.c.l.b16 %v719
    %v5751 = vunpack.c.l.b16 %v720
    %v5752 = vunpack.c.l.b16 %v721
    %v5753 = vunpack.c.l.b16 %v722
    %v5754 = vunpack.c.l.b16 %v723
    %v5755 = vunpack.c.l.b16 %v724
    %v5756 = vunpack.c.l.b16 %v725
    %v5757 = vunpack.c.l.b16 %v726
    %v5758 = vunpack.c.l.b16 %v727
    %v5759 = vunpack.c.l.b16 %v728
    %v5760 = vunpack.c.l.b16 %v729
    %v5761 = vunpack.c.l.b16 %v730
    %v5762 = vunpack.c.l.b16 %v731
    %v5763 = vunpack.c.l.b16 %v732
    %v5764 = vunpack.c.l.b16 %v733
    %v5765 = vunpack.c.l.b16 %v734
    %v5766 = vunpack.c.l.b16 %v735
    %v5767 = vunpack.c.l.b16 %v736
    %v5768 = vunpack.c.l.b16 %v737
    %v5769 = vunpack.c.l.b16 %v738
    %v5770 = vunpack.c.l.b16 %v739
    %v5771 = vunpack.c.l.b16 %v740
    %v5772 = vunpack.c.l.b16 %v741
    %v5773 = vunpack.c.l.b16 %v742
    %v5774 = vunpack.c.l.b16 %v743
    %v5775 = vunpack.c.l.b16 %v744
    %v5776 = vunpack.c.l.b16 %v745
    %v5777 = vunpack.c.l.b16 %v746
    %v5778 = vunpack.c.l.b16 %v747
    %v5779 = vunpack.c.l.b16 %v748
    %v5780 = vunpack.c.l.b16 %v749
    %v5781 = vunpack.c.l.b16 %v750
    %v5782 = vunpack.c.l.b16 %v751
    %v5783 = vunpack.c.l.b16 %v752
    %v5784 = vunpack.c.l.b16 %v753
    %v5785 = vunpack.c.l.b16 %v754
    %v5786 = vunpack.c.l.b16 %v755
    %v5787 = vunpack.c.l.b16 %v756
    %v5788 = vunpack.c.l.b16 %v757
    %v5789 = vunpack.c.l.b16 %v758
    %v5790 = vunpack.c.l.b16 %v759
    %v5791 = vunpack.c.l.b16 %v760
    %v5792 = vunpack.c.l.b16 %v761
    %v5793 = vunpack.c.l.b16 %v762
    %v5794 = vunpack.c.l.b16 %v763
    %v5795 = vunpack.c.l.b16 %v764
    %v5796 = vunpack.c.l.b16 %v765
    %v5797 = vunpack.c.l.b16 %v766
    %v5798 = vunpack.c.l.b16 %v767
    %v5799 = vunpack.c.l.b16 %v768
    %v5800 = vunpack.c.l.b16 %v769
    %v5801 = vunpack.c.l.b16 %v770
    %v5802 = vunpack.c.l.b16 %v771
    %v5803 = vunpack.c.l.b16 %v772
    %v5804 = vunpack.c.l.b16 %v773
    %v5805 = vunpack.c.l.b16 %v774
    %v5806 = vunpack.c.l.b16 %v775
    %v5807 = vunpack.c.l.b16 %v776
    %v5808 = vunpack.c.l.b16 %v777
    %v5809 = vunpack.c.l.b16 %v778
    %v5810 = vunpack.c.l.b16 %v779
    %v5811 = vunpack.c.l.b16 %v780
    %v5812 = vunpack.c.l.b16 %v781
    %v5813 = vunpack.c.l.b16 %v782
    %v5814 = vunpack.c.l.b16 %v783
    %v5815 = vunpack.c.l.b16 %v784
    %v5816 = vunpack.c.l.b16 %v785
    %v5817 = vunpack.c.l.b16 %v786
    %v5818 = vunpack.c.l.b16 %v787
    %v5819 = vunpack.c.l.b16 %v788
    %v5820 = vunpack.c.l.b16 %v789
    %v5821 = vunpack.c.l.b16 %v790
    %v5822 = vunpack.c.l.b16 %v791
    %v5823 = vunpack.c.l.b16 %v792
    %v5824 = vunpack.c.l.b16 %v793
    %v5825 = vunpack.c.l.b16 %v794
    %v5826 = vunpack.c.l.b16 %v795
    %v5827 = vunpack.c.l.b16 %v796
    %v5828 = vunpack.c.l.b16 %v797
    %v5829 = vunpack.c.l.b16 %v798
    %v5830 = vunpack.c.l.b16 %v799
    %v5831 = vunpack.c.l.b16 %v800
    %v5832 = vunpack.c.l.b16 %v801
    %v5833 = vunpack.c.l.b16 %v802
    %v5834 = vunpack.c.l.b16 %v803
    %v5835 = vunpack.c.l.b16 %v804
    %v5836 = vunpack.c.l.b16 %v805
    %v5837 = vunpack.c.l.b16 %v806
    %v5838 = vunpack.c.l.b16 %v807
    %v5839 = vunpack.c.l.b16 %v808
    %v5840 = vunpack.c.l.b16 %v809
    %v5841 = vunpack.c.l.b16 %v810
    %v5842 = vunpack.c.l.b16 %v811
    %v5843 = vunpack.c.l.b16 %v812
    %v5844 = vunpack.c.l.b16 %v813
    %v5845 = vunpack.c.l.b16 %v814
    %v5846 = vunpack.c.l.b16 %v815
    %v5847 = vunpack.c.l.b16 %v816
    %v5848 = vunpack.c.l.b16 %v817
    %v5849 = vunpack.c.l.b16 %v818
    %v5850 = vunpack.c.l.b16 %v819
    %v5851 = vunpack.c.l.b16 %v820
    %v5852 = vunpack.c.l.b16 %v821
    %v5853 = vunpack.c.l.b16 %v822
    %v5854 = vunpack.c.l.b16 %v823
    %v5855 = vunpack.c.l.b16 %v824
    %v5856 = vunpack.c.l.b16 %v825
    %v5857 = vunpack.c.l.b16 %v826
    %v5858 = vunpack.c.l.b16 %v827
    %v5859 = vunpack.c.l.b16 %v828
    %v5860 = vunpack.c.l.b16 %v829
    %v5861 = vunpack.c.l.b16 %v830
    %v5862 = vunpack.c.l.b16 %v831
    %v5863 = vunpack.c.l.b16 %v832
    %v5864 = vunpack.c.l.b16 %v833
    %v5865 = vunpack.c.l.b16 %v834
    %v5866 = vunpack.c.l.b16 %v835
    %v5867 = vunpack.c.l.b16 %v836
    %v5868 = vunpack.c.l.b16 %v837
    %v5869 = vunpack.c.l.b16 %v838
    %v5870 = vunpack.c.l.b16 %v839
    %v5871 = vunpack.c.l.b16 %v840
    %v5872 = vunpack.c.l.b16 %v841
    %v5873 = vunpack.c.l.b16 %v842
    %v5874 = vunpack.c.l.b16 %v843
    %v5875 = vunpack.c.l.b16 %v844
    %v5876 = vunpack.c.l.b16 %v845
    %v5877 = vunpack.c.l.b16 %v846
    %v5878 = vunpack.c.l.b16 %v847
    %v5879 = vunpack.c.l.b16 %v848
    %v5880 = vunpack.c.l.b16 %v849
    %v5881 = vunpack.c.l.b16 %v850
    %v5882 = vunpack.c.l.b16 %v851
    %v5883 = vunpack.c.l.b16 %v852
    %v5884 = vunpack.c.l.b16 %v853
    %v5885 = vunpack.c.l.b16 %v854
    %v5886 = vunpack.c.l.b16 %v855
    %v5887 = vunpack.c.l.b16 %v856
    %v5888 = vunpack.c.l.b16 %v857
    %v5889 = vunpack.c.l.b16 %v858
    %v5890 = vunpack.c.l.b16 %v859
    %v5891 = vunpack.c.l.b16 %v860
    %v5892 = vunpack.c.l.b16 %v861
    %v5893 = vunpack.c.l.b16 %v862
    %v5894 = vunpack.c.l.b16 %v863
    %v5895 = vunpack.c.l.b16 %v864
    %v5896 = vunpack.c.l.b16 %v865
    %v5897 = vunpack.c.l.b16 %v866
    %v5898 = vunpack.c.l.b16 %v867
    %v5899 = vunpack.c.l.b16 %v868
    %v5900 = vunpack.c.l.b16 %v869
    %v5901 = vunpack.c.l.b16 %v870
    %v5902 = vunpack.c.l.b16 %v871
    %v5903 = vunpack.c.l.b16 %v872
    %v5904 = vunpack.c.l.b16 %v873
    %v5905 = vunpack.c.l.b16 %v874
    %v5906 = vunpack.c.l.b16 %v875
    %v5907 = vunpack.c.l.b16 %v876
    %v5908 = vunpack.c.l.b16 %v877
    %v5909 = vunpack.c.l.b16 %v878
    %v5910 = vunpack.c.l.b16 %v879
    %v5911 = vunpack.c.l.b16 %v880
    %v5912 = vunpack.c.l.b16 %v881
    %v5913 = vunpack.c.l.b16 %v882
    %v5914 = vunpack.c.l.b16 %v883
    %v5915 = vunpack.c.l.b16 %v884
    %v5916 = vunpack.c.l.b16 %v885
    %v5917 = vunpack.c.l.b16 %v886
    %v5918 = vunpack.c.l.b16 %v887
    %v5919 = vunpack.c.l.b16 %v888
    %v5920 = vunpack.c.l.b16 %v889
    %v5921 = vunpack.c.l.b16 %v890
    %v5922 = vunpack.c.l.b16 %v891
    %v5923 = vunpack.c.l.b16 %v892
    %v5924 = vunpack.c.l.b16 %v893
    %v5925 = vunpack.c.l.b16 %v894
    %v5926 = vunpack.c.l.b16 %v895
    %v5927 = vunpack.c.l.b16 %v896
    %v5928 = vunpack.c.l.b16 %v897
    %v5929 = vunpack.c.l.b16 %v898
    %v5930 = vunpack.c.l.b16 %v899
    %v5931 = vunpack.c.l.b16 %v900
    %v5932 = vunpack.c.l.b16 %v901
    %v5933 = vunpack.c.l.b16 %v902
    %v5934 = vunpack.c.l.b16 %v903
    %v5935 = vunpack.c.l.b16 %v904
    %v5936 = vunpack.c.l.b16 %v905
    %v5937 = vunpack.c.l.b16 %v906
    %v5938 = vunpack.c.l.b16 %v907
    %v5939 = vunpack.c.l.b16 %v908
    %v5940 = vunpack.c.l.b16 %v909
    %v5941 = vunpack.c.l.b16 %v910
    %v5942 = vunpack.c.l.b16 %v911
    %v5943 = vunpack.c.l.b16 %v912
    %v5944 = vunpack.c.l.b16 %v913
    %v5945 = vunpack.c.l.b16 %v914
    %v5946 = vunpack.c.l.b16 %v915
    %v5947 = vunpack.c.l.b16 %v916
    %v5948 = vunpack.c.l.b16 %v917
    %v5949 = vunpack.c.l.b16 %v918
    %v5950 = vunpack.c.l.b16 %v919
    %v5951 = vunpack.c.l.b16 %v920
    %v5952 = vunpack.c.l.b16 %v921
    %v5953 = vunpack.c.l.b16 %v922
    %v5954 = vunpack.c.l.b16 %v923
    %v5955 = vunpack.c.l.b16 %v924
    %v5956 = vunpack.c.l.b16 %v925
    %v5957 = vunpack.c.l.b16 %v926
    %v5958 = vunpack.c.l.b16 %v927
    %v5959 = vunpack.c.l.b16 %v928
    %v5960 = vunpack.c.l.b16 %v929
    %v5961 = vunpack.c.l.b16 %v930
    %v5962 = vunpack.c.l.b16 %v931
    %v5963 = vunpack.c.l.b16 %v932
    %v5964 = vunpack.c.l.b16 %v933
    %v5965 = vunpack.c.l.b16 %v934
    %v5966 = vunpack.c.l.b16 %v935
    %v5967 = vunpack.c.l.b16 %v936
    %v5968 = vunpack.c.l.b16 %v937
    %v5969 = vunpack.c.l.b16 %v938
    %v5970 = vunpack.c.l.b16 %v939
    %v5971 = vunpack.c.l.b16 %v940
    %v5972 = vunpack.c.l.b16 %v941
    %v5973 = vunpack.c.l.b16 %v942
    %v5974 = vunpack.c.l.b16 %v943
    %v5975 = vunpack.c.l.b16 %v944
    %v5976 = vunpack.c.l.b16 %v945
    %v5977 = vunpack.c.l.b16 %v946
    %v5978 = vunpack.c.l.b16 %v947
    %v5979 = vunpack.c.l.b16 %v948
    %v5980 = vunpack.c.l.b16 %v949
    %v5981 = vunpack.c.l.b16 %v950
    %v5982 = vunpack.c.l.b16 %v951
    %v5983 = vunpack.c.l.b16 %v952
    %v5984 = vunpack.c.l.b16 %v953
    %v5985 = vunpack.c.l.b16 %v954
    %v5986 = vunpack.c.l.b16 %v955
    %v5987 = vunpack.c.l.b16 %v956
    %v5988 = vunpack.c.l.b16 %v957
    %v5989 = vunpack.c.l.b16 %v958
    %v5990 = vunpack.c.l.b16 %v959
    %v5991 = vunpack.c.l.b16 %v960
    %v5992 = vunpack.c.l.b16 %v961
    %v5993 = vunpack.c.l.b16 %v962
    %v5994 = vunpack.c.l.b16 %v963
    %v5995 = vunpack.c.l.b16 %v964
    %v5996 = vunpack.c.l.b16 %v965
    %v5997 = vunpack.c.l.b16 %v966
    %v5998 = vunpack.c.l.b16 %v967
    %v5999 = vunpack.c.l.b16 %v968
    %v6000 = vunpack.c.l.b16 %v969
    %v6001 = vunpack.c.l.b16 %v970
    %v6002 = vunpack.c.l.b16 %v971
    %v6003 = vunpack.c.l.b16 %v972
    %v6004 = vunpack.c.l.b16 %v973
    %v6005 = vunpack.c.l.b16 %v974
    %v6006 = vunpack.c.l.b16 %v975
    %v6007 = vunpack.c.l.b16 %v976
    %v6008 = vunpack.c.l.b16 %v977
    %v6009 = vunpack.c.l.b16 %v978
    %v6010 = vunpack.c.l.b16 %v979
    %v6011 = vunpack.c.l.b16 %v980
    %v6012 = vunpack.c.l.b16 %v981
    %v6013 = vunpack.c.l.b16 %v982
    %v6014 = vunpack.c.l.b16 %v983
    %v6015 = vunpack.c.l.b16 %v984
    %v6016 = vunpack.c.l.b16 %v985
    %v6017 = vunpack.c.l.b16 %v986
    %v6018 = vunpack.c.l.b16 %v987
    %v6019 = vunpack.c.l.b16 %v988
    %v6020 = vunpack.c.l.b16 %v989
    %v6021 = vunpack.c.l.b16 %v990
    %v6022 = vunpack.c.l.b16 %v991
    %v6023 = vunpack.c.l.b16 %v992
    %v6024 = vunpack.c.l.b16 %v993
    %v6025 = vunpack.c.l.b16 %v994
    %v6026 = vunpack.c.l.b16 %v995
    %v6027 = vunpack.c.l.b16 %v996
    %v6028 = vunpack.c.l.b16 %v997
    %v6029 = vunpack.c.l.b16 %v998
    %v6030 = vunpack.c.l.b16 %v999
    %v6031 = vunpack.c.l.b16 %v1000
    %v6032 = vunpack.c.l.b16 %v1001
    %v6033 = vunpack.c.l.b16 %v1002
    %v6034 = vunpack.c.l.b16 %v1003
    %v6035 = vunpack.c.l.b16 %v1004
    %v6036 = vunpack.c.l.b16 %v1005
    %v6037 = vunpack.c.l.b16 %v1006
    %v6038 = vunpack.c.l.b16 %v1007
    %v6039 = vunpack.c.l.b16 %v1008
    %v6040 = vunpack.c.l.b16 %v1009
    %v6041 = vunpack.c.l.b16 %v1010
    %v6042 = vunpack.c.l.b16 %v1011
    %v6043 = vunpack.c.l.b16 %v1012
    %v6044 = vunpack.c.l.b16 %v1013
    %v6045 = vunpack.c.l.b16 %v1014
    %v6046 = vunpack.c.l.b16 %v1015
    %v6047 = vunpack.c.l.b16 %v1016
    %v6048 = vunpack.c.l.b16 %v1017
    %v6049 = vunpack.c.l.b16 %v1018
    %v6050 = vunpack.c.l.b16 %v1019
    %v6051 = vunpack.c.l.b16 %v1020
    %v6052 = vunpack.c.l.b16 %v1021
    %v6053 = vunpack.c.l.b16 %v1022
    %v6054 = vunpack.c.l.b16 %v1023
    %v6055 = vunpack.c.l.b16 %v1024
    %v6056 = vunpack.c.l.b16 %v1025
    %v6057 = vunpack.c.l.b16 %v1026
    %v6058 = vunpack.c.l.b16 %v1027
    %v6059 = vunpack.c.l.b16 %v1028
    %v6060 = vunpack.c.l.b16 %v1029
    %v6061 = vunpack.c.l.b16 %v1030
    %v6062 = vunpack.c.l.b16 %v1031
    %v6063 = vunpack.c.l.b16 %v1032
    %v6064 = vunpack.c.l.b16 %v1033
    %v6065 = vunpack.c.l.b16 %v1034
    %v6066 = vunpack.c.l.b16 %v1035
    %v6067 = vunpack.c.l.b16 %v1036
    %v6068 = vunpack.c.l.b16 %v1037
    %v6069 = vunpack.c.l.b16 %v1038
    %v6070 = vunpack.c.l.b16 %v1039
    %v6071 = vunpack.c.l.b16 %v1040
    %v6072 = vunpack.c.l.b16 %v1041
    %v6073 = vunpack.c.l.b16 %v1042
    %v6074 = vunpack.c.l.b16 %v1043
    %v6075 = vunpack.c.l.b16 %v1044
    %v6076 = vunpack.c.l.b16 %v1045
    %v6077 = vunpack.c.l.b16 %v1046
    %v6078 = vunpack.c.l.b16 %v1047
    %v6079 = vunpack.c.l.b16 %v1048
    %v6080 = vunpack.c.l.b16 %v1049
    %v6081 = vunpack.c.l.b16 %v1050
    %v6082 = vunpack.c.l.b16 %v1051
    %v6083 = vunpack.c.l.b16 %v1052
    %v6084 = vunpack.c.l.b16 %v1053
    %v6085 = vunpack.c.l.b16 %v1054
    %v6086 = vunpack.c.l.b16 %v1055
    %v6087 = vunpack.c.l.b16 %v1056
    %v6088 = vunpack.c.l.b16 %v1057
    %v6089 = vunpack.c.l.b16 %v1058
    %v6090 = vunpack.c.l.b16 %v1059
    %v6091 = vunpack.c.l.b16 %v1060
    %v6092 = vunpack.c.l.b16 %v1061
    %v6093 = vunpack.c.l.b16 %v1062
    %v6094 = vunpack.c.l.b16 %v1063
    %v6095 = vunpack.c.l.b16 %v1064
    %v6096 = vunpack.c.l.b16 %v1065
    %v6097 = vunpack.c.l.b16 %v1066
    %v6098 = vunpack.c.l.b16 %v1067
    %v6099 = vunpack.c.l.b16 %v1068
    %v6100 = vunpack.c.l.b16 %v1069
    %v6101 = vunpack.c.l.b16 %v1070
    %v6102 = vunpack.c.l.b16 %v1071
    %v6103 = vunpack.c.l.b16 %v1072
    %v6104 = vunpack.c.l.b16 %v1073
    %v6105 = vunpack.c.l.b16 %v1074
    %v6106 = vunpack.c.l.b16 %v1075
    %v6107 = vunpack.c.l.b16 %v1076
    %v6108 = vunpack.c.l.b16 %v1077
    %v6109 = vunpack.c.l.b16 %v1078
    %v6110 = vunpack.c.l.b16 %v1079
    %v6111 = vunpack.c.l.b16 %v1080
    %v6112 = vunpack.c.l.b16 %v1081
    %v6113 = vunpack.c.l.b16 %v1082
    %v6114 = vunpack.c.l.b16 %v1083
    %v6115 = vunpack.c.l.b16 %v1084
    %v6116 = vunpack.c.l.b16 %v1085
    %v6117 = vunpack.c.l.b16 %v1086
    %v6118 = vunpack.c.l.b16 %v1087
    %v6119 = vunpack.c.l.b16 %v1088
    %v6120 = vunpack.c.l.b16 %v1089
    %v6121 = vunpack.c.l.b16 %v1090
    %v6122 = vunpack.c.l.b16 %v1091
    %v6123 = vunpack.c.l.b16 %v1092
    %v6124 = vunpack.c.l.b16 %v1093
    %v6125 = vunpack.c.l.b16 %v1094
    %v6126 = vunpack.c.l.b16 %v1095
    %v6127 = vunpack.c.l.b16 %v1096
    %v6128 = vunpack.c.l.b16 %v1097
    %v6129 = vunpack.c.l.b16 %v1098
    %v6130 = vunpack.c.l.b16 %v1099
    %v6131 = vunpack.c.l.b16 %v1100
    %v6132 = vunpack.c.l.b16 %v1101
    %v6133 = vunpack.c.l.b16 %v1102
    %v6134 = vunpack.c.l.b16 %v1103
    %v6135 = vunpack.c.l.b16 %v1104
    %v6136 = vunpack.c.l.b16 %v1105
    %v6137 = vunpack.c.l.b16 %v1106
    %v6138 = vunpack.c.l.b16 %v1107
    %v6139 = vunpack.c.l.b16 %v1108
    %v6140 = vunpack.c.l.b16 %v1109
    %v6141 = vunpack.c.l.b16 %v1110
    %v6142 = vunpack.c.l.b16 %v1111
    %v6143 = vunpack.c.l.b16 %v1112
    %v6144 = vunpack.c.l.b16 %v1113
    %v6145 = vunpack.c.l.b16 %v1114
    %v6146 = vunpack.c.l.b16 %v1115
    %v6147 = vunpack.c.l.b16 %v1116
    %v6148 = vunpack.c.l.b16 %v1117
    %v6149 = vunpack.c.l.b16 %v1118
    %v6150 = vunpack.c.l.b16 %v1119
    %v6151 = vunpack.c.l.b16 %v1120
    %v6152 = vunpack.c.l.b16 %v1121
    %v6153 = vunpack.c.l.b16 %v1122
    %v6154 = vunpack.c.l.b16 %v1123
    %v6155 = vunpack.c.l.b16 %v1124
    %v6156 = vunpack.c.l.b16 %v1125
    %v6157 = vunpack.c.l.b16 %v1126
    %v6158 = vunpack.c.l.b16 %v1127
    %v6159 = vunpack.c.l.b16 %v1128
    %v6160 = vunpack.c.l.b16 %v1129
    %v6161 = vunpack.c.l.b16 %v1130
    %v6162 = vunpack.c.l.b16 %v1131
    %v6163 = vunpack.c.l.b16 %v1132
    %v6164 = vunpack.c.l.b16 %v1133
    %v6165 = vunpack.c.l.b16 %v1134
    %v6166 = vunpack.c.l.b16 %v1135
    %v6167 = vunpack.c.l.b16 %v1136
    %v6168 = vunpack.c.l.b16 %v1137
    %v6169 = vunpack.c.l.b16 %v1138
    %v6170 = vunpack.c.l.b16 %v1139
    %v6171 = vunpack.c.l.b16 %v1140
    %v6172 = vunpack.c.l.b16 %v1141
    %v6173 = vunpack.c.l.b16 %v1142
    %v6174 = vunpack.c.l.b16 %v1143
    %v6175 = vunpack.c.l.b16 %v1144
    %v6176 = vunpack.c.l.b16 %v1145
    %v6177 = vunpack.c.l.b16 %v1146
    %v6178 = vunpack.c.l.b16 %v1147
    %v6179 = vunpack.c.l.b16 %v1148
    %v6180 = vunpack.c.l.b16 %v1149
    %v6181 = vunpack.c.l.b16 %v1150
    %v6182 = vunpack.c.l.b16 %v1151
    %v6183 = vunpack.c.l.b16 %v1152
    %v6184 = vunpack.c.l.b16 %v1153
    %v6185 = vunpack.c.l.b16 %v1154
    %v6186 = vunpack.c.l.b16 %v1155
    %v6187 = vunpack.c.l.b16 %v1156
    %v6188 = vunpack.c.l.b16 %v1157
    %v6189 = vunpack.c.l.b16 %v1158
    %v6190 = vunpack.c.l.b16 %v1159
    %v6191 = vunpack.c.l.b16 %v1160
    %v6192 = vunpack.c.l.b16 %v1161
    %v6193 = vunpack.c.l.b16 %v1162
    %v6194 = vunpack.c.l.b16 %v1163
    %v6195 = vunpack.c.l.b16 %v1164
    %v6196 = vunpack.c.l.b16 %v1165
    %v6197 = vunpack.c.l.b16 %v1166
    %v6198 = vunpack.c.l.b16 %v1167
    %v6199 = vunpack.c.l.b16 %v1168
    %v6200 = vunpack.c.l.b16 %v1169
    %v6201 = vunpack.c.l.b16 %v1170
    %v6202 = vunpack.c.l.b16 %v1171
    %v6203 = vunpack.c.l.b16 %v1172
    %v6204 = vunpack.c.l.b16 %v1173
    %v6205 = vunpack.c.l.b16 %v1174
    %v6206 = vunpack.c.l.b16 %v1175
    %v6207 = vunpack.c.l.b16 %v1176
    %v6208 = vunpack.c.l.b16 %v1177
    %v6209 = vunpack.c.l.b16 %v1178
    %v6210 = vunpack.c.l.b16 %v1179
    %v6211 = vunpack.c.l.b16 %v1180
    %v6212 = vunpack.c.l.b16 %v1181
    %v6213 = vunpack.c.l.b16 %v1182
    %v6214 = vunpack.c.l.b16 %v1183
    %v6215 = vunpack.c.l.b16 %v1184
    %v6216 = vunpack.c.l.b16 %v1185
    %v6217 = vunpack.c.l.b16 %v1186
    %v6218 = vunpack.c.l.b16 %v1187
    %v6219 = vunpack.c.l.b16 %v1188
    %v6220 = vunpack.c.l.b16 %v1189
    %v6221 = vunpack.c.l.b16 %v1190
    %v6222 = vunpack.c.l.b16 %v1191
    %v6223 = vunpack.c.l.b16 %v1192
    %v6224 = vunpack.c.l.b16 %v1193
    %v6225 = vunpack.c.l.b16 %v1194
    %v6226 = vunpack.c.l.b16 %v1195
    %v6227 = vunpack.c.l.b16 %v1196
    %v6228 = vunpack.c.l.b16 %v1197
    %v6229 = vunpack.c.l.b16 %v1198
    %v6230 = vunpack.c.l.b16 %v1199
    %v6231 = vunpack.c.l.b16 %v1200
    %v6232 = vunpack.c.l.b16 %v1201
    %v6233 = vunpack.c.l.b16 %v1202
    %v6234 = vunpack.c.l.b16 %v1203
    %v6235 = vunpack.c.l.b16 %v1204
    %v6236 = vunpack.c.l.b16 %v1205
    %v6237 = vunpack.c.l.b16 %v1206
    %v6238 = vunpack.c.l.b16 %v1207
    %v6239 = vunpack.c.l.b16 %v1208
    %v6240 = vunpack.c.l.b16 %v1209
    %v6241 = vunpack.c.l.b16 %v1210
    %v6242 = vunpack.c.l.b16 %v1211
    %v6243 = vunpack.c.l.b16 %v1212
    %v6244 = vunpack.c.l.b16 %v1213
    %v6245 = vunpack.c.l.b16 %v1214
    %v6246 = vunpack.c.l.b16 %v1215
    %v6247 = vunpack.c.l.b16 %v1216
    %v6248 = vunpack.c.l.b16 %v1217
    %v6249 = vunpack.c.l.b16 %v1218
    %v6250 = vunpack.c.l.b16 %v1219
    %v6251 = vunpack.c.l.b16 %v1220
    %v6252 = vunpack.c.l.b16 %v1221
    %v6253 = vunpack.c.l.b16 %v1222
    %v6254 = vunpack.c.l.b16 %v1223
    %v6255 = vunpack.c.l.b16 %v1224
    %v6256 = vunpack.c.l.b16 %v1225
    %v6257 = vunpack.c.l.b16 %v1226
    %v6258 = vunpack.c.l.b16 %v1227
    %v6259 = vunpack.c.l.b16 %v1228
    %v6260 = vunpack.c.l.b16 %v1229
    %v6261 = vunpack.c.l.b16 %v1230
    %v6262 = vunpack.c.l.b16 %v1231
    %v6263 = vunpack.c.l.b16 %v1232
    %v6264 = vunpack.c.l.b16 %v1233
    %v6265 = vunpack.c.l.b16 %v1234
    %v6266 = vunpack.c.l.b16 %v1235
    %v6267 = vunpack.c.l.b16 %v1236
    %v6268 = vunpack.c.l.b16 %v1237
    %v6269 = vunpack.c.l.b16 %v1238
    %v6270 = vunpack.c.l.b16 %v1239
    %v6271 = vunpack.c.l.b16 %v1240
    %v6272 = vunpack.c.l.b16 %v1241
    %v6273 = vunpack.c.l.b16 %v1242
    %v6274 = vunpack.c.l.b16 %v1243
    %v6275 = vunpack.c.l.b16 %v1244
    %v6276 = vunpack.c.l.b16 %v1245
    %v6277 = vunpack.c.l.b16 %v1246
    %v6278 = vunpack.c.l.b16 %v1247
    %v6279 = vunpack.c.l.b16 %v1248
    %v6280 = vunpack.c.l.b16 %v1249
    %v6281 = vunpack.c.l.b16 %v1250
    %v6282 = vunpack.c.l.b16 %v1251
    %v6283 = vunpack.c.l.b16 %v1252
    %v6284 = vunpack.c.l.b16 %v1253
    %v6285 = vunpack.c.l.b16 %v1254
    %v6286 = vunpack.c.l.b16 %v1255
    %v6287 = vunpack.c.l.b16 %v1256
    %v6288 = vunpack.c.l.b16 %v1257
    %v6289 = vunpack.c.l.b16 %v1258
    %v6290 = vunpack.c.l.b16 %v1259
    %v6291 = vunpack.c.l.b16 %v1260
    %v6292 = vunpack.c.l.b16 %v1261
    %v6293 = vunpack.c.l.b16 %v1262
    %v6294 = vunpack.c.l.b16 %v1263
    %v6295 = vunpack.c.l.b16 %v1264
    %v6296 = vunpack.c.l.b16 %v1265
    %v6297 = vunpack.c.l.b16 %v1266
    %v6298 = vunpack.c.l.b16 %v1267
    %v6299 = vunpack.c.l.b16 %v1268
    %v6300 = vunpack.c.l.b16 %v1269
    %v6301 = vunpack.c.l.b16 %v1270
    %v6302 = vunpack.c.l.b16 %v1271
    %v6303 = vunpack.c.l.b16 %v1272
    %v6304 = vunpack.c.l.b16 %v1273
    %v6305 = vunpack.c.l.b16 %v1274
    %v6306 = vunpack.c.l.b16 %v1275
    %v6307 = vunpack.c.l.b16 %v1276
    %v6308 = vunpack.c.l.b16 %v1277
    %v6309 = vunpack.c.l.b16 %v1278
    %v6310 = vunpack.c.l.b16 %v1279
    %v6311 = vunpack.c.l.b16 %v1280
    %v6312 = vunpack.c.l.b16 %v1281
    %v6313 = vunpack.c.l.b16 %v1282
    %v6314 = vunpack.c.l.b16 %v1283
    %v6315 = vunpack.c.l.b16 %v1284
    %v6316 = vunpack.c.l.b16 %v1285
    %v6317 = vunpack.c.l.b16 %v1286
    %v6318 = vunpack.c.l.b16 %v1287
    %v6319 = vunpack.c.l.b16 %v1288
    %v6320 = vunpack.c.l.b16 %v1289
    %v6321 = vunpack.c.l.b16 %v1290
    %v6322 = vunpack.c.l.b16 %v1291
    %v6323 = vunpack.c.l.b16 %v1292
    %v6324 = vunpack.c.l.b16 %v1293
    %v6325 = vunpack.c.l.b16 %v1294
    %v6326 = vunpack.c.l.b16 %v1295
    %v6327 = vunpack.c.l.b16 %v1296
    %v6328 = vunpack.c.l.b16 %v1297
    %v6329 = vunpack.c.l.b16 %v1298
    %v6330 = vunpack.c.l.b16 %v1299
    %v6331 = vunpack.c.l.b16 %v1300
    %v6332 = vunpack.c.l.b16 %v1301
    %v6333 = vunpack.c.l.b16 %v1302
    %v6334 = vunpack.c.l.b16 %v1303
    %v6335 = vunpack.c.l.b16 %v1304
    %v6336 = vunpack.c.l.b16 %v1305
    %v6337 = vunpack.c.l.b16 %v1306
    %v6338 = vunpack.c.l.b16 %v1307
    %v6339 = vunpack.c.l.b16 %v1308
    %v6340 = vunpack.c.l.b16 %v1309
    %v6341 = vunpack.c.l.b16 %v1310
    %v6342 = vunpack.c.l.b16 %v1311
    %v6343 = vunpack.c.l.b16 %v1312
    %v6344 = vunpack.c.l.b16 %v1313
    %v6345 = vunpack.c.l.b16 %v1314
    %v6346 = vunpack.c.l.b16 %v1315
    %v6347 = vunpack.c.l.b16 %v1316
    %v6348 = vunpack.c.l.b16 %v1317
    %v6349 = vunpack.c.l.b16 %v1318
    %v6350 = vunpack.c.l.b16 %v1319
    %v6351 = vunpack.c.l.b16 %v1320
    %v6352 = vunpack.c.l.b16 %v1321
    %v6353 = vunpack.c.l.b16 %v1322
    %v6354 = vunpack.c.l.b16 %v1323
    %v6355 = vunpack.c.l.b16 %v1324
    %v6356 = vunpack.c.l.b16 %v1325
    %v6357 = vunpack.c.l.b16 %v1326
    %v6358 = vunpack.c.l.b16 %v1327
    %v6359 = vunpack.c.l.b16 %v1328
    %v6360 = vunpack.c.l.b16 %v1329
    %v6361 = vunpack.c.l.b16 %v1330
    %v6362 = vunpack.c.l.b16 %v1331
    %v6363 = vunpack.c.l.b16 %v1332
    %v6364 = vunpack.c.l.b16 %v1333
    %v6365 = vunpack.c.l.b16 %v1334
    %v6366 = vunpack.c.l.b16 %v1335
    %v6367 = vunpack.c.l.b16 %v1336
    %v6368 = vunpack.c.l.b16 %v1337
    %v6369 = vunpack.c.l.b16 %v1338
    %v6370 = vunpack.c.l.b16 %v1339
    %v6371 = vunpack.c.l.b16 %v1340
    %v6372 = vunpack.c.l.b16 %v1341
    %v6373 = vunpack.c.l.b16 %v1342
    %v6374 = vunpack.c.l.b16 %v1343
    %v6375 = vunpack.c.l.b16 %v1344
    %v6376 = vunpack.c.l.b16 %v1345
    %v6377 = vunpack.c.l.b16 %v1346
    %v6378 = vunpack.c.l.b16 %v1347
    %v6379 = vunpack.c.l.b16 %v1348
    %v6380 = vunpack.c.l.b16 %v1349
    %v6381 = vunpack.c.l.b16 %v1350
    %v6382 = vunpack.c.l.b16 %v1351
    %v6383 = vunpack.c.l.b16 %v1352
    %v6384 = vunpack.c.l.b16 %v1353
    %v6385 = vunpack.c.l.b16 %v1354
    %v6386 = vunpack.c.l.b16 %v1355
    %v6387 = vunpack.c.l.b16 %v1356
    %v6388 = vunpack.c.l.b16 %v1357
    %v6389 = vunpack.c.l.b16 %v1358
    %v6390 = vunpack.c.l.b16 %v1359
    %v6391 = vunpack.c.l.b16 %v1360
    %v6392 = vunpack.c.l.b16 %v1361
    %v6393 = vunpack.c.l.b16 %v1362
    %v6394 = vunpack.c.l.b16 %v1363
    %v6395 = vunpack.c.l.b16 %v1364
    %v6396 = vunpack.c.l.b16 %v1365
    %v6397 = vunpack.c.l.b16 %v1366
    %v6398 = vunpack.c.l.b16 %v1367
    %v6399 = vunpack.c.l.b16 %v1368
    %v6400 = vunpack.c.l.b16 %v1369
    %v6401 = vunpack.c.l.b16 %v1370
    %v6402 = vunpack.c.l.b16 %v1371
    %v6403 = vunpack.c.l.b16 %v1372
    %v6404 = vunpack.c.l.b16 %v1373
    %v6405 = vunpack.c.l.b16 %v1374
    %v6406 = vunpack.c.l.b16 %v1375
    %v6407 = vunpack.c.l.b16 %v1376
    %v6408 = vunpack.c.l.b16 %v1377
    %v6409 = vunpack.c.l.b16 %v1378
    %v6410 = vunpack.c.l.b16 %v1379
    %v6411 = vunpack.c.l.b16 %v1380
    %v6412 = vunpack.c.l.b16 %v1381
    %v6413 = vunpack.c.l.b16 %v1382
    %v6414 = vunpack.c.l.b16 %v1383
    %v6415 = vunpack.c.l.b16 %v1384
    %v6416 = vunpack.c.l.b16 %v1385
    %v6417 = vunpack.c.l.b16 %v1386
    %v6418 = vunpack.c.l.b16 %v1387
    %v6419 = vunpack.c.l.b16 %v1388
    %v6420 = vunpack.c.l.b16 %v1389
    %v6421 = vunpack.c.l.b16 %v1390
    %v6422 = vunpack.c.l.b16 %v1391
    %v6423 = vunpack.c.l.b16 %v1392
    %v6424 = vunpack.c.l.b16 %v1393
    %v6425 = vunpack.c.l.b16 %v1394
    %v6426 = vunpack.c.l.b16 %v1395
    %v6427 = vunpack.c.l.b16 %v1396
    %v6428 = vunpack.c.l.b16 %v1397
    %v6429 = vunpack.c.l.b16 %v1398
    %v6430 = vunpack.c.l.b16 %v1399
    %v6431 = vunpack.c.l.b16 %v1400
    %v6432 = vunpack.c.l.b16 %v1401
    %v6433 = vunpack.c.l.b16 %v1402
    %v6434 = vunpack.c.l.b16 %v1403
    %v6435 = vunpack.c.l.b16 %v1404
    %v6436 = vunpack.c.l.b16 %v1405
    %v6437 = vunpack.c.l.b16 %v1406
    %v6438 = vunpack.c.l.b16 %v1407
    %v6439 = vunpack.c.l.b16 %v1408
    %v6440 = vunpack.c.l.b16 %v1409
    %v6441 = vunpack.c.l.b16 %v1410
    %v6442 = vunpack.c.l.b16 %v1411
    %v6443 = vunpack.c.l.b16 %v1412
    %v6444 = vunpack.c.l.b16 %v1413
    %v6445 = vunpack.c.l.b16 %v1414
    %v6446 = vunpack.c.l.b16 %v1415
    %v6447 = vunpack.c.l.b16 %v1416
    %v6448 = vunpack.c.l.b16 %v1417
    %v6449 = vunpack.c.l.b16 %v1418
    %v6450 = vunpack.c.l.b16 %v1419
    %v6451 = vunpack.c.l.b16 %v1420
    %v6452 = vunpack.c.l.b16 %v1421
    %v6453 = vunpack.c.l.b16 %v1422
    %v6454 = vunpack.c.l.b16 %v1423
    %v6455 = vunpack.c.l.b16 %v1424
    %v6456 = vunpack.c.l.b16 %v1425
    %v6457 = vunpack.c.l.b16 %v1426
    %v6458 = vunpack.c.l.b16 %v1427
    %v6459 = vunpack.c.l.b16 %v1428
    %v6460 = vunpack.c.l.b16 %v1429
    %v6461 = vunpack.c.l.b16 %v1430
    %v6462 = vunpack.c.l.b16 %v1431
    %v6463 = vunpack.c.l.b16 %v1432
    %v6464 = vunpack.c.l.b16 %v1433
    %v6465 = vunpack.c.l.b16 %v1434
    %v6466 = vunpack.c.l.b16 %v1435
    %v6467 = vunpack.c.l.b16 %v1436
    %v6468 = vunpack.c.l.b16 %v1437
    %v6469 = vunpack.c.l.b16 %v1438
    %v6470 = vunpack.c.l.b16 %v1439
    %v6471 = vunpack.c.l.b16 %v1440
    %v6472 = vunpack.c.l.b16 %v1441
    %v6473 = vunpack.c.l.b16 %v1442
    %v6474 = vunpack.c.l.b16 %v1443
    %v6475 = vunpack.c.l.b16 %v1444
    %v6476 = vunpack.c.l.b16 %v1445
    %v6477 = vunpack.c.l.b16 %v1446
    %v6478 = vunpack.c.l.b16 %v1447
    %v6479 = vunpack.c.l.b16 %v1448
    %v6480 = vunpack.c.l.b16 %v1449
    %v6481 = vunpack.c.l.b16 %v1450
    %v6482 = vunpack.c.l.b16 %v1451
    %v6483 = vunpack.c.l.b16 %v1452
    %v6484 = vunpack.c.l.b16 %v1453
    %v6485 = vunpack.c.l.b16 %v1454
    %v6486 = vunpack.c.l.b16 %v1455
    %v6487 = vunpack.c.l.b16 %v1456
    %v6488 = vunpack.c.l.b16 %v1457
    %v6489 = vunpack.c.l.b16 %v1458
    %v6490 = vunpack.c.l.b16 %v1459
    %v6491 = vunpack.c.l.b16 %v1460
    %v6492 = vunpack.c.l.b16 %v1461
    %v6493 = vunpack.c.l.b16 %v1462
    %v6494 = vunpack.c.l.b16 %v1463
    %v6495 = vunpack.c.l.b16 %v1464
    %v6496 = vunpack.c.l.b16 %v1465
    %v6497 = vunpack.c.l.b16 %v1466
    %v6498 = vunpack.c.l.b16 %v1467
    %v6499 = vunpack.c.l.b16 %v1468
    %v6500 = vunpack.c.l.b16 %v1469
    %v6501 = vunpack.c.l.b16 %v1470
    %v6502 = vunpack.c.l.b16 %v1471
    %v6503 = vunpack.c.l.b16 %v1472
    %v6504 = vunpack.c.l.b16 %v1473
    %v6505 = vunpack.c.l.b16 %v1474
    %v6506 = vunpack.c.l.b16 %v1475
    %v6507 = vunpack.c.l.b16 %v1476
    %v6508 = vunpack.c.l.b16 %v1477
    %v6509 = vunpack.c.l.b16 %v1478
    %v6510 = vunpack.c.l.b16 %v1479
    %v6511 = vunpack.c.l.b16 %v1480
    %v6512 = vunpack.c.l.b16 %v1481
    %v6513 = vunpack.c.l.b16 %v1482
    %v6514 = vunpack.c.l.b16 %v1483
    %v6515 = vunpack.c.l.b16 %v1484
    %v6516 = vunpack.c.l.b16 %v1485
    %v6517 = vunpack.c.l.b16 %v1486
    %v6518 = vunpack.c.l.b16 %v1487
    %v6519 = vunpack.c.l.b16 %v1488
    %v6520 = vunpack.c.l.b16 %v1489
    %v6521 = vunpack.c.l.b16 %v1490
    %v6522 = vunpack.c.l.b16 %v1491
    %v6523 = vunpack.c.l.b16 %v1492
    %v6524 = vunpack.c.l.b16 %v1493
    %v6525 = vunpack.c.l.b16 %v1494
    %v6526 = vunpack.c.l.b16 %v1495
    %v6527 = vunpack.c.l.b16 %v1496
    %v6528 = vunpack.c.l.b16 %v1497
    %v6529 = vunpack.c.l.b16 %v1498
    %v6530 = vunpack.c.l.b16 %v1499
    %v6531 = vunpack.c.l.b16 %v1500
    %v6532 = vunpack.c.l.b16 %v1501
    %v6533 = vunpack.c.l.b16 %v1502
    %v6534 = vunpack.c.l.b16 %v1503
    %v6535 = vunpack.c.l.b16 %v1504
    %v6536 = vunpack.c.l.b16 %v1505
    %v6537 = vunpack.c.l.b16 %v1506
    %v6538 = vunpack.c.l.b16 %v1507
    %v6539 = vunpack.c.l.b16 %v1508
    %v6540 = vunpack.c.l.b16 %v1509
    %v6541 = vunpack.c.l.b16 %v1510
    %v6542 = vunpack.c.l.b16 %v1511
    %v6543 = vunpack.c.l.b16 %v1512
    %v6544 = vunpack.c.l.b16 %v1513
    %v6545 = vunpack.c.l.b16 %v1514
    %v6546 = vunpack.c.l.b16 %v1515
    %v6547 = vunpack.c.l.b16 %v1516
    %v6548 = vunpack.c.l.b16 %v1517
    %v6549 = vunpack.c.l.b16 %v1518
    %v6550 = vunpack.c.l.b16 %v1519
    %v6551 = vunpack.c.l.b16 %v1520
    %v6552 = vunpack.c.l.b16 %v1521
    %v6553 = vunpack.c.l.b16 %v1522
    %v6554 = vunpack.c.l.b16 %v1523
    %v6555 = vunpack.c.l.b16 %v1524
    %v6556 = vunpack.c.l.b16 %v1525
    %v6557 = vunpack.c.l.b16 %v1526
    %v6558 = vunpack.c.l.b16 %v1527
    %v6559 = vunpack.c.l.b16 %v1528
    %v6560 = vunpack.c.l.b16 %v1529
    %v6561 = vunpack.c.l.b16 %v1530
    %v6562 = vunpack.c.l.b16 %v1531
    %v6563 = vunpack.c.l.b16 %v1532
    %v6564 = vunpack.c.l.b16 %v1533
    %v6565 = vunpack.c.l.b16 %v1534
    %v6566 = vunpack.c.l.b16 %v1535
    %v6567 = vunpack.c.l.b16 %v1536
    %v6568 = vunpack.c.l.b16 %v1537
    %v6569 = vunpack.c.l.b16 %v1538
    %v6570 = vunpack.c.l.b16 %v1539
    %v6571 = vunpack.c.l.b16 %v1540
    %v6572 = vunpack.c.l.b16 %v1541
    %v6573 = vunpack.c.l.b16 %v1542
    %v6574 = vunpack.c.l.b16 %v1543
    %v6575 = vunpack.c.l.b16 %v1544
    %v6576 = vunpack.c.l.b16 %v1545
    %v6577 = vunpack.c.l.b16 %v1546
    %v6578 = vunpack.c.l.b16 %v1547
    %v6579 = vunpack.c.l.b16 %v1548
    %v6580 = vunpack.c.l.b16 %v1549
    %v6581 = vunpack.c.l.b16 %v1550
    %v6582 = vunpack.c.l.b16 %v1551
    %v6583 = vunpack.c.l.b16 %v1552
    %v6584 = vunpack.c.l.b16 %v1553
    %v6585 = vunpack.c.l.b16 %v1554
    %v6586 = vunpack.c.l.b16 %v1555
    %v6587 = vunpack.c.l.b16 %v1556
    %v6588 = vunpack.c.l.b16 %v1557
    %v6589 = vunpack.c.l.b16 %v1558
    %v6590 = vunpack.c.l.b16 %v1559
    %v6591 = vunpack.c.l.b16 %v1560
    %v6592 = vunpack.c.l.b16 %v1561
    %v6593 = vunpack.c.l.b16 %v1562
    %v6594 = vunpack.c.l.b16 %v1563
    %v6595 = vunpack.c.l.b16 %v1564
    %v6596 = vunpack.c.l.b16 %v1565
    %v6597 = vunpack.c.l.b16 %v1566
    %v6598 = vunpack.c.l.b16 %v1567
    %v6599 = vunpack.c.l.b16 %v1568
    %v6600 = vunpack.c.l.b16 %v1569
    %v6601 = vunpack.c.l.b16 %v1570
    %v6602 = vunpack.c.l.b16 %v1571
    %v6603 = vunpack.c.l.b16 %v1572
    %v6604 = vunpack.c.l.b16 %v1573
    %v6605 = vunpack.c.l.b16 %v1574
    %v6606 = vunpack.c.l.b16 %v1575
    %v6607 = vunpack.c.l.b16 %v1576
    %v6608 = vunpack.c.l.b16 %v1577
    %v6609 = vunpack.c.l.b16 %v1578
    %v6610 = vunpack.c.l.b16 %v1579
    %v6611 = vunpack.c.l.b16 %v1580
    %v6612 = vunpack.c.l.b16 %v1581
    %v6613 = vunpack.c.l.b16 %v1582
    %v6614 = vunpack.c.l.b16 %v1583
    %v6615 = vunpack.c.l.b16 %v1584
    %v6616 = vunpack.c.l.b16 %v1585
    %v6617 = vunpack.c.l.b16 %v1586
    %v6618 = vunpack.c.l.b16 %v1587
    %v6619 = vunpack.c.l.b16 %v1588
    %v6620 = vunpack.c.l.b16 %v1589
    %v6621 = vunpack.c.l.b16 %v1590
    %v6622 = vunpack.c.l.b16 %v1591
    %v6623 = vunpack.c.l.b16 %v1592
    %v6624 = vunpack.c.l.b16 %v1593
    %v6625 = vunpack.c.l.b16 %v1594
    %v6626 = vunpack.c.l.b16 %v1595
    %v6627 = vunpack.c.l.b16 %v1596
    %v6628 = vunpack.c.l.b16 %v1597
    %v6629 = vunpack.c.l.b16 %v1598
    %v6630 = vunpack.c.l.b16 %v1599
    %v6631 = vunpack.c.l.b16 %v1600
    %v6632 = vunpack.c.l.b16 %v1601
    %v6633 = vunpack.c.l.b16 %v1602
    %v6634 = vunpack.c.l.b16 %v1603
    %v6635 = vunpack.c.l.b16 %v1604
    %v6636 = vunpack.c.l.b16 %v1605
    %v6637 = vunpack.c.l.b16 %v1606
    %v6638 = vunpack.c.l.b16 %v1607
    %v6639 = vunpack.c.l.b16 %v1608
    %v6640 = vunpack.c.l.b16 %v1609
    %v6641 = vunpack.c.l.b16 %v1610
    %v6642 = vunpack.c.l.b16 %v1611
    %v6643 = vunpack.c.l.b16 %v1612
    %v6644 = vunpack.c.l.b16 %v1613
    %v6645 = vunpack.c.l.b16 %v1614
    %v6646 = vunpack.c.l.b16 %v1615
    %v6647 = vunpack.c.l.b16 %v1616
    %v6648 = vunpack.c.l.b16 %v1617
    %v6649 = vunpack.c.l.b16 %v1618
    %v6650 = vunpack.c.l.b16 %v1619
    %v6651 = vunpack.c.l.b16 %v1620
    %v6652 = vunpack.c.l.b16 %v1621
    %v6653 = vunpack.c.l.b16 %v1622
    %v6654 = vunpack.c.l.b16 %v1623
    %v6655 = vunpack.c.l.b16 %v1624
    %v6656 = vunpack.c.l.b16 %v1625
    %v6657 = vunpack.c.l.b16 %v1626
    %v6658 = vunpack.c.l.b16 %v1627
    %v6659 = vunpack.c.l.b16 %v1628
    %v6660 = vunpack.c.l.b16 %v1629
    %v6661 = vunpack.c.l.b16 %v1630
    %v6662 = vunpack.c.l.b16 %v1631
    %v6663 = vunpack.c.l.b16 %v1632
    %v6664 = vunpack.c.l.b16 %v1633
    %v6665 = vunpack.c.l.b16 %v1634
    %v6666 = vunpack.c.l.b16 %v1635
    %v6667 = vunpack.c.l.b16 %v1636
    %v6668 = vunpack.c.l.b16 %v1637
    %v6669 = vunpack.c.l.b16 %v1638
    %v6670 = vunpack.c.l.b16 %v1639
    %v6671 = vunpack.c.l.b16 %v1640
    %v6672 = vunpack.c.l.b16 %v1641
    %v6673 = vunpack.c.l.b16 %v1642
    %v6674 = vunpack.c.l.b16 %v1643
    %v6675 = vunpack.c.l.b16 %v1644
    %v6676 = vunpack.c.l.b16 %v1645
    %v6677 = vunpack.c.l.b16 %v1646
    %v6678 = vunpack.c.l.b16 %v1647
    %v6679 = vunpack.c.l.b16 %v1648
    %v6680 = vunpack.c.l.b16 %v1649
    %v6681 = vunpack.c.l.b16 %v1650
    %v6682 = vunpack.c.l.b16 %v1651
    %v6683 = vunpack.c.l.b16 %v1652
    %v6684 = vunpack.c.l.b16 %v1653
    %v6685 = vunpack.c.l.b16 %v1654
    %v6686 = vunpack.c.l.b16 %v1655
    %v6687 = vunpack.c.l.b16 %v1656
    %v6688 = vunpack.c.l.b16 %v1657
    %v6689 = vunpack.c.l.b16 %v1658
    %v6690 = vunpack.c.l.b16 %v1659
    %v6691 = vunpack.c.l.b16 %v1660
    %v6692 = vunpack.c.l.b16 %v1661
    %v6693 = vunpack.c.l.b16 %v1662
    %v6694 = vunpack.c.l.b16 %v1663
    %v6695 = vunpack.c.l.b16 %v1664
    %v6696 = vunpack.c.l.b16 %v1665
    %v6697 = vunpack.c.l.b16 %v1666
    %v6698 = vunpack.c.l.b16 %v1667
    %v6699 = vunpack.c.l.b16 %v1668
    %v6700 = vunpack.c.l.b16 %v1669
    %v6701 = vunpack.c.l.b16 %v1670
    %v6702 = vunpack.c.l.b16 %v1671
    %v6703 = vunpack.c.l.b16 %v1672
    %v6704 = vunpack.c.l.b16 %v1673
    %v6705 = vunpack.c.l.b16 %v1674
    %v6706 = vunpack.c.l.b16 %v1675
    %v6707 = vunpack.c.l.b16 %v1676
    %v6708 = vunpack.c.l.b16 %v1677
    %v6709 = vunpack.c.l.b16 %v1678
    %v6710 = vunpack.c.l.b16 %v1679
    %v6711 = vunpack.c.l.b16 %v1680
    %v6712 = vunpack.c.l.b16 %v1681
    %v6713 = vunpack.c.l.b16 %v1682
    %v6714 = vunpack.c.l.b16 %v1683
    %v6715 = vunpack.c.l.b16 %v1684
    %v6716 = vunpack.c.l.b16 %v1685
    %v6717 = vunpack.c.l.b16 %v1686
    %v6718 = vunpack.c.l.b16 %v1687
    %v6719 = vunpack.c.l.b16 %v1688
    %v6720 = vunpack.c.l.b16 %v1689
    %v6721 = vunpack.c.l.b16 %v1690
    %v6722 = vunpack.c.l.b16 %v1691
    %v6723 = vunpack.c.l.b16 %v1692
    %v6724 = vunpack.c.l.b16 %v1693
    %v6725 = vunpack.c.l.b16 %v1694
    %v6726 = vunpack.c.l.b16 %v1695
    %v6727 = vunpack.c.l.b16 %v1696
    %v6728 = vunpack.c.l.b16 %v1697
    %v6729 = vunpack.c.l.b16 %v1698
    %v6730 = vunpack.c.l.b16 %v1699
    %v6731 = vunpack.c.l.b16 %v1700
    %v6732 = vunpack.c.l.b16 %v1701
    %v6733 = vunpack.c.l.b16 %v1702
    %v6734 = vunpack.c.l.b16 %v1703
    %v6735 = vunpack.c.l.b16 %v1704
    %v6736 = vunpack.c.l.b16 %v1705
    %v6737 = vunpack.c.l.b16 %v1706
    %v6738 = vunpack.c.l.b16 %v1707
    %v6739 = vunpack.c.l.b16 %v1708
    %v6740 = vunpack.c.l.b16 %v1709
    %v6741 = vunpack.c.l.b16 %v1710
    %v6742 = vunpack.c.l.b16 %v1711
    %v6743 = vunpack.c.l.b16 %v1712
    %v6744 = vunpack.c.l.b16 %v1713
    %v6745 = vunpack.c.l.b16 %v1714
    %v6746 = vunpack.c.l.b16 %v1715
    %v6747 = vunpack.c.l.b16 %v1716
    %v6748 = vunpack.c.l.b16 %v1717
    %v6749 = vunpack.c.l.b16 %v1718
    %v6750 = vunpack.c.l.b16 %v1719
    %v6751 = vunpack.c.l.b16 %v1720
    %v6752 = vunpack.c.l.b16 %v1721
    %v6753 = vunpack.c.l.b16 %v1722
    %v6754 = vunpack.c.l.b16 %v1723
    %v6755 = vunpack.c.l.b16 %v1724
    %v6756 = vunpack.c.l.b16 %v1725
    %v6757 = vunpack.c.l.b16 %v1726
    %v6758 = vunpack.c.l.b16 %v1727
    %v6759 = vunpack.c.l.b16 %v1728
    %v6760 = vunpack.c.l.b16 %v1729
    %v6761 = vunpack.c.l.b16 %v1730
    %v6762 = vunpack.c.l.b16 %v1731
    %v6763 = vunpack.c.l.b16 %v1732
    %v6764 = vunpack.c.l.b16 %v1733
    %v6765 = vunpack.c.l.b16 %v1734
    %v6766 = vunpack.c.l.b16 %v1735
    %v6767 = vunpack.c.l.b16 %v1736
    %v6768 = vunpack.c.l.b16 %v1737
    %v6769 = vunpack.c.l.b16 %v1738
    %v6770 = vunpack.c.l.b16 %v1739
    %v6771 = vunpack.c.l.b16 %v1740
    %v6772 = vunpack.c.l.b16 %v1741
    %v6773 = vunpack.c.l.b16 %v1742
    %v6774 = vunpack.c.l.b16 %v1743
    %v6775 = vunpack.c.l.b16 %v1744
    %v6776 = vunpack.c.l.b16 %v1745
    %v6777 = vunpack.c.l.b16 %v1746
    %v6778 = vunpack.c.l.b16 %v1747
    %v6779 = vunpack.c.l.b16 %v1748
    %v6780 = vunpack.c.l.b16 %v1749
    %v6781 = vunpack.c.l.b16 %v1750
    %v6782 = vunpack.c.l.b16 %v1751
    %v6783 = vunpack.c.l.b16 %v1752
    %v6784 = vunpack.c.l.b16 %v1753
    %v6785 = vunpack.c.l.b16 %v1754
    %v6786 = vunpack.c.l.b16 %v1755
    %v6787 = vunpack.c.l.b16 %v1756
    %v6788 = vunpack.c.l.b16 %v1757
    %v6789 = vunpack.c.l.b16 %v1758
    %v6790 = vunpack.c.l.b16 %v1759
    %v6791 = vunpack.c.l.b16 %v1760
    %v6792 = vunpack.c.l.b16 %v1761
    %v6793 = vunpack.c.l.b16 %v1762
    %v6794 = vunpack.c.l.b16 %v1763
    %v6795 = vunpack.c.l.b16 %v1764
    %v6796 = vunpack.c.l.b16 %v1765
    %v6797 = vunpack.c.l.b16 %v1766
    %v6798 = vunpack.c.l.b16 %v1767
    %v6799 = vunpack.c.l.b16 %v1768
    %v6800 = vunpack.c.l.b16 %v1769
    %v6801 = vunpack.c.l.b16 %v1770
    %v6802 = vunpack.c.l.b16 %v1771
    %v6803 = vunpack.c.l.b16 %v1772
    %v6804 = vunpack.c.l.b16 %v1773
    %v6805 = vunpack.c.l.b16 %v1774
    %v6806 = vunpack.c.l.b16 %v1775
    %v6807 = vunpack.c.l.b16 %v1776
    %v6808 = vunpack.c.l.b16 %v1777
    %v6809 = vunpack.c.l.b16 %v1778
    %v6810 = vunpack.c.l.b16 %v1779
    %v6811 = vunpack.c.l.b16 %v1780
    %v6812 = vunpack.c.l.b16 %v1781
    %v6813 = vunpack.c.l.b16 %v1782
    %v6814 = vunpack.c.l.b16 %v1783
    %v6815 = vunpack.c.l.b16 %v1784
    %v6816 = vunpack.c.l.b16 %v1785
    %v6817 = vunpack.c.l.b16 %v1786
    %v6818 = vunpack.c.l.b16 %v1787
    %v6819 = vunpack.c.l.b16 %v1788
    %v6820 = vunpack.c.l.b16 %v1789
    %v6821 = vunpack.c.l.b16 %v1790
    %v6822 = vunpack.c.l.b16 %v1791
    %v6823 = vunpack.c.l.b16 %v1792
    %v6824 = vunpack.c.l.b16 %v1793
    %v6825 = vunpack.c.l.b16 %v1794
    %v6826 = vunpack.c.l.b16 %v1795
    %v6827 = vunpack.c.l.b16 %v1796
    %v6828 = vunpack.c.l.b16 %v1797
    %v6829 = vunpack.c.l.b16 %v1798
    %v6830 = vunpack.c.l.b16 %v1799
    %v6831 = vunpack.c.l.b16 %v1800
    %v6832 = vunpack.c.l.b16 %v1801
    %v6833 = vunpack.c.l.b16 %v1802
    %v6834 = vunpack.c.l.b16 %v1803
    %v6835 = vunpack.c.l.b16 %v1804
    %v6836 = vunpack.c.l.b16 %v1805
    %v6837 = vunpack.c.l.b16 %v1806
    %v6838 = vunpack.c.l.b16 %v1807
    %v6839 = vunpack.c.l.b16 %v1808
    %v6840 = vunpack.c.l.b16 %v1809
    %v6841 = vunpack.c.l.b16 %v1810
    %v6842 = vunpack.c.l.b16 %v1811
    %v6843 = vunpack.c.l.b16 %v1812
    %v6844 = vunpack.c.l.b16 %v1813
    %v6845 = vunpack.c.l.b16 %v1814
    %v6846 = vunpack.c.l.b16 %v1815
    %v6847 = vunpack.c.l.b16 %v1816
    %v6848 = vunpack.c.l.b16 %v1817
    %v6849 = vunpack.c.l.b16 %v1818
    %v6850 = vunpack.c.l.b16 %v1819
    %v6851 = vunpack.c.l.b16 %v1820
    %v6852 = vunpack.c.l.b16 %v1821
    %v6853 = vunpack.c.l.b16 %v1822
    %v6854 = vunpack.c.l.b16 %v1823
    %v6855 = vunpack.c.l.b16 %v1824
    %v6856 = vunpack.c.l.b16 %v1825
    %v6857 = vunpack.c.l.b16 %v1826
    %v6858 = vunpack.c.l.b16 %v1827
    %v6859 = vunpack.c.l.b16 %v1828
    %v6860 = vunpack.c.l.b16 %v1829
    %v6861 = vunpack.c.l.b16 %v1830
    %v6862 = vunpack.c.l.b16 %v1831
    %v6863 = vunpack.c.l.b16 %v1832
    %v6864 = vunpack.c.l.b16 %v1833
    %v6865 = vunpack.c.l.b16 %v1834
    %v6866 = vunpack.c.l.b16 %v1835
    %v6867 = vunpack.c.l.b16 %v1836
    %v6868 = vunpack.c.l.b16 %v1837
    %v6869 = vunpack.c.l.b16 %v1838
    %v6870 = vunpack.c.l.b16 %v1839
    %v6871 = vunpack.c.l.b16 %v1840
    %v6872 = vunpack.c.l.b16 %v1841
    %v6873 = vunpack.c.l.b16 %v1842
    %v6874 = vunpack.c.l.b16 %v1843
    %v6875 = vunpack.c.l.b16 %v1844
    %v6876 = vunpack.c.l.b16 %v1845
    %v6877 = vunpack.c.l.b16 %v1846
    %v6878 = vunpack.c.l.b16 %v1847
    %v6879 = vunpack.c.l.b16 %v1848
    %v6880 = vunpack.c.l.b16 %v1849
    %v6881 = vunpack.c.l.b16 %v1850
    %v6882 = vunpack.c.l.b16 %v1851
    %v6883 = vunpack.c.l.b16 %v1852
    %v6884 = vunpack.c.l.b16 %v1853
    %v6885 = vunpack.c.l.b16 %v1854
    %v6886 = vunpack.c.l.b16 %v1855
    %v6887 = vunpack.c.l.b16 %v1856
    %v6888 = vunpack.c.l.b16 %v1857
    %v6889 = vunpack.c.l.b16 %v1858
    %v6890 = vunpack.c.l.b16 %v1859
    %v6891 = vunpack.c.l.b16 %v1860
    %v6892 = vunpack.c.l.b16 %v1861
    %v6893 = vunpack.c.l.b16 %v1862
    %v6894 = vunpack.c.l.b16 %v1863
    %v6895 = vunpack.c.l.b16 %v1864
    %v6896 = vunpack.c.l.b16 %v1865
    %v6897 = vunpack.c.l.b16 %v1866
    %v6898 = vunpack.c.l.b16 %v1867
    %v6899 = vunpack.c.l.b16 %v1868
    %v6900 = vunpack.c.l.b16 %v1869
    %v6901 = vunpack.c.l.b16 %v1870
    %v6902 = vunpack.c.l.b16 %v1871
    %v6903 = vunpack.c.l.b16 %v1872
    %v6904 = vunpack.c.l.b16 %v1873
    %v6905 = vunpack.c.l.b16 %v1874
    %v6906 = vunpack.c.l.b16 %v1875
    %v6907 = vunpack.c.l.b16 %v1876
    %v6908 = vunpack.c.l.b16 %v1877
    %v6909 = vunpack.c.l.b16 %v1878
    %v6910 = vunpack.c.l.b16 %v1879
    %v6911 = vunpack.c.l.b16 %v1880
    %v6912 = vunpack.c.l.b16 %v1881
    %v6913 = vunpack.c.l.b16 %v1882
    %v6914 = vunpack.c.l.b16 %v1883
    %v6915 = vunpack.c.l.b16 %v1884
    %v6916 = vunpack.c.l.b16 %v1885
    %v6917 = vunpack.c.l.b16 %v1886
    %v6918 = vunpack.c.l.b16 %v1887
    %v6919 = vunpack.c.l.b16 %v1888
    %v6920 = vunpack.c.l.b16 %v1889
    %v6921 = vunpack.c.l.b16 %v1890
    %v6922 = vunpack.c.l.b16 %v1891
    %v6923 = vunpack.c.l.b16 %v1892
    %v6924 = vunpack.c.l.b16 %v1893
    %v6925 = vunpack.c.l.b16 %v1894
    %v6926 = vunpack.c.l.b16 %v1895
    %v6927 = vunpack.c.l.b16 %v1896
    %v6928 = vunpack.c.l.b16 %v1897
    %v6929 = vunpack.c.l.b16 %v1898
    %v6930 = vunpack.c.l.b16 %v1899
    %v6931 = vunpack.c.l.b16 %v1900
    %v6932 = vunpack.c.l.b16 %v1901
    %v6933 = vunpack.c.l.b16 %v1902
    %v6934 = vunpack.c.l.b16 %v1903
    %v6935 = vunpack.c.l.b16 %v1904
    %v6936 = vunpack.c.l.b16 %v1905
    %v6937 = vunpack.c.l.b16 %v1906
    %v6938 = vunpack.c.l.b16 %v1907
    %v6939 = vunpack.c.l.b16 %v1908
    %v6940 = vunpack.c.l.b16 %v1909
    %v6941 = vunpack.c.l.b16 %v1910
    %v6942 = vunpack.c.l.b16 %v1911
    %v6943 = vunpack.c.l.b16 %v1912
    %v6944 = vunpack.c.l.b16 %v1913
    %v6945 = vunpack.c.l.b16 %v1914
    %v6946 = vunpack.c.l.b16 %v1915
    %v6947 = vunpack.c.l.b16 %v1916
    %v6948 = vunpack.c.l.b16 %v1917
    %v6949 = vunpack.c.l.b16 %v1918
    %v6950 = vunpack.c.l.b16 %v1919
    %v6951 = vunpack.c.l.b16 %v1920
    %v6952 = vunpack.c.l.b16 %v1921
    %v6953 = vunpack.c.l.b16 %v1922
    %v6954 = vunpack.c.l.b16 %v1923
    %v6955 = vunpack.c.l.b16 %v1924
    %v6956 = vunpack.c.l.b16 %v1925
    %v6957 = vunpack.c.l.b16 %v1926
    %v6958 = vunpack.c.l.b16 %v1927
    %v6959 = vunpack.c.l.b16 %v1928
    %v6960 = vunpack.c.l.b16 %v1929
    %v6961 = vunpack.c.l.b16 %v1930
    %v6962 = vunpack.c.l.b16 %v1931
    %v6963 = vunpack.c.l.b16 %v1932
    %v6964 = vunpack.c.l.b16 %v1933
    %v6965 = vunpack.c.l.b16 %v1934
    %v6966 = vunpack.c.l.b16 %v1935
    %v6967 = vunpack.c.l.b16 %v1936
    %v6968 = vunpack.c.l.b16 %v1937
    %v6969 = vunpack.c.l.b16 %v1938
    %v6970 = vunpack.c.l.b16 %v1939
    %v6971 = vunpack.c.l.b16 %v1940
    %v6972 = vunpack.c.l.b16 %v1941
    %v6973 = vunpack.c.l.b16 %v1942
    %v6974 = vunpack.c.l.b16 %v1943
    %v6975 = vunpack.c.l.b16 %v1944
    %v6976 = vunpack.c.l.b16 %v1945
    %v6977 = vunpack.c.l.b16 %v1946
    %v6978 = vunpack.c.l.b16 %v1947
    %v6979 = vunpack.c.l.b16 %v1948
    %v6980 = vunpack.c.l.b16 %v1949
    %v6981 = vunpack.c.l.b16 %v1950
    %v6982 = vunpack.c.l.b16 %v1951
    %v6983 = vunpack.c.l.b16 %v1952
    %v6984 = vunpack.c.l.b16 %v1953
    %v6985 = vunpack.c.l.b16 %v1954
    %v6986 = vunpack.c.l.b16 %v1955
    %v6987 = vunpack.c.l.b16 %v1956
    %v6988 = vunpack.c.l.b16 %v1957
    %v6989 = vunpack.c.l.b16 %v1958
    %v6990 = vunpack.c.l.b16 %v1959
    %v6991 = vunpack.c.l.b16 %v1960
    %v6992 = vunpack.c.l.b16 %v1961
    %v6993 = vunpack.c.l.b16 %v1962
    %v6994 = vunpack.c.l.b16 %v1963
    %v6995 = vunpack.c.l.b16 %v1964
    %v6996 = vunpack.c.l.b16 %v1965
    %v6997 = vunpack.c.l.b16 %v1966
    %v6998 = vunpack.c.l.b16 %v1967
    %v6999 = vunpack.c.l.b16 %v1968
    %v7000 = vunpack.c.l.b16 %v1969
    %v7001 = vunpack.c.l.b16 %v1970
    %v7002 = vunpack.c.l.b16 %v1971
    %v7003 = vunpack.c.l.b16 %v1972
    %v7004 = vunpack.c.l.b16 %v1973
    %v7005 = vunpack.c.l.b16 %v1974
    %v7006 = vunpack.c.l.b16 %v1975
    %v7007 = vunpack.c.l.b16 %v1976
    %v7008 = vunpack.c.l.b16 %v1977
    %v7009 = vunpack.c.l.b16 %v1978
    %v7010 = vunpack.c.l.b16 %v1979
    %v7011 = vunpack.c.l.b16 %v1980
    %v7012 = vunpack.c.l.b16 %v1981
    %v7013 = vunpack.c.l.b16 %v1982
    %v7014 = vunpack.c.l.b16 %v1983
    %v7015 = vunpack.c.l.b16 %v1984
    %v7016 = vunpack.c.l.b16 %v1985
    %v7017 = vunpack.c.l.b16 %v1986
    %v7018 = vunpack.c.l.b16 %v1987
    %v7019 = vunpack.c.l.b16 %v1988
    %v7020 = vunpack.c.l.b16 %v1989
    %v7021 = vunpack.c.l.b16 %v1990
    %v7022 = vunpack.c.l.b16 %v1991
    %v7023 = vunpack.c.l.b16 %v1992
    %v7024 = vunpack.c.l.b16 %v1993
    %v7025 = vunpack.c.l.b16 %v1994
    %v7026 = vunpack.c.l.b16 %v1995
    %v7027 = vunpack.c.l.b16 %v1996
    %v7028 = vunpack.c.l.b16 %v1997
    %v7029 = vunpack.c.l.b16 %v1998
    %v7030 = vunpack.c.l.b16 %v1999
    %v7031 = vunpack.c.l.b16 %v2000
    %v7032 = vunpack.c.l.b16 %v2001
    %v7033 = vunpack.c.l.b16 %v2002
    %v7034 = vunpack.c.l.b16 %v2003
    %v7035 = vunpack.c.l.b16 %v2004
    %v7036 = vunpack.c.l.b16 %v2005
    %v7037 = vunpack.c.l.b16 %v2006
    %v7038 = vunpack.c.l.b16 %v2007
    %v7039 = vunpack.c.l.b16 %v2008
    %v7040 = vunpack.c.l.b16 %v2009
    %v7041 = vunpack.c.l.b16 %v2010
    %v7042 = vunpack.c.l.b16 %v2011
    %v7043 = vunpack.c.l.b16 %v2012
    %v7044 = vunpack.c.l.b16 %v2013
    %v7045 = vunpack.c.l.b16 %v2014
    %v7046 = vunpack.c.l.b16 %v2015
    %v7047 = vunpack.c.l.b16 %v2016
    %v7048 = vunpack.c.l.b16 %v2017
    %v7049 = vunpack.c.l.b16 %v2018
    %v7050 = vunpack.c.l.b16 %v2019
    %v7051 = vunpack.c.l.b16 %v2020
    %v7052 = vunpack.c.l.b16 %v2021
    %v7053 = vunpack.c.l.b16 %v2022
    %v7054 = vunpack.c.l.b16 %v2023
    %v7055 = vunpack.c.l.b16 %v2024
    %v7056 = vunpack.c.l.b16 %v2025
    %v7057 = vunpack.c.l.b16 %v2026
    %v7058 = vunpack.c.l.b16 %v2027
    %v7059 = vunpack.c.l.b16 %v2028
    %v7060 = vunpack.c.l.b16 %v2029
    %v7061 = vunpack.c.l.b16 %v2030
    %v7062 = vunpack.c.l.b16 %v2031
    %v7063 = vunpack.c.l.b16 %v2032
    %v7064 = vunpack.c.l.b16 %v2033
    %v7065 = vunpack.c.l.b16 %v2034
    %v7066 = vunpack.c.l.b16 %v2035
    %v7067 = vunpack.c.l.b16 %v2036
    %v7068 = vunpack.c.l.b16 %v2037
    %v7069 = vunpack.c.l.b16 %v2038
    %v7070 = vunpack.c.l.b16 %v2039
    %v7071 = vunpack.c.l.b16 %v2040
    %v7072 = vunpack.c.l.b16 %v2041
    %v7073 = vunpack.c.l.b16 %v2042
    %v7074 = vunpack.c.l.b16 %v2043
    %v7075 = vunpack.c.l.b16 %v2044
    %v7076 = vunpack.c.l.b16 %v2045
    %v7077 = vunpack.c.l.b16 %v2046
    %v7078 = vunpack.c.l.b16 %v2047
    %v7079 = vunpack.c.l.b16 %v2048
    %v7080 = vunpack.c.l.b16 %v2049
    %v7081 = vunpack.c.l.b16 %v2050
    %v7082 = vunpack.c.l.b16 %v2051
    %v7083 = vunpack.c.l.b16 %v2052
    %v7084 = vunpack.c.l.b16 %v2053
    %v7085 = vunpack.c.l.b16 %v2054
    %v7086 = vunpack.c.l.b16 %v2055
    %v7087 = vunpack.c.l.b16 %v2056
    %v7088 = vunpack.c.l.b16 %v2057
    %v7089 = vunpack.c.l.b16 %v2058
    %v7090 = vunpack.c.l.b16 %v2059
    %v7091 = vunpack.c.l.b16 %v2060
    %v7092 = vunpack.c.l.b16 %v2061
    %v7093 = vunpack.c.l.b16 %v2062
    %v7094 = vunpack.c.l.b16 %v2063
    %v7095 = vunpack.c.l.b16 %v2064
    %v7096 = vunpack.c.l.b16 %v2065
    %v7097 = vunpack.c.l.b16 %v2066
    %v7098 = vunpack.c.l.b16 %v2067
    %v7099 = vunpack.c.l.b16 %v2068
    %v7100 = vunpack.c.l.b16 %v2069
    %v7101 = vunpack.c.l.b16 %v2070
    %v7102 = vunpack.c.l.b16 %v2071
    %v7103 = vunpack.c.l.b16 %v2072
    %v7104 = vunpack.c.l.b16 %v2073
    %v7105 = vunpack.c.l.b16 %v2074
    %v7106 = vunpack.c.l.b16 %v2075
    %v7107 = vunpack.c.l.b16 %v2076
    %v7108 = vunpack.c.l.b16 %v2077
    %v7109 = vunpack.c.l.b16 %v2078
    %v7110 = vunpack.c.l.b16 %v2079
    %v7111 = vunpack.c.l.b16 %v2080
    %v7112 = vunpack.c.l.b16 %v2081
    %v7113 = vunpack.c.l.b16 %v2082
    %v7114 = vunpack.c.l.b16 %v2083
    %v7115 = vunpack.c.l.b16 %v2084
    %v7116 = vunpack.c.l.b16 %v2085
    %v7117 = vunpack.c.l.b16 %v2086
    %v7118 = vunpack.c.l.b16 %v2087
    %v7119 = vunpack.c.l.b16 %v2088
    %v7120 = vunpack.c.l.b16 %v2089
    %v7121 = vunpack.c.l.b16 %v2090
    %v7122 = vunpack.c.l.b16 %v2091
    %v7123 = vunpack.c.l.b16 %v2092
    %v7124 = vunpack.c.l.b16 %v2093
    %v7125 = vunpack.c.l.b16 %v2094
    %v7126 = vunpack.c.l.b16 %v2095
    %v7127 = vunpack.c.l.b16 %v2096
    %v7128 = vunpack.c.l.b16 %v2097
    %v7129 = vunpack.c.l.b16 %v2098
    %v7130 = vunpack.c.l.b16 %v2099
    %v7131 = vunpack.c.l.b16 %v2100
    %v7132 = vunpack.c.l.b16 %v2101
    %v7133 = vunpack.c.l.b16 %v2102
    %v7134 = vunpack.c.l.b16 %v2103
    %v7135 = vunpack.c.l.b16 %v2104
    %v7136 = vpack.c.b16 %v5089, %v5088
    %v7137 = vpack.c.b16 %v5091, %v5090
    %v7138 = vpack.c.b16 %v5093, %v5092
    %v7139 = vpack.c.b16 %v5095, %v5094
    %v7140 = vpack.c.b16 %v5097, %v5096
    %v7141 = vpack.c.b16 %v5099, %v5098
    %v7142 = vpack.c.b16 %v5101, %v5100
    %v7143 = vpack.c.b16 %v5103, %v5102
    %v7144 = vpack.c.b16 %v5105, %v5104
    %v7145 = vpack.c.b16 %v5107, %v5106
    %v7146 = vpack.c.b16 %v5109, %v5108
    %v7147 = vpack.c.b16 %v5111, %v5110
    %v7148 = vpack.c.b16 %v5113, %v5112
    %v7149 = vpack.c.b16 %v5115, %v5114
    %v7150 = vpack.c.b16 %v5117, %v5116
    %v7151 = vpack.c.b16 %v5119, %v5118
    %v7152 = vpack.c.b16 %v5121, %v5120
    %v7153 = vpack.c.b16 %v5123, %v5122
    %v7154 = vpack.c.b16 %v5125, %v5124
    %v7155 = vpack.c.b16 %v5127, %v5126
    %v7156 = vpack.c.b16 %v5129, %v5128
    %v7157 = vpack.c.b16 %v5131, %v5130
    %v7158 = vpack.c.b16 %v5133, %v5132
    %v7159 = vpack.c.b16 %v5135, %v5134
    %v7160 = vpack.c.b16 %v5137, %v5136
    %v7161 = vpack.c.b16 %v5139, %v5138
    %v7162 = vpack.c.b16 %v5141, %v5140
    %v7163 = vpack.c.b16 %v5143, %v5142
    %v7164 = vpack.c.b16 %v5145, %v5144
    %v7165 = vpack.c.b16 %v5147, %v5146
    %v7166 = vpack.c.b16 %v5149, %v5148
    %v7167 = vpack.c.b16 %v5151, %v5150
    %v7168 = vpack.c.b16 %v5153, %v5152
    %v7169 = vpack.c.b16 %v5155, %v5154
    %v7170 = vpack.c.b16 %v5157, %v5156
    %v7171 = vpack.c.b16 %v5159, %v5158
    %v7172 = vpack.c.b16 %v5161, %v5160
    %v7173 = vpack.c.b16 %v5163, %v5162
    %v7174 = vpack.c.b16 %v5165, %v5164
    %v7175 = vpack.c.b16 %v5167, %v5166
    %v7176 = vpack.c.b16 %v5169, %v5168
    %v7177 = vpack.c.b16 %v5171, %v5170
    %v7178 = vpack.c.b16 %v5173, %v5172
    %v7179 = vpack.c.b16 %v5175, %v5174
    %v7180 = vpack.c.b16 %v5177, %v5176
    %v7181 = vpack.c.b16 %v5179, %v5178
    %v7182 = vpack.c.b16 %v5181, %v5180
    %v7183 = vpack.c.b16 %v5183, %v5182
    %v7184 = vpack.c.b16 %v5185, %v5184
    %v7185 = vpack.c.b16 %v5187, %v5186
    %v7186 = vpack.c.b16 %v5189, %v5188
    %v7187 = vpack.c.b16 %v5191, %v5190
    %v7188 = vpack.c.b16 %v5193, %v5192
    %v7189 = vpack.c.b16 %v5195, %v5194
    %v7190 = vpack.c.b16 %v5197, %v5196
    %v7191 = vpack.c.b16 %v5199, %v5198
    %v7192 = vpack.c.b16 %v5201, %v5200
    %v7193 = vpack.c.b16 %v5203, %v5202
    %v7194 = vpack.c.b16 %v5205, %v5204
    %v7195 = vpack.c.b16 %v5207, %v5206
    %v7196 = vpack.c.b16 %v5209, %v5208
    %v7197 = vpack.c.b16 %v5211, %v5210
    %v7198 = vpack.c.b16 %v5213, %v5212
    %v7199 = vpack.c.b16 %v5215, %v5214
    %v7200 = vpack.c.b16 %v5217, %v5216
    %v7201 = vpack.c.b16 %v5219, %v5218
    %v7202 = vpack.c.b16 %v5221, %v5220
    %v7203 = vpack.c.b16 %v5223, %v5222
    %v7204 = vpack.c.b16 %v5225, %v5224
    %v7205 = vpack.c.b16 %v5227, %v5226
    %v7206 = vpack.c.b16 %v5229, %v5228
    %v7207 = vpack.c.b16 %v5231, %v5230
    %v7208 = vpack.c.b16 %v5233, %v5232
    %v7209 = vpack.c.b16 %v5235, %v5234
    %v7210 = vpack.c.b16 %v5237, %v5236
    %v7211 = vpack.c.b16 %v5239, %v5238
    %v7212 = vpack.c.b16 %v5241, %v5240
    %v7213 = vpack.c.b16 %v5243, %v5242
    %v7214 = vpack.c.b16 %v5245, %v5244
    %v7215 = vpack.c.b16 %v5247, %v5246
    %v7216 = vpack.c.b16 %v5249, %v5248
    %v7217 = vpack.c.b16 %v5251, %v5250
    %v7218 = vpack.c.b16 %v5253, %v5252
    %v7219 = vpack.c.b16 %v5255, %v5254
    %v7220 = vpack.c.b16 %v5257, %v5256
    %v7221 = vpack.c.b16 %v5259, %v5258
    %v7222 = vpack.c.b16 %v5261, %v5260
    %v7223 = vpack.c.b16 %v5263, %v5262
    %v7224 = vpack.c.b16 %v5265, %v5264
    %v7225 = vpack.c.b16 %v5267, %v5266
    %v7226 = vpack.c.b16 %v5269, %v5268
    %v7227 = vpack.c.b16 %v5271, %v5270
    %v7228 = vpack.c.b16 %v5273, %v5272
    %v7229 = vpack.c.b16 %v5275, %v5274
    %v7230 = vpack.c.b16 %v5277, %v5276
    %v7231 = vpack.c.b16 %v5279, %v5278
    %v7232 = vpack.c.b16 %v5281, %v5280
    %v7233 = vpack.c.b16 %v5283, %v5282
    %v7234 = vpack.c.b16 %v5285, %v5284
    %v7235 = vpack.c.b16 %v5287, %v5286
    %v7236 = vpack.c.b16 %v5289, %v5288
    %v7237 = vpack.c.b16 %v5291, %v5290
    %v7238 = vpack.c.b16 %v5293, %v5292
    %v7239 = vpack.c.b16 %v5295, %v5294
    %v7240 = vpack.c.b16 %v5297, %v5296
    %v7241 = vpack.c.b16 %v5299, %v5298
    %v7242 = vpack.c.b16 %v5301, %v5300
    %v7243 = vpack.c.b16 %v5303, %v5302
    %v7244 = vpack.c.b16 %v5305, %v5304
    %v7245 = vpack.c.b16 %v5307, %v5306
    %v7246 = vpack.c.b16 %v5309, %v5308
    %v7247 = vpack.c.b16 %v5311, %v5310
    %v7248 = vpack.c.b16 %v5313, %v5312
    %v7249 = vpack.c.b16 %v5315, %v5314
    %v7250 = vpack.c.b16 %v5317, %v5316
    %v7251 = vpack.c.b16 %v5319, %v5318
    %v7252 = vpack.c.b16 %v5321, %v5320
    %v7253 = vpack.c.b16 %v5323, %v5322
    %v7254 = vpack.c.b16 %v5325, %v5324
    %v7255 = vpack.c.b16 %v5327, %v5326
    %v7256 = vpack.c.b16 %v5329, %v5328
    %v7257 = vpack.c.b16 %v5331, %v5330
    %v7258 = vpack.c.b16 %v5333, %v5332
    %v7259 = vpack.c.b16 %v5335, %v5334
    %v7260 = vpack.c.b16 %v5337, %v5336
    %v7261 = vpack.c.b16 %v5339, %v5338
    %v7262 = vpack.c.b16 %v5341, %v5340
    %v7263 = vpack.c.b16 %v5343, %v5342
    %v7264 = vpack.c.b16 %v5345, %v5344
    %v7265 = vpack.c.b16 %v5347, %v5346
    %v7266 = vpack.c.b16 %v5349, %v5348
    %v7267 = vpack.c.b16 %v5351, %v5350
    %v7268 = vpack.c.b16 %v5353, %v5352
    %v7269 = vpack.c.b16 %v5355, %v5354
    %v7270 = vpack.c.b16 %v5357, %v5356
    %v7271 = vpack.c.b16 %v5359, %v5358
    %v7272 = vpack.c.b16 %v5361, %v5360
    %v7273 = vpack.c.b16 %v5363, %v5362
    %v7274 = vpack.c.b16 %v5365, %v5364
    %v7275 = vpack.c.b16 %v5367, %v5366
    %v7276 = vpack.c.b16 %v5369, %v5368
    %v7277 = vpack.c.b16 %v5371, %v5370
    %v7278 = vpack.c.b16 %v5373, %v5372
    %v7279 = vpack.c.b16 %v5375, %v5374
    %v7280 = vpack.c.b16 %v5377, %v5376
    %v7281 = vpack.c.b16 %v5379, %v5378
    %v7282 = vpack.c.b16 %v5381, %v5380
    %v7283 = vpack.c.b16 %v5383, %v5382
    %v7284 = vpack.c.b16 %v5385, %v5384
    %v7285 = vpack.c.b16 %v5387, %v5386
    %v7286 = vpack.c.b16 %v5389, %v5388
    %v7287 = vpack.c.b16 %v5391, %v5390
    %v7288 = vpack.c.b16 %v5393, %v5392
    %v7289 = vpack.c.b16 %v5395, %v5394
    %v7290 = vpack.c.b16 %v5397, %v5396
    %v7291 = vpack.c.b16 %v5399, %v5398
    %v7292 = vpack.c.b16 %v5401, %v5400
    %v7293 = vpack.c.b16 %v5403, %v5402
    %v7294 = vpack.c.b16 %v5405, %v5404
    %v7295 = vpack.c.b16 %v5407, %v5406
    %v7296 = vpack.c.b16 %v5409, %v5408
    %v7297 = vpack.c.b16 %v5411, %v5410
    %v7298 = vpack.c.b16 %v5413, %v5412
    %v7299 = vpack.c.b16 %v5415, %v5414
    %v7300 = vpack.c.b16 %v5417, %v5416
    %v7301 = vpack.c.b16 %v5419, %v5418
    %v7302 = vpack.c.b16 %v5421, %v5420
    %v7303 = vpack.c.b16 %v5423, %v5422
    %v7304 = vpack.c.b16 %v5425, %v5424
    %v7305 = vpack.c.b16 %v5427, %v5426
    %v7306 = vpack.c.b16 %v5429, %v5428
    %v7307 = vpack.c.b16 %v5431, %v5430
    %v7308 = vpack.c.b16 %v5433, %v5432
    %v7309 = vpack.c.b16 %v5435, %v5434
    %v7310 = vpack.c.b16 %v5437, %v5436
    %v7311 = vpack.c.b16 %v5439, %v5438
    %v7312 = vpack.c.b16 %v5441, %v5440
    %v7313 = vpack.c.b16 %v5443, %v5442
    %v7314 = vpack.c.b16 %v5445, %v5444
    %v7315 = vpack.c.b16 %v5447, %v5446
    %v7316 = vpack.c.b16 %v5449, %v5448
    %v7317 = vpack.c.b16 %v5451, %v5450
    %v7318 = vpack.c.b16 %v5453, %v5452
    %v7319 = vpack.c.b16 %v5455, %v5454
    %v7320 = vpack.c.b16 %v5457, %v5456
    %v7321 = vpack.c.b16 %v5459, %v5458
    %v7322 = vpack.c.b16 %v5461, %v5460
    %v7323 = vpack.c.b16 %v5463, %v5462
    %v7324 = vpack.c.b16 %v5465, %v5464
    %v7325 = vpack.c.b16 %v5467, %v5466
    %v7326 = vpack.c.b16 %v5469, %v5468
    %v7327 = vpack.c.b16 %v5471, %v5470
    %v7328 = vpack.c.b16 %v5473, %v5472
    %v7329 = vpack.c.b16 %v5475, %v5474
    %v7330 = vpack.c.b16 %v5477, %v5476
    %v7331 = vpack.c.b16 %v5479, %v5478
    %v7332 = vpack.c.b16 %v5481, %v5480
    %v7333 = vpack.c.b16 %v5483, %v5482
    %v7334 = vpack.c.b16 %v5485, %v5484
    %v7335 = vpack.c.b16 %v5487, %v5486
    %v7336 = vpack.c.b16 %v5489, %v5488
    %v7337 = vpack.c.b16 %v5491, %v5490
    %v7338 = vpack.c.b16 %v5493, %v5492
    %v7339 = vpack.c.b16 %v5495, %v5494
    %v7340 = vpack.c.b16 %v5497, %v5496
    %v7341 = vpack.c.b16 %v5499, %v5498
    %v7342 = vpack.c.b16 %v5501, %v5500
    %v7343 = vpack.c.b16 %v5503, %v5502
    %v7344 = vpack.c.b16 %v5505, %v5504
    %v7345 = vpack.c.b16 %v5507, %v5506
    %v7346 = vpack.c.b16 %v5509, %v5508
    %v7347 = vpack.c.b16 %v5511, %v5510
    %v7348 = vpack.c.b16 %v5513, %v5512
    %v7349 = vpack.c.b16 %v5515, %v5514
    %v7350 = vpack.c.b16 %v5517, %v5516
    %v7351 = vpack.c.b16 %v5519, %v5518
    %v7352 = vpack.c.b16 %v5521, %v5520
    %v7353 = vpack.c.b16 %v5523, %v5522
    %v7354 = vpack.c.b16 %v5525, %v5524
    %v7355 = vpack.c.b16 %v5527, %v5526
    %v7356 = vpack.c.b16 %v5529, %v5528
    %v7357 = vpack.c.b16 %v5531, %v5530
    %v7358 = vpack.c.b16 %v5533, %v5532
    %v7359 = vpack.c.b16 %v5535, %v5534
    %v7360 = vpack.c.b16 %v5537, %v5536
    %v7361 = vpack.c.b16 %v5539, %v5538
    %v7362 = vpack.c.b16 %v5541, %v5540
    %v7363 = vpack.c.b16 %v5543, %v5542
    %v7364 = vpack.c.b16 %v5545, %v5544
    %v7365 = vpack.c.b16 %v5547, %v5546
    %v7366 = vpack.c.b16 %v5549, %v5548
    %v7367 = vpack.c.b16 %v5551, %v5550
    %v7368 = vpack.c.b16 %v5553, %v5552
    %v7369 = vpack.c.b16 %v5555, %v5554
    %v7370 = vpack.c.b16 %v5557, %v5556
    %v7371 = vpack.c.b16 %v5559, %v5558
    %v7372 = vpack.c.b16 %v5561, %v5560
    %v7373 = vpack.c.b16 %v5563, %v5562
    %v7374 = vpack.c.b16 %v5565, %v5564
    %v7375 = vpack.c.b16 %v5567, %v5566
    %v7376 = vpack.c.b16 %v5569, %v5568
    %v7377 = vpack.c.b16 %v5571, %v5570
    %v7378 = vpack.c.b16 %v5573, %v5572
    %v7379 = vpack.c.b16 %v5575, %v5574
    %v7380 = vpack.c.b16 %v5577, %v5576
    %v7381 = vpack.c.b16 %v5579, %v5578
    %v7382 = vpack.c.b16 %v5581, %v5580
    %v7383 = vpack.c.b16 %v5583, %v5582
    %v7384 = vpack.c.b16 %v5585, %v5584
    %v7385 = vpack.c.b16 %v5587, %v5586
    %v7386 = vpack.c.b16 %v5589, %v5588
    %v7387 = vpack.c.b16 %v5591, %v5590
    %v7388 = vpack.c.b16 %v5593, %v5592
    %v7389 = vpack.c.b16 %v5595, %v5594
    %v7390 = vpack.c.b16 %v5597, %v5596
    %v7391 = vpack.c.b16 %v5599, %v5598
    %v7392 = vpack.c.b16 %v5601, %v5600
    %v7393 = vpack.c.b16 %v5603, %v5602
    %v7394 = vpack.c.b16 %v5605, %v5604
    %v7395 = vpack.c.b16 %v5607, %v5606
    %v7396 = vpack.c.b16 %v5609, %v5608
    %v7397 = vpack.c.b16 %v5611, %v5610
    %v7398 = vpack.c.b16 %v5613, %v5612
    %v7399 = vpack.c.b16 %v5615, %v5614
    %v7400 = vpack.c.b16 %v5617, %v5616
    %v7401 = vpack.c.b16 %v5619, %v5618
    %v7402 = vpack.c.b16 %v5621, %v5620
    %v7403 = vpack.c.b16 %v5623, %v5622
    %v7404 = vpack.c.b16 %v5625, %v5624
    %v7405 = vpack.c.b16 %v5627, %v5626
    %v7406 = vpack.c.b16 %v5629, %v5628
    %v7407 = vpack.c.b16 %v5631, %v5630
    %v7408 = vpack.c.b16 %v5633, %v5632
    %v7409 = vpack.c.b16 %v5635, %v5634
    %v7410 = vpack.c.b16 %v5637, %v5636
    %v7411 = vpack.c.b16 %v5639, %v5638
    %v7412 = vpack.c.b16 %v5641, %v5640
    %v7413 = vpack.c.b16 %v5643, %v5642
    %v7414 = vpack.c.b16 %v5645, %v5644
    %v7415 = vpack.c.b16 %v5647, %v5646
    %v7416 = vpack.c.b16 %v5649, %v5648
    %v7417 = vpack.c.b16 %v5651, %v5650
    %v7418 = vpack.c.b16 %v5653, %v5652
    %v7419 = vpack.c.b16 %v5655, %v5654
    %v7420 = vpack.c.b16 %v5657, %v5656
    %v7421 = vpack.c.b16 %v5659, %v5658
    %v7422 = vpack.c.b16 %v5661, %v5660
    %v7423 = vpack.c.b16 %v5663, %v5662
    %v7424 = vpack.c.b16 %v5665, %v5664
    %v7425 = vpack.c.b16 %v5667, %v5666
    %v7426 = vpack.c.b16 %v5669, %v5668
    %v7427 = vpack.c.b16 %v5671, %v5670
    %v7428 = vpack.c.b16 %v5673, %v5672
    %v7429 = vpack.c.b16 %v5675, %v5674
    %v7430 = vpack.c.b16 %v5677, %v5676
    %v7431 = vpack.c.b16 %v5679, %v5678
    %v7432 = vpack.c.b16 %v5681, %v5680
    %v7433 = vpack.c.b16 %v5683, %v5682
    %v7434 = vpack.c.b16 %v5685, %v5684
    %v7435 = vpack.c.b16 %v5687, %v5686
    %v7436 = vpack.c.b16 %v5689, %v5688
    %v7437 = vpack.c.b16 %v5691, %v5690
    %v7438 = vpack.c.b16 %v5693, %v5692
    %v7439 = vpack.c.b16 %v5695, %v5694
    %v7440 = vpack.c.b16 %v5697, %v5696
    %v7441 = vpack.c.b16 %v5699, %v5698
    %v7442 = vpack.c.b16 %v5701, %v5700
    %v7443 = vpack.c.b16 %v5703, %v5702
    %v7444 = vpack.c.b16 %v5705, %v5704
    %v7445 = vpack.c.b16 %v5707, %v5706
    %v7446 = vpack.c.b16 %v5709, %v5708
    %v7447 = vpack.c.b16 %v5711, %v5710
    %v7448 = vpack.c.b16 %v5713, %v5712
    %v7449 = vpack.c.b16 %v5715, %v5714
    %v7450 = vpack.c.b16 %v5717, %v5716
    %v7451 = vpack.c.b16 %v5719, %v5718
    %v7452 = vpack.c.b16 %v5721, %v5720
    %v7453 = vpack.c.b16 %v5723, %v5722
    %v7454 = vpack.c.b16 %v5725, %v5724
    %v7455 = vpack.c.b16 %v5727, %v5726
    %v7456 = vpack.c.b16 %v5729, %v5728
    %v7457 = vpack.c.b16 %v5731, %v5730
    %v7458 = vpack.c.b16 %v5733, %v5732
    %v7459 = vpack.c.b16 %v5735, %v5734
    %v7460 = vpack.c.b16 %v5737, %v5736
    %v7461 = vpack.c.b16 %v5739, %v5738
    %v7462 = vpack.c.b16 %v5741, %v5740
    %v7463 = vpack.c.b16 %v5743, %v5742
    %v7464 = vpack.c.b16 %v5745, %v5744
    %v7465 = vpack.c.b16 %v5747, %v5746
    %v7466 = vpack.c.b16 %v5749, %v5748
    %v7467 = vpack.c.b16 %v5751, %v5750
    %v7468 = vpack.c.b16 %v5753, %v5752
    %v7469 = vpack.c.b16 %v5755, %v5754
    %v7470 = vpack.c.b16 %v5757, %v5756
    %v7471 = vpack.c.b16 %v5759, %v5758
    %v7472 = vpack.c.b16 %v5761, %v5760
    %v7473 = vpack.c.b16 %v5763, %v5762
    %v7474 = vpack.c.b16 %v5765, %v5764
    %v7475 = vpack.c.b16 %v5767, %v5766
    %v7476 = vpack.c.b16 %v5769, %v5768
    %v7477 = vpack.c.b16 %v5771, %v5770
    %v7478 = vpack.c.b16 %v5773, %v5772
    %v7479 = vpack.c.b16 %v5775, %v5774
    %v7480 = vpack.c.b16 %v5777, %v5776
    %v7481 = vpack.c.b16 %v5779, %v5778
    %v7482 = vpack.c.b16 %v5781, %v5780
    %v7483 = vpack.c.b16 %v5783, %v5782
    %v7484 = vpack.c.b16 %v5785, %v5784
    %v7485 = vpack.c.b16 %v5787, %v5786
    %v7486 = vpack.c.b16 %v5789, %v5788
    %v7487 = vpack.c.b16 %v5791, %v5790
    %v7488 = vpack.c.b16 %v5793, %v5792
    %v7489 = vpack.c.b16 %v5795, %v5794
    %v7490 = vpack.c.b16 %v5797, %v5796
    %v7491 = vpack.c.b16 %v5799, %v5798
    %v7492 = vpack.c.b16 %v5801, %v5800
    %v7493 = vpack.c.b16 %v5803, %v5802
    %v7494 = vpack.c.b16 %v5805, %v5804
    %v7495 = vpack.c.b16 %v5807, %v5806
    %v7496 = vpack.c.b16 %v5809, %v5808
    %v7497 = vpack.c.b16 %v5811, %v5810
    %v7498 = vpack.c.b16 %v5813, %v5812
    %v7499 = vpack.c.b16 %v5815, %v5814
    %v7500 = vpack.c.b16 %v5817, %v5816
    %v7501 = vpack.c.b16 %v5819, %v5818
    %v7502 = vpack.c.b16 %v5821, %v5820
    %v7503 = vpack.c.b16 %v5823, %v5822
    %v7504 = vpack.c.b16 %v5825, %v5824
    %v7505 = vpack.c.b16 %v5827, %v5826
    %v7506 = vpack.c.b16 %v5829, %v5828
    %v7507 = vpack.c.b16 %v5831, %v5830
    %v7508 = vpack.c.b16 %v5833, %v5832
    %v7509 = vpack.c.b16 %v5835, %v5834
    %v7510 = vpack.c.b16 %v5837, %v5836
    %v7511 = vpack.c.b16 %v5839, %v5838
    %v7512 = vpack.c.b16 %v5841, %v5840
    %v7513 = vpack.c.b16 %v5843, %v5842
    %v7514 = vpack.c.b16 %v5845, %v5844
    %v7515 = vpack.c.b16 %v5847, %v5846
    %v7516 = vpack.c.b16 %v5849, %v5848
    %v7517 = vpack.c.b16 %v5851, %v5850
    %v7518 = vpack.c.b16 %v5853, %v5852
    %v7519 = vpack.c.b16 %v5855, %v5854
    %v7520 = vpack.c.b16 %v5857, %v5856
    %v7521 = vpack.c.b16 %v5859, %v5858
    %v7522 = vpack.c.b16 %v5861, %v5860
    %v7523 = vpack.c.b16 %v5863, %v5862
    %v7524 = vpack.c.b16 %v5865, %v5864
    %v7525 = vpack.c.b16 %v5867, %v5866
    %v7526 = vpack.c.b16 %v5869, %v5868
    %v7527 = vpack.c.b16 %v5871, %v5870
    %v7528 = vpack.c.b16 %v5873, %v5872
    %v7529 = vpack.c.b16 %v5875, %v5874
    %v7530 = vpack.c.b16 %v5877, %v5876
    %v7531 = vpack.c.b16 %v5879, %v5878
    %v7532 = vpack.c.b16 %v5881, %v5880
    %v7533 = vpack.c.b16 %v5883, %v5882
    %v7534 = vpack.c.b16 %v5885, %v5884
    %v7535 = vpack.c.b16 %v5887, %v5886
    %v7536 = vpack.c.b16 %v5889, %v5888
    %v7537 = vpack.c.b16 %v5891, %v5890
    %v7538 = vpack.c.b16 %v5893, %v5892
    %v7539 = vpack.c.b16 %v5895, %v5894
    %v7540 = vpack.c.b16 %v5897, %v5896
    %v7541 = vpack.c.b16 %v5899, %v5898
    %v7542 = vpack.c.b16 %v5901, %v5900
    %v7543 = vpack.c.b16 %v5903, %v5902
    %v7544 = vpack.c.b16 %v5905, %v5904
    %v7545 = vpack.c.b16 %v5907, %v5906
    %v7546 = vpack.c.b16 %v5909, %v5908
    %v7547 = vpack.c.b16 %v5911, %v5910
    %v7548 = vpack.c.b16 %v5913, %v5912
    %v7549 = vpack.c.b16 %v5915, %v5914
    %v7550 = vpack.c.b16 %v5917, %v5916
    %v7551 = vpack.c.b16 %v5919, %v5918
    %v7552 = vpack.c.b16 %v5921, %v5920
    %v7553 = vpack.c.b16 %v5923, %v5922
    %v7554 = vpack.c.b16 %v5925, %v5924
    %v7555 = vpack.c.b16 %v5927, %v5926
    %v7556 = vpack.c.b16 %v5929, %v5928
    %v7557 = vpack.c.b16 %v5931, %v5930
    %v7558 = vpack.c.b16 %v5933, %v5932
    %v7559 = vpack.c.b16 %v5935, %v5934
    %v7560 = vpack.c.b16 %v5937, %v5936
    %v7561 = vpack.c.b16 %v5939, %v5938
    %v7562 = vpack.c.b16 %v5941, %v5940
    %v7563 = vpack.c.b16 %v5943, %v5942
    %v7564 = vpack.c.b16 %v5945, %v5944
    %v7565 = vpack.c.b16 %v5947, %v5946
    %v7566 = vpack.c.b16 %v5949, %v5948
    %v7567 = vpack.c.b16 %v5951, %v5950
    %v7568 = vpack.c.b16 %v5953, %v5952
    %v7569 = vpack.c.b16 %v5955, %v5954
    %v7570 = vpack.c.b16 %v5957, %v5956
    %v7571 = vpack.c.b16 %v5959, %v5958
    %v7572 = vpack.c.b16 %v5961, %v5960
    %v7573 = vpack.c.b16 %v5963, %v5962
    %v7574 = vpack.c.b16 %v5965, %v5964
    %v7575 = vpack.c.b16 %v5967, %v5966
    %v7576 = vpack.c.b16 %v5969, %v5968
    %v7577 = vpack.c.b16 %v5971, %v5970
    %v7578 = vpack.c.b16 %v5973, %v5972
    %v7579 = vpack.c.b16 %v5975, %v5974
    %v7580 = vpack.c.b16 %v5977, %v5976
    %v7581 = vpack.c.b16 %v5979, %v5978
    %v7582 = vpack.c.b16 %v5981, %v5980
    %v7583 = vpack.c.b16 %v5983, %v5982
    %v7584 = vpack.c.b16 %v5985, %v5984
    %v7585 = vpack.c.b16 %v5987, %v5986
    %v7586 = vpack.c.b16 %v5989, %v5988
    %v7587 = vpack.c.b16 %v5991, %v5990
    %v7588 = vpack.c.b16 %v5993, %v5992
    %v7589 = vpack.c.b16 %v5995, %v5994
    %v7590 = vpack.c.b16 %v5997, %v5996
    %v7591 = vpack.c.b16 %v5999, %v5998
    %v7592 = vpack.c.b16 %v6001, %v6000
    %v7593 = vpack.c.b16 %v6003, %v6002
    %v7594 = vpack.c.b16 %v6005, %v6004
    %v7595 = vpack.c.b16 %v6007, %v6006
    %v7596 = vpack.c.b16 %v6009, %v6008
    %v7597 = vpack.c.b16 %v6011, %v6010
    %v7598 = vpack.c.b16 %v6013, %v6012
    %v7599 = vpack.c.b16 %v6015, %v6014
    %v7600 = vpack.c.b16 %v6017, %v6016
    %v7601 = vpack.c.b16 %v6019, %v6018
    %v7602 = vpack.c.b16 %v6021, %v6020
    %v7603 = vpack.c.b16 %v6023, %v6022
    %v7604 = vpack.c.b16 %v6025, %v6024
    %v7605 = vpack.c.b16 %v6027, %v6026
    %v7606 = vpack.c.b16 %v6029, %v6028
    %v7607 = vpack.c.b16 %v6031, %v6030
    %v7608 = vpack.c.b16 %v6033, %v6032
    %v7609 = vpack.c.b16 %v6035, %v6034
    %v7610 = vpack.c.b16 %v6037, %v6036
    %v7611 = vpack.c.b16 %v6039, %v6038
    %v7612 = vpack.c.b16 %v6041, %v6040
    %v7613 = vpack.c.b16 %v6043, %v6042
    %v7614 = vpack.c.b16 %v6045, %v6044
    %v7615 = vpack.c.b16 %v6047, %v6046
    %v7616 = vpack.c.b16 %v6049, %v6048
    %v7617 = vpack.c.b16 %v6051, %v6050
    %v7618 = vpack.c.b16 %v6053, %v6052
    %v7619 = vpack.c.b16 %v6055, %v6054
    %v7620 = vpack.c.b16 %v6057, %v6056
    %v7621 = vpack.c.b16 %v6059, %v6058
    %v7622 = vpack.c.b16 %v6061, %v6060
    %v7623 = vpack.c.b16 %v6063, %v6062
    %v7624 = vpack.c.b16 %v6065, %v6064
    %v7625 = vpack.c.b16 %v6067, %v6066
    %v7626 = vpack.c.b16 %v6069, %v6068
    %v7627 = vpack.c.b16 %v6071, %v6070
    %v7628 = vpack.c.b16 %v6073, %v6072
    %v7629 = vpack.c.b16 %v6075, %v6074
    %v7630 = vpack.c.b16 %v6077, %v6076
    %v7631 = vpack.c.b16 %v6079, %v6078
    %v7632 = vpack.c.b16 %v6081, %v6080
    %v7633 = vpack.c.b16 %v6083, %v6082
    %v7634 = vpack.c.b16 %v6085, %v6084
    %v7635 = vpack.c.b16 %v6087, %v6086
    %v7636 = vpack.c.b16 %v6089, %v6088
    %v7637 = vpack.c.b16 %v6091, %v6090
    %v7638 = vpack.c.b16 %v6093, %v6092
    %v7639 = vpack.c.b16 %v6095, %v6094
    %v7640 = vpack.c.b16 %v6097, %v6096
    %v7641 = vpack.c.b16 %v6099, %v6098
    %v7642 = vpack.c.b16 %v6101, %v6100
    %v7643 = vpack.c.b16 %v6103, %v6102
    %v7644 = vpack.c.b16 %v6105, %v6104
    %v7645 = vpack.c.b16 %v6107, %v6106
    %v7646 = vpack.c.b16 %v6109, %v6108
    %v7647 = vpack.c.b16 %v6111, %v6110
    %v7648 = vpack.c.b16 %v6113, %v6112
    %v7649 = vpack.c.b16 %v6115, %v6114
    %v7650 = vpack.c.b16 %v6117, %v6116
    %v7651 = vpack.c.b16 %v6119, %v6118
    %v7652 = vpack.c.b16 %v6121, %v6120
    %v7653 = vpack.c.b16 %v6123, %v6122
    %v7654 = vpack.c.b16 %v6125, %v6124
    %v7655 = vpack.c.b16 %v6127, %v6126
    %v7656 = vpack.c.b16 %v6129, %v6128
    %v7657 = vpack.c.b16 %v6131, %v6130
    %v7658 = vpack.c.b16 %v6133, %v6132
    %v7659 = vpack.c.b16 %v6135, %v6134
    %v7660 = vpack.c.b16 %v6137, %v6136
    %v7661 = vpack.c.b16 %v6139, %v6138
    %v7662 = vpack.c.b16 %v6141, %v6140
    %v7663 = vpack.c.b16 %v6143, %v6142
    %v7664 = vpack.c.b16 %v6145, %v6144
    %v7665 = vpack.c.b16 %v6147, %v6146
    %v7666 = vpack.c.b16 %v6149, %v6148
    %v7667 = vpack.c.b16 %v6151, %v6150
    %v7668 = vpack.c.b16 %v6153, %v6152
    %v7669 = vpack.c.b16 %v6155, %v6154
    %v7670 = vpack.c.b16 %v6157, %v6156
    %v7671 = vpack.c.b16 %v6159, %v6158
    %v7672 = vpack.c.b16 %v6161, %v6160
    %v7673 = vpack.c.b16 %v6163, %v6162
    %v7674 = vpack.c.b16 %v6165, %v6164
    %v7675 = vpack.c.b16 %v6167, %v6166
    %v7676 = vpack.c.b16 %v6169, %v6168
    %v7677 = vpack.c.b16 %v6171, %v6170
    %v7678 = vpack.c.b16 %v6173, %v6172
    %v7679 = vpack.c.b16 %v6175, %v6174
    %v7680 = vpack.c.b16 %v6177, %v6176
    %v7681 = vpack.c.b16 %v6179, %v6178
    %v7682 = vpack.c.b16 %v6181, %v6180
    %v7683 = vpack.c.b16 %v6183, %v6182
    %v7684 = vpack.c.b16 %v6185, %v6184
    %v7685 = vpack.c.b16 %v6187, %v6186
    %v7686 = vpack.c.b16 %v6189, %v6188
    %v7687 = vpack.c.b16 %v6191, %v6190
    %v7688 = vpack.c.b16 %v6193, %v6192
    %v7689 = vpack.c.b16 %v6195, %v6194
    %v7690 = vpack.c.b16 %v6197, %v6196
    %v7691 = vpack.c.b16 %v6199, %v6198
    %v7692 = vpack.c.b16 %v6201, %v6200
    %v7693 = vpack.c.b16 %v6203, %v6202
    %v7694 = vpack.c.b16 %v6205, %v6204
    %v7695 = vpack.c.b16 %v6207, %v6206
    %v7696 = vpack.c.b16 %v6209, %v6208
    %v7697 = vpack.c.b16 %v6211, %v6210
    %v7698 = vpack.c.b16 %v6213, %v6212
    %v7699 = vpack.c.b16 %v6215, %v6214
    %v7700 = vpack.c.b16 %v6217, %v6216
    %v7701 = vpack.c.b16 %v6219, %v6218
    %v7702 = vpack.c.b16 %v6221, %v6220
    %v7703 = vpack.c.b16 %v6223, %v6222
    %v7704 = vpack.c.b16 %v6225, %v6224
    %v7705 = vpack.c.b16 %v6227, %v6226
    %v7706 = vpack.c.b16 %v6229, %v6228
    %v7707 = vpack.c.b16 %v6231, %v6230
    %v7708 = vpack.c.b16 %v6233, %v6232
    %v7709 = vpack.c.b16 %v6235, %v6234
    %v7710 = vpack.c.b16 %v6237, %v6236
    %v7711 = vpack.c.b16 %v6239, %v6238
    %v7712 = vpack.c.b16 %v6241, %v6240
    %v7713 = vpack.c.b16 %v6243, %v6242
    %v7714 = vpack.c.b16 %v6245, %v6244
    %v7715 = vpack.c.b16 %v6247, %v6246
    %v7716 = vpack.c.b16 %v6249, %v6248
    %v7717 = vpack.c.b16 %v6251, %v6250
    %v7718 = vpack.c.b16 %v6253, %v6252
    %v7719 = vpack.c.b16 %v6255, %v6254
    %v7720 = vpack.c.b16 %v6257, %v6256
    %v7721 = vpack.c.b16 %v6259, %v6258
    %v7722 = vpack.c.b16 %v6261, %v6260
    %v7723 = vpack.c.b16 %v6263, %v6262
    %v7724 = vpack.c.b16 %v6265, %v6264
    %v7725 = vpack.c.b16 %v6267, %v6266
    %v7726 = vpack.c.b16 %v6269, %v6268
    %v7727 = vpack.c.b16 %v6271, %v6270
    %v7728 = vpack.c.b16 %v6273, %v6272
    %v7729 = vpack.c.b16 %v6275, %v6274
    %v7730 = vpack.c.b16 %v6277, %v6276
    %v7731 = vpack.c.b16 %v6279, %v6278
    %v7732 = vpack.c.b16 %v6281, %v6280
    %v7733 = vpack.c.b16 %v6283, %v6282
    %v7734 = vpack.c.b16 %v6285, %v6284
    %v7735 = vpack.c.b16 %v6287, %v6286
    %v7736 = vpack.c.b16 %v6289, %v6288
    %v7737 = vpack.c.b16 %v6291, %v6290
    %v7738 = vpack.c.b16 %v6293, %v6292
    %v7739 = vpack.c.b16 %v6295, %v6294
    %v7740 = vpack.c.b16 %v6297, %v6296
    %v7741 = vpack.c.b16 %v6299, %v6298
    %v7742 = vpack.c.b16 %v6301, %v6300
    %v7743 = vpack.c.b16 %v6303, %v6302
    %v7744 = vpack.c.b16 %v6305, %v6304
    %v7745 = vpack.c.b16 %v6307, %v6306
    %v7746 = vpack.c.b16 %v6309, %v6308
    %v7747 = vpack.c.b16 %v6311, %v6310
    %v7748 = vpack.c.b16 %v6313, %v6312
    %v7749 = vpack.c.b16 %v6315, %v6314
    %v7750 = vpack.c.b16 %v6317, %v6316
    %v7751 = vpack.c.b16 %v6319, %v6318
    %v7752 = vpack.c.b16 %v6321, %v6320
    %v7753 = vpack.c.b16 %v6323, %v6322
    %v7754 = vpack.c.b16 %v6325, %v6324
    %v7755 = vpack.c.b16 %v6327, %v6326
    %v7756 = vpack.c.b16 %v6329, %v6328
    %v7757 = vpack.c.b16 %v6331, %v6330
    %v7758 = vpack.c.b16 %v6333, %v6332
    %v7759 = vpack.c.b16 %v6335, %v6334
    %v7760 = vpack.c.b16 %v6337, %v6336
    %v7761 = vpack.c.b16 %v6339, %v6338
    %v7762 = vpack.c.b16 %v6341, %v6340
    %v7763 = vpack.c.b16 %v6343, %v6342
    %v7764 = vpack.c.b16 %v6345, %v6344
    %v7765 = vpack.c.b16 %v6347, %v6346
    %v7766 = vpack.c.b16 %v6349, %v6348
    %v7767 = vpack.c.b16 %v6351, %v6350
    %v7768 = vpack.c.b16 %v6353, %v6352
    %v7769 = vpack.c.b16 %v6355, %v6354
    %v7770 = vpack.c.b16 %v6357, %v6356
    %v7771 = vpack.c.b16 %v6359, %v6358
    %v7772 = vpack.c.b16 %v6361, %v6360
    %v7773 = vpack.c.b16 %v6363, %v6362
    %v7774 = vpack.c.b16 %v6365, %v6364
    %v7775 = vpack.c.b16 %v6367, %v6366
    %v7776 = vpack.c.b16 %v6369, %v6368
    %v7777 = vpack.c.b16 %v6371, %v6370
    %v7778 = vpack.c.b16 %v6373, %v6372
    %v7779 = vpack.c.b16 %v6375, %v6374
    %v7780 = vpack.c.b16 %v6377, %v6376
    %v7781 = vpack.c.b16 %v6379, %v6378
    %v7782 = vpack.c.b16 %v6381, %v6380
    %v7783 = vpack.c.b16 %v6383, %v6382
    %v7784 = vpack.c.b16 %v6385, %v6384
    %v7785 = vpack.c.b16 %v6387, %v6386
    %v7786 = vpack.c.b16 %v6389, %v6388
    %v7787 = vpack.c.b16 %v6391, %v6390
    %v7788 = vpack.c.b16 %v6393, %v6392
    %v7789 = vpack.c.b16 %v6395, %v6394
    %v7790 = vpack.c.b16 %v6397, %v6396
    %v7791 = vpack.c.b16 %v6399, %v6398
    %v7792 = vpack.c.b16 %v6401, %v6400
    %v7793 = vpack.c.b16 %v6403, %v6402
    %v7794 = vpack.c.b16 %v6405, %v6404
    %v7795 = vpack.c.b16 %v6407, %v6406
    %v7796 = vpack.c.b16 %v6409, %v6408
    %v7797 = vpack.c.b16 %v6411, %v6410
    %v7798 = vpack.c.b16 %v6413, %v6412
    %v7799 = vpack.c.b16 %v6415, %v6414
    %v7800 = vpack.c.b16 %v6417, %v6416
    %v7801 = vpack.c.b16 %v6419, %v6418
    %v7802 = vpack.c.b16 %v6421, %v6420
    %v7803 = vpack.c.b16 %v6423, %v6422
    %v7804 = vpack.c.b16 %v6425, %v6424
    %v7805 = vpack.c.b16 %v6427, %v6426
    %v7806 = vpack.c.b16 %v6429, %v6428
    %v7807 = vpack.c.b16 %v6431, %v6430
    %v7808 = vpack.c.b16 %v6433, %v6432
    %v7809 = vpack.c.b16 %v6435, %v6434
    %v7810 = vpack.c.b16 %v6437, %v6436
    %v7811 = vpack.c.b16 %v6439, %v6438
    %v7812 = vpack.c.b16 %v6441, %v6440
    %v7813 = vpack.c.b16 %v6443, %v6442
    %v7814 = vpack.c.b16 %v6445, %v6444
    %v7815 = vpack.c.b16 %v6447, %v6446
    %v7816 = vpack.c.b16 %v6449, %v6448
    %v7817 = vpack.c.b16 %v6451, %v6450
    %v7818 = vpack.c.b16 %v6453, %v6452
    %v7819 = vpack.c.b16 %v6455, %v6454
    %v7820 = vpack.c.b16 %v6457, %v6456
    %v7821 = vpack.c.b16 %v6459, %v6458
    %v7822 = vpack.c.b16 %v6461, %v6460
    %v7823 = vpack.c.b16 %v6463, %v6462
    %v7824 = vpack.c.b16 %v6465, %v6464
    %v7825 = vpack.c.b16 %v6467, %v6466
    %v7826 = vpack.c.b16 %v6469, %v6468
    %v7827 = vpack.c.b16 %v6471, %v6470
    %v7828 = vpack.c.b16 %v6473, %v6472
    %v7829 = vpack.c.b16 %v6475, %v6474
    %v7830 = vpack.c.b16 %v6477, %v6476
    %v7831 = vpack.c.b16 %v6479, %v6478
    %v7832 = vpack.c.b16 %v6481, %v6480
    %v7833 = vpack.c.b16 %v6483, %v6482
    %v7834 = vpack.c.b16 %v6485, %v6484
    %v7835 = vpack.c.b16 %v6487, %v6486
    %v7836 = vpack.c.b16 %v6489, %v6488
    %v7837 = vpack.c.b16 %v6491, %v6490
    %v7838 = vpack.c.b16 %v6493, %v6492
    %v7839 = vpack.c.b16 %v6495, %v6494
    %v7840 = vpack.c.b16 %v6497, %v6496
    %v7841 = vpack.c.b16 %v6499, %v6498
    %v7842 = vpack.c.b16 %v6501, %v6500
    %v7843 = vpack.c.b16 %v6503, %v6502
    %v7844 = vpack.c.b16 %v6505, %v6504
    %v7845 = vpack.c.b16 %v6507, %v6506
    %v7846 = vpack.c.b16 %v6509, %v6508
    %v7847 = vpack.c.b16 %v6511, %v6510
    %v7848 = vpack.c.b16 %v6513, %v6512
    %v7849 = vpack.c.b16 %v6515, %v6514
    %v7850 = vpack.c.b16 %v6517, %v6516
    %v7851 = vpack.c.b16 %v6519, %v6518
    %v7852 = vpack.c.b16 %v6521, %v6520
    %v7853 = vpack.c.b16 %v6523, %v6522
    %v7854 = vpack.c.b16 %v6525, %v6524
    %v7855 = vpack.c.b16 %v6527, %v6526
    %v7856 = vpack.c.b16 %v6529, %v6528
    %v7857 = vpack.c.b16 %v6531, %v6530
    %v7858 = vpack.c.b16 %v6533, %v6532
    %v7859 = vpack.c.b16 %v6535, %v6534
    %v7860 = vpack.c.b16 %v6537, %v6536
    %v7861 = vpack.c.b16 %v6539, %v6538
    %v7862 = vpack.c.b16 %v6541, %v6540
    %v7863 = vpack.c.b16 %v6543, %v6542
    %v7864 = vpack.c.b16 %v6545, %v6544
    %v7865 = vpack.c.b16 %v6547, %v6546
    %v7866 = vpack.c.b16 %v6549, %v6548
    %v7867 = vpack.c.b16 %v6551, %v6550
    %v7868 = vpack.c.b16 %v6553, %v6552
    %v7869 = vpack.c.b16 %v6555, %v6554
    %v7870 = vpack.c.b16 %v6557, %v6556
    %v7871 = vpack.c.b16 %v6559, %v6558
    %v7872 = vpack.c.b16 %v6561, %v6560
    %v7873 = vpack.c.b16 %v6563, %v6562
    %v7874 = vpack.c.b16 %v6565, %v6564
    %v7875 = vpack.c.b16 %v6567, %v6566
    %v7876 = vpack.c.b16 %v6569, %v6568
    %v7877 = vpack.c.b16 %v6571, %v6570
    %v7878 = vpack.c.b16 %v6573, %v6572
    %v7879 = vpack.c.b16 %v6575, %v6574
    %v7880 = vpack.c.b16 %v6577, %v6576
    %v7881 = vpack.c.b16 %v6579, %v6578
    %v7882 = vpack.c.b16 %v6581, %v6580
    %v7883 = vpack.c.b16 %v6583, %v6582
    %v7884 = vpack.c.b16 %v6585, %v6584
    %v7885 = vpack.c.b16 %v6587, %v6586
    %v7886 = vpack.c.b16 %v6589, %v6588
    %v7887 = vpack.c.b16 %v6591, %v6590
    %v7888 = vpack.c.b16 %v6593, %v6592
    %v7889 = vpack.c.b16 %v6595, %v6594
    %v7890 = vpack.c.b16 %v6597, %v6596
    %v7891 = vpack.c.b16 %v6599, %v6598
    %v7892 = vpack.c.b16 %v6601, %v6600
    %v7893 = vpack.c.b16 %v6603, %v6602
    %v7894 = vpack.c.b16 %v6605, %v6604
    %v7895 = vpack.c.b16 %v6607, %v6606
    %v7896 = vpack.c.b16 %v6609, %v6608
    %v7897 = vpack.c.b16 %v6611, %v6610
    %v7898 = vpack.c.b16 %v6613, %v6612
    %v7899 = vpack.c.b16 %v6615, %v6614
    %v7900 = vpack.c.b16 %v6617, %v6616
    %v7901 = vpack.c.b16 %v6619, %v6618
    %v7902 = vpack.c.b16 %v6621, %v6620
    %v7903 = vpack.c.b16 %v6623, %v6622
    %v7904 = vpack.c.b16 %v6625, %v6624
    %v7905 = vpack.c.b16 %v6627, %v6626
    %v7906 = vpack.c.b16 %v6629, %v6628
    %v7907 = vpack.c.b16 %v6631, %v6630
    %v7908 = vpack.c.b16 %v6633, %v6632
    %v7909 = vpack.c.b16 %v6635, %v6634
    %v7910 = vpack.c.b16 %v6637, %v6636
    %v7911 = vpack.c.b16 %v6639, %v6638
    %v7912 = vpack.c.b16 %v6641, %v6640
    %v7913 = vpack.c.b16 %v6643, %v6642
    %v7914 = vpack.c.b16 %v6645, %v6644
    %v7915 = vpack.c.b16 %v6647, %v6646
    %v7916 = vpack.c.b16 %v6649, %v6648
    %v7917 = vpack.c.b16 %v6651, %v6650
    %v7918 = vpack.c.b16 %v6653, %v6652
    %v7919 = vpack.c.b16 %v6655, %v6654
    %v7920 = vpack.c.b16 %v6657, %v6656
    %v7921 = vpack.c.b16 %v6659, %v6658
    %v7922 = vpack.c.b16 %v6661, %v6660
    %v7923 = vpack.c.b16 %v6663, %v6662
    %v7924 = vpack.c.b16 %v6665, %v6664
    %v7925 = vpack.c.b16 %v6667, %v6666
    %v7926 = vpack.c.b16 %v6669, %v6668
    %v7927 = vpack.c.b16 %v6671, %v6670
    %v7928 = vpack.c.b16 %v6673, %v6672
    %v7929 = vpack.c.b16 %v6675, %v6674
    %v7930 = vpack.c.b16 %v6677, %v6676
    %v7931 = vpack.c.b16 %v6679, %v6678
    %v7932 = vpack.c.b16 %v6681, %v6680
    %v7933 = vpack.c.b16 %v6683, %v6682
    %v7934 = vpack.c.b16 %v6685, %v6684
    %v7935 = vpack.c.b16 %v6687, %v6686
    %v7936 = vpack.c.b16 %v6689, %v6688
    %v7937 = vpack.c.b16 %v6691, %v6690
    %v7938 = vpack.c.b16 %v6693, %v6692
    %v7939 = vpack.c.b16 %v6695, %v6694
    %v7940 = vpack.c.b16 %v6697, %v6696
    %v7941 = vpack.c.b16 %v6699, %v6698
    %v7942 = vpack.c.b16 %v6701, %v6700
    %v7943 = vpack.c.b16 %v6703, %v6702
    %v7944 = vpack.c.b16 %v6705, %v6704
    %v7945 = vpack.c.b16 %v6707, %v6706
    %v7946 = vpack.c.b16 %v6709, %v6708
    %v7947 = vpack.c.b16 %v6711, %v6710
    %v7948 = vpack.c.b16 %v6713, %v6712
    %v7949 = vpack.c.b16 %v6715, %v6714
    %v7950 = vpack.c.b16 %v6717, %v6716
    %v7951 = vpack.c.b16 %v6719, %v6718
    %v7952 = vpack.c.b16 %v6721, %v6720
    %v7953 = vpack.c.b16 %v6723, %v6722
    %v7954 = vpack.c.b16 %v6725, %v6724
    %v7955 = vpack.c.b16 %v6727, %v6726
    %v7956 = vpack.c.b16 %v6729, %v6728
    %v7957 = vpack.c.b16 %v6731, %v6730
    %v7958 = vpack.c.b16 %v6733, %v6732
    %v7959 = vpack.c.b16 %v6735, %v6734
    %v7960 = vpack.c.b16 %v6737, %v6736
    %v7961 = vpack.c.b16 %v6739, %v6738
    %v7962 = vpack.c.b16 %v6741, %v6740
    %v7963 = vpack.c.b16 %v6743, %v6742
    %v7964 = vpack.c.b16 %v6745, %v6744
    %v7965 = vpack.c.b16 %v6747, %v6746
    %v7966 = vpack.c.b16 %v6749, %v6748
    %v7967 = vpack.c.b16 %v6751, %v6750
    %v7968 = vpack.c.b16 %v6753, %v6752
    %v7969 = vpack.c.b16 %v6755, %v6754
    %v7970 = vpack.c.b16 %v6757, %v6756
    %v7971 = vpack.c.b16 %v6759, %v6758
    %v7972 = vpack.c.b16 %v6761, %v6760
    %v7973 = vpack.c.b16 %v6763, %v6762
    %v7974 = vpack.c.b16 %v6765, %v6764
    %v7975 = vpack.c.b16 %v6767, %v6766
    %v7976 = vpack.c.b16 %v6769, %v6768
    %v7977 = vpack.c.b16 %v6771, %v6770
    %v7978 = vpack.c.b16 %v6773, %v6772
    %v7979 = vpack.c.b16 %v6775, %v6774
    %v7980 = vpack.c.b16 %v6777, %v6776
    %v7981 = vpack.c.b16 %v6779, %v6778
    %v7982 = vpack.c.b16 %v6781, %v6780
    %v7983 = vpack.c.b16 %v6783, %v6782
    %v7984 = vpack.c.b16 %v6785, %v6784
    %v7985 = vpack.c.b16 %v6787, %v6786
    %v7986 = vpack.c.b16 %v6789, %v6788
    %v7987 = vpack.c.b16 %v6791, %v6790
    %v7988 = vpack.c.b16 %v6793, %v6792
    %v7989 = vpack.c.b16 %v6795, %v6794
    %v7990 = vpack.c.b16 %v6797, %v6796
    %v7991 = vpack.c.b16 %v6799, %v6798
    %v7992 = vpack.c.b16 %v6801, %v6800
    %v7993 = vpack.c.b16 %v6803, %v6802
    %v7994 = vpack.c.b16 %v6805, %v6804
    %v7995 = vpack.c.b16 %v6807, %v6806
    %v7996 = vpack.c.b16 %v6809, %v6808
    %v7997 = vpack.c.b16 %v6811, %v6810
    %v7998 = vpack.c.b16 %v6813, %v6812
    %v7999 = vpack.c.b16 %v6815, %v6814
    %v8000 = vpack.c.b16 %v6817, %v6816
    %v8001 = vpack.c.b16 %v6819, %v6818
    %v8002 = vpack.c.b16 %v6821, %v6820
    %v8003 = vpack.c.b16 %v6823, %v6822
    %v8004 = vpack.c.b16 %v6825, %v6824
    %v8005 = vpack.c.b16 %v6827, %v6826
    %v8006 = vpack.c.b16 %v6829, %v6828
    %v8007 = vpack.c.b16 %v6831, %v6830
    %v8008 = vpack.c.b16 %v6833, %v6832
    %v8009 = vpack.c.b16 %v6835, %v6834
    %v8010 = vpack.c.b16 %v6837, %v6836
    %v8011 = vpack.c.b16 %v6839, %v6838
    %v8012 = vpack.c.b16 %v6841, %v6840
    %v8013 = vpack.c.b16 %v6843, %v6842
    %v8014 = vpack.c.b16 %v6845, %v6844
    %v8015 = vpack.c.b16 %v6847, %v6846
    %v8016 = vpack.c.b16 %v6849, %v6848
    %v8017 = vpack.c.b16 %v6851, %v6850
    %v8018 = vpack.c.b16 %v6853, %v6852
    %v8019 = vpack.c.b16 %v6855, %v6854
    %v8020 = vpack.c.b16 %v6857, %v6856
    %v8021 = vpack.c.b16 %v6859, %v6858
    %v8022 = vpack.c.b16 %v6861, %v6860
    %v8023 = vpack.c.b16 %v6863, %v6862
    %v8024 = vpack.c.b16 %v6865, %v6864
    %v8025 = vpack.c.b16 %v6867, %v6866
    %v8026 = vpack.c.b16 %v6869, %v6868
    %v8027 = vpack.c.b16 %v6871, %v6870
    %v8028 = vpack.c.b16 %v6873, %v6872
    %v8029 = vpack.c.b16 %v6875, %v6874
    %v8030 = vpack.c.b16 %v6877, %v6876
    %v8031 = vpack.c.b16 %v6879, %v6878
    %v8032 = vpack.c.b16 %v6881, %v6880
    %v8033 = vpack.c.b16 %v6883, %v6882
    %v8034 = vpack.c.b16 %v6885, %v6884
    %v8035 = vpack.c.b16 %v6887, %v6886
    %v8036 = vpack.c.b16 %v6889, %v6888
    %v8037 = vpack.c.b16 %v6891, %v6890
    %v8038 = vpack.c.b16 %v6893, %v6892
    %v8039 = vpack.c.b16 %v6895, %v6894
    %v8040 = vpack.c.b16 %v6897, %v6896
    %v8041 = vpack.c.b16 %v6899, %v6898
    %v8042 = vpack.c.b16 %v6901, %v6900
    %v8043 = vpack.c.b16 %v6903, %v6902
    %v8044 = vpack.c.b16 %v6905, %v6904
    %v8045 = vpack.c.b16 %v6907, %v6906
    %v8046 = vpack.c.b16 %v6909, %v6908
    %v8047 = vpack.c.b16 %v6911, %v6910
    %v8048 = vpack.c.b16 %v6913, %v6912
    %v8049 = vpack.c.b16 %v6915, %v6914
    %v8050 = vpack.c.b16 %v6917, %v6916
    %v8051 = vpack.c.b16 %v6919, %v6918
    %v8052 = vpack.c.b16 %v6921, %v6920
    %v8053 = vpack.c.b16 %v6923, %v6922
    %v8054 = vpack.c.b16 %v6925, %v6924
    %v8055 = vpack.c.b16 %v6927, %v6926
    %v8056 = vpack.c.b16 %v6929, %v6928
    %v8057 = vpack.c.b16 %v6931, %v6930
    %v8058 = vpack.c.b16 %v6933, %v6932
    %v8059 = vpack.c.b16 %v6935, %v6934
    %v8060 = vpack.c.b16 %v6937, %v6936
    %v8061 = vpack.c.b16 %v6939, %v6938
    %v8062 = vpack.c.b16 %v6941, %v6940
    %v8063 = vpack.c.b16 %v6943, %v6942
    %v8064 = vpack.c.b16 %v6945, %v6944
    %v8065 = vpack.c.b16 %v6947, %v6946
    %v8066 = vpack.c.b16 %v6949, %v6948
    %v8067 = vpack.c.b16 %v6951, %v6950
    %v8068 = vpack.c.b16 %v6953, %v6952
    %v8069 = vpack.c.b16 %v6955, %v6954
    %v8070 = vpack.c.b16 %v6957, %v6956
    %v8071 = vpack.c.b16 %v6959, %v6958
    %v8072 = vpack.c.b16 %v6961, %v6960
    %v8073 = vpack.c.b16 %v6963, %v6962
    %v8074 = vpack.c.b16 %v6965, %v6964
    %v8075 = vpack.c.b16 %v6967, %v6966
    %v8076 = vpack.c.b16 %v6969, %v6968
    %v8077 = vpack.c.b16 %v6971, %v6970
    %v8078 = vpack.c.b16 %v6973, %v6972
    %v8079 = vpack.c.b16 %v6975, %v6974
    %v8080 = vpack.c.b16 %v6977, %v6976
    %v8081 = vpack.c.b16 %v6979, %v6978
    %v8082 = vpack.c.b16 %v6981, %v6980
    %v8083 = vpack.c.b16 %v6983, %v6982
    %v8084 = vpack.c.b16 %v6985, %v6984
    %v8085 = vpack.c.b16 %v6987, %v6986
    %v8086 = vpack.c.b16 %v6989, %v6988
    %v8087 = vpack.c.b16 %v6991, %v6990
    %v8088 = vpack.c.b16 %v6993, %v6992
    %v8089 = vpack.c.b16 %v6995, %v6994
    %v8090 = vpack.c.b16 %v6997, %v6996
    %v8091 = vpack.c.b16 %v6999, %v6998
    %v8092 = vpack.c.b16 %v7001, %v7000
    %v8093 = vpack.c.b16 %v7003, %v7002
    %v8094 = vpack.c.b16 %v7005, %v7004
    %v8095 = vpack.c.b16 %v7007, %v7006
    %v8096 = vpack.c.b16 %v7009, %v7008
    %v8097 = vpack.c.b16 %v7011, %v7010
    %v8098 = vpack.c.b16 %v7013, %v7012
    %v8099 = vpack.c.b16 %v7015, %v7014
    %v8100 = vpack.c.b16 %v7017, %v7016
    %v8101 = vpack.c.b16 %v7019, %v7018
    %v8102 = vpack.c.b16 %v7021, %v7020
    %v8103 = vpack.c.b16 %v7023, %v7022
    %v8104 = vpack.c.b16 %v7025, %v7024
    %v8105 = vpack.c.b16 %v7027, %v7026
    %v8106 = vpack.c.b16 %v7029, %v7028
    %v8107 = vpack.c.b16 %v7031, %v7030
    %v8108 = vpack.c.b16 %v7033, %v7032
    %v8109 = vpack.c.b16 %v7035, %v7034
    %v8110 = vpack.c.b16 %v7037, %v7036
    %v8111 = vpack.c.b16 %v7039, %v7038
    %v8112 = vpack.c.b16 %v7041, %v7040
    %v8113 = vpack.c.b16 %v7043, %v7042
    %v8114 = vpack.c.b16 %v7045, %v7044
    %v8115 = vpack.c.b16 %v7047, %v7046
    %v8116 = vpack.c.b16 %v7049, %v7048
    %v8117 = vpack.c.b16 %v7051, %v7050
    %v8118 = vpack.c.b16 %v7053, %v7052
    %v8119 = vpack.c.b16 %v7055, %v7054
    %v8120 = vpack.c.b16 %v7057, %v7056
    %v8121 = vpack.c.b16 %v7059, %v7058
    %v8122 = vpack.c.b16 %v7061, %v7060
    %v8123 = vpack.c.b16 %v7063, %v7062
    %v8124 = vpack.c.b16 %v7065, %v7064
    %v8125 = vpack.c.b16 %v7067, %v7066
    %v8126 = vpack.c.b16 %v7069, %v7068
    %v8127 = vpack.c.b16 %v7071, %v7070
    %v8128 = vpack.c.b16 %v7073, %v7072
    %v8129 = vpack.c.b16 %v7075, %v7074
    %v8130 = vpack.c.b16 %v7077, %v7076
    %v8131 = vpack.c.b16 %v7079, %v7078
    %v8132 = vpack.c.b16 %v7081, %v7080
    %v8133 = vpack.c.b16 %v7083, %v7082
    %v8134 = vpack.c.b16 %v7085, %v7084
    %v8135 = vpack.c.b16 %v7087, %v7086
    %v8136 = vpack.c.b16 %v7089, %v7088
    %v8137 = vpack.c.b16 %v7091, %v7090
    %v8138 = vpack.c.b16 %v7093, %v7092
    %v8139 = vpack.c.b16 %v7095, %v7094
    %v8140 = vpack.c.b16 %v7097, %v7096
    %v8141 = vpack.c.b16 %v7099, %v7098
    %v8142 = vpack.c.b16 %v7101, %v7100
    %v8143 = vpack.c.b16 %v7103, %v7102
    %v8144 = vpack.c.b16 %v7105, %v7104
    %v8145 = vpack.c.b16 %v7107, %v7106
    %v8146 = vpack.c.b16 %v7109, %v7108
    %v8147 = vpack.c.b16 %v7111, %v7110
    %v8148 = vpack.c.b16 %v7113, %v7112
    %v8149 = vpack.c.b16 %v7115, %v7114
    %v8150 = vpack.c.b16 %v7117, %v7116
    %v8151 = vpack.c.b16 %v7119, %v7118
    %v8152 = vpack.c.b16 %v7121, %v7120
    %v8153 = vpack.c.b16 %v7123, %v7122
    %v8154 = vpack.c.b16 %v7125, %v7124
    %v8155 = vpack.c.b16 %v7127, %v7126
    %v8156 = vpack.c.b16 %v7129, %v7128
    %v8157 = vpack.c.b16 %v7131, %v7130
    %v8158 = vpack.c.b16 %v7133, %v7132
    %v8159 = vpack.c.b16 %v7135, %v7134
    %9184 = vmatprep.subr.bf16.mxu0 0
    %9185 = vmatpush1.bf16.msra.mxu0 %v7136
    %9186 = vmatprep.subr.bf16.mxu0 0
    %9187 = vmatpush1.bf16.msra.mxu0 %v7137
    %9188 = vmatprep.subr.bf16.mxu0 0
    %9189 = vmatpush1.bf16.msra.mxu0 %v7138
    %9190 = vmatprep.subr.bf16.mxu0 0
    %9191 = vmatpush1.bf16.msra.mxu0 %v7139
    %9192 = vmatprep.subr.bf16.mxu0 0
    %9193 = vmatpush1.bf16.msra.mxu0 %v7140
    %9194 = vmatprep.subr.bf16.mxu0 0
    %9195 = vmatpush1.bf16.msra.mxu0 %v7141
    %9196 = vmatprep.subr.bf16.mxu0 0
    %9197 = vmatpush1.bf16.msra.mxu0 %v7142
    %9198 = vmatprep.subr.bf16.mxu0 0
    %9199 = vmatpush1.bf16.msra.mxu0 %v7143
    %9200 = vmatprep.subr.bf16.mxu0 0
    %9201 = vmatpush1.bf16.msra.mxu0 %v7144
    %9202 = vmatprep.subr.bf16.mxu0 0
    %9203 = vmatpush1.bf16.msra.mxu0 %v7145
    %9204 = vmatprep.subr.bf16.mxu0 0
    %9205 = vmatpush1.bf16.msra.mxu0 %v7146
    %9206 = vmatprep.subr.bf16.mxu0 0
    %9207 = vmatpush1.bf16.msra.mxu0 %v7147
    %9208 = vmatprep.subr.bf16.mxu0 0
    %9209 = vmatpush1.bf16.msra.mxu0 %v7148
    %9210 = vmatprep.subr.bf16.mxu0 0
    %9211 = vmatpush1.bf16.msra.mxu0 %v7149
    %9212 = vmatprep.subr.bf16.mxu0 0
    %9213 = vmatpush1.bf16.msra.mxu0 %v7150
    %9214 = vmatprep.subr.bf16.mxu0 0
    %9215 = vmatpush1.bf16.msra.mxu0 %v7151
    %9216 = vmatprep.mubr.bf16.mxu0 %v2165
    %9217 = vmatmul.mubr.bf16.gmra.mrb[0].mxu0 %v2151
    %v9218 = vpop.f32.mrb[0].mxu0
    %v9219 = vadd.f32 %v2110, %v9218
    %v9220 = vpop.f32.mrb[0].mxu0
    %v9221 = vpop.f32.mrb[0].mxu0
    %v9222 = vpop.f32.mrb[0].mxu0
    %9223 = vdwg.mxu0
    %9224 = vmatprep.subr.bf16.mxu0 0
    %9225 = vmatpush1.bf16.msra.mxu0 %v7152
    %9226 = vmatprep.subr.bf16.mxu0 0
    %9227 = vmatpush1.bf16.msra.mxu0 %v7153
    %9228 = vmatprep.subr.bf16.mxu0 0
    %9229 = vmatpush1.bf16.msra.mxu0 %v7154
    %9230 = vmatprep.subr.bf16.mxu0 0
    %9231 = vmatpush1.bf16.msra.mxu0 %v7155
    %9232 = vmatprep.subr.bf16.mxu0 0
    %9233 = vmatpush1.bf16.msra.mxu0 %v7156
    %9234 = vmatprep.subr.bf16.mxu0 0
    %9235 = vmatpush1.bf16.msra.mxu0 %v7157
    %9236 = vmatprep.subr.bf16.mxu0 0
    %9237 = vmatpush1.bf16.msra.mxu0 %v7158
    %9238 = vmatprep.subr.bf16.mxu0 0
    %9239 = vmatpush1.bf16.msra.mxu0 %v7159
    %9240 = vmatprep.subr.bf16.mxu0 0
    %9241 = vmatpush1.bf16.msra.mxu0 %v7160
    %9242 = vmatprep.subr.bf16.mxu0 0
    %9243 = vmatpush1.bf16.msra.mxu0 %v7161
    %9244 = vmatprep.subr.bf16.mxu0 0
    %9245 = vmatpush1.bf16.msra.mxu0 %v7162
    %9246 = vmatprep.subr.bf16.mxu0 0
    %9247 = vmatpush1.bf16.msra.mxu0 %v7163
    %9248 = vmatprep.subr.bf16.mxu0 0
    %9249 = vmatpush1.bf16.msra.mxu0 %v7164
    %9250 = vmatprep.subr.bf16.mxu0 0
    %9251 = vmatpush1.bf16.msra.mxu0 %v7165
    %9252 = vmatprep.subr.bf16.mxu0 0
    %9253 = vmatpush1.bf16.msra.mxu0 %v7166
    %9254 = vmatprep.subr.bf16.mxu0 0
    %9255 = vmatpush1.bf16.msra.mxu0 %v7167
    %9256 = vmatprep.mubr.bf16.mxu0 %v2175
    %9257 = vmatmul.mubr.bf16.gmra.mrb[0].mxu0 %v2173
    %v9258 = vpop.f32.mrb[0].mxu0
    %v9259 = vadd.f32 %v9219, %v9258
    %v9260 = vpop.f32.mrb[0].mxu0
    %v9261 = vpop.f32.mrb[0].mxu0
    %v9262 = vpop.f32.mrb[0].mxu0
    %9263 = vdwg.mxu0
    %9264 = vmatprep.subr.bf16.mxu0 0
    %9265 = vmatpush1.bf16.msra.mxu0 %v7168
    %9266 = vmatprep.subr.bf16.mxu0 0
    %9267 = vmatpush1.bf16.msra.mxu0 %v7169
    %9268 = vmatprep.subr.bf16.mxu0 0
    %9269 = vmatpush1.bf16.msra.mxu0 %v7170
    %9270 = vmatprep.subr.bf16.mxu0 0
    %9271 = vmatpush1.bf16.msra.mxu0 %v7171
    %9272 = vmatprep.subr.bf16.mxu0 0
    %9273 = vmatpush1.bf16.msra.mxu0 %v7172
    %9274 = vmatprep.subr.bf16.mxu0 0
    %9275 = vmatpush1.bf16.msra.mxu0 %v7173
    %9276 = vmatprep.subr.bf16.mxu0 0
    %9277 = vmatpush1.bf16.msra.mxu0 %v7174
    %9278 = vmatprep.subr.bf16.mxu0 0
    %9279 = vmatpush1.bf16.msra.mxu0 %v7175
    %9280 = vmatprep.subr.bf16.mxu0 0
    %9281 = vmatpush1.bf16.msra.mxu0 %v7176
    %9282 = vmatprep.subr.bf16.mxu0 0
    %9283 = vmatpush1.bf16.msra.mxu0 %v7177
    %9284 = vmatprep.subr.bf16.mxu0 0
    %9285 = vmatpush1.bf16.msra.mxu0 %v7178
    %9286 = vmatprep.subr.bf16.mxu0 0
    %9287 = vmatpush1.bf16.msra.mxu0 %v7179
    %9288 = vmatprep.subr.bf16.mxu0 0
    %9289 = vmatpush1.bf16.msra.mxu0 %v7180
    %9290 = vmatprep.subr.bf16.mxu0 0
    %9291 = vmatpush1.bf16.msra.mxu0 %v7181
    %9292 = vmatprep.subr.bf16.mxu0 0
    %9293 = vmatpush1.bf16.msra.mxu0 %v7182
    %9294 = vmatprep.subr.bf16.mxu0 0
    %9295 = vmatpush1.bf16.msra.mxu0 %v7183
    %9296 = vmatprep.mubr.bf16.mxu0 %v2172
    %9297 = vmatmul.mubr.bf16.gmra.mrb[0].mxu0 %v2158
    %v9298 = vpop.f32.mrb[0].mxu0
    %v9299 = vadd.f32 %v9259, %v9298
    %v9300 = vpop.f32.mrb[0].mxu0
    %v9301 = vpop.f32.mrb[0].mxu0
    %v9302 = vpop.f32.mrb[0].mxu0
    %9303 = vdwg.mxu0
    %9304 = vmatprep.subr.bf16.mxu0 0
    %9305 = vmatpush1.bf16.msra.mxu0 %v7184
    %9306 = vmatprep.subr.bf16.mxu0 0
    %9307 = vmatpush1.bf16.msra.mxu0 %v7185
    %9308 = vmatprep.subr.bf16.mxu0 0
    %9309 = vmatpush1.bf16.msra.mxu0 %v7186
    %9310 = vmatprep.subr.bf16.mxu0 0
    %9311 = vmatpush1.bf16.msra.mxu0 %v7187
    %9312 = vmatprep.subr.bf16.mxu0 0
    %9313 = vmatpush1.bf16.msra.mxu0 %v7188
    %9314 = vmatprep.subr.bf16.mxu0 0
    %9315 = vmatpush1.bf16.msra.mxu0 %v7189
    %9316 = vmatprep.subr.bf16.mxu0 0
    %9317 = vmatpush1.bf16.msra.mxu0 %v7190
    %9318 = vmatprep.subr.bf16.mxu0 0
    %9319 = vmatpush1.bf16.msra.mxu0 %v7191
    %9320 = vmatprep.subr.bf16.mxu0 0
    %9321 = vmatpush1.bf16.msra.mxu0 %v7192
    %9322 = vmatprep.subr.bf16.mxu0 0
    %9323 = vmatpush1.bf16.msra.mxu0 %v7193
    %9324 = vmatprep.subr.bf16.mxu0 0
    %9325 = vmatpush1.bf16.msra.mxu0 %v7194
    %9326 = vmatprep.subr.bf16.mxu0 0
    %9327 = vmatpush1.bf16.msra.mxu0 %v7195
    %9328 = vmatprep.subr.bf16.mxu0 0
    %9329 = vmatpush1.bf16.msra.mxu0 %v7196
    %9330 = vmatprep.subr.bf16.mxu0 0
    %9331 = vmatpush1.bf16.msra.mxu0 %v7197
    %9332 = vmatprep.subr.bf16.mxu0 0
    %9333 = vmatpush1.bf16.msra.mxu0 %v7198
    %9334 = vmatprep.subr.bf16.mxu0 0
    %9335 = vmatpush1.bf16.msra.mxu0 %v7199
    %9336 = vmatprep.mubr.bf16.mxu0 %v2176
    %9337 = vmatmul.mubr.bf16.gmra.mrb[0].mxu0 %v2174
    %v9338 = vpop.f32.mrb[0].mxu0
    %v9339 = vadd.f32 %v9299, %v9338
    %v9340 = vpop.f32.mrb[0].mxu0
    %v9341 = vpop.f32.mrb[0].mxu0
    %v9342 = vpop.f32.mrb[0].mxu0
    %9343 = vdwg.mxu0
    %9344 = vmatprep.subr.bf16.mxu0 0
    %9345 = vmatpush1.bf16.msra.mxu0 %v7200
    %9346 = vmatprep.subr.bf16.mxu0 0
    %9347 = vmatpush1.bf16.msra.mxu0 %v7201
    %9348 = vmatprep.subr.bf16.mxu0 0
    %9349 = vmatpush1.bf16.msra.mxu0 %v7202
    %9350 = vmatprep.subr.bf16.mxu0 0
    %9351 = vmatpush1.bf16.msra.mxu0 %v7203
    %9352 = vmatprep.subr.bf16.mxu0 0
    %9353 = vmatpush1.bf16.msra.mxu0 %v7204
    %9354 = vmatprep.subr.bf16.mxu0 0
    %9355 = vmatpush1.bf16.msra.mxu0 %v7205
    %9356 = vmatprep.subr.bf16.mxu0 0
    %9357 = vmatpush1.bf16.msra.mxu0 %v7206
    %9358 = vmatprep.subr.bf16.mxu0 0
    %9359 = vmatpush1.bf16.msra.mxu0 %v7207
    %9360 = vmatprep.subr.bf16.mxu0 0
    %9361 = vmatpush1.bf16.msra.mxu0 %v7208
    %9362 = vmatprep.subr.bf16.mxu0 0
    %9363 = vmatpush1.bf16.msra.mxu0 %v7209
    %9364 = vmatprep.subr.bf16.mxu0 0
    %9365 = vmatpush1.bf16.msra.mxu0 %v7210
    %9366 = vmatprep.subr.bf16.mxu0 0
    %9367 = vmatpush1.bf16.msra.mxu0 %v7211
    %9368 = vmatprep.subr.bf16.mxu0 0
    %9369 = vmatpush1.bf16.msra.mxu0 %v7212
    %9370 = vmatprep.subr.bf16.mxu0 0
    %9371 = vmatpush1.bf16.msra.mxu0 %v7213
    %9372 = vmatprep.subr.bf16.mxu0 0
    %9373 = vmatpush1.bf16.msra.mxu0 %v7214
    %9374 = vmatprep.subr.bf16.mxu0 0
    %9375 = vmatpush1.bf16.msra.mxu0 %v7215
    %9376 = vmatprep.mubr.bf16.mxu0 %v2214
    %9377 = vmatmul.mubr.bf16.gmra.mrb[0].mxu0 %v2200
    %v9378 = vpop.f32.mrb[0].mxu0
    %v9379 = vadd.f32 %v9339, %v9378
    %v9380 = vpop.f32.mrb[0].mxu0
    %v9381 = vpop.f32.mrb[0].mxu0
    %v9382 = vpop.f32.mrb[0].mxu0
    %9383 = vdwg.mxu0
    %9384 = vmatprep.subr.bf16.mxu0 0
    %9385 = vmatpush1.bf16.msra.mxu0 %v7216
    %9386 = vmatprep.subr.bf16.mxu0 0
    %9387 = vmatpush1.bf16.msra.mxu0 %v7217
    %9388 = vmatprep.subr.bf16.mxu0 0
    %9389 = vmatpush1.bf16.msra.mxu0 %v7218
    %9390 = vmatprep.subr.bf16.mxu0 0
    %9391 = vmatpush1.bf16.msra.mxu0 %v7219
    %9392 = vmatprep.subr.bf16.mxu0 0
    %9393 = vmatpush1.bf16.msra.mxu0 %v7220
    %9394 = vmatprep.subr.bf16.mxu0 0
    %9395 = vmatpush1.bf16.msra.mxu0 %v7221
    %9396 = vmatprep.subr.bf16.mxu0 0
    %9397 = vmatpush1.bf16.msra.mxu0 %v7222
    %9398 = vmatprep.subr.bf16.mxu0 0
    %9399 = vmatpush1.bf16.msra.mxu0 %v7223
    %9400 = vmatprep.subr.bf16.mxu0 0
    %9401 = vmatpush1.bf16.msra.mxu0 %v7224
    %9402 = vmatprep.subr.bf16.mxu0 0
    %9403 = vmatpush1.bf16.msra.mxu0 %v7225
    %9404 = vmatprep.subr.bf16.mxu0 0
    %9405 = vmatpush1.bf16.msra.mxu0 %v7226
    %9406 = vmatprep.subr.bf16.mxu0 0
    %9407 = vmatpush1.bf16.msra.mxu0 %v7227
    %9408 = vmatprep.subr.bf16.mxu0 0
    %9409 = vmatpush1.bf16.msra.mxu0 %v7228
    %9410 = vmatprep.subr.bf16.mxu0 0
    %9411 = vmatpush1.bf16.msra.mxu0 %v7229
    %9412 = vmatprep.subr.bf16.mxu0 0
    %9413 = vmatpush1.bf16.msra.mxu0 %v7230
    %9414 = vmatprep.subr.bf16.mxu0 0
    %9415 = vmatpush1.bf16.msra.mxu0 %v7231
    %9416 = vmatprep.mubr.bf16.mxu0 %v2224
    %9417 = vmatmul.mubr.bf16.gmra.mrb[0].mxu0 %v2222
    %v9418 = vpop.f32.mrb[0].mxu0
    %v9419 = vadd.f32 %v9379, %v9418
    %v9420 = vpop.f32.mrb[0].mxu0
    %v9421 = vpop.f32.mrb[0].mxu0
    %v9422 = vpop.f32.mrb[0].mxu0
    %9423 = vdwg.mxu0
    %9424 = vmatprep.subr.bf16.mxu0 0
    %9425 = vmatpush1.bf16.msra.mxu0 %v7232
    %9426 = vmatprep.subr.bf16.mxu0 0
    %9427 = vmatpush1.bf16.msra.mxu0 %v7233
    %9428 = vmatprep.subr.bf16.mxu0 0
    %9429 = vmatpush1.bf16.msra.mxu0 %v7234
    %9430 = vmatprep.subr.bf16.mxu0 0
    %9431 = vmatpush1.bf16.msra.mxu0 %v7235
    %9432 = vmatprep.subr.bf16.mxu0 0
    %9433 = vmatpush1.bf16.msra.mxu0 %v7236
    %9434 = vmatprep.subr.bf16.mxu0 0
    %9435 = vmatpush1.bf16.msra.mxu0 %v7237
    %9436 = vmatprep.subr.bf16.mxu0 0
    %9437 = vmatpush1.bf16.msra.mxu0 %v7238
    %9438 = vmatprep.subr.bf16.mxu0 0
    %9439 = vmatpush1.bf16.msra.mxu0 %v7239
    %9440 = vmatprep.subr.bf16.mxu0 0
    %9441 = vmatpush1.bf16.msra.mxu0 %v7240
    %9442 = vmatprep.subr.bf16.mxu0 0
    %9443 = vmatpush1.bf16.msra.mxu0 %v7241
    %9444 = vmatprep.subr.bf16.mxu0 0
    %9445 = vmatpush1.bf16.msra.mxu0 %v7242
    %9446 = vmatprep.subr.bf16.mxu0 0
    %9447 = vmatpush1.bf16.msra.mxu0 %v7243
    %9448 = vmatprep.subr.bf16.mxu0 0
    %9449 = vmatpush1.bf16.msra.mxu0 %v7244
    %9450 = vmatprep.subr.bf16.mxu0 0
    %9451 = vmatpush1.bf16.msra.mxu0 %v7245
    %9452 = vmatprep.subr.bf16.mxu0 0
    %9453 = vmatpush1.bf16.msra.mxu0 %v7246
    %9454 = vmatprep.subr.bf16.mxu0 0
    %9455 = vmatpush1.bf16.msra.mxu0 %v7247
    %9456 = vmatprep.mubr.bf16.mxu0 %v2221
    %9457 = vmatmul.mubr.bf16.gmra.mrb[0].mxu0 %v2207
    %v9458 = vpop.f32.mrb[0].mxu0
    %v9459 = vadd.f32 %v9419, %v9458
    %v9460 = vpop.f32.mrb[0].mxu0
    %v9461 = vpop.f32.mrb[0].mxu0
    %v9462 = vpop.f32.mrb[0].mxu0
    %9463 = vdwg.mxu0
    %9464 = vmatprep.subr.bf16.mxu0 0
    %9465 = vmatpush1.bf16.msra.mxu0 %v7248
    %9466 = vmatprep.subr.bf16.mxu0 0
    %9467 = vmatpush1.bf16.msra.mxu0 %v7249
    %9468 = vmatprep.subr.bf16.mxu0 0
    %9469 = vmatpush1.bf16.msra.mxu0 %v7250
    %9470 = vmatprep.subr.bf16.mxu0 0
    %9471 = vmatpush1.bf16.msra.mxu0 %v7251
    %9472 = vmatprep.subr.bf16.mxu0 0
    %9473 = vmatpush1.bf16.msra.mxu0 %v7252
    %9474 = vmatprep.subr.bf16.mxu0 0
    %9475 = vmatpush1.bf16.msra.mxu0 %v7253
    %9476 = vmatprep.subr.bf16.mxu0 0
    %9477 = vmatpush1.bf16.msra.mxu0 %v7254
    %9478 = vmatprep.subr.bf16.mxu0 0
    %9479 = vmatpush1.bf16.msra.mxu0 %v7255
    %9480 = vmatprep.subr.bf16.mxu0 0
    %9481 = vmatpush1.bf16.msra.mxu0 %v7256
    %9482 = vmatprep.subr.bf16.mxu0 0
    %9483 = vmatpush1.bf16.msra.mxu0 %v7257
    %9484 = vmatprep.subr.bf16.mxu0 0
    %9485 = vmatpush1.bf16.msra.mxu0 %v7258
    %9486 = vmatprep.subr.bf16.mxu0 0
    %9487 = vmatpush1.bf16.msra.mxu0 %v7259
    %9488 = vmatprep.subr.bf16.mxu0 0
    %9489 = vmatpush1.bf16.msra.mxu0 %v7260
    %9490 = vmatprep.subr.bf16.mxu0 0
    %9491 = vmatpush1.bf16.msra.mxu0 %v7261
    %9492 = vmatprep.subr.bf16.mxu0 0
    %9493 = vmatpush1.bf16.msra.mxu0 %v7262
    %9494 = vmatprep.subr.bf16.mxu0 0
    %9495 = vmatpush1.bf16.msra.mxu0 %v7263
    %9496 = vmatprep.mubr.bf16.mxu0 %v2225
    %9497 = vmatmul.mubr.bf16.gmra.mrb[0].mxu0 %v2223
    %v9498 = vpop.f32.mrb[0].mxu0
    %v9499 = vadd.f32 %v9459, %v9498
    %v9500 = vpop.f32.mrb[0].mxu0
    %v9501 = vpop.f32.mrb[0].mxu0
    %v9502 = vpop.f32.mrb[0].mxu0
    %9503 = vdwg.mxu0
    %9504 = vmatprep.subr.bf16.mxu0 0
    %9505 = vmatpush1.bf16.msra.mxu0 %v7264
    %9506 = vmatprep.subr.bf16.mxu0 0
    %9507 = vmatpush1.bf16.msra.mxu0 %v7265
    %9508 = vmatprep.subr.bf16.mxu0 0
    %9509 = vmatpush1.bf16.msra.mxu0 %v7266
    %9510 = vmatprep.subr.bf16.mxu0 0
    %9511 = vmatpush1.bf16.msra.mxu0 %v7267
    %9512 = vmatprep.subr.bf16.mxu0 0
    %9513 = vmatpush1.bf16.msra.mxu0 %v7268
    %9514 = vmatprep.subr.bf16.mxu0 0
    %9515 = vmatpush1.bf16.msra.mxu0 %v7269
    %9516 = vmatprep.subr.bf16.mxu0 0
    %9517 = vmatpush1.bf16.msra.mxu0 %v7270
    %9518 = vmatprep.subr.bf16.mxu0 0
    %9519 = vmatpush1.bf16.msra.mxu0 %v7271
    %9520 = vmatprep.subr.bf16.mxu0 0
    %9521 = vmatpush1.bf16.msra.mxu0 %v7272
    %9522 = vmatprep.subr.bf16.mxu0 0
    %9523 = vmatpush1.bf16.msra.mxu0 %v7273
    %9524 = vmatprep.subr.bf16.mxu0 0
    %9525 = vmatpush1.bf16.msra.mxu0 %v7274
    %9526 = vmatprep.subr.bf16.mxu0 0
    %9527 = vmatpush1.bf16.msra.mxu0 %v7275
    %9528 = vmatprep.subr.bf16.mxu0 0
    %9529 = vmatpush1.bf16.msra.mxu0 %v7276
    %9530 = vmatprep.subr.bf16.mxu0 0
    %9531 = vmatpush1.bf16.msra.mxu0 %v7277
    %9532 = vmatprep.subr.bf16.mxu0 0
    %9533 = vmatpush1.bf16.msra.mxu0 %v7278
    %9534 = vmatprep.subr.bf16.mxu0 0
    %9535 = vmatpush1.bf16.msra.mxu0 %v7279
    %9536 = vmatprep.mubr.bf16.mxu0 %v2263
    %9537 = vmatmul.mubr.bf16.gmra.mrb[0].mxu0 %v2249
    %v9538 = vpop.f32.mrb[0].mxu0
    %v9539 = vadd.f32 %v9499, %v9538
    %v9540 = vpop.f32.mrb[0].mxu0
    %v9541 = vpop.f32.mrb[0].mxu0
    %v9542 = vpop.f32.mrb[0].mxu0
    %9543 = vdwg.mxu0
    %9544 = vmatprep.subr.bf16.mxu0 0
    %9545 = vmatpush1.bf16.msra.mxu0 %v7280
    %9546 = vmatprep.subr.bf16.mxu0 0
    %9547 = vmatpush1.bf16.msra.mxu0 %v7281
    %9548 = vmatprep.subr.bf16.mxu0 0
    %9549 = vmatpush1.bf16.msra.mxu0 %v7282
    %9550 = vmatprep.subr.bf16.mxu0 0
    %9551 = vmatpush1.bf16.msra.mxu0 %v7283
    %9552 = vmatprep.subr.bf16.mxu0 0
    %9553 = vmatpush1.bf16.msra.mxu0 %v7284
    %9554 = vmatprep.subr.bf16.mxu0 0
    %9555 = vmatpush1.bf16.msra.mxu0 %v7285
    %9556 = vmatprep.subr.bf16.mxu0 0
    %9557 = vmatpush1.bf16.msra.mxu0 %v7286
    %9558 = vmatprep.subr.bf16.mxu0 0
    %9559 = vmatpush1.bf16.msra.mxu0 %v7287
    %9560 = vmatprep.subr.bf16.mxu0 0
    %9561 = vmatpush1.bf16.msra.mxu0 %v7288
    %9562 = vmatprep.subr.bf16.mxu0 0
    %9563 = vmatpush1.bf16.msra.mxu0 %v7289
    %9564 = vmatprep.subr.bf16.mxu0 0
    %9565 = vmatpush1.bf16.msra.mxu0 %v7290
    %9566 = vmatprep.subr.bf16.mxu0 0
    %9567 = vmatpush1.bf16.msra.mxu0 %v7291
    %9568 = vmatprep.subr.bf16.mxu0 0
    %9569 = vmatpush1.bf16.msra.mxu0 %v7292
    %9570 = vmatprep.subr.bf16.mxu0 0
    %9571 = vmatpush1.bf16.msra.mxu0 %v7293
    %9572 = vmatprep.subr.bf16.mxu0 0
    %9573 = vmatpush1.bf16.msra.mxu0 %v7294
    %9574 = vmatprep.subr.bf16.mxu0 0
    %9575 = vmatpush1.bf16.msra.mxu0 %v7295
    %9576 = vmatprep.mubr.bf16.mxu0 %v2273
    %9577 = vmatmul.mubr.bf16.gmra.mrb[0].mxu0 %v2271
    %v9578 = vpop.f32.mrb[0].mxu0
    %v9579 = vadd.f32 %v9539, %v9578
    %v9580 = vpop.f32.mrb[0].mxu0
    %v9581 = vpop.f32.mrb[0].mxu0
    %v9582 = vpop.f32.mrb[0].mxu0
    %9583 = vdwg.mxu0
    %9584 = vmatprep.subr.bf16.mxu0 0
    %9585 = vmatpush1.bf16.msra.mxu0 %v7296
    %9586 = vmatprep.subr.bf16.mxu0 0
    %9587 = vmatpush1.bf16.msra.mxu0 %v7297
    %9588 = vmatprep.subr.bf16.mxu0 0
    %9589 = vmatpush1.bf16.msra.mxu0 %v7298
    %9590 = vmatprep.subr.bf16.mxu0 0
    %9591 = vmatpush1.bf16.msra.mxu0 %v7299
    %9592 = vmatprep.subr.bf16.mxu0 0
    %9593 = vmatpush1.bf16.msra.mxu0 %v7300
    %9594 = vmatprep.subr.bf16.mxu0 0
    %9595 = vmatpush1.bf16.msra.mxu0 %v7301
    %9596 = vmatprep.subr.bf16.mxu0 0
    %9597 = vmatpush1.bf16.msra.mxu0 %v7302
    %9598 = vmatprep.subr.bf16.mxu0 0
    %9599 = vmatpush1.bf16.msra.mxu0 %v7303
    %9600 = vmatprep.subr.bf16.mxu0 0
    %9601 = vmatpush1.bf16.msra.mxu0 %v7304
    %9602 = vmatprep.subr.bf16.mxu0 0
    %9603 = vmatpush1.bf16.msra.mxu0 %v7305
    %9604 = vmatprep.subr.bf16.mxu0 0
    %9605 = vmatpush1.bf16.msra.mxu0 %v7306
    %9606 = vmatprep.subr.bf16.mxu0 0
    %9607 = vmatpush1.bf16.msra.mxu0 %v7307
    %9608 = vmatprep.subr.bf16.mxu0 0
    %9609 = vmatpush1.bf16.msra.mxu0 %v7308
    %9610 = vmatprep.subr.bf16.mxu0 0
    %9611 = vmatpush1.bf16.msra.mxu0 %v7309
    %9612 = vmatprep.subr.bf16.mxu0 0
    %9613 = vmatpush1.bf16.msra.mxu0 %v7310
    %9614 = vmatprep.subr.bf16.mxu0 0
    %9615 = vmatpush1.bf16.msra.mxu0 %v7311
    %9616 = vmatprep.mubr.bf16.mxu0 %v2270
    %9617 = vmatmul.mubr.bf16.gmra.mrb[0].mxu0 %v2256
    %v9618 = vpop.f32.mrb[0].mxu0
    %v9619 = vadd.f32 %v9579, %v9618
    %v9620 = vpop.f32.mrb[0].mxu0
    %v9621 = vpop.f32.mrb[0].mxu0
    %v9622 = vpop.f32.mrb[0].mxu0
    %9623 = vdwg.mxu0
    %9624 = vmatprep.subr.bf16.mxu0 0
    %9625 = vmatpush1.bf16.msra.mxu0 %v7312
    %9626 = vmatprep.subr.bf16.mxu0 0
    %9627 = vmatpush1.bf16.msra.mxu0 %v7313
    %9628 = vmatprep.subr.bf16.mxu0 0
    %9629 = vmatpush1.bf16.msra.mxu0 %v7314
    %9630 = vmatprep.subr.bf16.mxu0 0
    %9631 = vmatpush1.bf16.msra.mxu0 %v7315
    %9632 = vmatprep.subr.bf16.mxu0 0
    %9633 = vmatpush1.bf16.msra.mxu0 %v7316
    %9634 = vmatprep.subr.bf16.mxu0 0
    %9635 = vmatpush1.bf16.msra.mxu0 %v7317
    %9636 = vmatprep.subr.bf16.mxu0 0
    %9637 = vmatpush1.bf16.msra.mxu0 %v7318
    %9638 = vmatprep.subr.bf16.mxu0 0
    %9639 = vmatpush1.bf16.msra.mxu0 %v7319
    %9640 = vmatprep.subr.bf16.mxu0 0
    %9641 = vmatpush1.bf16.msra.mxu0 %v7320
    %9642 = vmatprep.subr.bf16.mxu0 0
    %9643 = vmatpush1.bf16.msra.mxu0 %v7321
    %9644 = vmatprep.subr.bf16.mxu0 0
    %9645 = vmatpush1.bf16.msra.mxu0 %v7322
    %9646 = vmatprep.subr.bf16.mxu0 0
    %9647 = vmatpush1.bf16.msra.mxu0 %v7323
    %9648 = vmatprep.subr.bf16.mxu0 0
    %9649 = vmatpush1.bf16.msra.mxu0 %v7324
    %9650 = vmatprep.subr.bf16.mxu0 0
    %9651 = vmatpush1.bf16.msra.mxu0 %v7325
    %9652 = vmatprep.subr.bf16.mxu0 0
    %9653 = vmatpush1.bf16.msra.mxu0 %v7326
    %9654 = vmatprep.subr.bf16.mxu0 0
    %9655 = vmatpush1.bf16.msra.mxu0 %v7327
    %9656 = vmatprep.mubr.bf16.mxu0 %v2274
    %9657 = vmatmul.mubr.bf16.gmra.mrb[0].mxu0 %v2272
    %v9658 = vpop.f32.mrb[0].mxu0
    %v9659 = vadd.f32 %v9619, %v9658
    %v9660 = vpop.f32.mrb[0].mxu0
    %v9661 = vpop.f32.mrb[0].mxu0
    %v9662 = vpop.f32.mrb[0].mxu0
    %9663 = vdwg.mxu0
    %9664 = vmatprep.subr.bf16.mxu0 0
    %9665 = vmatpush1.bf16.msra.mxu0 %v7328
    %9666 = vmatprep.subr.bf16.mxu0 0
    %9667 = vmatpush1.bf16.msra.mxu0 %v7329
    %9668 = vmatprep.subr.bf16.mxu0 0
    %9669 = vmatpush1.bf16.msra.mxu0 %v7330
    %9670 = vmatprep.subr.bf16.mxu0 0
    %9671 = vmatpush1.bf16.msra.mxu0 %v7331
    %9672 = vmatprep.subr.bf16.mxu0 0
    %9673 = vmatpush1.bf16.msra.mxu0 %v7332
    %9674 = vmatprep.subr.bf16.mxu0 0
    %9675 = vmatpush1.bf16.msra.mxu0 %v7333
    %9676 = vmatprep.subr.bf16.mxu0 0
    %9677 = vmatpush1.bf16.msra.mxu0 %v7334
    %9678 = vmatprep.subr.bf16.mxu0 0
    %9679 = vmatpush1.bf16.msra.mxu0 %v7335
    %9680 = vmatprep.subr.bf16.mxu0 0
    %9681 = vmatpush1.bf16.msra.mxu0 %v7336
    %9682 = vmatprep.subr.bf16.mxu0 0
    %9683 = vmatpush1.bf16.msra.mxu0 %v7337
    %9684 = vmatprep.subr.bf16.mxu0 0
    %9685 = vmatpush1.bf16.msra.mxu0 %v7338
    %9686 = vmatprep.subr.bf16.mxu0 0
    %9687 = vmatpush1.bf16.msra.mxu0 %v7339
    %9688 = vmatprep.subr.bf16.mxu0 0
    %9689 = vmatpush1.bf16.msra.mxu0 %v7340
    %9690 = vmatprep.subr.bf16.mxu0 0
    %9691 = vmatpush1.bf16.msra.mxu0 %v7341
    %9692 = vmatprep.subr.bf16.mxu0 0
    %9693 = vmatpush1.bf16.msra.mxu0 %v7342
    %9694 = vmatprep.subr.bf16.mxu0 0
    %9695 = vmatpush1.bf16.msra.mxu0 %v7343
    %9696 = vmatprep.mubr.bf16.mxu0 %v2312
    %9697 = vmatmul.mubr.bf16.gmra.mrb[0].mxu0 %v2298
    %v9698 = vpop.f32.mrb[0].mxu0
    %v9699 = vadd.f32 %v9659, %v9698
    %v9700 = vpop.f32.mrb[0].mxu0
    %v9701 = vpop.f32.mrb[0].mxu0
    %v9702 = vpop.f32.mrb[0].mxu0
    %9703 = vdwg.mxu0
    %9704 = vmatprep.subr.bf16.mxu0 0
    %9705 = vmatpush1.bf16.msra.mxu0 %v7344
    %9706 = vmatprep.subr.bf16.mxu0 0
    %9707 = vmatpush1.bf16.msra.mxu0 %v7345
    %9708 = vmatprep.subr.bf16.mxu0 0
    %9709 = vmatpush1.bf16.msra.mxu0 %v7346
    %9710 = vmatprep.subr.bf16.mxu0 0
    %9711 = vmatpush1.bf16.msra.mxu0 %v7347
    %9712 = vmatprep.subr.bf16.mxu0 0
    %9713 = vmatpush1.bf16.msra.mxu0 %v7348
    %9714 = vmatprep.subr.bf16.mxu0 0
    %9715 = vmatpush1.bf16.msra.mxu0 %v7349
    %9716 = vmatprep.subr.bf16.mxu0 0
    %9717 = vmatpush1.bf16.msra.mxu0 %v7350
    %9718 = vmatprep.subr.bf16.mxu0 0
    %9719 = vmatpush1.bf16.msra.mxu0 %v7351
    %9720 = vmatprep.subr.bf16.mxu0 0
    %9721 = vmatpush1.bf16.msra.mxu0 %v7352
    %9722 = vmatprep.subr.bf16.mxu0 0
    %9723 = vmatpush1.bf16.msra.mxu0 %v7353
    %9724 = vmatprep.subr.bf16.mxu0 0
    %9725 = vmatpush1.bf16.msra.mxu0 %v7354
    %9726 = vmatprep.subr.bf16.mxu0 0
    %9727 = vmatpush1.bf16.msra.mxu0 %v7355
    %9728 = vmatprep.subr.bf16.mxu0 0
    %9729 = vmatpush1.bf16.msra.mxu0 %v7356
    %9730 = vmatprep.subr.bf16.mxu0 0
    %9731 = vmatpush1.bf16.msra.mxu0 %v7357
    %9732 = vmatprep.subr.bf16.mxu0 0
    %9733 = vmatpush1.bf16.msra.mxu0 %v7358
    %9734 = vmatprep.subr.bf16.mxu0 0
    %9735 = vmatpush1.bf16.msra.mxu0 %v7359
    %9736 = vmatprep.mubr.bf16.mxu0 %v2322
    %9737 = vmatmul.mubr.bf16.gmra.mrb[0].mxu0 %v2320
    %v9738 = vpop.f32.mrb[0].mxu0
    %v9739 = vadd.f32 %v9699, %v9738
    %v9740 = vpop.f32.mrb[0].mxu0
    %v9741 = vpop.f32.mrb[0].mxu0
    %v9742 = vpop.f32.mrb[0].mxu0
    %9743 = vdwg.mxu0
    %9744 = vmatprep.subr.bf16.mxu0 0
    %9745 = vmatpush1.bf16.msra.mxu0 %v7360
    %9746 = vmatprep.subr.bf16.mxu0 0
    %9747 = vmatpush1.bf16.msra.mxu0 %v7361
    %9748 = vmatprep.subr.bf16.mxu0 0
    %9749 = vmatpush1.bf16.msra.mxu0 %v7362
    %9750 = vmatprep.subr.bf16.mxu0 0
    %9751 = vmatpush1.bf16.msra.mxu0 %v7363
    %9752 = vmatprep.subr.bf16.mxu0 0
    %9753 = vmatpush1.bf16.msra.mxu0 %v7364
    %9754 = vmatprep.subr.bf16.mxu0 0
    %9755 = vmatpush1.bf16.msra.mxu0 %v7365
    %9756 = vmatprep.subr.bf16.mxu0 0
    %9757 = vmatpush1.bf16.msra.mxu0 %v7366
    %9758 = vmatprep.subr.bf16.mxu0 0
    %9759 = vmatpush1.bf16.msra.mxu0 %v7367
    %9760 = vmatprep.subr.bf16.mxu0 0
    %9761 = vmatpush1.bf16.msra.mxu0 %v7368
    %9762 = vmatprep.subr.bf16.mxu0 0
    %9763 = vmatpush1.bf16.msra.mxu0 %v7369
    %9764 = vmatprep.subr.bf16.mxu0 0
    %9765 = vmatpush1.bf16.msra.mxu0 %v7370
    %9766 = vmatprep.subr.bf16.mxu0 0
    %9767 = vmatpush1.bf16.msra.mxu0 %v7371
    %9768 = vmatprep.subr.bf16.mxu0 0
    %9769 = vmatpush1.bf16.msra.mxu0 %v7372
    %9770 = vmatprep.subr.bf16.mxu0 0
    %9771 = vmatpush1.bf16.msra.mxu0 %v7373
    %9772 = vmatprep.subr.bf16.mxu0 0
    %9773 = vmatpush1.bf16.msra.mxu0 %v7374
    %9774 = vmatprep.subr.bf16.mxu0 0
    %9775 = vmatpush1.bf16.msra.mxu0 %v7375
    %9776 = vmatprep.mubr.bf16.mxu0 %v2319
    %9777 = vmatmul.mubr.bf16.gmra.mrb[0].mxu0 %v2305
    %v9778 = vpop.f32.mrb[0].mxu0
    %v9779 = vadd.f32 %v9739, %v9778
    %v9780 = vpop.f32.mrb[0].mxu0
    %v9781 = vpop.f32.mrb[0].mxu0
    %v9782 = vpop.f32.mrb[0].mxu0
    %9783 = vdwg.mxu0
    %9784 = vmatprep.subr.bf16.mxu0 0
    %9785 = vmatpush1.bf16.msra.mxu0 %v7376
    %9786 = vmatprep.subr.bf16.mxu0 0
    %9787 = vmatpush1.bf16.msra.mxu0 %v7377
    %9788 = vmatprep.subr.bf16.mxu0 0
    %9789 = vmatpush1.bf16.msra.mxu0 %v7378
    %9790 = vmatprep.subr.bf16.mxu0 0
    %9791 = vmatpush1.bf16.msra.mxu0 %v7379
    %9792 = vmatprep.subr.bf16.mxu0 0
    %9793 = vmatpush1.bf16.msra.mxu0 %v7380
    %9794 = vmatprep.subr.bf16.mxu0 0
    %9795 = vmatpush1.bf16.msra.mxu0 %v7381
    %9796 = vmatprep.subr.bf16.mxu0 0
    %9797 = vmatpush1.bf16.msra.mxu0 %v7382
    %9798 = vmatprep.subr.bf16.mxu0 0
    %9799 = vmatpush1.bf16.msra.mxu0 %v7383
    %9800 = vmatprep.subr.bf16.mxu0 0
    %9801 = vmatpush1.bf16.msra.mxu0 %v7384
    %9802 = vmatprep.subr.bf16.mxu0 0
    %9803 = vmatpush1.bf16.msra.mxu0 %v7385
    %9804 = vmatprep.subr.bf16.mxu0 0
    %9805 = vmatpush1.bf16.msra.mxu0 %v7386
    %9806 = vmatprep.subr.bf16.mxu0 0
    %9807 = vmatpush1.bf16.msra.mxu0 %v7387
    %9808 = vmatprep.subr.bf16.mxu0 0
    %9809 = vmatpush1.bf16.msra.mxu0 %v7388
    %9810 = vmatprep.subr.bf16.mxu0 0
    %9811 = vmatpush1.bf16.msra.mxu0 %v7389
    %9812 = vmatprep.subr.bf16.mxu0 0
    %9813 = vmatpush1.bf16.msra.mxu0 %v7390
    %9814 = vmatprep.subr.bf16.mxu0 0
    %9815 = vmatpush1.bf16.msra.mxu0 %v7391
    %9816 = vmatprep.mubr.bf16.mxu0 %v2323
    %9817 = vmatmul.mubr.bf16.gmra.mrb[0].mxu0 %v2321
    %v9818 = vpop.f32.mrb[0].mxu0
    %v9819 = vadd.f32 %v9779, %v9818
    %v9820 = vpop.f32.mrb[0].mxu0
    %v9821 = vpop.f32.mrb[0].mxu0
    %v9822 = vpop.f32.mrb[0].mxu0
    %9823 = vdwg.mxu0
    %9824 = vmatprep.subr.bf16.mxu0 0
    %9825 = vmatpush1.bf16.msra.mxu0 %v7392
    %9826 = vmatprep.subr.bf16.mxu0 0
    %9827 = vmatpush1.bf16.msra.mxu0 %v7393
    %9828 = vmatprep.subr.bf16.mxu0 0
    %9829 = vmatpush1.bf16.msra.mxu0 %v7394
    %9830 = vmatprep.subr.bf16.mxu0 0
    %9831 = vmatpush1.bf16.msra.mxu0 %v7395
    %9832 = vmatprep.subr.bf16.mxu0 0
    %9833 = vmatpush1.bf16.msra.mxu0 %v7396
    %9834 = vmatprep.subr.bf16.mxu0 0
    %9835 = vmatpush1.bf16.msra.mxu0 %v7397
    %9836 = vmatprep.subr.bf16.mxu0 0
    %9837 = vmatpush1.bf16.msra.mxu0 %v7398
    %9838 = vmatprep.subr.bf16.mxu0 0
    %9839 = vmatpush1.bf16.msra.mxu0 %v7399
    %9840 = vmatprep.subr.bf16.mxu0 0
    %9841 = vmatpush1.bf16.msra.mxu0 %v7400
    %9842 = vmatprep.subr.bf16.mxu0 0
    %9843 = vmatpush1.bf16.msra.mxu0 %v7401
    %9844 = vmatprep.subr.bf16.mxu0 0
    %9845 = vmatpush1.bf16.msra.mxu0 %v7402
    %9846 = vmatprep.subr.bf16.mxu0 0
    %9847 = vmatpush1.bf16.msra.mxu0 %v7403
    %9848 = vmatprep.subr.bf16.mxu0 0
    %9849 = vmatpush1.bf16.msra.mxu0 %v7404
    %9850 = vmatprep.subr.bf16.mxu0 0
    %9851 = vmatpush1.bf16.msra.mxu0 %v7405
    %9852 = vmatprep.subr.bf16.mxu0 0
    %9853 = vmatpush1.bf16.msra.mxu0 %v7406
    %9854 = vmatprep.subr.bf16.mxu0 0
    %9855 = vmatpush1.bf16.msra.mxu0 %v7407
    %9856 = vmatprep.mubr.bf16.mxu0 %v2361
    %9857 = vmatmul.mubr.bf16.gmra.mrb[0].mxu0 %v2347
    %v9858 = vpop.f32.mrb[0].mxu0
    %v9859 = vadd.f32 %v9819, %v9858
    %v9860 = vpop.f32.mrb[0].mxu0
    %v9861 = vpop.f32.mrb[0].mxu0
    %v9862 = vpop.f32.mrb[0].mxu0
    %9863 = vdwg.mxu0
    %9864 = vmatprep.subr.bf16.mxu0 0
    %9865 = vmatpush1.bf16.msra.mxu0 %v7408
    %9866 = vmatprep.subr.bf16.mxu0 0
    %9867 = vmatpush1.bf16.msra.mxu0 %v7409
    %9868 = vmatprep.subr.bf16.mxu0 0
    %9869 = vmatpush1.bf16.msra.mxu0 %v7410
    %9870 = vmatprep.subr.bf16.mxu0 0
    %9871 = vmatpush1.bf16.msra.mxu0 %v7411
    %9872 = vmatprep.subr.bf16.mxu0 0
    %9873 = vmatpush1.bf16.msra.mxu0 %v7412
    %9874 = vmatprep.subr.bf16.mxu0 0
    %9875 = vmatpush1.bf16.msra.mxu0 %v7413
    %9876 = vmatprep.subr.bf16.mxu0 0
    %9877 = vmatpush1.bf16.msra.mxu0 %v7414
    %9878 = vmatprep.subr.bf16.mxu0 0
    %9879 = vmatpush1.bf16.msra.mxu0 %v7415
    %9880 = vmatprep.subr.bf16.mxu0 0
    %9881 = vmatpush1.bf16.msra.mxu0 %v7416
    %9882 = vmatprep.subr.bf16.mxu0 0
    %9883 = vmatpush1.bf16.msra.mxu0 %v7417
    %9884 = vmatprep.subr.bf16.mxu0 0
    %9885 = vmatpush1.bf16.msra.mxu0 %v7418
    %9886 = vmatprep.subr.bf16.mxu0 0
    %9887 = vmatpush1.bf16.msra.mxu0 %v7419
    %9888 = vmatprep.subr.bf16.mxu0 0
    %9889 = vmatpush1.bf16.msra.mxu0 %v7420
    %9890 = vmatprep.subr.bf16.mxu0 0
    %9891 = vmatpush1.bf16.msra.mxu0 %v7421
    %9892 = vmatprep.subr.bf16.mxu0 0
    %9893 = vmatpush1.bf16.msra.mxu0 %v7422
    %9894 = vmatprep.subr.bf16.mxu0 0
    %9895 = vmatpush1.bf16.msra.mxu0 %v7423
    %9896 = vmatprep.mubr.bf16.mxu0 %v2371
    %9897 = vmatmul.mubr.bf16.gmra.mrb[0].mxu0 %v2369
    %v9898 = vpop.f32.mrb[0].mxu0
    %v9899 = vadd.f32 %v9859, %v9898
    %v9900 = vpop.f32.mrb[0].mxu0
    %v9901 = vpop.f32.mrb[0].mxu0
    %v9902 = vpop.f32.mrb[0].mxu0
    %9903 = vdwg.mxu0
    %9904 = vmatprep.subr.bf16.mxu0 0
    %9905 = vmatpush1.bf16.msra.mxu0 %v7424
    %9906 = vmatprep.subr.bf16.mxu0 0
    %9907 = vmatpush1.bf16.msra.mxu0 %v7425
    %9908 = vmatprep.subr.bf16.mxu0 0
    %9909 = vmatpush1.bf16.msra.mxu0 %v7426
    %9910 = vmatprep.subr.bf16.mxu0 0
    %9911 = vmatpush1.bf16.msra.mxu0 %v7427
    %9912 = vmatprep.subr.bf16.mxu0 0
    %9913 = vmatpush1.bf16.msra.mxu0 %v7428
    %9914 = vmatprep.subr.bf16.mxu0 0
    %9915 = vmatpush1.bf16.msra.mxu0 %v7429
    %9916 = vmatprep.subr.bf16.mxu0 0
    %9917 = vmatpush1.bf16.msra.mxu0 %v7430
    %9918 = vmatprep.subr.bf16.mxu0 0
    %9919 = vmatpush1.bf16.msra.mxu0 %v7431
    %9920 = vmatprep.subr.bf16.mxu0 0
    %9921 = vmatpush1.bf16.msra.mxu0 %v7432
    %9922 = vmatprep.subr.bf16.mxu0 0
    %9923 = vmatpush1.bf16.msra.mxu0 %v7433
    %9924 = vmatprep.subr.bf16.mxu0 0
    %9925 = vmatpush1.bf16.msra.mxu0 %v7434
    %9926 = vmatprep.subr.bf16.mxu0 0
    %9927 = vmatpush1.bf16.msra.mxu0 %v7435
    %9928 = vmatprep.subr.bf16.mxu0 0
    %9929 = vmatpush1.bf16.msra.mxu0 %v7436
    %9930 = vmatprep.subr.bf16.mxu0 0
    %9931 = vmatpush1.bf16.msra.mxu0 %v7437
    %9932 = vmatprep.subr.bf16.mxu0 0
    %9933 = vmatpush1.bf16.msra.mxu0 %v7438
    %9934 = vmatprep.subr.bf16.mxu0 0
    %9935 = vmatpush1.bf16.msra.mxu0 %v7439
    %9936 = vmatprep.mubr.bf16.mxu0 %v2368
    %9937 = vmatmul.mubr.bf16.gmra.mrb[0].mxu0 %v2354
    %v9938 = vpop.f32.mrb[0].mxu0
    %v9939 = vadd.f32 %v9899, %v9938
    %v9940 = vpop.f32.mrb[0].mxu0
    %v9941 = vpop.f32.mrb[0].mxu0
    %v9942 = vpop.f32.mrb[0].mxu0
    %9943 = vdwg.mxu0
    %9944 = vmatprep.subr.bf16.mxu0 0
    %9945 = vmatpush1.bf16.msra.mxu0 %v7440
    %9946 = vmatprep.subr.bf16.mxu0 0
    %9947 = vmatpush1.bf16.msra.mxu0 %v7441
    %9948 = vmatprep.subr.bf16.mxu0 0
    %9949 = vmatpush1.bf16.msra.mxu0 %v7442
    %9950 = vmatprep.subr.bf16.mxu0 0
    %9951 = vmatpush1.bf16.msra.mxu0 %v7443
    %9952 = vmatprep.subr.bf16.mxu0 0
    %9953 = vmatpush1.bf16.msra.mxu0 %v7444
    %9954 = vmatprep.subr.bf16.mxu0 0
    %9955 = vmatpush1.bf16.msra.mxu0 %v7445
    %9956 = vmatprep.subr.bf16.mxu0 0
    %9957 = vmatpush1.bf16.msra.mxu0 %v7446
    %9958 = vmatprep.subr.bf16.mxu0 0
    %9959 = vmatpush1.bf16.msra.mxu0 %v7447
    %9960 = vmatprep.subr.bf16.mxu0 0
    %9961 = vmatpush1.bf16.msra.mxu0 %v7448
    %9962 = vmatprep.subr.bf16.mxu0 0
    %9963 = vmatpush1.bf16.msra.mxu0 %v7449
    %9964 = vmatprep.subr.bf16.mxu0 0
    %9965 = vmatpush1.bf16.msra.mxu0 %v7450
    %9966 = vmatprep.subr.bf16.mxu0 0
    %9967 = vmatpush1.bf16.msra.mxu0 %v7451
    %9968 = vmatprep.subr.bf16.mxu0 0
    %9969 = vmatpush1.bf16.msra.mxu0 %v7452
    %9970 = vmatprep.subr.bf16.mxu0 0
    %9971 = vmatpush1.bf16.msra.mxu0 %v7453
    %9972 = vmatprep.subr.bf16.mxu0 0
    %9973 = vmatpush1.bf16.msra.mxu0 %v7454
    %9974 = vmatprep.subr.bf16.mxu0 0
    %9975 = vmatpush1.bf16.msra.mxu0 %v7455
    %9976 = vmatprep.mubr.bf16.mxu0 %v2372
    %9977 = vmatmul.mubr.bf16.gmra.mrb[0].mxu0 %v2370
    %v9978 = vpop.f32.mrb[0].mxu0
    %v9979 = vadd.f32 %v9939, %v9978
    %v9980 = vpop.f32.mrb[0].mxu0
    %v9981 = vpop.f32.mrb[0].mxu0
    %v9982 = vpop.f32.mrb[0].mxu0
    %9983 = vdwg.mxu0
    %9984 = vmatprep.subr.bf16.mxu0 0
    %9985 = vmatpush1.bf16.msra.mxu0 %v7456
    %9986 = vmatprep.subr.bf16.mxu0 0
    %9987 = vmatpush1.bf16.msra.mxu0 %v7457
    %9988 = vmatprep.subr.bf16.mxu0 0
    %9989 = vmatpush1.bf16.msra.mxu0 %v7458
    %9990 = vmatprep.subr.bf16.mxu0 0
    %9991 = vmatpush1.bf16.msra.mxu0 %v7459
    %9992 = vmatprep.subr.bf16.mxu0 0
    %9993 = vmatpush1.bf16.msra.mxu0 %v7460
    %9994 = vmatprep.subr.bf16.mxu0 0
    %9995 = vmatpush1.bf16.msra.mxu0 %v7461
    %9996 = vmatprep.subr.bf16.mxu0 0
    %9997 = vmatpush1.bf16.msra.mxu0 %v7462
    %9998 = vmatprep.subr.bf16.mxu0 0
    %9999 = vmatpush1.bf16.msra.mxu0 %v7463
    %10000 = vmatprep.subr.bf16.mxu0 0
    %10001 = vmatpush1.bf16.msra.mxu0 %v7464
    %10002 = vmatprep.subr.bf16.mxu0 0
    %10003 = vmatpush1.bf16.msra.mxu0 %v7465
    %10004 = vmatprep.subr.bf16.mxu0 0
    %10005 = vmatpush1.bf16.msra.mxu0 %v7466
    %10006 = vmatprep.subr.bf16.mxu0 0
    %10007 = vmatpush1.bf16.msra.mxu0 %v7467
    %10008 = vmatprep.subr.bf16.mxu0 0
    %10009 = vmatpush1.bf16.msra.mxu0 %v7468
    %10010 = vmatprep.subr.bf16.mxu0 0
    %10011 = vmatpush1.bf16.msra.mxu0 %v7469
    %10012 = vmatprep.subr.bf16.mxu0 0
    %10013 = vmatpush1.bf16.msra.mxu0 %v7470
    %10014 = vmatprep.subr.bf16.mxu0 0
    %10015 = vmatpush1.bf16.msra.mxu0 %v7471
    %10016 = vmatprep.mubr.bf16.mxu0 %v2410
    %10017 = vmatmul.mubr.bf16.gmra.mrb[0].mxu0 %v2396
    %v10018 = vpop.f32.mrb[0].mxu0
    %v10019 = vadd.f32 %v9979, %v10018
    %v10020 = vpop.f32.mrb[0].mxu0
    %v10021 = vpop.f32.mrb[0].mxu0
    %v10022 = vpop.f32.mrb[0].mxu0
    %10023 = vdwg.mxu0
    %10024 = vmatprep.subr.bf16.mxu0 0
    %10025 = vmatpush1.bf16.msra.mxu0 %v7472
    %10026 = vmatprep.subr.bf16.mxu0 0
    %10027 = vmatpush1.bf16.msra.mxu0 %v7473
    %10028 = vmatprep.subr.bf16.mxu0 0
    %10029 = vmatpush1.bf16.msra.mxu0 %v7474
    %10030 = vmatprep.subr.bf16.mxu0 0
    %10031 = vmatpush1.bf16.msra.mxu0 %v7475
    %10032 = vmatprep.subr.bf16.mxu0 0
    %10033 = vmatpush1.bf16.msra.mxu0 %v7476
    %10034 = vmatprep.subr.bf16.mxu0 0
    %10035 = vmatpush1.bf16.msra.mxu0 %v7477
    %10036 = vmatprep.subr.bf16.mxu0 0
    %10037 = vmatpush1.bf16.msra.mxu0 %v7478
    %10038 = vmatprep.subr.bf16.mxu0 0
    %10039 = vmatpush1.bf16.msra.mxu0 %v7479
    %10040 = vmatprep.subr.bf16.mxu0 0
    %10041 = vmatpush1.bf16.msra.mxu0 %v7480
    %10042 = vmatprep.subr.bf16.mxu0 0
    %10043 = vmatpush1.bf16.msra.mxu0 %v7481
    %10044 = vmatprep.subr.bf16.mxu0 0
    %10045 = vmatpush1.bf16.msra.mxu0 %v7482
    %10046 = vmatprep.subr.bf16.mxu0 0
    %10047 = vmatpush1.bf16.msra.mxu0 %v7483
    %10048 = vmatprep.subr.bf16.mxu0 0
    %10049 = vmatpush1.bf16.msra.mxu0 %v7484
    %10050 = vmatprep.subr.bf16.mxu0 0
    %10051 = vmatpush1.bf16.msra.mxu0 %v7485
    %10052 = vmatprep.subr.bf16.mxu0 0
    %10053 = vmatpush1.bf16.msra.mxu0 %v7486
    %10054 = vmatprep.subr.bf16.mxu0 0
    %10055 = vmatpush1.bf16.msra.mxu0 %v7487
    %10056 = vmatprep.mubr.bf16.mxu0 %v2420
    %10057 = vmatmul.mubr.bf16.gmra.mrb[0].mxu0 %v2418
    %v10058 = vpop.f32.mrb[0].mxu0
    %v10059 = vadd.f32 %v10019, %v10058
    %v10060 = vpop.f32.mrb[0].mxu0
    %v10061 = vpop.f32.mrb[0].mxu0
    %v10062 = vpop.f32.mrb[0].mxu0
    %10063 = vdwg.mxu0
    %10064 = vmatprep.subr.bf16.mxu0 0
    %10065 = vmatpush1.bf16.msra.mxu0 %v7488
    %10066 = vmatprep.subr.bf16.mxu0 0
    %10067 = vmatpush1.bf16.msra.mxu0 %v7489
    %10068 = vmatprep.subr.bf16.mxu0 0
    %10069 = vmatpush1.bf16.msra.mxu0 %v7490
    %10070 = vmatprep.subr.bf16.mxu0 0
    %10071 = vmatpush1.bf16.msra.mxu0 %v7491
    %10072 = vmatprep.subr.bf16.mxu0 0
    %10073 = vmatpush1.bf16.msra.mxu0 %v7492
    %10074 = vmatprep.subr.bf16.mxu0 0
    %10075 = vmatpush1.bf16.msra.mxu0 %v7493
    %10076 = vmatprep.subr.bf16.mxu0 0
    %10077 = vmatpush1.bf16.msra.mxu0 %v7494
    %10078 = vmatprep.subr.bf16.mxu0 0
    %10079 = vmatpush1.bf16.msra.mxu0 %v7495
    %10080 = vmatprep.subr.bf16.mxu0 0
    %10081 = vmatpush1.bf16.msra.mxu0 %v7496
    %10082 = vmatprep.subr.bf16.mxu0 0
    %10083 = vmatpush1.bf16.msra.mxu0 %v7497
    %10084 = vmatprep.subr.bf16.mxu0 0
    %10085 = vmatpush1.bf16.msra.mxu0 %v7498
    %10086 = vmatprep.subr.bf16.mxu0 0
    %10087 = vmatpush1.bf16.msra.mxu0 %v7499
    %10088 = vmatprep.subr.bf16.mxu0 0
    %10089 = vmatpush1.bf16.msra.mxu0 %v7500
    %10090 = vmatprep.subr.bf16.mxu0 0
    %10091 = vmatpush1.bf16.msra.mxu0 %v7501
    %10092 = vmatprep.subr.bf16.mxu0 0
    %10093 = vmatpush1.bf16.msra.mxu0 %v7502
    %10094 = vmatprep.subr.bf16.mxu0 0
    %10095 = vmatpush1.bf16.msra.mxu0 %v7503
    %10096 = vmatprep.mubr.bf16.mxu0 %v2417
    %10097 = vmatmul.mubr.bf16.gmra.mrb[0].mxu0 %v2403
    %v10098 = vpop.f32.mrb[0].mxu0
    %v10099 = vadd.f32 %v10059, %v10098
    %v10100 = vpop.f32.mrb[0].mxu0
    %v10101 = vpop.f32.mrb[0].mxu0
    %v10102 = vpop.f32.mrb[0].mxu0
    %10103 = vdwg.mxu0
    %10104 = vmatprep.subr.bf16.mxu0 0
    %10105 = vmatpush1.bf16.msra.mxu0 %v7504
    %10106 = vmatprep.subr.bf16.mxu0 0
    %10107 = vmatpush1.bf16.msra.mxu0 %v7505
    %10108 = vmatprep.subr.bf16.mxu0 0
    %10109 = vmatpush1.bf16.msra.mxu0 %v7506
    %10110 = vmatprep.subr.bf16.mxu0 0
    %10111 = vmatpush1.bf16.msra.mxu0 %v7507
    %10112 = vmatprep.subr.bf16.mxu0 0
    %10113 = vmatpush1.bf16.msra.mxu0 %v7508
    %10114 = vmatprep.subr.bf16.mxu0 0
    %10115 = vmatpush1.bf16.msra.mxu0 %v7509
    %10116 = vmatprep.subr.bf16.mxu0 0
    %10117 = vmatpush1.bf16.msra.mxu0 %v7510
    %10118 = vmatprep.subr.bf16.mxu0 0
    %10119 = vmatpush1.bf16.msra.mxu0 %v7511
    %10120 = vmatprep.subr.bf16.mxu0 0
    %10121 = vmatpush1.bf16.msra.mxu0 %v7512
    %10122 = vmatprep.subr.bf16.mxu0 0
    %10123 = vmatpush1.bf16.msra.mxu0 %v7513
    %10124 = vmatprep.subr.bf16.mxu0 0
    %10125 = vmatpush1.bf16.msra.mxu0 %v7514
    %10126 = vmatprep.subr.bf16.mxu0 0
    %10127 = vmatpush1.bf16.msra.mxu0 %v7515
    %10128 = vmatprep.subr.bf16.mxu0 0
    %10129 = vmatpush1.bf16.msra.mxu0 %v7516
    %10130 = vmatprep.subr.bf16.mxu0 0
    %10131 = vmatpush1.bf16.msra.mxu0 %v7517
    %10132 = vmatprep.subr.bf16.mxu0 0
    %10133 = vmatpush1.bf16.msra.mxu0 %v7518
    %10134 = vmatprep.subr.bf16.mxu0 0
    %10135 = vmatpush1.bf16.msra.mxu0 %v7519
    %10136 = vmatprep.mubr.bf16.mxu0 %v2421
    %10137 = vmatmul.mubr.bf16.gmra.mrb[0].mxu0 %v2419
    %v10138 = vpop.f32.mrb[0].mxu0
    %v10139 = vadd.f32 %v10099, %v10138
    %v10140 = vpop.f32.mrb[0].mxu0
    %v10141 = vpop.f32.mrb[0].mxu0
    %v10142 = vpop.f32.mrb[0].mxu0
    %10143 = vdwg.mxu0
    %10144 = vmatprep.subr.bf16.mxu0 0
    %10145 = vmatpush1.bf16.msra.mxu0 %v7520
    %10146 = vmatprep.subr.bf16.mxu0 0
    %10147 = vmatpush1.bf16.msra.mxu0 %v7521
    %10148 = vmatprep.subr.bf16.mxu0 0
    %10149 = vmatpush1.bf16.msra.mxu0 %v7522
    %10150 = vmatprep.subr.bf16.mxu0 0
    %10151 = vmatpush1.bf16.msra.mxu0 %v7523
    %10152 = vmatprep.subr.bf16.mxu0 0
    %10153 = vmatpush1.bf16.msra.mxu0 %v7524
    %10154 = vmatprep.subr.bf16.mxu0 0
    %10155 = vmatpush1.bf16.msra.mxu0 %v7525
    %10156 = vmatprep.subr.bf16.mxu0 0
    %10157 = vmatpush1.bf16.msra.mxu0 %v7526
    %10158 = vmatprep.subr.bf16.mxu0 0
    %10159 = vmatpush1.bf16.msra.mxu0 %v7527
    %10160 = vmatprep.subr.bf16.mxu0 0
    %10161 = vmatpush1.bf16.msra.mxu0 %v7528
    %10162 = vmatprep.subr.bf16.mxu0 0
    %10163 = vmatpush1.bf16.msra.mxu0 %v7529
    %10164 = vmatprep.subr.bf16.mxu0 0
    %10165 = vmatpush1.bf16.msra.mxu0 %v7530
    %10166 = vmatprep.subr.bf16.mxu0 0
    %10167 = vmatpush1.bf16.msra.mxu0 %v7531
    %10168 = vmatprep.subr.bf16.mxu0 0
    %10169 = vmatpush1.bf16.msra.mxu0 %v7532
    %10170 = vmatprep.subr.bf16.mxu0 0
    %10171 = vmatpush1.bf16.msra.mxu0 %v7533
    %10172 = vmatprep.subr.bf16.mxu0 0
    %10173 = vmatpush1.bf16.msra.mxu0 %v7534
    %10174 = vmatprep.subr.bf16.mxu0 0
    %10175 = vmatpush1.bf16.msra.mxu0 %v7535
    %10176 = vmatprep.mubr.bf16.mxu0 %v2459
    %10177 = vmatmul.mubr.bf16.gmra.mrb[0].mxu0 %v2445
    %v10178 = vpop.f32.mrb[0].mxu0
    %v10179 = vadd.f32 %v10139, %v10178
    %v10180 = vpop.f32.mrb[0].mxu0
    %v10181 = vpop.f32.mrb[0].mxu0
    %v10182 = vpop.f32.mrb[0].mxu0
    %10183 = vdwg.mxu0
    %10184 = vmatprep.subr.bf16.mxu0 0
    %10185 = vmatpush1.bf16.msra.mxu0 %v7536
    %10186 = vmatprep.subr.bf16.mxu0 0
    %10187 = vmatpush1.bf16.msra.mxu0 %v7537
    %10188 = vmatprep.subr.bf16.mxu0 0
    %10189 = vmatpush1.bf16.msra.mxu0 %v7538
    %10190 = vmatprep.subr.bf16.mxu0 0
    %10191 = vmatpush1.bf16.msra.mxu0 %v7539
    %10192 = vmatprep.subr.bf16.mxu0 0
    %10193 = vmatpush1.bf16.msra.mxu0 %v7540
    %10194 = vmatprep.subr.bf16.mxu0 0
    %10195 = vmatpush1.bf16.msra.mxu0 %v7541
    %10196 = vmatprep.subr.bf16.mxu0 0
    %10197 = vmatpush1.bf16.msra.mxu0 %v7542
    %10198 = vmatprep.subr.bf16.mxu0 0
    %10199 = vmatpush1.bf16.msra.mxu0 %v7543
    %10200 = vmatprep.subr.bf16.mxu0 0
    %10201 = vmatpush1.bf16.msra.mxu0 %v7544
    %10202 = vmatprep.subr.bf16.mxu0 0
    %10203 = vmatpush1.bf16.msra.mxu0 %v7545
    %10204 = vmatprep.subr.bf16.mxu0 0
    %10205 = vmatpush1.bf16.msra.mxu0 %v7546
    %10206 = vmatprep.subr.bf16.mxu0 0
    %10207 = vmatpush1.bf16.msra.mxu0 %v7547
    %10208 = vmatprep.subr.bf16.mxu0 0
    %10209 = vmatpush1.bf16.msra.mxu0 %v7548
    %10210 = vmatprep.subr.bf16.mxu0 0
    %10211 = vmatpush1.bf16.msra.mxu0 %v7549
    %10212 = vmatprep.subr.bf16.mxu0 0
    %10213 = vmatpush1.bf16.msra.mxu0 %v7550
    %10214 = vmatprep.subr.bf16.mxu0 0
    %10215 = vmatpush1.bf16.msra.mxu0 %v7551
    %10216 = vmatprep.mubr.bf16.mxu0 %v2469
    %10217 = vmatmul.mubr.bf16.gmra.mrb[0].mxu0 %v2467
    %v10218 = vpop.f32.mrb[0].mxu0
    %v10219 = vadd.f32 %v10179, %v10218
    %v10220 = vpop.f32.mrb[0].mxu0
    %v10221 = vpop.f32.mrb[0].mxu0
    %v10222 = vpop.f32.mrb[0].mxu0
    %10223 = vdwg.mxu0
    %10224 = vmatprep.subr.bf16.mxu0 0
    %10225 = vmatpush1.bf16.msra.mxu0 %v7552
    %10226 = vmatprep.subr.bf16.mxu0 0
    %10227 = vmatpush1.bf16.msra.mxu0 %v7553
    %10228 = vmatprep.subr.bf16.mxu0 0
    %10229 = vmatpush1.bf16.msra.mxu0 %v7554
    %10230 = vmatprep.subr.bf16.mxu0 0
    %10231 = vmatpush1.bf16.msra.mxu0 %v7555
    %10232 = vmatprep.subr.bf16.mxu0 0
    %10233 = vmatpush1.bf16.msra.mxu0 %v7556
    %10234 = vmatprep.subr.bf16.mxu0 0
    %10235 = vmatpush1.bf16.msra.mxu0 %v7557
    %10236 = vmatprep.subr.bf16.mxu0 0
    %10237 = vmatpush1.bf16.msra.mxu0 %v7558
    %10238 = vmatprep.subr.bf16.mxu0 0
    %10239 = vmatpush1.bf16.msra.mxu0 %v7559
    %10240 = vmatprep.subr.bf16.mxu0 0
    %10241 = vmatpush1.bf16.msra.mxu0 %v7560
    %10242 = vmatprep.subr.bf16.mxu0 0
    %10243 = vmatpush1.bf16.msra.mxu0 %v7561
    %10244 = vmatprep.subr.bf16.mxu0 0
    %10245 = vmatpush1.bf16.msra.mxu0 %v7562
    %10246 = vmatprep.subr.bf16.mxu0 0
    %10247 = vmatpush1.bf16.msra.mxu0 %v7563
    %10248 = vmatprep.subr.bf16.mxu0 0
    %10249 = vmatpush1.bf16.msra.mxu0 %v7564
    %10250 = vmatprep.subr.bf16.mxu0 0
    %10251 = vmatpush1.bf16.msra.mxu0 %v7565
    %10252 = vmatprep.subr.bf16.mxu0 0
    %10253 = vmatpush1.bf16.msra.mxu0 %v7566
    %10254 = vmatprep.subr.bf16.mxu0 0
    %10255 = vmatpush1.bf16.msra.mxu0 %v7567
    %10256 = vmatprep.mubr.bf16.mxu0 %v2466
    %10257 = vmatmul.mubr.bf16.gmra.mrb[0].mxu0 %v2452
    %v10258 = vpop.f32.mrb[0].mxu0
    %v10259 = vadd.f32 %v10219, %v10258
    %v10260 = vpop.f32.mrb[0].mxu0
    %v10261 = vpop.f32.mrb[0].mxu0
    %v10262 = vpop.f32.mrb[0].mxu0
    %10263 = vdwg.mxu0
    %10264 = vmatprep.subr.bf16.mxu0 0
    %10265 = vmatpush1.bf16.msra.mxu0 %v7568
    %10266 = vmatprep.subr.bf16.mxu0 0
    %10267 = vmatpush1.bf16.msra.mxu0 %v7569
    %10268 = vmatprep.subr.bf16.mxu0 0
    %10269 = vmatpush1.bf16.msra.mxu0 %v7570
    %10270 = vmatprep.subr.bf16.mxu0 0
    %10271 = vmatpush1.bf16.msra.mxu0 %v7571
    %10272 = vmatprep.subr.bf16.mxu0 0
    %10273 = vmatpush1.bf16.msra.mxu0 %v7572
    %10274 = vmatprep.subr.bf16.mxu0 0
    %10275 = vmatpush1.bf16.msra.mxu0 %v7573
    %10276 = vmatprep.subr.bf16.mxu0 0
    %10277 = vmatpush1.bf16.msra.mxu0 %v7574
    %10278 = vmatprep.subr.bf16.mxu0 0
    %10279 = vmatpush1.bf16.msra.mxu0 %v7575
    %10280 = vmatprep.subr.bf16.mxu0 0
    %10281 = vmatpush1.bf16.msra.mxu0 %v7576
    %10282 = vmatprep.subr.bf16.mxu0 0
    %10283 = vmatpush1.bf16.msra.mxu0 %v7577
    %10284 = vmatprep.subr.bf16.mxu0 0
    %10285 = vmatpush1.bf16.msra.mxu0 %v7578
    %10286 = vmatprep.subr.bf16.mxu0 0
    %10287 = vmatpush1.bf16.msra.mxu0 %v7579
    %10288 = vmatprep.subr.bf16.mxu0 0
    %10289 = vmatpush1.bf16.msra.mxu0 %v7580
    %10290 = vmatprep.subr.bf16.mxu0 0
    %10291 = vmatpush1.bf16.msra.mxu0 %v7581
    %10292 = vmatprep.subr.bf16.mxu0 0
    %10293 = vmatpush1.bf16.msra.mxu0 %v7582
    %10294 = vmatprep.subr.bf16.mxu0 0
    %10295 = vmatpush1.bf16.msra.mxu0 %v7583
    %10296 = vmatprep.mubr.bf16.mxu0 %v2470
    %10297 = vmatmul.mubr.bf16.gmra.mrb[0].mxu0 %v2468
    %v10298 = vpop.f32.mrb[0].mxu0
    %v10299 = vadd.f32 %v10259, %v10298
    %v10300 = vpop.f32.mrb[0].mxu0
    %v10301 = vpop.f32.mrb[0].mxu0
    %v10302 = vpop.f32.mrb[0].mxu0
    %10303 = vdwg.mxu0
    %10304 = vmatprep.subr.bf16.mxu0 0
    %10305 = vmatpush1.bf16.msra.mxu0 %v7584
    %10306 = vmatprep.subr.bf16.mxu0 0
    %10307 = vmatpush1.bf16.msra.mxu0 %v7585
    %10308 = vmatprep.subr.bf16.mxu0 0
    %10309 = vmatpush1.bf16.msra.mxu0 %v7586
    %10310 = vmatprep.subr.bf16.mxu0 0
    %10311 = vmatpush1.bf16.msra.mxu0 %v7587
    %10312 = vmatprep.subr.bf16.mxu0 0
    %10313 = vmatpush1.bf16.msra.mxu0 %v7588
    %10314 = vmatprep.subr.bf16.mxu0 0
    %10315 = vmatpush1.bf16.msra.mxu0 %v7589
    %10316 = vmatprep.subr.bf16.mxu0 0
    %10317 = vmatpush1.bf16.msra.mxu0 %v7590
    %10318 = vmatprep.subr.bf16.mxu0 0
    %10319 = vmatpush1.bf16.msra.mxu0 %v7591
    %10320 = vmatprep.subr.bf16.mxu0 0
    %10321 = vmatpush1.bf16.msra.mxu0 %v7592
    %10322 = vmatprep.subr.bf16.mxu0 0
    %10323 = vmatpush1.bf16.msra.mxu0 %v7593
    %10324 = vmatprep.subr.bf16.mxu0 0
    %10325 = vmatpush1.bf16.msra.mxu0 %v7594
    %10326 = vmatprep.subr.bf16.mxu0 0
    %10327 = vmatpush1.bf16.msra.mxu0 %v7595
    %10328 = vmatprep.subr.bf16.mxu0 0
    %10329 = vmatpush1.bf16.msra.mxu0 %v7596
    %10330 = vmatprep.subr.bf16.mxu0 0
    %10331 = vmatpush1.bf16.msra.mxu0 %v7597
    %10332 = vmatprep.subr.bf16.mxu0 0
    %10333 = vmatpush1.bf16.msra.mxu0 %v7598
    %10334 = vmatprep.subr.bf16.mxu0 0
    %10335 = vmatpush1.bf16.msra.mxu0 %v7599
    %10336 = vmatprep.mubr.bf16.mxu0 %v2508
    %10337 = vmatmul.mubr.bf16.gmra.mrb[0].mxu0 %v2494
    %v10338 = vpop.f32.mrb[0].mxu0
    %v10339 = vadd.f32 %v10299, %v10338
    %v10340 = vpop.f32.mrb[0].mxu0
    %v10341 = vpop.f32.mrb[0].mxu0
    %v10342 = vpop.f32.mrb[0].mxu0
    %10343 = vdwg.mxu0
    %10344 = vmatprep.subr.bf16.mxu0 0
    %10345 = vmatpush1.bf16.msra.mxu0 %v7600
    %10346 = vmatprep.subr.bf16.mxu0 0
    %10347 = vmatpush1.bf16.msra.mxu0 %v7601
    %10348 = vmatprep.subr.bf16.mxu0 0
    %10349 = vmatpush1.bf16.msra.mxu0 %v7602
    %10350 = vmatprep.subr.bf16.mxu0 0
    %10351 = vmatpush1.bf16.msra.mxu0 %v7603
    %10352 = vmatprep.subr.bf16.mxu0 0
    %10353 = vmatpush1.bf16.msra.mxu0 %v7604
    %10354 = vmatprep.subr.bf16.mxu0 0
    %10355 = vmatpush1.bf16.msra.mxu0 %v7605
    %10356 = vmatprep.subr.bf16.mxu0 0
    %10357 = vmatpush1.bf16.msra.mxu0 %v7606
    %10358 = vmatprep.subr.bf16.mxu0 0
    %10359 = vmatpush1.bf16.msra.mxu0 %v7607
    %10360 = vmatprep.subr.bf16.mxu0 0
    %10361 = vmatpush1.bf16.msra.mxu0 %v7608
    %10362 = vmatprep.subr.bf16.mxu0 0
    %10363 = vmatpush1.bf16.msra.mxu0 %v7609
    %10364 = vmatprep.subr.bf16.mxu0 0
    %10365 = vmatpush1.bf16.msra.mxu0 %v7610
    %10366 = vmatprep.subr.bf16.mxu0 0
    %10367 = vmatpush1.bf16.msra.mxu0 %v7611
    %10368 = vmatprep.subr.bf16.mxu0 0
    %10369 = vmatpush1.bf16.msra.mxu0 %v7612
    %10370 = vmatprep.subr.bf16.mxu0 0
    %10371 = vmatpush1.bf16.msra.mxu0 %v7613
    %10372 = vmatprep.subr.bf16.mxu0 0
    %10373 = vmatpush1.bf16.msra.mxu0 %v7614
    %10374 = vmatprep.subr.bf16.mxu0 0
    %10375 = vmatpush1.bf16.msra.mxu0 %v7615
    %10376 = vmatprep.mubr.bf16.mxu0 %v2518
    %10377 = vmatmul.mubr.bf16.gmra.mrb[0].mxu0 %v2516
    %v10378 = vpop.f32.mrb[0].mxu0
    %v10379 = vadd.f32 %v10339, %v10378
    %v10380 = vpop.f32.mrb[0].mxu0
    %v10381 = vpop.f32.mrb[0].mxu0
    %v10382 = vpop.f32.mrb[0].mxu0
    %10383 = vdwg.mxu0
    %10384 = vmatprep.subr.bf16.mxu0 0
    %10385 = vmatpush1.bf16.msra.mxu0 %v7616
    %10386 = vmatprep.subr.bf16.mxu0 0
    %10387 = vmatpush1.bf16.msra.mxu0 %v7617
    %10388 = vmatprep.subr.bf16.mxu0 0
    %10389 = vmatpush1.bf16.msra.mxu0 %v7618
    %10390 = vmatprep.subr.bf16.mxu0 0
    %10391 = vmatpush1.bf16.msra.mxu0 %v7619
    %10392 = vmatprep.subr.bf16.mxu0 0
    %10393 = vmatpush1.bf16.msra.mxu0 %v7620
    %10394 = vmatprep.subr.bf16.mxu0 0
    %10395 = vmatpush1.bf16.msra.mxu0 %v7621
    %10396 = vmatprep.subr.bf16.mxu0 0
    %10397 = vmatpush1.bf16.msra.mxu0 %v7622
    %10398 = vmatprep.subr.bf16.mxu0 0
    %10399 = vmatpush1.bf16.msra.mxu0 %v7623
    %10400 = vmatprep.subr.bf16.mxu0 0
    %10401 = vmatpush1.bf16.msra.mxu0 %v7624
    %10402 = vmatprep.subr.bf16.mxu0 0
    %10403 = vmatpush1.bf16.msra.mxu0 %v7625
    %10404 = vmatprep.subr.bf16.mxu0 0
    %10405 = vmatpush1.bf16.msra.mxu0 %v7626
    %10406 = vmatprep.subr.bf16.mxu0 0
    %10407 = vmatpush1.bf16.msra.mxu0 %v7627
    %10408 = vmatprep.subr.bf16.mxu0 0
    %10409 = vmatpush1.bf16.msra.mxu0 %v7628
    %10410 = vmatprep.subr.bf16.mxu0 0
    %10411 = vmatpush1.bf16.msra.mxu0 %v7629
    %10412 = vmatprep.subr.bf16.mxu0 0
    %10413 = vmatpush1.bf16.msra.mxu0 %v7630
    %10414 = vmatprep.subr.bf16.mxu0 0
    %10415 = vmatpush1.bf16.msra.mxu0 %v7631
    %10416 = vmatprep.mubr.bf16.mxu0 %v2515
    %10417 = vmatmul.mubr.bf16.gmra.mrb[0].mxu0 %v2501
    %v10418 = vpop.f32.mrb[0].mxu0
    %v10419 = vadd.f32 %v10379, %v10418
    %v10420 = vpop.f32.mrb[0].mxu0
    %v10421 = vpop.f32.mrb[0].mxu0
    %v10422 = vpop.f32.mrb[0].mxu0
    %10423 = vdwg.mxu0
    %10424 = vmatprep.subr.bf16.mxu0 0
    %10425 = vmatpush1.bf16.msra.mxu0 %v7632
    %10426 = vmatprep.subr.bf16.mxu0 0
    %10427 = vmatpush1.bf16.msra.mxu0 %v7633
    %10428 = vmatprep.subr.bf16.mxu0 0
    %10429 = vmatpush1.bf16.msra.mxu0 %v7634
    %10430 = vmatprep.subr.bf16.mxu0 0
    %10431 = vmatpush1.bf16.msra.mxu0 %v7635
    %10432 = vmatprep.subr.bf16.mxu0 0
    %10433 = vmatpush1.bf16.msra.mxu0 %v7636
    %10434 = vmatprep.subr.bf16.mxu0 0
    %10435 = vmatpush1.bf16.msra.mxu0 %v7637
    %10436 = vmatprep.subr.bf16.mxu0 0
    %10437 = vmatpush1.bf16.msra.mxu0 %v7638
    %10438 = vmatprep.subr.bf16.mxu0 0
    %10439 = vmatpush1.bf16.msra.mxu0 %v7639
    %10440 = vmatprep.subr.bf16.mxu0 0
    %10441 = vmatpush1.bf16.msra.mxu0 %v7640
    %10442 = vmatprep.subr.bf16.mxu0 0
    %10443 = vmatpush1.bf16.msra.mxu0 %v7641
    %10444 = vmatprep.subr.bf16.mxu0 0
    %10445 = vmatpush1.bf16.msra.mxu0 %v7642
    %10446 = vmatprep.subr.bf16.mxu0 0
    %10447 = vmatpush1.bf16.msra.mxu0 %v7643
    %10448 = vmatprep.subr.bf16.mxu0 0
    %10449 = vmatpush1.bf16.msra.mxu0 %v7644
    %10450 = vmatprep.subr.bf16.mxu0 0
    %10451 = vmatpush1.bf16.msra.mxu0 %v7645
    %10452 = vmatprep.subr.bf16.mxu0 0
    %10453 = vmatpush1.bf16.msra.mxu0 %v7646
    %10454 = vmatprep.subr.bf16.mxu0 0
    %10455 = vmatpush1.bf16.msra.mxu0 %v7647
    %10456 = vmatprep.mubr.bf16.mxu0 %v2519
    %10457 = vmatmul.mubr.bf16.gmra.mrb[0].mxu0 %v2517
    %v10458 = vpop.f32.mrb[0].mxu0
    %v10459 = vadd.f32 %v10419, %v10458
    %v10460 = vpop.f32.mrb[0].mxu0
    %v10461 = vpop.f32.mrb[0].mxu0
    %v10462 = vpop.f32.mrb[0].mxu0
    %10463 = vdwg.mxu0
    %10464 = vmatprep.subr.bf16.mxu0 0
    %10465 = vmatpush1.bf16.msra.mxu0 %v7648
    %10466 = vmatprep.subr.bf16.mxu0 0
    %10467 = vmatpush1.bf16.msra.mxu0 %v7649
    %10468 = vmatprep.subr.bf16.mxu0 0
    %10469 = vmatpush1.bf16.msra.mxu0 %v7650
    %10470 = vmatprep.subr.bf16.mxu0 0
    %10471 = vmatpush1.bf16.msra.mxu0 %v7651
    %10472 = vmatprep.subr.bf16.mxu0 0
    %10473 = vmatpush1.bf16.msra.mxu0 %v7652
    %10474 = vmatprep.subr.bf16.mxu0 0
    %10475 = vmatpush1.bf16.msra.mxu0 %v7653
    %10476 = vmatprep.subr.bf16.mxu0 0
    %10477 = vmatpush1.bf16.msra.mxu0 %v7654
    %10478 = vmatprep.subr.bf16.mxu0 0
    %10479 = vmatpush1.bf16.msra.mxu0 %v7655
    %10480 = vmatprep.subr.bf16.mxu0 0
    %10481 = vmatpush1.bf16.msra.mxu0 %v7656
    %10482 = vmatprep.subr.bf16.mxu0 0
    %10483 = vmatpush1.bf16.msra.mxu0 %v7657
    %10484 = vmatprep.subr.bf16.mxu0 0
    %10485 = vmatpush1.bf16.msra.mxu0 %v7658
    %10486 = vmatprep.subr.bf16.mxu0 0
    %10487 = vmatpush1.bf16.msra.mxu0 %v7659
    %10488 = vmatprep.subr.bf16.mxu0 0
    %10489 = vmatpush1.bf16.msra.mxu0 %v7660
    %10490 = vmatprep.subr.bf16.mxu0 0
    %10491 = vmatpush1.bf16.msra.mxu0 %v7661
    %10492 = vmatprep.subr.bf16.mxu0 0
    %10493 = vmatpush1.bf16.msra.mxu0 %v7662
    %10494 = vmatprep.subr.bf16.mxu0 0
    %10495 = vmatpush1.bf16.msra.mxu0 %v7663
    %10496 = vmatprep.mubr.bf16.mxu0 %v2557
    %10497 = vmatmul.mubr.bf16.gmra.mrb[0].mxu0 %v2543
    %v10498 = vpop.f32.mrb[0].mxu0
    %v10499 = vadd.f32 %v10459, %v10498
    %v10500 = vpop.f32.mrb[0].mxu0
    %v10501 = vpop.f32.mrb[0].mxu0
    %v10502 = vpop.f32.mrb[0].mxu0
    %10503 = vdwg.mxu0
    %10504 = vmatprep.subr.bf16.mxu0 0
    %10505 = vmatpush1.bf16.msra.mxu0 %v7664
    %10506 = vmatprep.subr.bf16.mxu0 0
    %10507 = vmatpush1.bf16.msra.mxu0 %v7665
    %10508 = vmatprep.subr.bf16.mxu0 0
    %10509 = vmatpush1.bf16.msra.mxu0 %v7666
    %10510 = vmatprep.subr.bf16.mxu0 0
    %10511 = vmatpush1.bf16.msra.mxu0 %v7667
    %10512 = vmatprep.subr.bf16.mxu0 0
    %10513 = vmatpush1.bf16.msra.mxu0 %v7668
    %10514 = vmatprep.subr.bf16.mxu0 0
    %10515 = vmatpush1.bf16.msra.mxu0 %v7669
    %10516 = vmatprep.subr.bf16.mxu0 0
    %10517 = vmatpush1.bf16.msra.mxu0 %v7670
    %10518 = vmatprep.subr.bf16.mxu0 0
    %10519 = vmatpush1.bf16.msra.mxu0 %v7671
    %10520 = vmatprep.subr.bf16.mxu0 0
    %10521 = vmatpush1.bf16.msra.mxu0 %v7672
    %10522 = vmatprep.subr.bf16.mxu0 0
    %10523 = vmatpush1.bf16.msra.mxu0 %v7673
    %10524 = vmatprep.subr.bf16.mxu0 0
    %10525 = vmatpush1.bf16.msra.mxu0 %v7674
    %10526 = vmatprep.subr.bf16.mxu0 0
    %10527 = vmatpush1.bf16.msra.mxu0 %v7675
    %10528 = vmatprep.subr.bf16.mxu0 0
    %10529 = vmatpush1.bf16.msra.mxu0 %v7676
    %10530 = vmatprep.subr.bf16.mxu0 0
    %10531 = vmatpush1.bf16.msra.mxu0 %v7677
    %10532 = vmatprep.subr.bf16.mxu0 0
    %10533 = vmatpush1.bf16.msra.mxu0 %v7678
    %10534 = vmatprep.subr.bf16.mxu0 0
    %10535 = vmatpush1.bf16.msra.mxu0 %v7679
    %10536 = vmatprep.mubr.bf16.mxu0 %v2567
    %10537 = vmatmul.mubr.bf16.gmra.mrb[0].mxu0 %v2565
    %v10538 = vpop.f32.mrb[0].mxu0
    %v10539 = vadd.f32 %v10499, %v10538
    %v10540 = vpop.f32.mrb[0].mxu0
    %v10541 = vpop.f32.mrb[0].mxu0
    %v10542 = vpop.f32.mrb[0].mxu0
    %10543 = vdwg.mxu0
    %10544 = vmatprep.subr.bf16.mxu0 0
    %10545 = vmatpush1.bf16.msra.mxu0 %v7680
    %10546 = vmatprep.subr.bf16.mxu0 0
    %10547 = vmatpush1.bf16.msra.mxu0 %v7681
    %10548 = vmatprep.subr.bf16.mxu0 0
    %10549 = vmatpush1.bf16.msra.mxu0 %v7682
    %10550 = vmatprep.subr.bf16.mxu0 0
    %10551 = vmatpush1.bf16.msra.mxu0 %v7683
    %10552 = vmatprep.subr.bf16.mxu0 0
    %10553 = vmatpush1.bf16.msra.mxu0 %v7684
    %10554 = vmatprep.subr.bf16.mxu0 0
    %10555 = vmatpush1.bf16.msra.mxu0 %v7685
    %10556 = vmatprep.subr.bf16.mxu0 0
    %10557 = vmatpush1.bf16.msra.mxu0 %v7686
    %10558 = vmatprep.subr.bf16.mxu0 0
    %10559 = vmatpush1.bf16.msra.mxu0 %v7687
    %10560 = vmatprep.subr.bf16.mxu0 0
    %10561 = vmatpush1.bf16.msra.mxu0 %v7688
    %10562 = vmatprep.subr.bf16.mxu0 0
    %10563 = vmatpush1.bf16.msra.mxu0 %v7689
    %10564 = vmatprep.subr.bf16.mxu0 0
    %10565 = vmatpush1.bf16.msra.mxu0 %v7690
    %10566 = vmatprep.subr.bf16.mxu0 0
    %10567 = vmatpush1.bf16.msra.mxu0 %v7691
    %10568 = vmatprep.subr.bf16.mxu0 0
    %10569 = vmatpush1.bf16.msra.mxu0 %v7692
    %10570 = vmatprep.subr.bf16.mxu0 0
    %10571 = vmatpush1.bf16.msra.mxu0 %v7693
    %10572 = vmatprep.subr.bf16.mxu0 0
    %10573 = vmatpush1.bf16.msra.mxu0 %v7694
    %10574 = vmatprep.subr.bf16.mxu0 0
    %10575 = vmatpush1.bf16.msra.mxu0 %v7695
    %10576 = vmatprep.mubr.bf16.mxu0 %v2564
    %10577 = vmatmul.mubr.bf16.gmra.mrb[0].mxu0 %v2550
    %v10578 = vpop.f32.mrb[0].mxu0
    %v10579 = vadd.f32 %v10539, %v10578
    %v10580 = vpop.f32.mrb[0].mxu0
    %v10581 = vpop.f32.mrb[0].mxu0
    %v10582 = vpop.f32.mrb[0].mxu0
    %10583 = vdwg.mxu0
    %10584 = vmatprep.subr.bf16.mxu0 0
    %10585 = vmatpush1.bf16.msra.mxu0 %v7696
    %10586 = vmatprep.subr.bf16.mxu0 0
    %10587 = vmatpush1.bf16.msra.mxu0 %v7697
    %10588 = vmatprep.subr.bf16.mxu0 0
    %10589 = vmatpush1.bf16.msra.mxu0 %v7698
    %10590 = vmatprep.subr.bf16.mxu0 0
    %10591 = vmatpush1.bf16.msra.mxu0 %v7699
    %10592 = vmatprep.subr.bf16.mxu0 0
    %10593 = vmatpush1.bf16.msra.mxu0 %v7700
    %10594 = vmatprep.subr.bf16.mxu0 0
    %10595 = vmatpush1.bf16.msra.mxu0 %v7701
    %10596 = vmatprep.subr.bf16.mxu0 0
    %10597 = vmatpush1.bf16.msra.mxu0 %v7702
    %10598 = vmatprep.subr.bf16.mxu0 0
    %10599 = vmatpush1.bf16.msra.mxu0 %v7703
    %10600 = vmatprep.subr.bf16.mxu0 0
    %10601 = vmatpush1.bf16.msra.mxu0 %v7704
    %10602 = vmatprep.subr.bf16.mxu0 0
    %10603 = vmatpush1.bf16.msra.mxu0 %v7705
    %10604 = vmatprep.subr.bf16.mxu0 0
    %10605 = vmatpush1.bf16.msra.mxu0 %v7706
    %10606 = vmatprep.subr.bf16.mxu0 0
    %10607 = vmatpush1.bf16.msra.mxu0 %v7707
    %10608 = vmatprep.subr.bf16.mxu0 0
    %10609 = vmatpush1.bf16.msra.mxu0 %v7708
    %10610 = vmatprep.subr.bf16.mxu0 0
    %10611 = vmatpush1.bf16.msra.mxu0 %v7709
    %10612 = vmatprep.subr.bf16.mxu0 0
    %10613 = vmatpush1.bf16.msra.mxu0 %v7710
    %10614 = vmatprep.subr.bf16.mxu0 0
    %10615 = vmatpush1.bf16.msra.mxu0 %v7711
    %10616 = vmatprep.mubr.bf16.mxu0 %v2568
    %10617 = vmatmul.mubr.bf16.gmra.mrb[0].mxu0 %v2566
    %v10618 = vpop.f32.mrb[0].mxu0
    %v10619 = vadd.f32 %v10579, %v10618
    %v10620 = vpop.f32.mrb[0].mxu0
    %v10621 = vpop.f32.mrb[0].mxu0
    %v10622 = vpop.f32.mrb[0].mxu0
    %10623 = vdwg.mxu0
    %10624 = vmatprep.subr.bf16.mxu0 0
    %10625 = vmatpush1.bf16.msra.mxu0 %v7712
    %10626 = vmatprep.subr.bf16.mxu0 0
    %10627 = vmatpush1.bf16.msra.mxu0 %v7713
    %10628 = vmatprep.subr.bf16.mxu0 0
    %10629 = vmatpush1.bf16.msra.mxu0 %v7714
    %10630 = vmatprep.subr.bf16.mxu0 0
    %10631 = vmatpush1.bf16.msra.mxu0 %v7715
    %10632 = vmatprep.subr.bf16.mxu0 0
    %10633 = vmatpush1.bf16.msra.mxu0 %v7716
    %10634 = vmatprep.subr.bf16.mxu0 0
    %10635 = vmatpush1.bf16.msra.mxu0 %v7717
    %10636 = vmatprep.subr.bf16.mxu0 0
    %10637 = vmatpush1.bf16.msra.mxu0 %v7718
    %10638 = vmatprep.subr.bf16.mxu0 0
    %10639 = vmatpush1.bf16.msra.mxu0 %v7719
    %10640 = vmatprep.subr.bf16.mxu0 0
    %10641 = vmatpush1.bf16.msra.mxu0 %v7720
    %10642 = vmatprep.subr.bf16.mxu0 0
    %10643 = vmatpush1.bf16.msra.mxu0 %v7721
    %10644 = vmatprep.subr.bf16.mxu0 0
    %10645 = vmatpush1.bf16.msra.mxu0 %v7722
    %10646 = vmatprep.subr.bf16.mxu0 0
    %10647 = vmatpush1.bf16.msra.mxu0 %v7723
    %10648 = vmatprep.subr.bf16.mxu0 0
    %10649 = vmatpush1.bf16.msra.mxu0 %v7724
    %10650 = vmatprep.subr.bf16.mxu0 0
    %10651 = vmatpush1.bf16.msra.mxu0 %v7725
    %10652 = vmatprep.subr.bf16.mxu0 0
    %10653 = vmatpush1.bf16.msra.mxu0 %v7726
    %10654 = vmatprep.subr.bf16.mxu0 0
    %10655 = vmatpush1.bf16.msra.mxu0 %v7727
    %10656 = vmatprep.mubr.bf16.mxu0 %v2606
    %10657 = vmatmul.mubr.bf16.gmra.mrb[0].mxu0 %v2592
    %v10658 = vpop.f32.mrb[0].mxu0
    %v10659 = vadd.f32 %v10619, %v10658
    %v10660 = vpop.f32.mrb[0].mxu0
    %v10661 = vpop.f32.mrb[0].mxu0
    %v10662 = vpop.f32.mrb[0].mxu0
    %10663 = vdwg.mxu0
    %10664 = vmatprep.subr.bf16.mxu0 0
    %10665 = vmatpush1.bf16.msra.mxu0 %v7728
    %10666 = vmatprep.subr.bf16.mxu0 0
    %10667 = vmatpush1.bf16.msra.mxu0 %v7729
    %10668 = vmatprep.subr.bf16.mxu0 0
    %10669 = vmatpush1.bf16.msra.mxu0 %v7730
    %10670 = vmatprep.subr.bf16.mxu0 0
    %10671 = vmatpush1.bf16.msra.mxu0 %v7731
    %10672 = vmatprep.subr.bf16.mxu0 0
    %10673 = vmatpush1.bf16.msra.mxu0 %v7732
    %10674 = vmatprep.subr.bf16.mxu0 0
    %10675 = vmatpush1.bf16.msra.mxu0 %v7733
    %10676 = vmatprep.subr.bf16.mxu0 0
    %10677 = vmatpush1.bf16.msra.mxu0 %v7734
    %10678 = vmatprep.subr.bf16.mxu0 0
    %10679 = vmatpush1.bf16.msra.mxu0 %v7735
    %10680 = vmatprep.subr.bf16.mxu0 0
    %10681 = vmatpush1.bf16.msra.mxu0 %v7736
    %10682 = vmatprep.subr.bf16.mxu0 0
    %10683 = vmatpush1.bf16.msra.mxu0 %v7737
    %10684 = vmatprep.subr.bf16.mxu0 0
    %10685 = vmatpush1.bf16.msra.mxu0 %v7738
    %10686 = vmatprep.subr.bf16.mxu0 0
    %10687 = vmatpush1.bf16.msra.mxu0 %v7739
    %10688 = vmatprep.subr.bf16.mxu0 0
    %10689 = vmatpush1.bf16.msra.mxu0 %v7740
    %10690 = vmatprep.subr.bf16.mxu0 0
    %10691 = vmatpush1.bf16.msra.mxu0 %v7741
    %10692 = vmatprep.subr.bf16.mxu0 0
    %10693 = vmatpush1.bf16.msra.mxu0 %v7742
    %10694 = vmatprep.subr.bf16.mxu0 0
    %10695 = vmatpush1.bf16.msra.mxu0 %v7743
    %10696 = vmatprep.mubr.bf16.mxu0 %v2616
    %10697 = vmatmul.mubr.bf16.gmra.mrb[0].mxu0 %v2614
    %v10698 = vpop.f32.mrb[0].mxu0
    %v10699 = vadd.f32 %v10659, %v10698
    %v10700 = vpop.f32.mrb[0].mxu0
    %v10701 = vpop.f32.mrb[0].mxu0
    %v10702 = vpop.f32.mrb[0].mxu0
    %10703 = vdwg.mxu0
    %10704 = vmatprep.subr.bf16.mxu0 0
    %10705 = vmatpush1.bf16.msra.mxu0 %v7744
    %10706 = vmatprep.subr.bf16.mxu0 0
    %10707 = vmatpush1.bf16.msra.mxu0 %v7745
    %10708 = vmatprep.subr.bf16.mxu0 0
    %10709 = vmatpush1.bf16.msra.mxu0 %v7746
    %10710 = vmatprep.subr.bf16.mxu0 0
    %10711 = vmatpush1.bf16.msra.mxu0 %v7747
    %10712 = vmatprep.subr.bf16.mxu0 0
    %10713 = vmatpush1.bf16.msra.mxu0 %v7748
    %10714 = vmatprep.subr.bf16.mxu0 0
    %10715 = vmatpush1.bf16.msra.mxu0 %v7749
    %10716 = vmatprep.subr.bf16.mxu0 0
    %10717 = vmatpush1.bf16.msra.mxu0 %v7750
    %10718 = vmatprep.subr.bf16.mxu0 0
    %10719 = vmatpush1.bf16.msra.mxu0 %v7751
    %10720 = vmatprep.subr.bf16.mxu0 0
    %10721 = vmatpush1.bf16.msra.mxu0 %v7752
    %10722 = vmatprep.subr.bf16.mxu0 0
    %10723 = vmatpush1.bf16.msra.mxu0 %v7753
    %10724 = vmatprep.subr.bf16.mxu0 0
    %10725 = vmatpush1.bf16.msra.mxu0 %v7754
    %10726 = vmatprep.subr.bf16.mxu0 0
    %10727 = vmatpush1.bf16.msra.mxu0 %v7755
    %10728 = vmatprep.subr.bf16.mxu0 0
    %10729 = vmatpush1.bf16.msra.mxu0 %v7756
    %10730 = vmatprep.subr.bf16.mxu0 0
    %10731 = vmatpush1.bf16.msra.mxu0 %v7757
    %10732 = vmatprep.subr.bf16.mxu0 0
    %10733 = vmatpush1.bf16.msra.mxu0 %v7758
    %10734 = vmatprep.subr.bf16.mxu0 0
    %10735 = vmatpush1.bf16.msra.mxu0 %v7759
    %10736 = vmatprep.mubr.bf16.mxu0 %v2613
    %10737 = vmatmul.mubr.bf16.gmra.mrb[0].mxu0 %v2599
    %v10738 = vpop.f32.mrb[0].mxu0
    %v10739 = vadd.f32 %v10699, %v10738
    %v10740 = vpop.f32.mrb[0].mxu0
    %v10741 = vpop.f32.mrb[0].mxu0
    %v10742 = vpop.f32.mrb[0].mxu0
    %10743 = vdwg.mxu0
    %10744 = vmatprep.subr.bf16.mxu0 0
    %10745 = vmatpush1.bf16.msra.mxu0 %v7760
    %10746 = vmatprep.subr.bf16.mxu0 0
    %10747 = vmatpush1.bf16.msra.mxu0 %v7761
    %10748 = vmatprep.subr.bf16.mxu0 0
    %10749 = vmatpush1.bf16.msra.mxu0 %v7762
    %10750 = vmatprep.subr.bf16.mxu0 0
    %10751 = vmatpush1.bf16.msra.mxu0 %v7763
    %10752 = vmatprep.subr.bf16.mxu0 0
    %10753 = vmatpush1.bf16.msra.mxu0 %v7764
    %10754 = vmatprep.subr.bf16.mxu0 0
    %10755 = vmatpush1.bf16.msra.mxu0 %v7765
    %10756 = vmatprep.subr.bf16.mxu0 0
    %10757 = vmatpush1.bf16.msra.mxu0 %v7766
    %10758 = vmatprep.subr.bf16.mxu0 0
    %10759 = vmatpush1.bf16.msra.mxu0 %v7767
    %10760 = vmatprep.subr.bf16.mxu0 0
    %10761 = vmatpush1.bf16.msra.mxu0 %v7768
    %10762 = vmatprep.subr.bf16.mxu0 0
    %10763 = vmatpush1.bf16.msra.mxu0 %v7769
    %10764 = vmatprep.subr.bf16.mxu0 0
    %10765 = vmatpush1.bf16.msra.mxu0 %v7770
    %10766 = vmatprep.subr.bf16.mxu0 0
    %10767 = vmatpush1.bf16.msra.mxu0 %v7771
    %10768 = vmatprep.subr.bf16.mxu0 0
    %10769 = vmatpush1.bf16.msra.mxu0 %v7772
    %10770 = vmatprep.subr.bf16.mxu0 0
    %10771 = vmatpush1.bf16.msra.mxu0 %v7773
    %10772 = vmatprep.subr.bf16.mxu0 0
    %10773 = vmatpush1.bf16.msra.mxu0 %v7774
    %10774 = vmatprep.subr.bf16.mxu0 0
    %10775 = vmatpush1.bf16.msra.mxu0 %v7775
    %10776 = vmatprep.mubr.bf16.mxu0 %v2617
    %10777 = vmatmul.mubr.bf16.gmra.mrb[0].mxu0 %v2615
    %v10778 = vpop.f32.mrb[0].mxu0
    %v10779 = vadd.f32 %v10739, %v10778
    %v10780 = vpop.f32.mrb[0].mxu0
    %v10781 = vpop.f32.mrb[0].mxu0
    %v10782 = vpop.f32.mrb[0].mxu0
    %10783 = vdwg.mxu0
    %10784 = vmatprep.subr.bf16.mxu0 0
    %10785 = vmatpush1.bf16.msra.mxu0 %v7776
    %10786 = vmatprep.subr.bf16.mxu0 0
    %10787 = vmatpush1.bf16.msra.mxu0 %v7777
    %10788 = vmatprep.subr.bf16.mxu0 0
    %10789 = vmatpush1.bf16.msra.mxu0 %v7778
    %10790 = vmatprep.subr.bf16.mxu0 0
    %10791 = vmatpush1.bf16.msra.mxu0 %v7779
    %10792 = vmatprep.subr.bf16.mxu0 0
    %10793 = vmatpush1.bf16.msra.mxu0 %v7780
    %10794 = vmatprep.subr.bf16.mxu0 0
    %10795 = vmatpush1.bf16.msra.mxu0 %v7781
    %10796 = vmatprep.subr.bf16.mxu0 0
    %10797 = vmatpush1.bf16.msra.mxu0 %v7782
    %10798 = vmatprep.subr.bf16.mxu0 0
    %10799 = vmatpush1.bf16.msra.mxu0 %v7783
    %10800 = vmatprep.subr.bf16.mxu0 0
    %10801 = vmatpush1.bf16.msra.mxu0 %v7784
    %10802 = vmatprep.subr.bf16.mxu0 0
    %10803 = vmatpush1.bf16.msra.mxu0 %v7785
    %10804 = vmatprep.subr.bf16.mxu0 0
    %10805 = vmatpush1.bf16.msra.mxu0 %v7786
    %10806 = vmatprep.subr.bf16.mxu0 0
    %10807 = vmatpush1.bf16.msra.mxu0 %v7787
    %10808 = vmatprep.subr.bf16.mxu0 0
    %10809 = vmatpush1.bf16.msra.mxu0 %v7788
    %10810 = vmatprep.subr.bf16.mxu0 0
    %10811 = vmatpush1.bf16.msra.mxu0 %v7789
    %10812 = vmatprep.subr.bf16.mxu0 0
    %10813 = vmatpush1.bf16.msra.mxu0 %v7790
    %10814 = vmatprep.subr.bf16.mxu0 0
    %10815 = vmatpush1.bf16.msra.mxu0 %v7791
    %10816 = vmatprep.mubr.bf16.mxu0 %v2655
    %10817 = vmatmul.mubr.bf16.gmra.mrb[0].mxu0 %v2641
    %v10818 = vpop.f32.mrb[0].mxu0
    %v10819 = vadd.f32 %v10779, %v10818
    %v10820 = vpop.f32.mrb[0].mxu0
    %v10821 = vpop.f32.mrb[0].mxu0
    %v10822 = vpop.f32.mrb[0].mxu0
    %10823 = vdwg.mxu0
    %10824 = vmatprep.subr.bf16.mxu0 0
    %10825 = vmatpush1.bf16.msra.mxu0 %v7792
    %10826 = vmatprep.subr.bf16.mxu0 0
    %10827 = vmatpush1.bf16.msra.mxu0 %v7793
    %10828 = vmatprep.subr.bf16.mxu0 0
    %10829 = vmatpush1.bf16.msra.mxu0 %v7794
    %10830 = vmatprep.subr.bf16.mxu0 0
    %10831 = vmatpush1.bf16.msra.mxu0 %v7795
    %10832 = vmatprep.subr.bf16.mxu0 0
    %10833 = vmatpush1.bf16.msra.mxu0 %v7796
    %10834 = vmatprep.subr.bf16.mxu0 0
    %10835 = vmatpush1.bf16.msra.mxu0 %v7797
    %10836 = vmatprep.subr.bf16.mxu0 0
    %10837 = vmatpush1.bf16.msra.mxu0 %v7798
    %10838 = vmatprep.subr.bf16.mxu0 0
    %10839 = vmatpush1.bf16.msra.mxu0 %v7799
    %10840 = vmatprep.subr.bf16.mxu0 0
    %10841 = vmatpush1.bf16.msra.mxu0 %v7800
    %10842 = vmatprep.subr.bf16.mxu0 0
    %10843 = vmatpush1.bf16.msra.mxu0 %v7801
    %10844 = vmatprep.subr.bf16.mxu0 0
    %10845 = vmatpush1.bf16.msra.mxu0 %v7802
    %10846 = vmatprep.subr.bf16.mxu0 0
    %10847 = vmatpush1.bf16.msra.mxu0 %v7803
    %10848 = vmatprep.subr.bf16.mxu0 0
    %10849 = vmatpush1.bf16.msra.mxu0 %v7804
    %10850 = vmatprep.subr.bf16.mxu0 0
    %10851 = vmatpush1.bf16.msra.mxu0 %v7805
    %10852 = vmatprep.subr.bf16.mxu0 0
    %10853 = vmatpush1.bf16.msra.mxu0 %v7806
    %10854 = vmatprep.subr.bf16.mxu0 0
    %10855 = vmatpush1.bf16.msra.mxu0 %v7807
    %10856 = vmatprep.mubr.bf16.mxu0 %v2665
    %10857 = vmatmul.mubr.bf16.gmra.mrb[0].mxu0 %v2663
    %v10858 = vpop.f32.mrb[0].mxu0
    %v10859 = vadd.f32 %v10819, %v10858
    %v10860 = vpop.f32.mrb[0].mxu0
    %v10861 = vpop.f32.mrb[0].mxu0
    %v10862 = vpop.f32.mrb[0].mxu0
    %10863 = vdwg.mxu0
    %10864 = vmatprep.subr.bf16.mxu0 0
    %10865 = vmatpush1.bf16.msra.mxu0 %v7808
    %10866 = vmatprep.subr.bf16.mxu0 0
    %10867 = vmatpush1.bf16.msra.mxu0 %v7809
    %10868 = vmatprep.subr.bf16.mxu0 0
    %10869 = vmatpush1.bf16.msra.mxu0 %v7810
    %10870 = vmatprep.subr.bf16.mxu0 0
    %10871 = vmatpush1.bf16.msra.mxu0 %v7811
    %10872 = vmatprep.subr.bf16.mxu0 0
    %10873 = vmatpush1.bf16.msra.mxu0 %v7812
    %10874 = vmatprep.subr.bf16.mxu0 0
    %10875 = vmatpush1.bf16.msra.mxu0 %v7813
    %10876 = vmatprep.subr.bf16.mxu0 0
    %10877 = vmatpush1.bf16.msra.mxu0 %v7814
    %10878 = vmatprep.subr.bf16.mxu0 0
    %10879 = vmatpush1.bf16.msra.mxu0 %v7815
    %10880 = vmatprep.subr.bf16.mxu0 0
    %10881 = vmatpush1.bf16.msra.mxu0 %v7816
    %10882 = vmatprep.subr.bf16.mxu0 0
    %10883 = vmatpush1.bf16.msra.mxu0 %v7817
    %10884 = vmatprep.subr.bf16.mxu0 0
    %10885 = vmatpush1.bf16.msra.mxu0 %v7818
    %10886 = vmatprep.subr.bf16.mxu0 0
    %10887 = vmatpush1.bf16.msra.mxu0 %v7819
    %10888 = vmatprep.subr.bf16.mxu0 0
    %10889 = vmatpush1.bf16.msra.mxu0 %v7820
    %10890 = vmatprep.subr.bf16.mxu0 0
    %10891 = vmatpush1.bf16.msra.mxu0 %v7821
    %10892 = vmatprep.subr.bf16.mxu0 0
    %10893 = vmatpush1.bf16.msra.mxu0 %v7822
    %10894 = vmatprep.subr.bf16.mxu0 0
    %10895 = vmatpush1.bf16.msra.mxu0 %v7823
    %10896 = vmatprep.mubr.bf16.mxu0 %v2662
    %10897 = vmatmul.mubr.bf16.gmra.mrb[0].mxu0 %v2648
    %v10898 = vpop.f32.mrb[0].mxu0
    %v10899 = vadd.f32 %v10859, %v10898
    %v10900 = vpop.f32.mrb[0].mxu0
    %v10901 = vpop.f32.mrb[0].mxu0
    %v10902 = vpop.f32.mrb[0].mxu0
    %10903 = vdwg.mxu0
    %10904 = vmatprep.subr.bf16.mxu0 0
    %10905 = vmatpush1.bf16.msra.mxu0 %v7824
    %10906 = vmatprep.subr.bf16.mxu0 0
    %10907 = vmatpush1.bf16.msra.mxu0 %v7825
    %10908 = vmatprep.subr.bf16.mxu0 0
    %10909 = vmatpush1.bf16.msra.mxu0 %v7826
    %10910 = vmatprep.subr.bf16.mxu0 0
    %10911 = vmatpush1.bf16.msra.mxu0 %v7827
    %10912 = vmatprep.subr.bf16.mxu0 0
    %10913 = vmatpush1.bf16.msra.mxu0 %v7828
    %10914 = vmatprep.subr.bf16.mxu0 0
    %10915 = vmatpush1.bf16.msra.mxu0 %v7829
    %10916 = vmatprep.subr.bf16.mxu0 0
    %10917 = vmatpush1.bf16.msra.mxu0 %v7830
    %10918 = vmatprep.subr.bf16.mxu0 0
    %10919 = vmatpush1.bf16.msra.mxu0 %v7831
    %10920 = vmatprep.subr.bf16.mxu0 0
    %10921 = vmatpush1.bf16.msra.mxu0 %v7832
    %10922 = vmatprep.subr.bf16.mxu0 0
    %10923 = vmatpush1.bf16.msra.mxu0 %v7833
    %10924 = vmatprep.subr.bf16.mxu0 0
    %10925 = vmatpush1.bf16.msra.mxu0 %v7834
    %10926 = vmatprep.subr.bf16.mxu0 0
    %10927 = vmatpush1.bf16.msra.mxu0 %v7835
    %10928 = vmatprep.subr.bf16.mxu0 0
    %10929 = vmatpush1.bf16.msra.mxu0 %v7836
    %10930 = vmatprep.subr.bf16.mxu0 0
    %10931 = vmatpush1.bf16.msra.mxu0 %v7837
    %10932 = vmatprep.subr.bf16.mxu0 0
    %10933 = vmatpush1.bf16.msra.mxu0 %v7838
    %10934 = vmatprep.subr.bf16.mxu0 0
    %10935 = vmatpush1.bf16.msra.mxu0 %v7839
    %10936 = vmatprep.mubr.bf16.mxu0 %v2666
    %10937 = vmatmul.mubr.bf16.gmra.mrb[0].mxu0 %v2664
    %v10938 = vpop.f32.mrb[0].mxu0
    %v10939 = vadd.f32 %v10899, %v10938
    %v10940 = vpop.f32.mrb[0].mxu0
    %v10941 = vpop.f32.mrb[0].mxu0
    %v10942 = vpop.f32.mrb[0].mxu0
    %10943 = vdwg.mxu0
    %10944 = vmatprep.subr.bf16.mxu0 0
    %10945 = vmatpush1.bf16.msra.mxu0 %v7840
    %10946 = vmatprep.subr.bf16.mxu0 0
    %10947 = vmatpush1.bf16.msra.mxu0 %v7841
    %10948 = vmatprep.subr.bf16.mxu0 0
    %10949 = vmatpush1.bf16.msra.mxu0 %v7842
    %10950 = vmatprep.subr.bf16.mxu0 0
    %10951 = vmatpush1.bf16.msra.mxu0 %v7843
    %10952 = vmatprep.subr.bf16.mxu0 0
    %10953 = vmatpush1.bf16.msra.mxu0 %v7844
    %10954 = vmatprep.subr.bf16.mxu0 0
    %10955 = vmatpush1.bf16.msra.mxu0 %v7845
    %10956 = vmatprep.subr.bf16.mxu0 0
    %10957 = vmatpush1.bf16.msra.mxu0 %v7846
    %10958 = vmatprep.subr.bf16.mxu0 0
    %10959 = vmatpush1.bf16.msra.mxu0 %v7847
    %10960 = vmatprep.subr.bf16.mxu0 0
    %10961 = vmatpush1.bf16.msra.mxu0 %v7848
    %10962 = vmatprep.subr.bf16.mxu0 0
    %10963 = vmatpush1.bf16.msra.mxu0 %v7849
    %10964 = vmatprep.subr.bf16.mxu0 0
    %10965 = vmatpush1.bf16.msra.mxu0 %v7850
    %10966 = vmatprep.subr.bf16.mxu0 0
    %10967 = vmatpush1.bf16.msra.mxu0 %v7851
    %10968 = vmatprep.subr.bf16.mxu0 0
    %10969 = vmatpush1.bf16.msra.mxu0 %v7852
    %10970 = vmatprep.subr.bf16.mxu0 0
    %10971 = vmatpush1.bf16.msra.mxu0 %v7853
    %10972 = vmatprep.subr.bf16.mxu0 0
    %10973 = vmatpush1.bf16.msra.mxu0 %v7854
    %10974 = vmatprep.subr.bf16.mxu0 0
    %10975 = vmatpush1.bf16.msra.mxu0 %v7855
    %10976 = vmatprep.mubr.bf16.mxu0 %v2704
    %10977 = vmatmul.mubr.bf16.gmra.mrb[0].mxu0 %v2690
    %v10978 = vpop.f32.mrb[0].mxu0
    %v10979 = vadd.f32 %v10939, %v10978
    %v10980 = vpop.f32.mrb[0].mxu0
    %v10981 = vpop.f32.mrb[0].mxu0
    %v10982 = vpop.f32.mrb[0].mxu0
    %10983 = vdwg.mxu0
    %10984 = vmatprep.subr.bf16.mxu0 0
    %10985 = vmatpush1.bf16.msra.mxu0 %v7856
    %10986 = vmatprep.subr.bf16.mxu0 0
    %10987 = vmatpush1.bf16.msra.mxu0 %v7857
    %10988 = vmatprep.subr.bf16.mxu0 0
    %10989 = vmatpush1.bf16.msra.mxu0 %v7858
    %10990 = vmatprep.subr.bf16.mxu0 0
    %10991 = vmatpush1.bf16.msra.mxu0 %v7859
    %10992 = vmatprep.subr.bf16.mxu0 0
    %10993 = vmatpush1.bf16.msra.mxu0 %v7860
    %10994 = vmatprep.subr.bf16.mxu0 0
    %10995 = vmatpush1.bf16.msra.mxu0 %v7861
    %10996 = vmatprep.subr.bf16.mxu0 0
    %10997 = vmatpush1.bf16.msra.mxu0 %v7862
    %10998 = vmatprep.subr.bf16.mxu0 0
    %10999 = vmatpush1.bf16.msra.mxu0 %v7863
    %11000 = vmatprep.subr.bf16.mxu0 0
    %11001 = vmatpush1.bf16.msra.mxu0 %v7864
    %11002 = vmatprep.subr.bf16.mxu0 0
    %11003 = vmatpush1.bf16.msra.mxu0 %v7865
    %11004 = vmatprep.subr.bf16.mxu0 0
    %11005 = vmatpush1.bf16.msra.mxu0 %v7866
    %11006 = vmatprep.subr.bf16.mxu0 0
    %11007 = vmatpush1.bf16.msra.mxu0 %v7867
    %11008 = vmatprep.subr.bf16.mxu0 0
    %11009 = vmatpush1.bf16.msra.mxu0 %v7868
    %11010 = vmatprep.subr.bf16.mxu0 0
    %11011 = vmatpush1.bf16.msra.mxu0 %v7869
    %11012 = vmatprep.subr.bf16.mxu0 0
    %11013 = vmatpush1.bf16.msra.mxu0 %v7870
    %11014 = vmatprep.subr.bf16.mxu0 0
    %11015 = vmatpush1.bf16.msra.mxu0 %v7871
    %11016 = vmatprep.mubr.bf16.mxu0 %v2714
    %11017 = vmatmul.mubr.bf16.gmra.mrb[0].mxu0 %v2712
    %v11018 = vpop.f32.mrb[0].mxu0
    %v11019 = vadd.f32 %v10979, %v11018
    %v11020 = vpop.f32.mrb[0].mxu0
    %v11021 = vpop.f32.mrb[0].mxu0
    %v11022 = vpop.f32.mrb[0].mxu0
    %11023 = vdwg.mxu0
    %11024 = vmatprep.subr.bf16.mxu0 0
    %11025 = vmatpush1.bf16.msra.mxu0 %v7872
    %11026 = vmatprep.subr.bf16.mxu0 0
    %11027 = vmatpush1.bf16.msra.mxu0 %v7873
    %11028 = vmatprep.subr.bf16.mxu0 0
    %11029 = vmatpush1.bf16.msra.mxu0 %v7874
    %11030 = vmatprep.subr.bf16.mxu0 0
    %11031 = vmatpush1.bf16.msra.mxu0 %v7875
    %11032 = vmatprep.subr.bf16.mxu0 0
    %11033 = vmatpush1.bf16.msra.mxu0 %v7876
    %11034 = vmatprep.subr.bf16.mxu0 0
    %11035 = vmatpush1.bf16.msra.mxu0 %v7877
    %11036 = vmatprep.subr.bf16.mxu0 0
    %11037 = vmatpush1.bf16.msra.mxu0 %v7878
    %11038 = vmatprep.subr.bf16.mxu0 0
    %11039 = vmatpush1.bf16.msra.mxu0 %v7879
    %11040 = vmatprep.subr.bf16.mxu0 0
    %11041 = vmatpush1.bf16.msra.mxu0 %v7880
    %11042 = vmatprep.subr.bf16.mxu0 0
    %11043 = vmatpush1.bf16.msra.mxu0 %v7881
    %11044 = vmatprep.subr.bf16.mxu0 0
    %11045 = vmatpush1.bf16.msra.mxu0 %v7882
    %11046 = vmatprep.subr.bf16.mxu0 0
    %11047 = vmatpush1.bf16.msra.mxu0 %v7883
    %11048 = vmatprep.subr.bf16.mxu0 0
    %11049 = vmatpush1.bf16.msra.mxu0 %v7884
    %11050 = vmatprep.subr.bf16.mxu0 0
    %11051 = vmatpush1.bf16.msra.mxu0 %v7885
    %11052 = vmatprep.subr.bf16.mxu0 0
    %11053 = vmatpush1.bf16.msra.mxu0 %v7886
    %11054 = vmatprep.subr.bf16.mxu0 0
    %11055 = vmatpush1.bf16.msra.mxu0 %v7887
    %11056 = vmatprep.mubr.bf16.mxu0 %v2711
    %11057 = vmatmul.mubr.bf16.gmra.mrb[0].mxu0 %v2697
    %v11058 = vpop.f32.mrb[0].mxu0
    %v11059 = vadd.f32 %v11019, %v11058
    %v11060 = vpop.f32.mrb[0].mxu0
    %v11061 = vpop.f32.mrb[0].mxu0
    %v11062 = vpop.f32.mrb[0].mxu0
    %11063 = vdwg.mxu0
    %11064 = vmatprep.subr.bf16.mxu0 0
    %11065 = vmatpush1.bf16.msra.mxu0 %v7888
    %11066 = vmatprep.subr.bf16.mxu0 0
    %11067 = vmatpush1.bf16.msra.mxu0 %v7889
    %11068 = vmatprep.subr.bf16.mxu0 0
    %11069 = vmatpush1.bf16.msra.mxu0 %v7890
    %11070 = vmatprep.subr.bf16.mxu0 0
    %11071 = vmatpush1.bf16.msra.mxu0 %v7891
    %11072 = vmatprep.subr.bf16.mxu0 0
    %11073 = vmatpush1.bf16.msra.mxu0 %v7892
    %11074 = vmatprep.subr.bf16.mxu0 0
    %11075 = vmatpush1.bf16.msra.mxu0 %v7893
    %11076 = vmatprep.subr.bf16.mxu0 0
    %11077 = vmatpush1.bf16.msra.mxu0 %v7894
    %11078 = vmatprep.subr.bf16.mxu0 0
    %11079 = vmatpush1.bf16.msra.mxu0 %v7895
    %11080 = vmatprep.subr.bf16.mxu0 0
    %11081 = vmatpush1.bf16.msra.mxu0 %v7896
    %11082 = vmatprep.subr.bf16.mxu0 0
    %11083 = vmatpush1.bf16.msra.mxu0 %v7897
    %11084 = vmatprep.subr.bf16.mxu0 0
    %11085 = vmatpush1.bf16.msra.mxu0 %v7898
    %11086 = vmatprep.subr.bf16.mxu0 0
    %11087 = vmatpush1.bf16.msra.mxu0 %v7899
    %11088 = vmatprep.subr.bf16.mxu0 0
    %11089 = vmatpush1.bf16.msra.mxu0 %v7900
    %11090 = vmatprep.subr.bf16.mxu0 0
    %11091 = vmatpush1.bf16.msra.mxu0 %v7901
    %11092 = vmatprep.subr.bf16.mxu0 0
    %11093 = vmatpush1.bf16.msra.mxu0 %v7902
    %11094 = vmatprep.subr.bf16.mxu0 0
    %11095 = vmatpush1.bf16.msra.mxu0 %v7903
    %11096 = vmatprep.mubr.bf16.mxu0 %v2715
    %11097 = vmatmul.mubr.bf16.gmra.mrb[0].mxu0 %v2713
    %v11098 = vpop.f32.mrb[0].mxu0
    %v11099 = vadd.f32 %v11059, %v11098
    %v11100 = vpop.f32.mrb[0].mxu0
    %v11101 = vpop.f32.mrb[0].mxu0
    %v11102 = vpop.f32.mrb[0].mxu0
    %11103 = vdwg.mxu0
    %11104 = vmatprep.subr.bf16.mxu0 0
    %11105 = vmatpush1.bf16.msra.mxu0 %v7904
    %11106 = vmatprep.subr.bf16.mxu0 0
    %11107 = vmatpush1.bf16.msra.mxu0 %v7905
    %11108 = vmatprep.subr.bf16.mxu0 0
    %11109 = vmatpush1.bf16.msra.mxu0 %v7906
    %11110 = vmatprep.subr.bf16.mxu0 0
    %11111 = vmatpush1.bf16.msra.mxu0 %v7907
    %11112 = vmatprep.subr.bf16.mxu0 0
    %11113 = vmatpush1.bf16.msra.mxu0 %v7908
    %11114 = vmatprep.subr.bf16.mxu0 0
    %11115 = vmatpush1.bf16.msra.mxu0 %v7909
    %11116 = vmatprep.subr.bf16.mxu0 0
    %11117 = vmatpush1.bf16.msra.mxu0 %v7910
    %11118 = vmatprep.subr.bf16.mxu0 0
    %11119 = vmatpush1.bf16.msra.mxu0 %v7911
    %11120 = vmatprep.subr.bf16.mxu0 0
    %11121 = vmatpush1.bf16.msra.mxu0 %v7912
    %11122 = vmatprep.subr.bf16.mxu0 0
    %11123 = vmatpush1.bf16.msra.mxu0 %v7913
    %11124 = vmatprep.subr.bf16.mxu0 0
    %11125 = vmatpush1.bf16.msra.mxu0 %v7914
    %11126 = vmatprep.subr.bf16.mxu0 0
    %11127 = vmatpush1.bf16.msra.mxu0 %v7915
    %11128 = vmatprep.subr.bf16.mxu0 0
    %11129 = vmatpush1.bf16.msra.mxu0 %v7916
    %11130 = vmatprep.subr.bf16.mxu0 0
    %11131 = vmatpush1.bf16.msra.mxu0 %v7917
    %11132 = vmatprep.subr.bf16.mxu0 0
    %11133 = vmatpush1.bf16.msra.mxu0 %v7918
    %11134 = vmatprep.subr.bf16.mxu0 0
    %11135 = vmatpush1.bf16.msra.mxu0 %v7919
    %11136 = vmatprep.mubr.bf16.mxu0 %v2753
    %11137 = vmatmul.mubr.bf16.gmra.mrb[0].mxu0 %v2739
    %v11138 = vpop.f32.mrb[0].mxu0
    %v11139 = vadd.f32 %v11099, %v11138
    %v11140 = vpop.f32.mrb[0].mxu0
    %v11141 = vpop.f32.mrb[0].mxu0
    %v11142 = vpop.f32.mrb[0].mxu0
    %11143 = vdwg.mxu0
    %11144 = vmatprep.subr.bf16.mxu0 0
    %11145 = vmatpush1.bf16.msra.mxu0 %v7920
    %11146 = vmatprep.subr.bf16.mxu0 0
    %11147 = vmatpush1.bf16.msra.mxu0 %v7921
    %11148 = vmatprep.subr.bf16.mxu0 0
    %11149 = vmatpush1.bf16.msra.mxu0 %v7922
    %11150 = vmatprep.subr.bf16.mxu0 0
    %11151 = vmatpush1.bf16.msra.mxu0 %v7923
    %11152 = vmatprep.subr.bf16.mxu0 0
    %11153 = vmatpush1.bf16.msra.mxu0 %v7924
    %11154 = vmatprep.subr.bf16.mxu0 0
    %11155 = vmatpush1.bf16.msra.mxu0 %v7925
    %11156 = vmatprep.subr.bf16.mxu0 0
    %11157 = vmatpush1.bf16.msra.mxu0 %v7926
    %11158 = vmatprep.subr.bf16.mxu0 0
    %11159 = vmatpush1.bf16.msra.mxu0 %v7927
    %11160 = vmatprep.subr.bf16.mxu0 0
    %11161 = vmatpush1.bf16.msra.mxu0 %v7928
    %11162 = vmatprep.subr.bf16.mxu0 0
    %11163 = vmatpush1.bf16.msra.mxu0 %v7929
    %11164 = vmatprep.subr.bf16.mxu0 0
    %11165 = vmatpush1.bf16.msra.mxu0 %v7930
    %11166 = vmatprep.subr.bf16.mxu0 0
    %11167 = vmatpush1.bf16.msra.mxu0 %v7931
    %11168 = vmatprep.subr.bf16.mxu0 0
    %11169 = vmatpush1.bf16.msra.mxu0 %v7932
    %11170 = vmatprep.subr.bf16.mxu0 0
    %11171 = vmatpush1.bf16.msra.mxu0 %v7933
    %11172 = vmatprep.subr.bf16.mxu0 0
    %11173 = vmatpush1.bf16.msra.mxu0 %v7934
    %11174 = vmatprep.subr.bf16.mxu0 0
    %11175 = vmatpush1.bf16.msra.mxu0 %v7935
    %11176 = vmatprep.mubr.bf16.mxu0 %v2763
    %11177 = vmatmul.mubr.bf16.gmra.mrb[0].mxu0 %v2761
    %v11178 = vpop.f32.mrb[0].mxu0
    %v11179 = vadd.f32 %v11139, %v11178
    %v11180 = vpop.f32.mrb[0].mxu0
    %v11181 = vpop.f32.mrb[0].mxu0
    %v11182 = vpop.f32.mrb[0].mxu0
    %11183 = vdwg.mxu0
    %11184 = vmatprep.subr.bf16.mxu0 0
    %11185 = vmatpush1.bf16.msra.mxu0 %v7936
    %11186 = vmatprep.subr.bf16.mxu0 0
    %11187 = vmatpush1.bf16.msra.mxu0 %v7937
    %11188 = vmatprep.subr.bf16.mxu0 0
    %11189 = vmatpush1.bf16.msra.mxu0 %v7938
    %11190 = vmatprep.subr.bf16.mxu0 0
    %11191 = vmatpush1.bf16.msra.mxu0 %v7939
    %11192 = vmatprep.subr.bf16.mxu0 0
    %11193 = vmatpush1.bf16.msra.mxu0 %v7940
    %11194 = vmatprep.subr.bf16.mxu0 0
    %11195 = vmatpush1.bf16.msra.mxu0 %v7941
    %11196 = vmatprep.subr.bf16.mxu0 0
    %11197 = vmatpush1.bf16.msra.mxu0 %v7942
    %11198 = vmatprep.subr.bf16.mxu0 0
    %11199 = vmatpush1.bf16.msra.mxu0 %v7943
    %11200 = vmatprep.subr.bf16.mxu0 0
    %11201 = vmatpush1.bf16.msra.mxu0 %v7944
    %11202 = vmatprep.subr.bf16.mxu0 0
    %11203 = vmatpush1.bf16.msra.mxu0 %v7945
    %11204 = vmatprep.subr.bf16.mxu0 0
    %11205 = vmatpush1.bf16.msra.mxu0 %v7946
    %11206 = vmatprep.subr.bf16.mxu0 0
    %11207 = vmatpush1.bf16.msra.mxu0 %v7947
    %11208 = vmatprep.subr.bf16.mxu0 0
    %11209 = vmatpush1.bf16.msra.mxu0 %v7948
    %11210 = vmatprep.subr.bf16.mxu0 0
    %11211 = vmatpush1.bf16.msra.mxu0 %v7949
    %11212 = vmatprep.subr.bf16.mxu0 0
    %11213 = vmatpush1.bf16.msra.mxu0 %v7950
    %11214 = vmatprep.subr.bf16.mxu0 0
    %11215 = vmatpush1.bf16.msra.mxu0 %v7951
    %11216 = vmatprep.mubr.bf16.mxu0 %v2760
    %11217 = vmatmul.mubr.bf16.gmra.mrb[0].mxu0 %v2746
    %v11218 = vpop.f32.mrb[0].mxu0
    %v11219 = vadd.f32 %v11179, %v11218
    %v11220 = vpop.f32.mrb[0].mxu0
    %v11221 = vpop.f32.mrb[0].mxu0
    %v11222 = vpop.f32.mrb[0].mxu0
    %11223 = vdwg.mxu0
    %11224 = vmatprep.subr.bf16.mxu0 0
    %11225 = vmatpush1.bf16.msra.mxu0 %v7952
    %11226 = vmatprep.subr.bf16.mxu0 0
    %11227 = vmatpush1.bf16.msra.mxu0 %v7953
    %11228 = vmatprep.subr.bf16.mxu0 0
    %11229 = vmatpush1.bf16.msra.mxu0 %v7954
    %11230 = vmatprep.subr.bf16.mxu0 0
    %11231 = vmatpush1.bf16.msra.mxu0 %v7955
    %11232 = vmatprep.subr.bf16.mxu0 0
    %11233 = vmatpush1.bf16.msra.mxu0 %v7956
    %11234 = vmatprep.subr.bf16.mxu0 0
    %11235 = vmatpush1.bf16.msra.mxu0 %v7957
    %11236 = vmatprep.subr.bf16.mxu0 0
    %11237 = vmatpush1.bf16.msra.mxu0 %v7958
    %11238 = vmatprep.subr.bf16.mxu0 0
    %11239 = vmatpush1.bf16.msra.mxu0 %v7959
    %11240 = vmatprep.subr.bf16.mxu0 0
    %11241 = vmatpush1.bf16.msra.mxu0 %v7960
    %11242 = vmatprep.subr.bf16.mxu0 0
    %11243 = vmatpush1.bf16.msra.mxu0 %v7961
    %11244 = vmatprep.subr.bf16.mxu0 0
    %11245 = vmatpush1.bf16.msra.mxu0 %v7962
    %11246 = vmatprep.subr.bf16.mxu0 0
    %11247 = vmatpush1.bf16.msra.mxu0 %v7963
    %11248 = vmatprep.subr.bf16.mxu0 0
    %11249 = vmatpush1.bf16.msra.mxu0 %v7964
    %11250 = vmatprep.subr.bf16.mxu0 0
    %11251 = vmatpush1.bf16.msra.mxu0 %v7965
    %11252 = vmatprep.subr.bf16.mxu0 0
    %11253 = vmatpush1.bf16.msra.mxu0 %v7966
    %11254 = vmatprep.subr.bf16.mxu0 0
    %11255 = vmatpush1.bf16.msra.mxu0 %v7967
    %11256 = vmatprep.mubr.bf16.mxu0 %v2764
    %11257 = vmatmul.mubr.bf16.gmra.mrb[0].mxu0 %v2762
    %v11258 = vpop.f32.mrb[0].mxu0
    %v11259 = vadd.f32 %v11219, %v11258
    %v11260 = vpop.f32.mrb[0].mxu0
    %v11261 = vpop.f32.mrb[0].mxu0
    %v11262 = vpop.f32.mrb[0].mxu0
    %11263 = vdwg.mxu0
    %11264 = vmatprep.subr.bf16.mxu0 0
    %11265 = vmatpush1.bf16.msra.mxu0 %v7968
    %11266 = vmatprep.subr.bf16.mxu0 0
    %11267 = vmatpush1.bf16.msra.mxu0 %v7969
    %11268 = vmatprep.subr.bf16.mxu0 0
    %11269 = vmatpush1.bf16.msra.mxu0 %v7970
    %11270 = vmatprep.subr.bf16.mxu0 0
    %11271 = vmatpush1.bf16.msra.mxu0 %v7971
    %11272 = vmatprep.subr.bf16.mxu0 0
    %11273 = vmatpush1.bf16.msra.mxu0 %v7972
    %11274 = vmatprep.subr.bf16.mxu0 0
    %11275 = vmatpush1.bf16.msra.mxu0 %v7973
    %11276 = vmatprep.subr.bf16.mxu0 0
    %11277 = vmatpush1.bf16.msra.mxu0 %v7974
    %11278 = vmatprep.subr.bf16.mxu0 0
    %11279 = vmatpush1.bf16.msra.mxu0 %v7975
    %11280 = vmatprep.subr.bf16.mxu0 0
    %11281 = vmatpush1.bf16.msra.mxu0 %v7976
    %11282 = vmatprep.subr.bf16.mxu0 0
    %11283 = vmatpush1.bf16.msra.mxu0 %v7977
    %11284 = vmatprep.subr.bf16.mxu0 0
    %11285 = vmatpush1.bf16.msra.mxu0 %v7978
    %11286 = vmatprep.subr.bf16.mxu0 0
    %11287 = vmatpush1.bf16.msra.mxu0 %v7979
    %11288 = vmatprep.subr.bf16.mxu0 0
    %11289 = vmatpush1.bf16.msra.mxu0 %v7980
    %11290 = vmatprep.subr.bf16.mxu0 0
    %11291 = vmatpush1.bf16.msra.mxu0 %v7981
    %11292 = vmatprep.subr.bf16.mxu0 0
    %11293 = vmatpush1.bf16.msra.mxu0 %v7982
    %11294 = vmatprep.subr.bf16.mxu0 0
    %11295 = vmatpush1.bf16.msra.mxu0 %v7983
    %11296 = vmatprep.mubr.bf16.mxu0 %v2802
    %11297 = vmatmul.mubr.bf16.gmra.mrb[0].mxu0 %v2788
    %v11298 = vpop.f32.mrb[0].mxu0
    %v11299 = vadd.f32 %v11259, %v11298
    %v11300 = vpop.f32.mrb[0].mxu0
    %v11301 = vpop.f32.mrb[0].mxu0
    %v11302 = vpop.f32.mrb[0].mxu0
    %11303 = vdwg.mxu0
    %11304 = vmatprep.subr.bf16.mxu0 0
    %11305 = vmatpush1.bf16.msra.mxu0 %v7984
    %11306 = vmatprep.subr.bf16.mxu0 0
    %11307 = vmatpush1.bf16.msra.mxu0 %v7985
    %11308 = vmatprep.subr.bf16.mxu0 0
    %11309 = vmatpush1.bf16.msra.mxu0 %v7986
    %11310 = vmatprep.subr.bf16.mxu0 0
    %11311 = vmatpush1.bf16.msra.mxu0 %v7987
    %11312 = vmatprep.subr.bf16.mxu0 0
    %11313 = vmatpush1.bf16.msra.mxu0 %v7988
    %11314 = vmatprep.subr.bf16.mxu0 0
    %11315 = vmatpush1.bf16.msra.mxu0 %v7989
    %11316 = vmatprep.subr.bf16.mxu0 0
    %11317 = vmatpush1.bf16.msra.mxu0 %v7990
    %11318 = vmatprep.subr.bf16.mxu0 0
    %11319 = vmatpush1.bf16.msra.mxu0 %v7991
    %11320 = vmatprep.subr.bf16.mxu0 0
    %11321 = vmatpush1.bf16.msra.mxu0 %v7992
    %11322 = vmatprep.subr.bf16.mxu0 0
    %11323 = vmatpush1.bf16.msra.mxu0 %v7993
    %11324 = vmatprep.subr.bf16.mxu0 0
    %11325 = vmatpush1.bf16.msra.mxu0 %v7994
    %11326 = vmatprep.subr.bf16.mxu0 0
    %11327 = vmatpush1.bf16.msra.mxu0 %v7995
    %11328 = vmatprep.subr.bf16.mxu0 0
    %11329 = vmatpush1.bf16.msra.mxu0 %v7996
    %11330 = vmatprep.subr.bf16.mxu0 0
    %11331 = vmatpush1.bf16.msra.mxu0 %v7997
    %11332 = vmatprep.subr.bf16.mxu0 0
    %11333 = vmatpush1.bf16.msra.mxu0 %v7998
    %11334 = vmatprep.subr.bf16.mxu0 0
    %11335 = vmatpush1.bf16.msra.mxu0 %v7999
    %11336 = vmatprep.mubr.bf16.mxu0 %v2812
    %11337 = vmatmul.mubr.bf16.gmra.mrb[0].mxu0 %v2810
    %v11338 = vpop.f32.mrb[0].mxu0
    %v11339 = vadd.f32 %v11299, %v11338
    %v11340 = vpop.f32.mrb[0].mxu0
    %v11341 = vpop.f32.mrb[0].mxu0
    %v11342 = vpop.f32.mrb[0].mxu0
    %11343 = vdwg.mxu0
    %11344 = vmatprep.subr.bf16.mxu0 0
    %11345 = vmatpush1.bf16.msra.mxu0 %v8000
    %11346 = vmatprep.subr.bf16.mxu0 0
    %11347 = vmatpush1.bf16.msra.mxu0 %v8001
    %11348 = vmatprep.subr.bf16.mxu0 0
    %11349 = vmatpush1.bf16.msra.mxu0 %v8002
    %11350 = vmatprep.subr.bf16.mxu0 0
    %11351 = vmatpush1.bf16.msra.mxu0 %v8003
    %11352 = vmatprep.subr.bf16.mxu0 0
    %11353 = vmatpush1.bf16.msra.mxu0 %v8004
    %11354 = vmatprep.subr.bf16.mxu0 0
    %11355 = vmatpush1.bf16.msra.mxu0 %v8005
    %11356 = vmatprep.subr.bf16.mxu0 0
    %11357 = vmatpush1.bf16.msra.mxu0 %v8006
    %11358 = vmatprep.subr.bf16.mxu0 0
    %11359 = vmatpush1.bf16.msra.mxu0 %v8007
    %11360 = vmatprep.subr.bf16.mxu0 0
    %11361 = vmatpush1.bf16.msra.mxu0 %v8008
    %11362 = vmatprep.subr.bf16.mxu0 0
    %11363 = vmatpush1.bf16.msra.mxu0 %v8009
    %11364 = vmatprep.subr.bf16.mxu0 0
    %11365 = vmatpush1.bf16.msra.mxu0 %v8010
    %11366 = vmatprep.subr.bf16.mxu0 0
    %11367 = vmatpush1.bf16.msra.mxu0 %v8011
    %11368 = vmatprep.subr.bf16.mxu0 0
    %11369 = vmatpush1.bf16.msra.mxu0 %v8012
    %11370 = vmatprep.subr.bf16.mxu0 0
    %11371 = vmatpush1.bf16.msra.mxu0 %v8013
    %11372 = vmatprep.subr.bf16.mxu0 0
    %11373 = vmatpush1.bf16.msra.mxu0 %v8014
    %11374 = vmatprep.subr.bf16.mxu0 0
    %11375 = vmatpush1.bf16.msra.mxu0 %v8015
    %11376 = vmatprep.mubr.bf16.mxu0 %v2809
    %11377 = vmatmul.mubr.bf16.gmra.mrb[0].mxu0 %v2795
    %v11378 = vpop.f32.mrb[0].mxu0
    %v11379 = vadd.f32 %v11339, %v11378
    %v11380 = vpop.f32.mrb[0].mxu0
    %v11381 = vpop.f32.mrb[0].mxu0
    %v11382 = vpop.f32.mrb[0].mxu0
    %11383 = vdwg.mxu0
    %11384 = vmatprep.subr.bf16.mxu0 0
    %11385 = vmatpush1.bf16.msra.mxu0 %v8016
    %11386 = vmatprep.subr.bf16.mxu0 0
    %11387 = vmatpush1.bf16.msra.mxu0 %v8017
    %11388 = vmatprep.subr.bf16.mxu0 0
    %11389 = vmatpush1.bf16.msra.mxu0 %v8018
    %11390 = vmatprep.subr.bf16.mxu0 0
    %11391 = vmatpush1.bf16.msra.mxu0 %v8019
    %11392 = vmatprep.subr.bf16.mxu0 0
    %11393 = vmatpush1.bf16.msra.mxu0 %v8020
    %11394 = vmatprep.subr.bf16.mxu0 0
    %11395 = vmatpush1.bf16.msra.mxu0 %v8021
    %11396 = vmatprep.subr.bf16.mxu0 0
    %11397 = vmatpush1.bf16.msra.mxu0 %v8022
    %11398 = vmatprep.subr.bf16.mxu0 0
    %11399 = vmatpush1.bf16.msra.mxu0 %v8023
    %11400 = vmatprep.subr.bf16.mxu0 0
    %11401 = vmatpush1.bf16.msra.mxu0 %v8024
    %11402 = vmatprep.subr.bf16.mxu0 0
    %11403 = vmatpush1.bf16.msra.mxu0 %v8025
    %11404 = vmatprep.subr.bf16.mxu0 0
    %11405 = vmatpush1.bf16.msra.mxu0 %v8026
    %11406 = vmatprep.subr.bf16.mxu0 0
    %11407 = vmatpush1.bf16.msra.mxu0 %v8027
    %11408 = vmatprep.subr.bf16.mxu0 0
    %11409 = vmatpush1.bf16.msra.mxu0 %v8028
    %11410 = vmatprep.subr.bf16.mxu0 0
    %11411 = vmatpush1.bf16.msra.mxu0 %v8029
    %11412 = vmatprep.subr.bf16.mxu0 0
    %11413 = vmatpush1.bf16.msra.mxu0 %v8030
    %11414 = vmatprep.subr.bf16.mxu0 0
    %11415 = vmatpush1.bf16.msra.mxu0 %v8031
    %11416 = vmatprep.mubr.bf16.mxu0 %v2813
    %11417 = vmatmul.mubr.bf16.gmra.mrb[0].mxu0 %v2811
    %v11418 = vpop.f32.mrb[0].mxu0
    %v11419 = vadd.f32 %v11379, %v11418
    %v11420 = vpop.f32.mrb[0].mxu0
    %v11421 = vpop.f32.mrb[0].mxu0
    %v11422 = vpop.f32.mrb[0].mxu0
    %11423 = vdwg.mxu0
    %11424 = vmatprep.subr.bf16.mxu0 0
    %11425 = vmatpush1.bf16.msra.mxu0 %v8032
    %11426 = vmatprep.subr.bf16.mxu0 0
    %11427 = vmatpush1.bf16.msra.mxu0 %v8033
    %11428 = vmatprep.subr.bf16.mxu0 0
    %11429 = vmatpush1.bf16.msra.mxu0 %v8034
    %11430 = vmatprep.subr.bf16.mxu0 0
    %11431 = vmatpush1.bf16.msra.mxu0 %v8035
    %11432 = vmatprep.subr.bf16.mxu0 0
    %11433 = vmatpush1.bf16.msra.mxu0 %v8036
    %11434 = vmatprep.subr.bf16.mxu0 0
    %11435 = vmatpush1.bf16.msra.mxu0 %v8037
    %11436 = vmatprep.subr.bf16.mxu0 0
    %11437 = vmatpush1.bf16.msra.mxu0 %v8038
    %11438 = vmatprep.subr.bf16.mxu0 0
    %11439 = vmatpush1.bf16.msra.mxu0 %v8039
    %11440 = vmatprep.subr.bf16.mxu0 0
    %11441 = vmatpush1.bf16.msra.mxu0 %v8040
    %11442 = vmatprep.subr.bf16.mxu0 0
    %11443 = vmatpush1.bf16.msra.mxu0 %v8041
    %11444 = vmatprep.subr.bf16.mxu0 0
    %11445 = vmatpush1.bf16.msra.mxu0 %v8042
    %11446 = vmatprep.subr.bf16.mxu0 0
    %11447 = vmatpush1.bf16.msra.mxu0 %v8043
    %11448 = vmatprep.subr.bf16.mxu0 0
    %11449 = vmatpush1.bf16.msra.mxu0 %v8044
    %11450 = vmatprep.subr.bf16.mxu0 0
    %11451 = vmatpush1.bf16.msra.mxu0 %v8045
    %11452 = vmatprep.subr.bf16.mxu0 0
    %11453 = vmatpush1.bf16.msra.mxu0 %v8046
    %11454 = vmatprep.subr.bf16.mxu0 0
    %11455 = vmatpush1.bf16.msra.mxu0 %v8047
    %11456 = vmatprep.mubr.bf16.mxu0 %v2851
    %11457 = vmatmul.mubr.bf16.gmra.mrb[0].mxu0 %v2837
    %v11458 = vpop.f32.mrb[0].mxu0
    %v11459 = vadd.f32 %v11419, %v11458
    %v11460 = vpop.f32.mrb[0].mxu0
    %v11461 = vpop.f32.mrb[0].mxu0
    %v11462 = vpop.f32.mrb[0].mxu0
    %11463 = vdwg.mxu0
    %11464 = vmatprep.subr.bf16.mxu0 0
    %11465 = vmatpush1.bf16.msra.mxu0 %v8048
    %11466 = vmatprep.subr.bf16.mxu0 0
    %11467 = vmatpush1.bf16.msra.mxu0 %v8049
    %11468 = vmatprep.subr.bf16.mxu0 0
    %11469 = vmatpush1.bf16.msra.mxu0 %v8050
    %11470 = vmatprep.subr.bf16.mxu0 0
    %11471 = vmatpush1.bf16.msra.mxu0 %v8051
    %11472 = vmatprep.subr.bf16.mxu0 0
    %11473 = vmatpush1.bf16.msra.mxu0 %v8052
    %11474 = vmatprep.subr.bf16.mxu0 0
    %11475 = vmatpush1.bf16.msra.mxu0 %v8053
    %11476 = vmatprep.subr.bf16.mxu0 0
    %11477 = vmatpush1.bf16.msra.mxu0 %v8054
    %11478 = vmatprep.subr.bf16.mxu0 0
    %11479 = vmatpush1.bf16.msra.mxu0 %v8055
    %11480 = vmatprep.subr.bf16.mxu0 0
    %11481 = vmatpush1.bf16.msra.mxu0 %v8056
    %11482 = vmatprep.subr.bf16.mxu0 0
    %11483 = vmatpush1.bf16.msra.mxu0 %v8057
    %11484 = vmatprep.subr.bf16.mxu0 0
    %11485 = vmatpush1.bf16.msra.mxu0 %v8058
    %11486 = vmatprep.subr.bf16.mxu0 0
    %11487 = vmatpush1.bf16.msra.mxu0 %v8059
    %11488 = vmatprep.subr.bf16.mxu0 0
    %11489 = vmatpush1.bf16.msra.mxu0 %v8060
    %11490 = vmatprep.subr.bf16.mxu0 0
    %11491 = vmatpush1.bf16.msra.mxu0 %v8061
    %11492 = vmatprep.subr.bf16.mxu0 0
    %11493 = vmatpush1.bf16.msra.mxu0 %v8062
    %11494 = vmatprep.subr.bf16.mxu0 0
    %11495 = vmatpush1.bf16.msra.mxu0 %v8063
    %11496 = vmatprep.mubr.bf16.mxu0 %v2861
    %11497 = vmatmul.mubr.bf16.gmra.mrb[0].mxu0 %v2859
    %v11498 = vpop.f32.mrb[0].mxu0
    %v11499 = vadd.f32 %v11459, %v11498
    %v11500 = vpop.f32.mrb[0].mxu0
    %v11501 = vpop.f32.mrb[0].mxu0
    %v11502 = vpop.f32.mrb[0].mxu0
    %11503 = vdwg.mxu0
    %11504 = vmatprep.subr.bf16.mxu0 0
    %11505 = vmatpush1.bf16.msra.mxu0 %v8064
    %11506 = vmatprep.subr.bf16.mxu0 0
    %11507 = vmatpush1.bf16.msra.mxu0 %v8065
    %11508 = vmatprep.subr.bf16.mxu0 0
    %11509 = vmatpush1.bf16.msra.mxu0 %v8066
    %11510 = vmatprep.subr.bf16.mxu0 0
    %11511 = vmatpush1.bf16.msra.mxu0 %v8067
    %11512 = vmatprep.subr.bf16.mxu0 0
    %11513 = vmatpush1.bf16.msra.mxu0 %v8068
    %11514 = vmatprep.subr.bf16.mxu0 0
    %11515 = vmatpush1.bf16.msra.mxu0 %v8069
    %11516 = vmatprep.subr.bf16.mxu0 0
    %11517 = vmatpush1.bf16.msra.mxu0 %v8070
    %11518 = vmatprep.subr.bf16.mxu0 0
    %11519 = vmatpush1.bf16.msra.mxu0 %v8071
    %11520 = vmatprep.subr.bf16.mxu0 0
    %11521 = vmatpush1.bf16.msra.mxu0 %v8072
    %11522 = vmatprep.subr.bf16.mxu0 0
    %11523 = vmatpush1.bf16.msra.mxu0 %v8073
    %11524 = vmatprep.subr.bf16.mxu0 0
    %11525 = vmatpush1.bf16.msra.mxu0 %v8074
    %11526 = vmatprep.subr.bf16.mxu0 0
    %11527 = vmatpush1.bf16.msra.mxu0 %v8075
    %11528 = vmatprep.subr.bf16.mxu0 0
    %11529 = vmatpush1.bf16.msra.mxu0 %v8076
    %11530 = vmatprep.subr.bf16.mxu0 0
    %11531 = vmatpush1.bf16.msra.mxu0 %v8077
    %11532 = vmatprep.subr.bf16.mxu0 0
    %11533 = vmatpush1.bf16.msra.mxu0 %v8078
    %11534 = vmatprep.subr.bf16.mxu0 0
    %11535 = vmatpush1.bf16.msra.mxu0 %v8079
    %11536 = vmatprep.mubr.bf16.mxu0 %v2858
    %11537 = vmatmul.mubr.bf16.gmra.mrb[0].mxu0 %v2844
    %v11538 = vpop.f32.mrb[0].mxu0
    %v11539 = vadd.f32 %v11499, %v11538
    %v11540 = vpop.f32.mrb[0].mxu0
    %v11541 = vpop.f32.mrb[0].mxu0
    %v11542 = vpop.f32.mrb[0].mxu0
    %11543 = vdwg.mxu0
    %11544 = vmatprep.subr.bf16.mxu0 0
    %11545 = vmatpush1.bf16.msra.mxu0 %v8080
    %11546 = vmatprep.subr.bf16.mxu0 0
    %11547 = vmatpush1.bf16.msra.mxu0 %v8081
    %11548 = vmatprep.subr.bf16.mxu0 0
    %11549 = vmatpush1.bf16.msra.mxu0 %v8082
    %11550 = vmatprep.subr.bf16.mxu0 0
    %11551 = vmatpush1.bf16.msra.mxu0 %v8083
    %11552 = vmatprep.subr.bf16.mxu0 0
    %11553 = vmatpush1.bf16.msra.mxu0 %v8084
    %11554 = vmatprep.subr.bf16.mxu0 0
    %11555 = vmatpush1.bf16.msra.mxu0 %v8085
    %11556 = vmatprep.subr.bf16.mxu0 0
    %11557 = vmatpush1.bf16.msra.mxu0 %v8086
    %11558 = vmatprep.subr.bf16.mxu0 0
    %11559 = vmatpush1.bf16.msra.mxu0 %v8087
    %11560 = vmatprep.subr.bf16.mxu0 0
    %11561 = vmatpush1.bf16.msra.mxu0 %v8088
    %11562 = vmatprep.subr.bf16.mxu0 0
    %11563 = vmatpush1.bf16.msra.mxu0 %v8089
    %11564 = vmatprep.subr.bf16.mxu0 0
    %11565 = vmatpush1.bf16.msra.mxu0 %v8090
    %11566 = vmatprep.subr.bf16.mxu0 0
    %11567 = vmatpush1.bf16.msra.mxu0 %v8091
    %11568 = vmatprep.subr.bf16.mxu0 0
    %11569 = vmatpush1.bf16.msra.mxu0 %v8092
    %11570 = vmatprep.subr.bf16.mxu0 0
    %11571 = vmatpush1.bf16.msra.mxu0 %v8093
    %11572 = vmatprep.subr.bf16.mxu0 0
    %11573 = vmatpush1.bf16.msra.mxu0 %v8094
    %11574 = vmatprep.subr.bf16.mxu0 0
    %11575 = vmatpush1.bf16.msra.mxu0 %v8095
    %11576 = vmatprep.mubr.bf16.mxu0 %v2862
    %11577 = vmatmul.mubr.bf16.gmra.mrb[0].mxu0 %v2860
    %v11578 = vpop.f32.mrb[0].mxu0
    %v11579 = vadd.f32 %v11539, %v11578
    %v11580 = vpop.f32.mrb[0].mxu0
    %v11581 = vpop.f32.mrb[0].mxu0
    %v11582 = vpop.f32.mrb[0].mxu0
    %11583 = vdwg.mxu0
    %11584 = vmatprep.subr.bf16.mxu0 0
    %11585 = vmatpush1.bf16.msra.mxu0 %v8096
    %11586 = vmatprep.subr.bf16.mxu0 0
    %11587 = vmatpush1.bf16.msra.mxu0 %v8097
    %11588 = vmatprep.subr.bf16.mxu0 0
    %11589 = vmatpush1.bf16.msra.mxu0 %v8098
    %11590 = vmatprep.subr.bf16.mxu0 0
    %11591 = vmatpush1.bf16.msra.mxu0 %v8099
    %11592 = vmatprep.subr.bf16.mxu0 0
    %11593 = vmatpush1.bf16.msra.mxu0 %v8100
    %11594 = vmatprep.subr.bf16.mxu0 0
    %11595 = vmatpush1.bf16.msra.mxu0 %v8101
    %11596 = vmatprep.subr.bf16.mxu0 0
    %11597 = vmatpush1.bf16.msra.mxu0 %v8102
    %11598 = vmatprep.subr.bf16.mxu0 0
    %11599 = vmatpush1.bf16.msra.mxu0 %v8103
    %11600 = vmatprep.subr.bf16.mxu0 0
    %11601 = vmatpush1.bf16.msra.mxu0 %v8104
    %11602 = vmatprep.subr.bf16.mxu0 0
    %11603 = vmatpush1.bf16.msra.mxu0 %v8105
    %11604 = vmatprep.subr.bf16.mxu0 0
    %11605 = vmatpush1.bf16.msra.mxu0 %v8106
    %11606 = vmatprep.subr.bf16.mxu0 0
    %11607 = vmatpush1.bf16.msra.mxu0 %v8107
    %11608 = vmatprep.subr.bf16.mxu0 0
    %11609 = vmatpush1.bf16.msra.mxu0 %v8108
    %11610 = vmatprep.subr.bf16.mxu0 0
    %11611 = vmatpush1.bf16.msra.mxu0 %v8109
    %11612 = vmatprep.subr.bf16.mxu0 0
    %11613 = vmatpush1.bf16.msra.mxu0 %v8110
    %11614 = vmatprep.subr.bf16.mxu0 0
    %11615 = vmatpush1.bf16.msra.mxu0 %v8111
    %11616 = vmatprep.mubr.bf16.mxu0 %v2900
    %11617 = vmatmul.mubr.bf16.gmra.mrb[0].mxu0 %v2886
    %v11618 = vpop.f32.mrb[0].mxu0
    %v11619 = vadd.f32 %v11579, %v11618
    %v11620 = vpop.f32.mrb[0].mxu0
    %v11621 = vpop.f32.mrb[0].mxu0
    %v11622 = vpop.f32.mrb[0].mxu0
    %11623 = vdwg.mxu0
    %11624 = vmatprep.subr.bf16.mxu0 0
    %11625 = vmatpush1.bf16.msra.mxu0 %v8112
    %11626 = vmatprep.subr.bf16.mxu0 0
    %11627 = vmatpush1.bf16.msra.mxu0 %v8113
    %11628 = vmatprep.subr.bf16.mxu0 0
    %11629 = vmatpush1.bf16.msra.mxu0 %v8114
    %11630 = vmatprep.subr.bf16.mxu0 0
    %11631 = vmatpush1.bf16.msra.mxu0 %v8115
    %11632 = vmatprep.subr.bf16.mxu0 0
    %11633 = vmatpush1.bf16.msra.mxu0 %v8116
    %11634 = vmatprep.subr.bf16.mxu0 0
    %11635 = vmatpush1.bf16.msra.mxu0 %v8117
    %11636 = vmatprep.subr.bf16.mxu0 0
    %11637 = vmatpush1.bf16.msra.mxu0 %v8118
    %11638 = vmatprep.subr.bf16.mxu0 0
    %11639 = vmatpush1.bf16.msra.mxu0 %v8119
    %11640 = vmatprep.subr.bf16.mxu0 0
    %11641 = vmatpush1.bf16.msra.mxu0 %v8120
    %11642 = vmatprep.subr.bf16.mxu0 0
    %11643 = vmatpush1.bf16.msra.mxu0 %v8121
    %11644 = vmatprep.subr.bf16.mxu0 0
    %11645 = vmatpush1.bf16.msra.mxu0 %v8122
    %11646 = vmatprep.subr.bf16.mxu0 0
    %11647 = vmatpush1.bf16.msra.mxu0 %v8123
    %11648 = vmatprep.subr.bf16.mxu0 0
    %11649 = vmatpush1.bf16.msra.mxu0 %v8124
    %11650 = vmatprep.subr.bf16.mxu0 0
    %11651 = vmatpush1.bf16.msra.mxu0 %v8125
    %11652 = vmatprep.subr.bf16.mxu0 0
    %11653 = vmatpush1.bf16.msra.mxu0 %v8126
    %11654 = vmatprep.subr.bf16.mxu0 0
    %11655 = vmatpush1.bf16.msra.mxu0 %v8127
    %11656 = vmatprep.mubr.bf16.mxu0 %v2910
    %11657 = vmatmul.mubr.bf16.gmra.mrb[0].mxu0 %v2908
    %v11658 = vpop.f32.mrb[0].mxu0
    %v11659 = vadd.f32 %v11619, %v11658
    %v11660 = vpop.f32.mrb[0].mxu0
    %v11661 = vpop.f32.mrb[0].mxu0
    %v11662 = vpop.f32.mrb[0].mxu0
    %11663 = vdwg.mxu0
    %11664 = vmatprep.subr.bf16.mxu0 0
    %11665 = vmatpush1.bf16.msra.mxu0 %v8128
    %11666 = vmatprep.subr.bf16.mxu0 0
    %11667 = vmatpush1.bf16.msra.mxu0 %v8129
    %11668 = vmatprep.subr.bf16.mxu0 0
    %11669 = vmatpush1.bf16.msra.mxu0 %v8130
    %11670 = vmatprep.subr.bf16.mxu0 0
    %11671 = vmatpush1.bf16.msra.mxu0 %v8131
    %11672 = vmatprep.subr.bf16.mxu0 0
    %11673 = vmatpush1.bf16.msra.mxu0 %v8132
    %11674 = vmatprep.subr.bf16.mxu0 0
    %11675 = vmatpush1.bf16.msra.mxu0 %v8133
    %11676 = vmatprep.subr.bf16.mxu0 0
    %11677 = vmatpush1.bf16.msra.mxu0 %v8134
    %11678 = vmatprep.subr.bf16.mxu0 0
    %11679 = vmatpush1.bf16.msra.mxu0 %v8135
    %11680 = vmatprep.subr.bf16.mxu0 0
    %11681 = vmatpush1.bf16.msra.mxu0 %v8136
    %11682 = vmatprep.subr.bf16.mxu0 0
    %11683 = vmatpush1.bf16.msra.mxu0 %v8137
    %11684 = vmatprep.subr.bf16.mxu0 0
    %11685 = vmatpush1.bf16.msra.mxu0 %v8138
    %11686 = vmatprep.subr.bf16.mxu0 0
    %11687 = vmatpush1.bf16.msra.mxu0 %v8139
    %11688 = vmatprep.subr.bf16.mxu0 0
    %11689 = vmatpush1.bf16.msra.mxu0 %v8140
    %11690 = vmatprep.subr.bf16.mxu0 0
    %11691 = vmatpush1.bf16.msra.mxu0 %v8141
    %11692 = vmatprep.subr.bf16.mxu0 0
    %11693 = vmatpush1.bf16.msra.mxu0 %v8142
    %11694 = vmatprep.subr.bf16.mxu0 0
    %11695 = vmatpush1.bf16.msra.mxu0 %v8143
    %11696 = vmatprep.mubr.bf16.mxu0 %v2907
    %11697 = vmatmul.mubr.bf16.gmra.mrb[0].mxu0 %v2893
    %v11698 = vpop.f32.mrb[0].mxu0
    %v11699 = vadd.f32 %v11659, %v11698
    %v11700 = vpop.f32.mrb[0].mxu0
    %v11701 = vpop.f32.mrb[0].mxu0
    %v11702 = vpop.f32.mrb[0].mxu0
    %11703 = vdwg.mxu0
    %11704 = vmatprep.subr.bf16.mxu0 0
    %11705 = vmatpush1.bf16.msra.mxu0 %v8144
    %11706 = vmatprep.subr.bf16.mxu0 0
    %11707 = vmatpush1.bf16.msra.mxu0 %v8145
    %11708 = vmatprep.subr.bf16.mxu0 0
    %11709 = vmatpush1.bf16.msra.mxu0 %v8146
    %11710 = vmatprep.subr.bf16.mxu0 0
    %11711 = vmatpush1.bf16.msra.mxu0 %v8147
    %11712 = vmatprep.subr.bf16.mxu0 0
    %11713 = vmatpush1.bf16.msra.mxu0 %v8148
    %11714 = vmatprep.subr.bf16.mxu0 0
    %11715 = vmatpush1.bf16.msra.mxu0 %v8149
    %11716 = vmatprep.subr.bf16.mxu0 0
    %11717 = vmatpush1.bf16.msra.mxu0 %v8150
    %11718 = vmatprep.subr.bf16.mxu0 0
    %11719 = vmatpush1.bf16.msra.mxu0 %v8151
    %11720 = vmatprep.subr.bf16.mxu0 0
    %11721 = vmatpush1.bf16.msra.mxu0 %v8152
    %11722 = vmatprep.subr.bf16.mxu0 0
    %11723 = vmatpush1.bf16.msra.mxu0 %v8153
    %11724 = vmatprep.subr.bf16.mxu0 0
    %11725 = vmatpush1.bf16.msra.mxu0 %v8154
    %11726 = vmatprep.subr.bf16.mxu0 0
    %11727 = vmatpush1.bf16.msra.mxu0 %v8155
    %11728 = vmatprep.subr.bf16.mxu0 0
    %11729 = vmatpush1.bf16.msra.mxu0 %v8156
    %11730 = vmatprep.subr.bf16.mxu0 0
    %11731 = vmatpush1.bf16.msra.mxu0 %v8157
    %11732 = vmatprep.subr.bf16.mxu0 0
    %11733 = vmatpush1.bf16.msra.mxu0 %v8158
    %11734 = vmatprep.subr.bf16.mxu0 0
    %11735 = vmatpush1.bf16.msra.mxu0 %v8159
    %11736 = vmatprep.mubr.bf16.mxu0 %v2911
    %11737 = vmatmul.mubr.bf16.gmra.mrb[0].mxu0 %v2909
    %v11738 = vpop.f32.mrb[0].mxu0
    %v11739 = vadd.f32 %v11699, %v11738
    %v11740 = vpop.f32.mrb[0].mxu0
    %v11741 = vpop.f32.mrb[0].mxu0
    %v11742 = vpop.f32.mrb[0].mxu0
    %11743 = vdwg.mxu0
    %11744 = vst [vmem:[%s3] sm:$0x3] %v11739
    // Predicated region
    $region22: #{cnn_forward.3} parent=1 // pred_check
      _
    $region23: #{cnn_forward.3} parent=1 // pred_check_branch
      %11746 = sbr.rel (0) target = $region25
    $region24: #{cnn_forward.3} parent=1 // pred_region
      _
    $region25: #{cnn_forward.3} parent=1 // pred_fallthru
      _
    // Predicated region
    $region26: #{cnn_forward.3} parent=1 // pred_check
      _
    $region27: #{cnn_forward.3} parent=1 // pred_check_branch
      %11748 = sbr.rel (0) target = $region29
    $region28: #{cnn_forward.3} parent=1 // pred_region
      _
    $region29: #{cnn_forward.3} parent=1 // pred_fallthru
      _
    %11749 = vsyncpa [#allocation3], 1
    %11750 = vsyncpa [#allocation5], 1

</llo_original>
